<compile_context>
chip_gen: v5e
topology: v5e:2x2
jax: 0.10.0
libtpu: 0.0.40
codegen_flags: <defaults>
</compile_context>

<pallas_src>
import jax
import jax.numpy as jnp
import numpy as np
from jax.experimental import pallas as pl
from jax.experimental.pallas import tpu as pltpu

LANE = 128    # channel axis is padded up to a multiple of the TPU lane width
CPAD1 = 8     # physical column pad of the 5x5 scratch  (>= 2, multiple of 8)
CPAD2 = 16    # physical column pad of the dilated 7x7 scratch (>= 9, multiple of 8)


def _round_up(x, m):
    return (x + m - 1) // m * m


def lka_kernel(x_ref, w1_ref, b1_ref, w2_ref, wp_ref, bpf_ref, o_ref,
               pad1_ref, pad2_ref):
    # x_ref: (1, H, W, CP)   w1_ref: (25, CP)  w2_ref: (49, CP)
    # wp_ref: (CP, CP) as (C_in, C_out)   b1_ref / bpf_ref: (1, CP)
    H = x_ref.shape[1]
    W = x_ref.shape[2]
    CP = x_ref.shape[3]
    Wb1 = pad1_ref.shape[1]
    Wb2 = pad2_ref.shape[1]

    # ---- zero only the halo borders (interiors are fully overwritten below).
    # Done every step so it stays correct when the batch axis is sharded
    # across TensorCores ("parallel" semantics).
    pad1_ref[0:2, :, :] = jnp.zeros((2, Wb1, CP), jnp.float32)
    pad1_ref[2 + H:4 + H, :, :] = jnp.zeros((2, Wb1, CP), jnp.float32)
    pad1_ref[2:2 + H, 0:CPAD1, :] = jnp.zeros((H, CPAD1, CP), jnp.float32)
    pad1_ref[2:2 + H, CPAD1 + W:Wb1, :] = jnp.zeros((H, Wb1 - CPAD1 - W, CP),
                                                    jnp.float32)

    pad2_ref[0:9, :, :] = jnp.zeros((9, Wb2, CP), jnp.float32)
    pad2_ref[9 + H:18 + H, :, :] = jnp.zeros((9, Wb2, CP), jnp.float32)
    pad2_ref[9:9 + H, 0:CPAD2, :] = jnp.zeros((H, CPAD2, CP), jnp.float32)
    pad2_ref[9:9 + H, CPAD2 + W:Wb2, :] = jnp.zeros((H, Wb2 - CPAD2 - W, CP),
                                                    jnp.float32)

    x = x_ref[0]                                           # (H, W, CP)

    # ---------- depthwise 5x5 conv, padding=2 ----------
    pad1_ref[2:2 + H, CPAD1:CPAD1 + W, :] = x              # aligned interior store
    w1 = w1_ref[...]                                       # (25, CP), loaded once
    y1 = jnp.zeros((H, W, CP), jnp.float32)
    for j in range(5):
        off = CPAD1 - 2 + j                                # column offset of tap j
        # cols[r, c] = pad1[r, c + off]; roll (XLU) keeps every slice 8-aligned.
        cols = pltpu.roll(pad1_ref[...], shift=Wb1 - off, axis=1)
        for i in range(5):
            tap = w1[5 * i + j:5 * i + j + 1]              # (1, CP) in-register
            y1 = y1 + cols[i:i + H, 0:W, :] * tap
    y1 = y1 + b1_ref[...]

    # ---------- depthwise 7x7 conv, dilation=3, padding=9 ----------
    pad2_ref[9:9 + H, CPAD2:CPAD2 + W, :] = y1             # aligned interior store
    w2 = w2_ref[...]                                       # (49, CP)
    y2 = jnp.zeros((H, W, CP), jnp.float32)
    for j in range(7):
        off = CPAD2 - 9 + 3 * j
        cols = pltpu.roll(pad2_ref[...], shift=Wb2 - off, axis=1)
        for i in range(7):
            tap = w2[7 * i + j:7 * i + j + 1]
            y2 = y2 + cols[3 * i:3 * i + H, 0:W, :] * tap
    # dw_conv2 bias is folded into the pointwise bias on the host.

    # ---------- pointwise 1x1 conv (MXU, lane-aligned CP) ----------
    y3 = jnp.dot(y2.reshape(H * W, CP), wp_ref[...],
                 preferred_element_type=jnp.float32)
    y3 = (y3 + bpf_ref[...]).reshape(H, W, CP)

    # ---------- gating: out = conv(x) * x ----------
    o_ref[0] = (y3 * x_ref[0]).astype(o_ref.dtype)


def lka_prepare_params(w1_oihw, b1, w2_oihw, b2, wp_oihw, bp):
    """PyTorch-layout params -> kernel layout (lane-padded, dw_conv2 bias folded)."""
    C = w1_oihw.shape[0]
    CP = _round_up(C, LANE)
    pc = CP - C
    w1 = jnp.transpose(w1_oihw[:, 0], (1, 2, 0)).reshape(25, C)    # (kh*kw, C)
    w2 = jnp.transpose(w2_oihw[:, 0], (1, 2, 0)).reshape(49, C)
    wp_t = jnp.transpose(wp_oihw[:, :, 0, 0], (1, 0))              # (C_in, C_out)
    bpf = b2 @ wp_t + bp                                           # fold dw_conv2 bias
    w1 = jnp.pad(w1, ((0, 0), (0, pc)))
    w2 = jnp.pad(w2, ((0, 0), (0, pc)))
    b1p = jnp.pad(b1, (0, pc)).reshape(1, CP)
    wp_p = jnp.pad(wp_t, ((0, pc), (0, pc)))
    bpf_p = jnp.pad(bpf, (0, pc)).reshape(1, CP)
    return (w1.astype(jnp.float32), b1p.astype(jnp.float32),
            w2.astype(jnp.float32), wp_p.astype(jnp.float32),
            bpf_p.astype(jnp.float32))


def lka_forward_nhwc(x_nhwc, params):
    """LKA forward on NHWC activations (preferred entry: no layout transposes)."""
    w1, b1, w2, wp, bpf = params
    B, H, W, C = x_nhwc.shape
    CP = w1.shape[1]
    x = x_nhwc.astype(jnp.float32)
    if CP != C:
        x = jnp.pad(x, ((0, 0), (0, 0), (0, 0), (0, CP - C)))

    Wb1 = _round_up(W + 2 * CPAD1, 8)
    Wb2 = _round_up(W + 2 * CPAD2, 8)

    out = pl.pallas_call(
        lka_kernel,
        out_shape=jax.ShapeDtypeStruct((B, H, W, CP), jnp.float32),
        grid_spec=pltpu.PrefetchScalarGridSpec(
            num_scalar_prefetch=0,
            grid=(B,),
            in_specs=[
                pl.BlockSpec((1, H, W, CP), lambda b: (b, 0, 0, 0)),   # x (padded C)
                pl.BlockSpec((25, CP), lambda b: (0, 0)),              # dw_conv1 weight
                pl.BlockSpec((1, CP), lambda b: (0, 0)),               # dw_conv1 bias
                pl.BlockSpec((49, CP), lambda b: (0, 0)),              # dw_conv2 weight
                pl.BlockSpec((CP, CP), lambda b: (0, 0)),              # pw_conv weight^T
                pl.BlockSpec((1, CP), lambda b: (0, 0)),               # folded pw bias
            ],
            out_specs=pl.BlockSpec((1, H, W, CP), lambda b: (b, 0, 0, 0)),
            scratch_shapes=[
                pltpu.VMEM((H + 4, Wb1, CP), jnp.float32),     # padded buf, 5x5
                pltpu.VMEM((H + 18, Wb2, CP), jnp.float32),    # padded buf, dilated 7x7
            ],
        ),
        compiler_params=pltpu.CompilerParams(
            dimension_semantics=("parallel",),         # batch images are independent
            vmem_limit_bytes=48 * 1024 * 1024,         # explicit budget (v5e default 16MiB)
        ),
    )(x, w1, b1, w2, wp, bpf)

    return out[..., :C]


def lka_forward(x_nchw, w1_oihw, b1, w2_oihw, b2, wp_oihw, bp):
    """PyTorch-compatible NCHW entry. In an NHWC model call lka_forward_nhwc directly."""
    params = lka_prepare_params(w1_oihw, b1, w2_oihw, b2, wp_oihw, bp)
    x = jnp.transpose(x_nchw, (0, 2, 3, 1))            # NHWC for the kernel
    out = lka_forward_nhwc(x, params)
    return jnp.transpose(out, (0, 3, 1, 2))            # back to NCHW


# ---------------- pure-JAX reference (PyTorch semantics, NCHW) ----------------
def ref_lka(x, w1_oihw, b1, w2_oihw, b2, wp_oihw, bp):
    C = x.shape[1]
    dn = ('NCHW', 'OIHW', 'NCHW')
    y = jax.lax.conv_general_dilated(
        x, w1_oihw, (1, 1), [(2, 2), (2, 2)],
        dimension_numbers=dn, feature_group_count=C,
        precision=jax.lax.Precision.HIGHEST)
    y = y + b1[None, :, None, None]
    y = jax.lax.conv_general_dilated(
        y, w2_oihw, (1, 1), [(9, 9), (9, 9)], rhs_dilation=(3, 3),
        dimension_numbers=dn, feature_group_count=C,
        precision=jax.lax.Precision.HIGHEST)
    y = y + b2[None, :, None, None]
    y = jax.lax.conv_general_dilated(
        y, wp_oihw, (1, 1), [(0, 0), (0, 0)],
        dimension_numbers=dn,
        precision=jax.lax.Precision.HIGHEST)
    y = y + bp[None, :, None, None]
    return y * x


if __name__ == "__main__":
    B, C, H, W = 2, 4, 16, 16
    key = jax.random.PRNGKey(0)
    kx, k1, k2, k3, k4, k5, k6 = jax.random.split(key, 7)

    x = jax.random.normal(kx, (B, C, H, W), jnp.float32)

    # PyTorch-shaped parameters (OIHW).
    w1_oihw = 0.1 * jax.random.normal(k1, (C, 1, 5, 5), jnp.float32)   # dw_conv1
    b1 = 0.1 * jax.random.normal(k2, (C,), jnp.float32)
    w2_oihw = 0.1 * jax.random.normal(k3, (C, 1, 7, 7), jnp.float32)   # dw_conv2
    b2 = 0.1 * jax.random.normal(k4, (C,), jnp.float32)
    wp_oihw = 0.1 * jax.random.normal(k5, (C, C, 1, 1), jnp.float32)   # pw_conv
    bp = 0.1 * jax.random.normal(k6, (C,), jnp.float32)

    out = jax.block_until_ready(
        lka_forward(x, w1_oihw, b1, w2_oihw, b2, wp_oihw, bp))
    ref = jax.block_until_ready(
        ref_lka(x, w1_oihw, b1, w2_oihw, b2, wp_oihw, bp))

    np.testing.assert_allclose(np.asarray(out), np.asarray(ref), rtol=1e-2, atol=1e-2)
    print("KERNEL_OK")
</pallas_src>

<mosaic_0001>
module attributes {stable_mosaic.version = 11 : i64} {
  func.func @lka_kernel(%arg0: i32, %arg1: memref<1x16x16x128xf32, #tpu.memory_space<vmem>>, %arg2: memref<25x128xf32, #tpu.memory_space<vmem>>, %arg3: memref<1x128xf32, #tpu.memory_space<vmem>>, %arg4: memref<49x128xf32, #tpu.memory_space<vmem>>, %arg5: memref<128x128xf32, #tpu.memory_space<vmem>>, %arg6: memref<1x128xf32, #tpu.memory_space<vmem>>, %arg7: memref<1x16x16x128xf32, #tpu.memory_space<vmem>>, %arg8: memref<20x32x128xf32, #tpu.memory_space<vmem>>, %arg9: memref<34x48x128xf32, #tpu.memory_space<vmem>>) attributes {dimension_semantics = [#tpu.dimension_semantics<parallel>], iteration_bounds = array<i64: 2>, scalar_prefetch = 0 : i64, scratch_operands = 2 : i64, tpu.core_type = #tpu.core_type<tc>, window_params = [{transform_indices = @transform_0, window_bounds = array<i64: 1, 16, 16, 128>}, {pipeline_mode = #tpu.pipeline_mode<synchronous>, transform_indices = @transform_1, window_bounds = array<i64: 25, 128>}, {pipeline_mode = #tpu.pipeline_mode<synchronous>, transform_indices = @transform_2, window_bounds = array<i64: 1, 128>}, {pipeline_mode = #tpu.pipeline_mode<synchronous>, transform_indices = @transform_3, window_bounds = array<i64: 49, 128>}, {pipeline_mode = #tpu.pipeline_mode<synchronous>, transform_indices = @transform_4, window_bounds = array<i64: 128, 128>}, {pipeline_mode = #tpu.pipeline_mode<synchronous>, transform_indices = @transform_5, window_bounds = array<i64: 1, 128>}, {transform_indices = @transform_6, window_bounds = array<i64: 1, 16, 16, 128>}]} {
    %cst = arith.constant 0.000000e+00 : f32
    %0 = vector.broadcast %cst : f32 to vector<2x32x128xf32>
    %c0 = arith.constant 0 : index
    %c0_0 = arith.constant 0 : index
    %c0_1 = arith.constant 0 : index
    %1 = vector.load %arg8[%c0, %c0_0, %c0_1] : memref<20x32x128xf32, #tpu.memory_space<vmem>>, vector<2x32x128xf32>
    tpu.vector_store %arg8[%c0, %c0_0, %c0_1], %0 {strides = array<i32>} : memref<20x32x128xf32, #tpu.memory_space<vmem>>, vector<2x32x128xf32>,
    %cst_2 = arith.constant 0.000000e+00 : f32
    %2 = vector.broadcast %cst_2 : f32 to vector<2x32x128xf32>
    %c18 = arith.constant 18 : index
    %c0_3 = arith.constant 0 : index
    %c0_4 = arith.constant 0 : index
    %3 = vector.load %arg8[%c18, %c0_3, %c0_4] : memref<20x32x128xf32, #tpu.memory_space<vmem>>, vector<2x32x128xf32>
    tpu.vector_store %arg8[%c18, %c0_3, %c0_4], %2 {strides = array<i32>} : memref<20x32x128xf32, #tpu.memory_space<vmem>>, vector<2x32x128xf32>,
    %cst_5 = arith.constant 0.000000e+00 : f32
    %4 = vector.broadcast %cst_5 : f32 to vector<16x8x128xf32>
    %c2 = arith.constant 2 : index
    %c0_6 = arith.constant 0 : index
    %c0_7 = arith.constant 0 : index
    %5 = vector.load %arg8[%c2, %c0_6, %c0_7] : memref<20x32x128xf32, #tpu.memory_space<vmem>>, vector<16x8x128xf32>
    tpu.vector_store %arg8[%c2, %c0_6, %c0_7], %4 {strides = array<i32>} : memref<20x32x128xf32, #tpu.memory_space<vmem>>, vector<16x8x128xf32>,
    %cst_8 = arith.constant 0.000000e+00 : f32
    %6 = vector.broadcast %cst_8 : f32 to vector<16x8x128xf32>
    %c2_9 = arith.constant 2 : index
    %c24 = arith.constant 24 : index
    %c0_10 = arith.constant 0 : index
    %7 = vector.load %arg8[%c2_9, %c24, %c0_10] : memref<20x32x128xf32, #tpu.memory_space<vmem>>, vector<16x8x128xf32>
    tpu.vector_store %arg8[%c2_9, %c24, %c0_10], %6 {strides = array<i32>} : memref<20x32x128xf32, #tpu.memory_space<vmem>>, vector<16x8x128xf32>,
    %cst_11 = arith.constant 0.000000e+00 : f32
    %8 = vector.broadcast %cst_11 : f32 to vector<9x48x128xf32>
    %c0_12 = arith.constant 0 : index
    %c0_13 = arith.constant 0 : index
    %c0_14 = arith.constant 0 : index
    %9 = vector.load %arg9[%c0_12, %c0_13, %c0_14] : memref<34x48x128xf32, #tpu.memory_space<vmem>>, vector<9x48x128xf32>
    tpu.vector_store %arg9[%c0_12, %c0_13, %c0_14], %8 {strides = array<i32>} : memref<34x48x128xf32, #tpu.memory_space<vmem>>, vector<9x48x128xf32>,
    %cst_15 = arith.constant 0.000000e+00 : f32
    %10 = vector.broadcast %cst_15 : f32 to vector<9x48x128xf32>
    %c25 = arith.constant 25 : index
    %c0_16 = arith.constant 0 : index
    %c0_17 = arith.constant 0 : index
    %11 = vector.load %arg9[%c25, %c0_16, %c0_17] : memref<34x48x128xf32, #tpu.memory_space<vmem>>, vector<9x48x128xf32>
    tpu.vector_store %arg9[%c25, %c0_16, %c0_17], %10 {strides = array<i32>} : memref<34x48x128xf32, #tpu.memory_space<vmem>>, vector<9x48x128xf32>,
    %cst_18 = arith.constant 0.000000e+00 : f32
    %12 = vector.broadcast %cst_18 : f32 to vector<16x16x128xf32>
    %c9 = arith.constant 9 : index
    %c0_19 = arith.constant 0 : index
    %c0_20 = arith.constant 0 : index
    %13 = vector.load %arg9[%c9, %c0_19, %c0_20] : memref<34x48x128xf32, #tpu.memory_space<vmem>>, vector<16x16x128xf32>
    tpu.vector_store %arg9[%c9, %c0_19, %c0_20], %12 {strides = array<i32>} : memref<34x48x128xf32, #tpu.memory_space<vmem>>, vector<16x16x128xf32>,
    %cst_21 = arith.constant 0.000000e+00 : f32
    %14 = vector.broadcast %cst_21 : f32 to vector<16x16x128xf32>
    %c9_22 = arith.constant 9 : index
    %c32 = arith.constant 32 : index
    %c0_23 = arith.constant 0 : index
    %15 = vector.load %arg9[%c9_22, %c32, %c0_23] : memref<34x48x128xf32, #tpu.memory_space<vmem>>, vector<16x16x128xf32>
    tpu.vector_store %arg9[%c9_22, %c32, %c0_23], %14 {strides = array<i32>} : memref<34x48x128xf32, #tpu.memory_space<vmem>>, vector<16x16x128xf32>,
    %c0_24 = arith.constant 0 : index
    %c0_25 = arith.constant 0 : index
    %c0_26 = arith.constant 0 : index
    %c0_27 = arith.constant 0 : index
    %16 = vector.load %arg1[%c0_24, %c0_25, %c0_26, %c0_27] : memref<1x16x16x128xf32, #tpu.memory_space<vmem>>, vector<1x16x16x128xf32>
    %17 = vector.shape_cast %16 : vector<1x16x16x128xf32> to vector<16x16x128xf32>
    %c2_28 = arith.constant 2 : index
    %c8 = arith.constant 8 : index
    %c0_29 = arith.constant 0 : index
    %18 = vector.load %arg8[%c2_28, %c8, %c0_29] : memref<20x32x128xf32, #tpu.memory_space<vmem>>, vector<16x16x128xf32>
    tpu.vector_store %arg8[%c2_28, %c8, %c0_29], %17 {strides = array<i32>} : memref<20x32x128xf32, #tpu.memory_space<vmem>>, vector<16x16x128xf32>,
    %c0_30 = arith.constant 0 : index
    %c0_31 = arith.constant 0 : index
    %19 = vector.load %arg2[%c0_30, %c0_31] : memref<25x128xf32, #tpu.memory_space<vmem>>, vector<25x128xf32>
    %cst_32 = arith.constant 0.000000e+00 : f32
    %20 = vector.broadcast %cst_32 : f32 to vector<16x16x128xf32>
    %c0_33 = arith.constant 0 : index
    %c0_34 = arith.constant 0 : index
    %c0_35 = arith.constant 0 : index
    %21 = vector.load %arg8[%c0_33, %c0_34, %c0_35] : memref<20x32x128xf32, #tpu.memory_space<vmem>>, vector<20x32x128xf32>
    %c26_i32 = arith.constant 26 : i32
    %22 = tpu.dynamic_rotate %21 by %c26_i32 dim 1 : vector<20x32x128xf32>, i32 -> vector<20x32x128xf32>
    %23 = vector.extract_strided_slice %19 {offsets = [0, 0], sizes = [1, 128], strides = [1, 1]} : vector<25x128xf32> to vector<1x128xf32>
    %24 = vector.extract_strided_slice %22 {offsets = [0, 0, 0], sizes = [16, 16, 128], strides = [1, 1, 1]} : vector<20x32x128xf32> to vector<16x16x128xf32>
    %25 = vector.shape_cast %23 : vector<1x128xf32> to vector<1x1x128xf32>
    %26 = vector.broadcast %25 : vector<1x1x128xf32> to vector<16x16x128xf32>
    %27 = arith.mulf %24, %26 : vector<16x16x128xf32>
    %28 = arith.addf %20, %27 : vector<16x16x128xf32>
    %29 = vector.extract_strided_slice %19 {offsets = [5, 0], sizes = [1, 128], strides = [1, 1]} : vector<25x128xf32> to vector<1x128xf32>
    %30 = vector.extract_strided_slice %22 {offsets = [1, 0, 0], sizes = [16, 16, 128], strides = [1, 1, 1]} : vector<20x32x128xf32> to vector<16x16x128xf32>
    %31 = vector.shape_cast %29 : vector<1x128xf32> to vector<1x1x128xf32>
    %32 = vector.broadcast %31 : vector<1x1x128xf32> to vector<16x16x128xf32>
    %33 = arith.mulf %30, %32 : vector<16x16x128xf32>
    %34 = arith.addf %28, %33 : vector<16x16x128xf32>
    %35 = vector.extract_strided_slice %19 {offsets = [10, 0], sizes = [1, 128], strides = [1, 1]} : vector<25x128xf32> to vector<1x128xf32>
    %36 = vector.extract_strided_slice %22 {offsets = [2, 0, 0], sizes = [16, 16, 128], strides = [1, 1, 1]} : vector<20x32x128xf32> to vector<16x16x128xf32>
    %37 = vector.shape_cast %35 : vector<1x128xf32> to vector<1x1x128xf32>
    %38 = vector.broadcast %37 : vector<1x1x128xf32> to vector<16x16x128xf32>
    %39 = arith.mulf %36, %38 : vector<16x16x128xf32>
    %40 = arith.addf %34, %39 : vector<16x16x128xf32>
    %41 = vector.extract_strided_slice %19 {offsets = [15, 0], sizes = [1, 128], strides = [1, 1]} : vector<25x128xf32> to vector<1x128xf32>
    %42 = vector.extract_strided_slice %22 {offsets = [3, 0, 0], sizes = [16, 16, 128], strides = [1, 1, 1]} : vector<20x32x128xf32> to vector<16x16x128xf32>
    %43 = vector.shape_cast %41 : vector<1x128xf32> to vector<1x1x128xf32>
    %44 = vector.broadcast %43 : vector<1x1x128xf32> to vector<16x16x128xf32>
    %45 = arith.mulf %42, %44 : vector<16x16x128xf32>
    %46 = arith.addf %40, %45 : vector<16x16x128xf32>
    %47 = vector.extract_strided_slice %19 {offsets = [20, 0], sizes = [1, 128], strides = [1, 1]} : vector<25x128xf32> to vector<1x128xf32>
    %48 = vector.extract_strided_slice %22 {offsets = [4, 0, 0], sizes = [16, 16, 128], strides = [1, 1, 1]} : vector<20x32x128xf32> to vector<16x16x128xf32>
    %49 = vector.shape_cast %47 : vector<1x128xf32> to vector<1x1x128xf32>
    %50 = vector.broadcast %49 : vector<1x1x128xf32> to vector<16x16x128xf32>
    %51 = arith.mulf %48, %50 : vector<16x16x128xf32>
    %52 = arith.addf %46, %51 : vector<16x16x128xf32>
    %c0_36 = arith.constant 0 : index
    %c0_37 = arith.constant 0 : index
    %c0_38 = arith.constant 0 : index
    %53 = vector.load %arg8[%c0_36, %c0_37, %c0_38] : memref<20x32x128xf32, #tpu.memory_space<vmem>>, vector<20x32x128xf32>
    %c25_i32 = arith.constant 25 : i32
    %54 = tpu.dynamic_rotate %53 by %c25_i32 dim 1 : vector<20x32x128xf32>, i32 -> vector<20x32x128xf32>
    %55 = vector.extract_strided_slice %19 {offsets = [1, 0], sizes = [1, 128], strides = [1, 1]} : vector<25x128xf32> to vector<1x128xf32>
    %56 = vector.extract_strided_slice %54 {offsets = [0, 0, 0], sizes = [16, 16, 128], strides = [1, 1, 1]} : vector<20x32x128xf32> to vector<16x16x128xf32>
    %57 = vector.shape_cast %55 : vector<1x128xf32> to vector<1x1x128xf32>
    %58 = vector.broadcast %57 : vector<1x1x128xf32> to vector<16x16x128xf32>
    %59 = arith.mulf %56, %58 : vector<16x16x128xf32>
    %60 = arith.addf %52, %59 : vector<16x16x128xf32>
    %61 = vector.extract_strided_slice %19 {offsets = [6, 0], sizes = [1, 128], strides = [1, 1]} : vector<25x128xf32> to vector<1x128xf32>
    %62 = vector.extract_strided_slice %54 {offsets = [1, 0, 0], sizes = [16, 16, 128], strides = [1, 1, 1]} : vector<20x32x128xf32> to vector<16x16x128xf32>
    %63 = vector.shape_cast %61 : vector<1x128xf32> to vector<1x1x128xf32>
    %64 = vector.broadcast %63 : vector<1x1x128xf32> to vector<16x16x128xf32>
    %65 = arith.mulf %62, %64 : vector<16x16x128xf32>
    %66 = arith.addf %60, %65 : vector<16x16x128xf32>
    %67 = vector.extract_strided_slice %19 {offsets = [11, 0], sizes = [1, 128], strides = [1, 1]} : vector<25x128xf32> to vector<1x128xf32>
    %68 = vector.extract_strided_slice %54 {offsets = [2, 0, 0], sizes = [16, 16, 128], strides = [1, 1, 1]} : vector<20x32x128xf32> to vector<16x16x128xf32>
    %69 = vector.shape_cast %67 : vector<1x128xf32> to vector<1x1x128xf32>
    %70 = vector.broadcast %69 : vector<1x1x128xf32> to vector<16x16x128xf32>
    %71 = arith.mulf %68, %70 : vector<16x16x128xf32>
    %72 = arith.addf %66, %71 : vector<16x16x128xf32>
    %73 = vector.extract_strided_slice %19 {offsets = [16, 0], sizes = [1, 128], strides = [1, 1]} : vector<25x128xf32> to vector<1x128xf32>
    %74 = vector.extract_strided_slice %54 {offsets = [3, 0, 0], sizes = [16, 16, 128], strides = [1, 1, 1]} : vector<20x32x128xf32> to vector<16x16x128xf32>
    %75 = vector.shape_cast %73 : vector<1x128xf32> to vector<1x1x128xf32>
    %76 = vector.broadcast %75 : vector<1x1x128xf32> to vector<16x16x128xf32>
    %77 = arith.mulf %74, %76 : vector<16x16x128xf32>
    %78 = arith.addf %72, %77 : vector<16x16x128xf32>
    %79 = vector.extract_strided_slice %19 {offsets = [21, 0], sizes = [1, 128], strides = [1, 1]} : vector<25x128xf32> to vector<1x128xf32>
    %80 = vector.extract_strided_slice %54 {offsets = [4, 0, 0], sizes = [16, 16, 128], strides = [1, 1, 1]} : vector<20x32x128xf32> to vector<16x16x128xf32>
    %81 = vector.shape_cast %79 : vector<1x128xf32> to vector<1x1x128xf32>
    %82 = vector.broadcast %81 : vector<1x1x128xf32> to vector<16x16x128xf32>
    %83 = arith.mulf %80, %82 : vector<16x16x128xf32>
    %84 = arith.addf %78, %83 : vector<16x16x128xf32>
    %c0_39 = arith.constant 0 : index
    %c0_40 = arith.constant 0 : index
    %c0_41 = arith.constant 0 : index
    %85 = vector.load %arg8[%c0_39, %c0_40, %c0_41] : memref<20x32x128xf32, #tpu.memory_space<vmem>>, vector<20x32x128xf32>
    %c24_i32 = arith.constant 24 : i32
    %86 = tpu.dynamic_rotate %85 by %c24_i32 dim 1 : vector<20x32x128xf32>, i32 -> vector<20x32x128xf32>
    %87 = vector.extract_strided_slice %19 {offsets = [2, 0], sizes = [1, 128], strides = [1, 1]} : vector<25x128xf32> to vector<1x128xf32>
    %88 = vector.extract_strided_slice %86 {offsets = [0, 0, 0], sizes = [16, 16, 128], strides = [1, 1, 1]} : vector<20x32x128xf32> to vector<16x16x128xf32>
    %89 = vector.shape_cast %87 : vector<1x128xf32> to vector<1x1x128xf32>
    %90 = vector.broadcast %89 : vector<1x1x128xf32> to vector<16x16x128xf32>
    %91 = arith.mulf %88, %90 : vector<16x16x128xf32>
    %92 = arith.addf %84, %91 : vector<16x16x128xf32>
    %93 = vector.extract_strided_slice %19 {offsets = [7, 0], sizes = [1, 128], strides = [1, 1]} : vector<25x128xf32> to vector<1x128xf32>
    %94 = vector.extract_strided_slice %86 {offsets = [1, 0, 0], sizes = [16, 16, 128], strides = [1, 1, 1]} : vector<20x32x128xf32> to vector<16x16x128xf32>
    %95 = vector.shape_cast %93 : vector<1x128xf32> to vector<1x1x128xf32>
    %96 = vector.broadcast %95 : vector<1x1x128xf32> to vector<16x16x128xf32>
    %97 = arith.mulf %94, %96 : vector<16x16x128xf32>
    %98 = arith.addf %92, %97 : vector<16x16x128xf32>
    %99 = vector.extract_strided_slice %19 {offsets = [12, 0], sizes = [1, 128], strides = [1, 1]} : vector<25x128xf32> to vector<1x128xf32>
    %100 = vector.extract_strided_slice %86 {offsets = [2, 0, 0], sizes = [16, 16, 128], strides = [1, 1, 1]} : vector<20x32x128xf32> to vector<16x16x128xf32>
    %101 = vector.shape_cast %99 : vector<1x128xf32> to vector<1x1x128xf32>
    %102 = vector.broadcast %101 : vector<1x1x128xf32> to vector<16x16x128xf32>
    %103 = arith.mulf %100, %102 : vector<16x16x128xf32>
    %104 = arith.addf %98, %103 : vector<16x16x128xf32>
    %105 = vector.extract_strided_slice %19 {offsets = [17, 0], sizes = [1, 128], strides = [1, 1]} : vector<25x128xf32> to vector<1x128xf32>
    %106 = vector.extract_strided_slice %86 {offsets = [3, 0, 0], sizes = [16, 16, 128], strides = [1, 1, 1]} : vector<20x32x128xf32> to vector<16x16x128xf32>
    %107 = vector.shape_cast %105 : vector<1x128xf32> to vector<1x1x128xf32>
    %108 = vector.broadcast %107 : vector<1x1x128xf32> to vector<16x16x128xf32>
    %109 = arith.mulf %106, %108 : vector<16x16x128xf32>
    %110 = arith.addf %104, %109 : vector<16x16x128xf32>
    %111 = vector.extract_strided_slice %19 {offsets = [22, 0], sizes = [1, 128], strides = [1, 1]} : vector<25x128xf32> to vector<1x128xf32>
    %112 = vector.extract_strided_slice %86 {offsets = [4, 0, 0], sizes = [16, 16, 128], strides = [1, 1, 1]} : vector<20x32x128xf32> to vector<16x16x128xf32>
    %113 = vector.shape_cast %111 : vector<1x128xf32> to vector<1x1x128xf32>
    %114 = vector.broadcast %113 : vector<1x1x128xf32> to vector<16x16x128xf32>
    %115 = arith.mulf %112, %114 : vector<16x16x128xf32>
    %116 = arith.addf %110, %115 : vector<16x16x128xf32>
    %c0_42 = arith.constant 0 : index
    %c0_43 = arith.constant 0 : index
    %c0_44 = arith.constant 0 : index
    %117 = vector.load %arg8[%c0_42, %c0_43, %c0_44] : memref<20x32x128xf32, #tpu.memory_space<vmem>>, vector<20x32x128xf32>
    %c23_i32 = arith.constant 23 : i32
    %118 = tpu.dynamic_rotate %117 by %c23_i32 dim 1 : vector<20x32x128xf32>, i32 -> vector<20x32x128xf32>
    %119 = vector.extract_strided_slice %19 {offsets = [3, 0], sizes = [1, 128], strides = [1, 1]} : vector<25x128xf32> to vector<1x128xf32>
    %120 = vector.extract_strided_slice %118 {offsets = [0, 0, 0], sizes = [16, 16, 128], strides = [1, 1, 1]} : vector<20x32x128xf32> to vector<16x16x128xf32>
    %121 = vector.shape_cast %119 : vector<1x128xf32> to vector<1x1x128xf32>
    %122 = vector.broadcast %121 : vector<1x1x128xf32> to vector<16x16x128xf32>
    %123 = arith.mulf %120, %122 : vector<16x16x128xf32>
    %124 = arith.addf %116, %123 : vector<16x16x128xf32>
    %125 = vector.extract_strided_slice %19 {offsets = [8, 0], sizes = [1, 128], strides = [1, 1]} : vector<25x128xf32> to vector<1x128xf32>
    %126 = vector.extract_strided_slice %118 {offsets = [1, 0, 0], sizes = [16, 16, 128], strides = [1, 1, 1]} : vector<20x32x128xf32> to vector<16x16x128xf32>
    %127 = vector.shape_cast %125 : vector<1x128xf32> to vector<1x1x128xf32>
    %128 = vector.broadcast %127 : vector<1x1x128xf32> to vector<16x16x128xf32>
    %129 = arith.mulf %126, %128 : vector<16x16x128xf32>
    %130 = arith.addf %124, %129 : vector<16x16x128xf32>
    %131 = vector.extract_strided_slice %19 {offsets = [13, 0], sizes = [1, 128], strides = [1, 1]} : vector<25x128xf32> to vector<1x128xf32>
    %132 = vector.extract_strided_slice %118 {offsets = [2, 0, 0], sizes = [16, 16, 128], strides = [1, 1, 1]} : vector<20x32x128xf32> to vector<16x16x128xf32>
    %133 = vector.shape_cast %131 : vector<1x128xf32> to vector<1x1x128xf32>
    %134 = vector.broadcast %133 : vector<1x1x128xf32> to vector<16x16x128xf32>
    %135 = arith.mulf %132, %134 : vector<16x16x128xf32>
    %136 = arith.addf %130, %135 : vector<16x16x128xf32>
    %137 = vector.extract_strided_slice %19 {offsets = [18, 0], sizes = [1, 128], strides = [1, 1]} : vector<25x128xf32> to vector<1x128xf32>
    %138 = vector.extract_strided_slice %118 {offsets = [3, 0, 0], sizes = [16, 16, 128], strides = [1, 1, 1]} : vector<20x32x128xf32> to vector<16x16x128xf32>
    %139 = vector.shape_cast %137 : vector<1x128xf32> to vector<1x1x128xf32>
    %140 = vector.broadcast %139 : vector<1x1x128xf32> to vector<16x16x128xf32>
    %141 = arith.mulf %138, %140 : vector<16x16x128xf32>
    %142 = arith.addf %136, %141 : vector<16x16x128xf32>
    %143 = vector.extract_strided_slice %19 {offsets = [23, 0], sizes = [1, 128], strides = [1, 1]} : vector<25x128xf32> to vector<1x128xf32>
    %144 = vector.extract_strided_slice %118 {offsets = [4, 0, 0], sizes = [16, 16, 128], strides = [1, 1, 1]} : vector<20x32x128xf32> to vector<16x16x128xf32>
    %145 = vector.shape_cast %143 : vector<1x128xf32> to vector<1x1x128xf32>
    %146 = vector.broadcast %145 : vector<1x1x128xf32> to vector<16x16x128xf32>
    %147 = arith.mulf %144, %146 : vector<16x16x128xf32>
    %148 = arith.addf %142, %147 : vector<16x16x128xf32>
    %c0_45 = arith.constant 0 : index
    %c0_46 = arith.constant 0 : index
    %c0_47 = arith.constant 0 : index
    %149 = vector.load %arg8[%c0_45, %c0_46, %c0_47] : memref<20x32x128xf32, #tpu.memory_space<vmem>>, vector<20x32x128xf32>
    %c22_i32 = arith.constant 22 : i32
    %150 = tpu.dynamic_rotate %149 by %c22_i32 dim 1 : vector<20x32x128xf32>, i32 -> vector<20x32x128xf32>
    %151 = vector.extract_strided_slice %19 {offsets = [4, 0], sizes = [1, 128], strides = [1, 1]} : vector<25x128xf32> to vector<1x128xf32>
    %152 = vector.extract_strided_slice %150 {offsets = [0, 0, 0], sizes = [16, 16, 128], strides = [1, 1, 1]} : vector<20x32x128xf32> to vector<16x16x128xf32>
    %153 = vector.shape_cast %151 : vector<1x128xf32> to vector<1x1x128xf32>
    %154 = vector.broadcast %153 : vector<1x1x128xf32> to vector<16x16x128xf32>
    %155 = arith.mulf %152, %154 : vector<16x16x128xf32>
    %156 = arith.addf %148, %155 : vector<16x16x128xf32>
    %157 = vector.extract_strided_slice %19 {offsets = [9, 0], sizes = [1, 128], strides = [1, 1]} : vector<25x128xf32> to vector<1x128xf32>
    %158 = vector.extract_strided_slice %150 {offsets = [1, 0, 0], sizes = [16, 16, 128], strides = [1, 1, 1]} : vector<20x32x128xf32> to vector<16x16x128xf32>
    %159 = vector.shape_cast %157 : vector<1x128xf32> to vector<1x1x128xf32>
    %160 = vector.broadcast %159 : vector<1x1x128xf32> to vector<16x16x128xf32>
    %161 = arith.mulf %158, %160 : vector<16x16x128xf32>
    %162 = arith.addf %156, %161 : vector<16x16x128xf32>
    %163 = vector.extract_strided_slice %19 {offsets = [14, 0], sizes = [1, 128], strides = [1, 1]} : vector<25x128xf32> to vector<1x128xf32>
    %164 = vector.extract_strided_slice %150 {offsets = [2, 0, 0], sizes = [16, 16, 128], strides = [1, 1, 1]} : vector<20x32x128xf32> to vector<16x16x128xf32>
    %165 = vector.shape_cast %163 : vector<1x128xf32> to vector<1x1x128xf32>
    %166 = vector.broadcast %165 : vector<1x1x128xf32> to vector<16x16x128xf32>
    %167 = arith.mulf %164, %166 : vector<16x16x128xf32>
    %168 = arith.addf %162, %167 : vector<16x16x128xf32>
    %169 = vector.extract_strided_slice %19 {offsets = [19, 0], sizes = [1, 128], strides = [1, 1]} : vector<25x128xf32> to vector<1x128xf32>
    %170 = vector.extract_strided_slice %150 {offsets = [3, 0, 0], sizes = [16, 16, 128], strides = [1, 1, 1]} : vector<20x32x128xf32> to vector<16x16x128xf32>
    %171 = vector.shape_cast %169 : vector<1x128xf32> to vector<1x1x128xf32>
    %172 = vector.broadcast %171 : vector<1x1x128xf32> to vector<16x16x128xf32>
    %173 = arith.mulf %170, %172 : vector<16x16x128xf32>
    %174 = arith.addf %168, %173 : vector<16x16x128xf32>
    %175 = vector.extract_strided_slice %19 {offsets = [24, 0], sizes = [1, 128], strides = [1, 1]} : vector<25x128xf32> to vector<1x128xf32>
    %176 = vector.extract_strided_slice %150 {offsets = [4, 0, 0], sizes = [16, 16, 128], strides = [1, 1, 1]} : vector<20x32x128xf32> to vector<16x16x128xf32>
    %177 = vector.shape_cast %175 : vector<1x128xf32> to vector<1x1x128xf32>
    %178 = vector.broadcast %177 : vector<1x1x128xf32> to vector<16x16x128xf32>
    %179 = arith.mulf %176, %178 : vector<16x16x128xf32>
    %180 = arith.addf %174, %179 : vector<16x16x128xf32>
    %c0_48 = arith.constant 0 : index
    %c0_49 = arith.constant 0 : index
    %181 = vector.load %arg3[%c0_48, %c0_49] : memref<1x128xf32, #tpu.memory_space<vmem>>, vector<1x128xf32>
    %182 = vector.shape_cast %181 : vector<1x128xf32> to vector<1x1x128xf32>
    %183 = vector.broadcast %182 : vector<1x1x128xf32> to vector<16x16x128xf32>
    %184 = arith.addf %180, %183 : vector<16x16x128xf32>
    %c9_50 = arith.constant 9 : index
    %c16 = arith.constant 16 : index
    %c0_51 = arith.constant 0 : index
    %185 = vector.load %arg9[%c9_50, %c16, %c0_51] : memref<34x48x128xf32, #tpu.memory_space<vmem>>, vector<16x16x128xf32>
    tpu.vector_store %arg9[%c9_50, %c16, %c0_51], %184 {strides = array<i32>} : memref<34x48x128xf32, #tpu.memory_space<vmem>>, vector<16x16x128xf32>,
    %c0_52 = arith.constant 0 : index
    %c0_53 = arith.constant 0 : index
    %186 = vector.load %arg4[%c0_52, %c0_53] : memref<49x128xf32, #tpu.memory_space<vmem>>, vector<49x128xf32>
    %cst_54 = arith.constant 0.000000e+00 : f32
    %187 = vector.broadcast %cst_54 : f32 to vector<16x16x128xf32>
    %c0_55 = arith.constant 0 : index
    %c0_56 = arith.constant 0 : index
    %c0_57 = arith.constant 0 : index
    %188 = vector.load %arg9[%c0_55, %c0_56, %c0_57] : memref<34x48x128xf32, #tpu.memory_space<vmem>>, vector<34x48x128xf32>
    %c41_i32 = arith.constant 41 : i32
    %189 = tpu.dynamic_rotate %188 by %c41_i32 dim 1 : vector<34x48x128xf32>, i32 -> vector<34x48x128xf32>
    %190 = vector.extract_strided_slice %186 {offsets = [0, 0], sizes = [1, 128], strides = [1, 1]} : vector<49x128xf32> to vector<1x128xf32>
    %191 = vector.extract_strided_slice %189 {offsets = [0, 0, 0], sizes = [16, 16, 128], strides = [1, 1, 1]} : vector<34x48x128xf32> to vector<16x16x128xf32>
    %192 = vector.shape_cast %190 : vector<1x128xf32> to vector<1x1x128xf32>
    %193 = vector.broadcast %192 : vector<1x1x128xf32> to vector<16x16x128xf32>
    %194 = arith.mulf %191, %193 : vector<16x16x128xf32>
    %195 = arith.addf %187, %194 : vector<16x16x128xf32>
    %196 = vector.extract_strided_slice %186 {offsets = [7, 0], sizes = [1, 128], strides = [1, 1]} : vector<49x128xf32> to vector<1x128xf32>
    %197 = vector.extract_strided_slice %189 {offsets = [3, 0, 0], sizes = [16, 16, 128], strides = [1, 1, 1]} : vector<34x48x128xf32> to vector<16x16x128xf32>
    %198 = vector.shape_cast %196 : vector<1x128xf32> to vector<1x1x128xf32>
    %199 = vector.broadcast %198 : vector<1x1x128xf32> to vector<16x16x128xf32>
    %200 = arith.mulf %197, %199 : vector<16x16x128xf32>
    %201 = arith.addf %195, %200 : vector<16x16x128xf32>
    %202 = vector.extract_strided_slice %186 {offsets = [14, 0], sizes = [1, 128], strides = [1, 1]} : vector<49x128xf32> to vector<1x128xf32>
    %203 = vector.extract_strided_slice %189 {offsets = [6, 0, 0], sizes = [16, 16, 128], strides = [1, 1, 1]} : vector<34x48x128xf32> to vector<16x16x128xf32>
    %204 = vector.shape_cast %202 : vector<1x128xf32> to vector<1x1x128xf32>
    %205 = vector.broadcast %204 : vector<1x1x128xf32> to vector<16x16x128xf32>
    %206 = arith.mulf %203, %205 : vector<16x16x128xf32>
    %207 = arith.addf %201, %206 : vector<16x16x128xf32>
    %208 = vector.extract_strided_slice %186 {offsets = [21, 0], sizes = [1, 128], strides = [1, 1]} : vector<49x128xf32> to vector<1x128xf32>
    %209 = vector.extract_strided_slice %189 {offsets = [9, 0, 0], sizes = [16, 16, 128], strides = [1, 1, 1]} : vector<34x48x128xf32> to vector<16x16x128xf32>
    %210 = vector.shape_cast %208 : vector<1x128xf32> to vector<1x1x128xf32>
    %211 = vector.broadcast %210 : vector<1x1x128xf32> to vector<16x16x128xf32>
    %212 = arith.mulf %209, %211 : vector<16x16x128xf32>
    %213 = arith.addf %207, %212 : vector<16x16x128xf32>
    %214 = vector.extract_strided_slice %186 {offsets = [28, 0], sizes = [1, 128], strides = [1, 1]} : vector<49x128xf32> to vector<1x128xf32>
    %215 = vector.extract_strided_slice %189 {offsets = [12, 0, 0], sizes = [16, 16, 128], strides = [1, 1, 1]} : vector<34x48x128xf32> to vector<16x16x128xf32>
    %216 = vector.shape_cast %214 : vector<1x128xf32> to vector<1x1x128xf32>
    %217 = vector.broadcast %216 : vector<1x1x128xf32> to vector<16x16x128xf32>
    %218 = arith.mulf %215, %217 : vector<16x16x128xf32>
    %219 = arith.addf %213, %218 : vector<16x16x128xf32>
    %220 = vector.extract_strided_slice %186 {offsets = [35, 0], sizes = [1, 128], strides = [1, 1]} : vector<49x128xf32> to vector<1x128xf32>
    %221 = vector.extract_strided_slice %189 {offsets = [15, 0, 0], sizes = [16, 16, 128], strides = [1, 1, 1]} : vector<34x48x128xf32> to vector<16x16x128xf32>
    %222 = vector.shape_cast %220 : vector<1x128xf32> to vector<1x1x128xf32>
    %223 = vector.broadcast %222 : vector<1x1x128xf32> to vector<16x16x128xf32>
    %224 = arith.mulf %221, %223 : vector<16x16x128xf32>
    %225 = arith.addf %219, %224 : vector<16x16x128xf32>
    %226 = vector.extract_strided_slice %186 {offsets = [42, 0], sizes = [1, 128], strides = [1, 1]} : vector<49x128xf32> to vector<1x128xf32>
    %227 = vector.extract_strided_slice %189 {offsets = [18, 0, 0], sizes = [16, 16, 128], strides = [1, 1, 1]} : vector<34x48x128xf32> to vector<16x16x128xf32>
    %228 = vector.shape_cast %226 : vector<1x128xf32> to vector<1x1x128xf32>
    %229 = vector.broadcast %228 : vector<1x1x128xf32> to vector<16x16x128xf32>
    %230 = arith.mulf %227, %229 : vector<16x16x128xf32>
    %231 = arith.addf %225, %230 : vector<16x16x128xf32>
    %c0_58 = arith.constant 0 : index
    %c0_59 = arith.constant 0 : index
    %c0_60 = arith.constant 0 : index
    %232 = vector.load %arg9[%c0_58, %c0_59, %c0_60] : memref<34x48x128xf32, #tpu.memory_space<vmem>>, vector<34x48x128xf32>
    %c38_i32 = arith.constant 38 : i32
    %233 = tpu.dynamic_rotate %232 by %c38_i32 dim 1 : vector<34x48x128xf32>, i32 -> vector<34x48x128xf32>
    %234 = vector.extract_strided_slice %186 {offsets = [1, 0], sizes = [1, 128], strides = [1, 1]} : vector<49x128xf32> to vector<1x128xf32>
    %235 = vector.extract_strided_slice %233 {offsets = [0, 0, 0], sizes = [16, 16, 128], strides = [1, 1, 1]} : vector<34x48x128xf32> to vector<16x16x128xf32>
    %236 = vector.shape_cast %234 : vector<1x128xf32> to vector<1x1x128xf32>
    %237 = vector.broadcast %236 : vector<1x1x128xf32> to vector<16x16x128xf32>
    %238 = arith.mulf %235, %237 : vector<16x16x128xf32>
    %239 = arith.addf %231, %238 : vector<16x16x128xf32>
    %240 = vector.extract_strided_slice %186 {offsets = [8, 0], sizes = [1, 128], strides = [1, 1]} : vector<49x128xf32> to vector<1x128xf32>
    %241 = vector.extract_strided_slice %233 {offsets = [3, 0, 0], sizes = [16, 16, 128], strides = [1, 1, 1]} : vector<34x48x128xf32> to vector<16x16x128xf32>
    %242 = vector.shape_cast %240 : vector<1x128xf32> to vector<1x1x128xf32>
    %243 = vector.broadcast %242 : vector<1x1x128xf32> to vector<16x16x128xf32>
    %244 = arith.mulf %241, %243 : vector<16x16x128xf32>
    %245 = arith.addf %239, %244 : vector<16x16x128xf32>
    %246 = vector.extract_strided_slice %186 {offsets = [15, 0], sizes = [1, 128], strides = [1, 1]} : vector<49x128xf32> to vector<1x128xf32>
    %247 = vector.extract_strided_slice %233 {offsets = [6, 0, 0], sizes = [16, 16, 128], strides = [1, 1, 1]} : vector<34x48x128xf32> to vector<16x16x128xf32>
    %248 = vector.shape_cast %246 : vector<1x128xf32> to vector<1x1x128xf32>
    %249 = vector.broadcast %248 : vector<1x1x128xf32> to vector<16x16x128xf32>
    %250 = arith.mulf %247, %249 : vector<16x16x128xf32>
    %251 = arith.addf %245, %250 : vector<16x16x128xf32>
    %252 = vector.extract_strided_slice %186 {offsets = [22, 0], sizes = [1, 128], strides = [1, 1]} : vector<49x128xf32> to vector<1x128xf32>
    %253 = vector.extract_strided_slice %233 {offsets = [9, 0, 0], sizes = [16, 16, 128], strides = [1, 1, 1]} : vector<34x48x128xf32> to vector<16x16x128xf32>
    %254 = vector.shape_cast %252 : vector<1x128xf32> to vector<1x1x128xf32>
    %255 = vector.broadcast %254 : vector<1x1x128xf32> to vector<16x16x128xf32>
    %256 = arith.mulf %253, %255 : vector<16x16x128xf32>
    %257 = arith.addf %251, %256 : vector<16x16x128xf32>
    %258 = vector.extract_strided_slice %186 {offsets = [29, 0], sizes = [1, 128], strides = [1, 1]} : vector<49x128xf32> to vector<1x128xf32>
    %259 = vector.extract_strided_slice %233 {offsets = [12, 0, 0], sizes = [16, 16, 128], strides = [1, 1, 1]} : vector<34x48x128xf32> to vector<16x16x128xf32>
    %260 = vector.shape_cast %258 : vector<1x128xf32> to vector<1x1x128xf32>
    %261 = vector.broadcast %260 : vector<1x1x128xf32> to vector<16x16x128xf32>
    %262 = arith.mulf %259, %261 : vector<16x16x128xf32>
    %263 = arith.addf %257, %262 : vector<16x16x128xf32>
    %264 = vector.extract_strided_slice %186 {offsets = [36, 0], sizes = [1, 128], strides = [1, 1]} : vector<49x128xf32> to vector<1x128xf32>
    %265 = vector.extract_strided_slice %233 {offsets = [15, 0, 0], sizes = [16, 16, 128], strides = [1, 1, 1]} : vector<34x48x128xf32> to vector<16x16x128xf32>
    %266 = vector.shape_cast %264 : vector<1x128xf32> to vector<1x1x128xf32>
    %267 = vector.broadcast %266 : vector<1x1x128xf32> to vector<16x16x128xf32>
    %268 = arith.mulf %265, %267 : vector<16x16x128xf32>
    %269 = arith.addf %263, %268 : vector<16x16x128xf32>
    %270 = vector.extract_strided_slice %186 {offsets = [43, 0], sizes = [1, 128], strides = [1, 1]} : vector<49x128xf32> to vector<1x128xf32>
    %271 = vector.extract_strided_slice %233 {offsets = [18, 0, 0], sizes = [16, 16, 128], strides = [1, 1, 1]} : vector<34x48x128xf32> to vector<16x16x128xf32>
    %272 = vector.shape_cast %270 : vector<1x128xf32> to vector<1x1x128xf32>
    %273 = vector.broadcast %272 : vector<1x1x128xf32> to vector<16x16x128xf32>
    %274 = arith.mulf %271, %273 : vector<16x16x128xf32>
    %275 = arith.addf %269, %274 : vector<16x16x128xf32>
    %c0_61 = arith.constant 0 : index
    %c0_62 = arith.constant 0 : index
    %c0_63 = arith.constant 0 : index
    %276 = vector.load %arg9[%c0_61, %c0_62, %c0_63] : memref<34x48x128xf32, #tpu.memory_space<vmem>>, vector<34x48x128xf32>
    %c35_i32 = arith.constant 35 : i32
    %277 = tpu.dynamic_rotate %276 by %c35_i32 dim 1 : vector<34x48x128xf32>, i32 -> vector<34x48x128xf32>
    %278 = vector.extract_strided_slice %186 {offsets = [2, 0], sizes = [1, 128], strides = [1, 1]} : vector<49x128xf32> to vector<1x128xf32>
    %279 = vector.extract_strided_slice %277 {offsets = [0, 0, 0], sizes = [16, 16, 128], strides = [1, 1, 1]} : vector<34x48x128xf32> to vector<16x16x128xf32>
    %280 = vector.shape_cast %278 : vector<1x128xf32> to vector<1x1x128xf32>
    %281 = vector.broadcast %280 : vector<1x1x128xf32> to vector<16x16x128xf32>
    %282 = arith.mulf %279, %281 : vector<16x16x128xf32>
    %283 = arith.addf %275, %282 : vector<16x16x128xf32>
    %284 = vector.extract_strided_slice %186 {offsets = [9, 0], sizes = [1, 128], strides = [1, 1]} : vector<49x128xf32> to vector<1x128xf32>
    %285 = vector.extract_strided_slice %277 {offsets = [3, 0, 0], sizes = [16, 16, 128], strides = [1, 1, 1]} : vector<34x48x128xf32> to vector<16x16x128xf32>
    %286 = vector.shape_cast %284 : vector<1x128xf32> to vector<1x1x128xf32>
    %287 = vector.broadcast %286 : vector<1x1x128xf32> to vector<16x16x128xf32>
    %288 = arith.mulf %285, %287 : vector<16x16x128xf32>
    %289 = arith.addf %283, %288 : vector<16x16x128xf32>
    %290 = vector.extract_strided_slice %186 {offsets = [16, 0], sizes = [1, 128], strides = [1, 1]} : vector<49x128xf32> to vector<1x128xf32>
    %291 = vector.extract_strided_slice %277 {offsets = [6, 0, 0], sizes = [16, 16, 128], strides = [1, 1, 1]} : vector<34x48x128xf32> to vector<16x16x128xf32>
    %292 = vector.shape_cast %290 : vector<1x128xf32> to vector<1x1x128xf32>
    %293 = vector.broadcast %292 : vector<1x1x128xf32> to vector<16x16x128xf32>
    %294 = arith.mulf %291, %293 : vector<16x16x128xf32>
    %295 = arith.addf %289, %294 : vector<16x16x128xf32>
    %296 = vector.extract_strided_slice %186 {offsets = [23, 0], sizes = [1, 128], strides = [1, 1]} : vector<49x128xf32> to vector<1x128xf32>
    %297 = vector.extract_strided_slice %277 {offsets = [9, 0, 0], sizes = [16, 16, 128], strides = [1, 1, 1]} : vector<34x48x128xf32> to vector<16x16x128xf32>
    %298 = vector.shape_cast %296 : vector<1x128xf32> to vector<1x1x128xf32>
    %299 = vector.broadcast %298 : vector<1x1x128xf32> to vector<16x16x128xf32>
    %300 = arith.mulf %297, %299 : vector<16x16x128xf32>
    %301 = arith.addf %295, %300 : vector<16x16x128xf32>
    %302 = vector.extract_strided_slice %186 {offsets = [30, 0], sizes = [1, 128], strides = [1, 1]} : vector<49x128xf32> to vector<1x128xf32>
    %303 = vector.extract_strided_slice %277 {offsets = [12, 0, 0], sizes = [16, 16, 128], strides = [1, 1, 1]} : vector<34x48x128xf32> to vector<16x16x128xf32>
    %304 = vector.shape_cast %302 : vector<1x128xf32> to vector<1x1x128xf32>
    %305 = vector.broadcast %304 : vector<1x1x128xf32> to vector<16x16x128xf32>
    %306 = arith.mulf %303, %305 : vector<16x16x128xf32>
    %307 = arith.addf %301, %306 : vector<16x16x128xf32>
    %308 = vector.extract_strided_slice %186 {offsets = [37, 0], sizes = [1, 128], strides = [1, 1]} : vector<49x128xf32> to vector<1x128xf32>
    %309 = vector.extract_strided_slice %277 {offsets = [15, 0, 0], sizes = [16, 16, 128], strides = [1, 1, 1]} : vector<34x48x128xf32> to vector<16x16x128xf32>
    %310 = vector.shape_cast %308 : vector<1x128xf32> to vector<1x1x128xf32>
    %311 = vector.broadcast %310 : vector<1x1x128xf32> to vector<16x16x128xf32>
    %312 = arith.mulf %309, %311 : vector<16x16x128xf32>
    %313 = arith.addf %307, %312 : vector<16x16x128xf32>
    %314 = vector.extract_strided_slice %186 {offsets = [44, 0], sizes = [1, 128], strides = [1, 1]} : vector<49x128xf32> to vector<1x128xf32>
    %315 = vector.extract_strided_slice %277 {offsets = [18, 0, 0], sizes = [16, 16, 128], strides = [1, 1, 1]} : vector<34x48x128xf32> to vector<16x16x128xf32>
    %316 = vector.shape_cast %314 : vector<1x128xf32> to vector<1x1x128xf32>
    %317 = vector.broadcast %316 : vector<1x1x128xf32> to vector<16x16x128xf32>
    %318 = arith.mulf %315, %317 : vector<16x16x128xf32>
    %319 = arith.addf %313, %318 : vector<16x16x128xf32>
    %c0_64 = arith.constant 0 : index
    %c0_65 = arith.constant 0 : index
    %c0_66 = arith.constant 0 : index
    %320 = vector.load %arg9[%c0_64, %c0_65, %c0_66] : memref<34x48x128xf32, #tpu.memory_space<vmem>>, vector<34x48x128xf32>
    %c32_i32 = arith.constant 32 : i32
    %321 = tpu.dynamic_rotate %320 by %c32_i32 dim 1 : vector<34x48x128xf32>, i32 -> vector<34x48x128xf32>
    %322 = vector.extract_strided_slice %186 {offsets = [3, 0], sizes = [1, 128], strides = [1, 1]} : vector<49x128xf32> to vector<1x128xf32>
    %323 = vector.extract_strided_slice %321 {offsets = [0, 0, 0], sizes = [16, 16, 128], strides = [1, 1, 1]} : vector<34x48x128xf32> to vector<16x16x128xf32>
    %324 = vector.shape_cast %322 : vector<1x128xf32> to vector<1x1x128xf32>
    %325 = vector.broadcast %324 : vector<1x1x128xf32> to vector<16x16x128xf32>
    %326 = arith.mulf %323, %325 : vector<16x16x128xf32>
    %327 = arith.addf %319, %326 : vector<16x16x128xf32>
    %328 = vector.extract_strided_slice %186 {offsets = [10, 0], sizes = [1, 128], strides = [1, 1]} : vector<49x128xf32> to vector<1x128xf32>
    %329 = vector.extract_strided_slice %321 {offsets = [3, 0, 0], sizes = [16, 16, 128], strides = [1, 1, 1]} : vector<34x48x128xf32> to vector<16x16x128xf32>
    %330 = vector.shape_cast %328 : vector<1x128xf32> to vector<1x1x128xf32>
    %331 = vector.broadcast %330 : vector<1x1x128xf32> to vector<16x16x128xf32>
    %332 = arith.mulf %329, %331 : vector<16x16x128xf32>
    %333 = arith.addf %327, %332 : vector<16x16x128xf32>
    %334 = vector.extract_strided_slice %186 {offsets = [17, 0], sizes = [1, 128], strides = [1, 1]} : vector<49x128xf32> to vector<1x128xf32>
    %335 = vector.extract_strided_slice %321 {offsets = [6, 0, 0], sizes = [16, 16, 128], strides = [1, 1, 1]} : vector<34x48x128xf32> to vector<16x16x128xf32>
    %336 = vector.shape_cast %334 : vector<1x128xf32> to vector<1x1x128xf32>
    %337 = vector.broadcast %336 : vector<1x1x128xf32> to vector<16x16x128xf32>
    %338 = arith.mulf %335, %337 : vector<16x16x128xf32>
    %339 = arith.addf %333, %338 : vector<16x16x128xf32>
    %340 = vector.extract_strided_slice %186 {offsets = [24, 0], sizes = [1, 128], strides = [1, 1]} : vector<49x128xf32> to vector<1x128xf32>
    %341 = vector.extract_strided_slice %321 {offsets = [9, 0, 0], sizes = [16, 16, 128], strides = [1, 1, 1]} : vector<34x48x128xf32> to vector<16x16x128xf32>
    %342 = vector.shape_cast %340 : vector<1x128xf32> to vector<1x1x128xf32>
    %343 = vector.broadcast %342 : vector<1x1x128xf32> to vector<16x16x128xf32>
    %344 = arith.mulf %341, %343 : vector<16x16x128xf32>
    %345 = arith.addf %339, %344 : vector<16x16x128xf32>
    %346 = vector.extract_strided_slice %186 {offsets = [31, 0], sizes = [1, 128], strides = [1, 1]} : vector<49x128xf32> to vector<1x128xf32>
    %347 = vector.extract_strided_slice %321 {offsets = [12, 0, 0], sizes = [16, 16, 128], strides = [1, 1, 1]} : vector<34x48x128xf32> to vector<16x16x128xf32>
    %348 = vector.shape_cast %346 : vector<1x128xf32> to vector<1x1x128xf32>
    %349 = vector.broadcast %348 : vector<1x1x128xf32> to vector<16x16x128xf32>
    %350 = arith.mulf %347, %349 : vector<16x16x128xf32>
    %351 = arith.addf %345, %350 : vector<16x16x128xf32>
    %352 = vector.extract_strided_slice %186 {offsets = [38, 0], sizes = [1, 128], strides = [1, 1]} : vector<49x128xf32> to vector<1x128xf32>
    %353 = vector.extract_strided_slice %321 {offsets = [15, 0, 0], sizes = [16, 16, 128], strides = [1, 1, 1]} : vector<34x48x128xf32> to vector<16x16x128xf32>
    %354 = vector.shape_cast %352 : vector<1x128xf32> to vector<1x1x128xf32>
    %355 = vector.broadcast %354 : vector<1x1x128xf32> to vector<16x16x128xf32>
    %356 = arith.mulf %353, %355 : vector<16x16x128xf32>
    %357 = arith.addf %351, %356 : vector<16x16x128xf32>
    %358 = vector.extract_strided_slice %186 {offsets = [45, 0], sizes = [1, 128], strides = [1, 1]} : vector<49x128xf32> to vector<1x128xf32>
    %359 = vector.extract_strided_slice %321 {offsets = [18, 0, 0], sizes = [16, 16, 128], strides = [1, 1, 1]} : vector<34x48x128xf32> to vector<16x16x128xf32>
    %360 = vector.shape_cast %358 : vector<1x128xf32> to vector<1x1x128xf32>
    %361 = vector.broadcast %360 : vector<1x1x128xf32> to vector<16x16x128xf32>
    %362 = arith.mulf %359, %361 : vector<16x16x128xf32>
    %363 = arith.addf %357, %362 : vector<16x16x128xf32>
    %c0_67 = arith.constant 0 : index
    %c0_68 = arith.constant 0 : index
    %c0_69 = arith.constant 0 : index
    %364 = vector.load %arg9[%c0_67, %c0_68, %c0_69] : memref<34x48x128xf32, #tpu.memory_space<vmem>>, vector<34x48x128xf32>
    %c29_i32 = arith.constant 29 : i32
    %365 = tpu.dynamic_rotate %364 by %c29_i32 dim 1 : vector<34x48x128xf32>, i32 -> vector<34x48x128xf32>
    %366 = vector.extract_strided_slice %186 {offsets = [4, 0], sizes = [1, 128], strides = [1, 1]} : vector<49x128xf32> to vector<1x128xf32>
    %367 = vector.extract_strided_slice %365 {offsets = [0, 0, 0], sizes = [16, 16, 128], strides = [1, 1, 1]} : vector<34x48x128xf32> to vector<16x16x128xf32>
    %368 = vector.shape_cast %366 : vector<1x128xf32> to vector<1x1x128xf32>
    %369 = vector.broadcast %368 : vector<1x1x128xf32> to vector<16x16x128xf32>
    %370 = arith.mulf %367, %369 : vector<16x16x128xf32>
    %371 = arith.addf %363, %370 : vector<16x16x128xf32>
    %372 = vector.extract_strided_slice %186 {offsets = [11, 0], sizes = [1, 128], strides = [1, 1]} : vector<49x128xf32> to vector<1x128xf32>
    %373 = vector.extract_strided_slice %365 {offsets = [3, 0, 0], sizes = [16, 16, 128], strides = [1, 1, 1]} : vector<34x48x128xf32> to vector<16x16x128xf32>
    %374 = vector.shape_cast %372 : vector<1x128xf32> to vector<1x1x128xf32>
    %375 = vector.broadcast %374 : vector<1x1x128xf32> to vector<16x16x128xf32>
    %376 = arith.mulf %373, %375 : vector<16x16x128xf32>
    %377 = arith.addf %371, %376 : vector<16x16x128xf32>
    %378 = vector.extract_strided_slice %186 {offsets = [18, 0], sizes = [1, 128], strides = [1, 1]} : vector<49x128xf32> to vector<1x128xf32>
    %379 = vector.extract_strided_slice %365 {offsets = [6, 0, 0], sizes = [16, 16, 128], strides = [1, 1, 1]} : vector<34x48x128xf32> to vector<16x16x128xf32>
    %380 = vector.shape_cast %378 : vector<1x128xf32> to vector<1x1x128xf32>
    %381 = vector.broadcast %380 : vector<1x1x128xf32> to vector<16x16x128xf32>
    %382 = arith.mulf %379, %381 : vector<16x16x128xf32>
    %383 = arith.addf %377, %382 : vector<16x16x128xf32>
    %384 = vector.extract_strided_slice %186 {offsets = [25, 0], sizes = [1, 128], strides = [1, 1]} : vector<49x128xf32> to vector<1x128xf32>
    %385 = vector.extract_strided_slice %365 {offsets = [9, 0, 0], sizes = [16, 16, 128], strides = [1, 1, 1]} : vector<34x48x128xf32> to vector<16x16x128xf32>
    %386 = vector.shape_cast %384 : vector<1x128xf32> to vector<1x1x128xf32>
    %387 = vector.broadcast %386 : vector<1x1x128xf32> to vector<16x16x128xf32>
    %388 = arith.mulf %385, %387 : vector<16x16x128xf32>
    %389 = arith.addf %383, %388 : vector<16x16x128xf32>
    %390 = vector.extract_strided_slice %186 {offsets = [32, 0], sizes = [1, 128], strides = [1, 1]} : vector<49x128xf32> to vector<1x128xf32>
    %391 = vector.extract_strided_slice %365 {offsets = [12, 0, 0], sizes = [16, 16, 128], strides = [1, 1, 1]} : vector<34x48x128xf32> to vector<16x16x128xf32>
    %392 = vector.shape_cast %390 : vector<1x128xf32> to vector<1x1x128xf32>
    %393 = vector.broadcast %392 : vector<1x1x128xf32> to vector<16x16x128xf32>
    %394 = arith.mulf %391, %393 : vector<16x16x128xf32>
    %395 = arith.addf %389, %394 : vector<16x16x128xf32>
    %396 = vector.extract_strided_slice %186 {offsets = [39, 0], sizes = [1, 128], strides = [1, 1]} : vector<49x128xf32> to vector<1x128xf32>
    %397 = vector.extract_strided_slice %365 {offsets = [15, 0, 0], sizes = [16, 16, 128], strides = [1, 1, 1]} : vector<34x48x128xf32> to vector<16x16x128xf32>
    %398 = vector.shape_cast %396 : vector<1x128xf32> to vector<1x1x128xf32>
    %399 = vector.broadcast %398 : vector<1x1x128xf32> to vector<16x16x128xf32>
    %400 = arith.mulf %397, %399 : vector<16x16x128xf32>
    %401 = arith.addf %395, %400 : vector<16x16x128xf32>
    %402 = vector.extract_strided_slice %186 {offsets = [46, 0], sizes = [1, 128], strides = [1, 1]} : vector<49x128xf32> to vector<1x128xf32>
    %403 = vector.extract_strided_slice %365 {offsets = [18, 0, 0], sizes = [16, 16, 128], strides = [1, 1, 1]} : vector<34x48x128xf32> to vector<16x16x128xf32>
    %404 = vector.shape_cast %402 : vector<1x128xf32> to vector<1x1x128xf32>
    %405 = vector.broadcast %404 : vector<1x1x128xf32> to vector<16x16x128xf32>
    %406 = arith.mulf %403, %405 : vector<16x16x128xf32>
    %407 = arith.addf %401, %406 : vector<16x16x128xf32>
    %c0_70 = arith.constant 0 : index
    %c0_71 = arith.constant 0 : index
    %c0_72 = arith.constant 0 : index
    %408 = vector.load %arg9[%c0_70, %c0_71, %c0_72] : memref<34x48x128xf32, #tpu.memory_space<vmem>>, vector<34x48x128xf32>
    %c26_i32_73 = arith.constant 26 : i32
    %409 = tpu.dynamic_rotate %408 by %c26_i32_73 dim 1 : vector<34x48x128xf32>, i32 -> vector<34x48x128xf32>
    %410 = vector.extract_strided_slice %186 {offsets = [5, 0], sizes = [1, 128], strides = [1, 1]} : vector<49x128xf32> to vector<1x128xf32>
    %411 = vector.extract_strided_slice %409 {offsets = [0, 0, 0], sizes = [16, 16, 128], strides = [1, 1, 1]} : vector<34x48x128xf32> to vector<16x16x128xf32>
    %412 = vector.shape_cast %410 : vector<1x128xf32> to vector<1x1x128xf32>
    %413 = vector.broadcast %412 : vector<1x1x128xf32> to vector<16x16x128xf32>
    %414 = arith.mulf %411, %413 : vector<16x16x128xf32>
    %415 = arith.addf %407, %414 : vector<16x16x128xf32>
    %416 = vector.extract_strided_slice %186 {offsets = [12, 0], sizes = [1, 128], strides = [1, 1]} : vector<49x128xf32> to vector<1x128xf32>
    %417 = vector.extract_strided_slice %409 {offsets = [3, 0, 0], sizes = [16, 16, 128], strides = [1, 1, 1]} : vector<34x48x128xf32> to vector<16x16x128xf32>
    %418 = vector.shape_cast %416 : vector<1x128xf32> to vector<1x1x128xf32>
    %419 = vector.broadcast %418 : vector<1x1x128xf32> to vector<16x16x128xf32>
    %420 = arith.mulf %417, %419 : vector<16x16x128xf32>
    %421 = arith.addf %415, %420 : vector<16x16x128xf32>
    %422 = vector.extract_strided_slice %186 {offsets = [19, 0], sizes = [1, 128], strides = [1, 1]} : vector<49x128xf32> to vector<1x128xf32>
    %423 = vector.extract_strided_slice %409 {offsets = [6, 0, 0], sizes = [16, 16, 128], strides = [1, 1, 1]} : vector<34x48x128xf32> to vector<16x16x128xf32>
    %424 = vector.shape_cast %422 : vector<1x128xf32> to vector<1x1x128xf32>
    %425 = vector.broadcast %424 : vector<1x1x128xf32> to vector<16x16x128xf32>
    %426 = arith.mulf %423, %425 : vector<16x16x128xf32>
    %427 = arith.addf %421, %426 : vector<16x16x128xf32>
    %428 = vector.extract_strided_slice %186 {offsets = [26, 0], sizes = [1, 128], strides = [1, 1]} : vector<49x128xf32> to vector<1x128xf32>
    %429 = vector.extract_strided_slice %409 {offsets = [9, 0, 0], sizes = [16, 16, 128], strides = [1, 1, 1]} : vector<34x48x128xf32> to vector<16x16x128xf32>
    %430 = vector.shape_cast %428 : vector<1x128xf32> to vector<1x1x128xf32>
    %431 = vector.broadcast %430 : vector<1x1x128xf32> to vector<16x16x128xf32>
    %432 = arith.mulf %429, %431 : vector<16x16x128xf32>
    %433 = arith.addf %427, %432 : vector<16x16x128xf32>
    %434 = vector.extract_strided_slice %186 {offsets = [33, 0], sizes = [1, 128], strides = [1, 1]} : vector<49x128xf32> to vector<1x128xf32>
    %435 = vector.extract_strided_slice %409 {offsets = [12, 0, 0], sizes = [16, 16, 128], strides = [1, 1, 1]} : vector<34x48x128xf32> to vector<16x16x128xf32>
    %436 = vector.shape_cast %434 : vector<1x128xf32> to vector<1x1x128xf32>
    %437 = vector.broadcast %436 : vector<1x1x128xf32> to vector<16x16x128xf32>
    %438 = arith.mulf %435, %437 : vector<16x16x128xf32>
    %439 = arith.addf %433, %438 : vector<16x16x128xf32>
    %440 = vector.extract_strided_slice %186 {offsets = [40, 0], sizes = [1, 128], strides = [1, 1]} : vector<49x128xf32> to vector<1x128xf32>
    %441 = vector.extract_strided_slice %409 {offsets = [15, 0, 0], sizes = [16, 16, 128], strides = [1, 1, 1]} : vector<34x48x128xf32> to vector<16x16x128xf32>
    %442 = vector.shape_cast %440 : vector<1x128xf32> to vector<1x1x128xf32>
    %443 = vector.broadcast %442 : vector<1x1x128xf32> to vector<16x16x128xf32>
    %444 = arith.mulf %441, %443 : vector<16x16x128xf32>
    %445 = arith.addf %439, %444 : vector<16x16x128xf32>
    %446 = vector.extract_strided_slice %186 {offsets = [47, 0], sizes = [1, 128], strides = [1, 1]} : vector<49x128xf32> to vector<1x128xf32>
    %447 = vector.extract_strided_slice %409 {offsets = [18, 0, 0], sizes = [16, 16, 128], strides = [1, 1, 1]} : vector<34x48x128xf32> to vector<16x16x128xf32>
    %448 = vector.shape_cast %446 : vector<1x128xf32> to vector<1x1x128xf32>
    %449 = vector.broadcast %448 : vector<1x1x128xf32> to vector<16x16x128xf32>
    %450 = arith.mulf %447, %449 : vector<16x16x128xf32>
    %451 = arith.addf %445, %450 : vector<16x16x128xf32>
    %c0_74 = arith.constant 0 : index
    %c0_75 = arith.constant 0 : index
    %c0_76 = arith.constant 0 : index
    %452 = vector.load %arg9[%c0_74, %c0_75, %c0_76] : memref<34x48x128xf32, #tpu.memory_space<vmem>>, vector<34x48x128xf32>
    %c23_i32_77 = arith.constant 23 : i32
    %453 = tpu.dynamic_rotate %452 by %c23_i32_77 dim 1 : vector<34x48x128xf32>, i32 -> vector<34x48x128xf32>
    %454 = vector.extract_strided_slice %186 {offsets = [6, 0], sizes = [1, 128], strides = [1, 1]} : vector<49x128xf32> to vector<1x128xf32>
    %455 = vector.extract_strided_slice %453 {offsets = [0, 0, 0], sizes = [16, 16, 128], strides = [1, 1, 1]} : vector<34x48x128xf32> to vector<16x16x128xf32>
    %456 = vector.shape_cast %454 : vector<1x128xf32> to vector<1x1x128xf32>
    %457 = vector.broadcast %456 : vector<1x1x128xf32> to vector<16x16x128xf32>
    %458 = arith.mulf %455, %457 : vector<16x16x128xf32>
    %459 = arith.addf %451, %458 : vector<16x16x128xf32>
    %460 = vector.extract_strided_slice %186 {offsets = [13, 0], sizes = [1, 128], strides = [1, 1]} : vector<49x128xf32> to vector<1x128xf32>
    %461 = vector.extract_strided_slice %453 {offsets = [3, 0, 0], sizes = [16, 16, 128], strides = [1, 1, 1]} : vector<34x48x128xf32> to vector<16x16x128xf32>
    %462 = vector.shape_cast %460 : vector<1x128xf32> to vector<1x1x128xf32>
    %463 = vector.broadcast %462 : vector<1x1x128xf32> to vector<16x16x128xf32>
    %464 = arith.mulf %461, %463 : vector<16x16x128xf32>
    %465 = arith.addf %459, %464 : vector<16x16x128xf32>
    %466 = vector.extract_strided_slice %186 {offsets = [20, 0], sizes = [1, 128], strides = [1, 1]} : vector<49x128xf32> to vector<1x128xf32>
    %467 = vector.extract_strided_slice %453 {offsets = [6, 0, 0], sizes = [16, 16, 128], strides = [1, 1, 1]} : vector<34x48x128xf32> to vector<16x16x128xf32>
    %468 = vector.shape_cast %466 : vector<1x128xf32> to vector<1x1x128xf32>
    %469 = vector.broadcast %468 : vector<1x1x128xf32> to vector<16x16x128xf32>
    %470 = arith.mulf %467, %469 : vector<16x16x128xf32>
    %471 = arith.addf %465, %470 : vector<16x16x128xf32>
    %472 = vector.extract_strided_slice %186 {offsets = [27, 0], sizes = [1, 128], strides = [1, 1]} : vector<49x128xf32> to vector<1x128xf32>
    %473 = vector.extract_strided_slice %453 {offsets = [9, 0, 0], sizes = [16, 16, 128], strides = [1, 1, 1]} : vector<34x48x128xf32> to vector<16x16x128xf32>
    %474 = vector.shape_cast %472 : vector<1x128xf32> to vector<1x1x128xf32>
    %475 = vector.broadcast %474 : vector<1x1x128xf32> to vector<16x16x128xf32>
    %476 = arith.mulf %473, %475 : vector<16x16x128xf32>
    %477 = arith.addf %471, %476 : vector<16x16x128xf32>
    %478 = vector.extract_strided_slice %186 {offsets = [34, 0], sizes = [1, 128], strides = [1, 1]} : vector<49x128xf32> to vector<1x128xf32>
    %479 = vector.extract_strided_slice %453 {offsets = [12, 0, 0], sizes = [16, 16, 128], strides = [1, 1, 1]} : vector<34x48x128xf32> to vector<16x16x128xf32>
    %480 = vector.shape_cast %478 : vector<1x128xf32> to vector<1x1x128xf32>
    %481 = vector.broadcast %480 : vector<1x1x128xf32> to vector<16x16x128xf32>
    %482 = arith.mulf %479, %481 : vector<16x16x128xf32>
    %483 = arith.addf %477, %482 : vector<16x16x128xf32>
    %484 = vector.extract_strided_slice %186 {offsets = [41, 0], sizes = [1, 128], strides = [1, 1]} : vector<49x128xf32> to vector<1x128xf32>
    %485 = vector.extract_strided_slice %453 {offsets = [15, 0, 0], sizes = [16, 16, 128], strides = [1, 1, 1]} : vector<34x48x128xf32> to vector<16x16x128xf32>
    %486 = vector.shape_cast %484 : vector<1x128xf32> to vector<1x1x128xf32>
    %487 = vector.broadcast %486 : vector<1x1x128xf32> to vector<16x16x128xf32>
    %488 = arith.mulf %485, %487 : vector<16x16x128xf32>
    %489 = arith.addf %483, %488 : vector<16x16x128xf32>
    %490 = vector.extract_strided_slice %186 {offsets = [48, 0], sizes = [1, 128], strides = [1, 1]} : vector<49x128xf32> to vector<1x128xf32>
    %491 = vector.extract_strided_slice %453 {offsets = [18, 0, 0], sizes = [16, 16, 128], strides = [1, 1, 1]} : vector<34x48x128xf32> to vector<16x16x128xf32>
    %492 = vector.shape_cast %490 : vector<1x128xf32> to vector<1x1x128xf32>
    %493 = vector.broadcast %492 : vector<1x1x128xf32> to vector<16x16x128xf32>
    %494 = arith.mulf %491, %493 : vector<16x16x128xf32>
    %495 = arith.addf %489, %494 : vector<16x16x128xf32>
    %496 = vector.shape_cast %495 : vector<16x16x128xf32> to vector<256x128xf32>
    %c0_78 = arith.constant 0 : index
    %c0_79 = arith.constant 0 : index
    %497 = vector.load %arg5[%c0_78, %c0_79] : memref<128x128xf32, #tpu.memory_space<vmem>>, vector<128x128xf32>
    %cst_80 = arith.constant dense<0.000000e+00> : vector<256x128xf32>
    %498 = tpu.matmul %496, %497, %cst_80 {dimension_numbers = #tpu.dot_dimension_numbers<[1], [0], [0], [1], [0, 0, 1, 1], [], []>} : vector<256x128xf32>, vector<128x128xf32>, vector<256x128xf32> -> vector<256x128xf32>
    %c0_81 = arith.constant 0 : index
    %c0_82 = arith.constant 0 : index
    %499 = vector.load %arg6[%c0_81, %c0_82] : memref<1x128xf32, #tpu.memory_space<vmem>>, vector<1x128xf32>
    %500 = vector.broadcast %499 : vector<1x128xf32> to vector<256x128xf32>
    %501 = arith.addf %498, %500 : vector<256x128xf32>
    %502 = vector.shape_cast %501 : vector<256x128xf32> to vector<16x16x128xf32>
    %c0_83 = arith.constant 0 : index
    %c0_84 = arith.constant 0 : index
    %c0_85 = arith.constant 0 : index
    %c0_86 = arith.constant 0 : index
    %503 = vector.load %arg1[%c0_83, %c0_84, %c0_85, %c0_86] : memref<1x16x16x128xf32, #tpu.memory_space<vmem>>, vector<1x16x16x128xf32>
    %504 = vector.shape_cast %503 : vector<1x16x16x128xf32> to vector<16x16x128xf32>
    %505 = arith.mulf %502, %504 : vector<16x16x128xf32>
    %c0_87 = arith.constant 0 : index
    %c0_88 = arith.constant 0 : index
    %c0_89 = arith.constant 0 : index
    %c0_90 = arith.constant 0 : index
    %506 = vector.load %arg7[%c0_87, %c0_88, %c0_89, %c0_90] : memref<1x16x16x128xf32, #tpu.memory_space<vmem>>, vector<1x16x16x128xf32>
    %507 = vector.shape_cast %506 : vector<1x16x16x128xf32> to vector<16x16x128xf32>
    %508 = vector.shape_cast %505 : vector<16x16x128xf32> to vector<1x16x16x128xf32>
    tpu.vector_store %arg7[%c0_87, %c0_88, %c0_89, %c0_90], %508 {strides = array<i32>} : memref<1x16x16x128xf32, #tpu.memory_space<vmem>>, vector<1x16x16x128xf32>,
    return
  }
  func.func @transform_0(%arg0: i32) -> (i32, i32, i32, i32) {
    %c0_i32 = arith.constant 0 : i32
    %c0_i32_0 = arith.constant 0 : i32
    %c0_i32_1 = arith.constant 0 : i32
    %c0_i32_2 = arith.constant 0 : i32
    return %arg0, %c0_i32, %c0_i32_0, %c0_i32_1 : i32, i32, i32, i32
  }
  func.func @transform_1(%arg0: i32) -> (i32, i32) {
    %c0_i32 = arith.constant 0 : i32
    %c0_i32_0 = arith.constant 0 : i32
    %c0_i32_1 = arith.constant 0 : i32
    return %c0_i32, %c0_i32_0 : i32, i32
  }
  func.func @transform_2(%arg0: i32) -> (i32, i32) {
    %c0_i32 = arith.constant 0 : i32
    %c0_i32_0 = arith.constant 0 : i32
    %c0_i32_1 = arith.constant 0 : i32
    return %c0_i32, %c0_i32_0 : i32, i32
  }
  func.func @transform_3(%arg0: i32) -> (i32, i32) {
    %c0_i32 = arith.constant 0 : i32
    %c0_i32_0 = arith.constant 0 : i32
    %c0_i32_1 = arith.constant 0 : i32
    return %c0_i32, %c0_i32_0 : i32, i32
  }
  func.func @transform_4(%arg0: i32) -> (i32, i32) {
    %c0_i32 = arith.constant 0 : i32
    %c0_i32_0 = arith.constant 0 : i32
    %c0_i32_1 = arith.constant 0 : i32
    return %c0_i32, %c0_i32_0 : i32, i32
  }
  func.func @transform_5(%arg0: i32) -> (i32, i32) {
    %c0_i32 = arith.constant 0 : i32
    %c0_i32_0 = arith.constant 0 : i32
    %c0_i32_1 = arith.constant 0 : i32
    return %c0_i32, %c0_i32_0 : i32, i32
  }
  func.func @transform_6(%arg0: i32) -> (i32, i32, i32, i32) {
    %c0_i32 = arith.constant 0 : i32
    %c0_i32_0 = arith.constant 0 : i32
    %c0_i32_1 = arith.constant 0 : i32
    %c0_i32_2 = arith.constant 0 : i32
    return %arg0, %c0_i32, %c0_i32_0, %c0_i32_1 : i32, i32, i32, i32
  }
}

</mosaic_0001>

<llo_original>
// kernel: tpu_custom_call.1
$region0: #{tpu_custom_call.1}
  #allocation0 [shape = 'u32[]', space=smem, size = 0x4, offset = 0x4, fixed_abs, tag = 'smem constant byte address 0x4 - core index']
  #allocation1 [shape = 'u32[72,128]{1,0:T(1,128)}', space=vmem, size = 0x9000, scoped, tag = 'internal scratch']
  #allocation2 [shape = 'f32[20,32,128]{2,1,0:T(8,128)}', space=vmem, size = 0x50000, scoped, tag = 'scratch operand']
  #allocation3 [shape = 'f32[34,48,128]{2,1,0:T(8,128)}', space=vmem, size = 0xcc000, scoped, tag = 'scratch operand']
  %s0 = inlined_call_operand.hbm [shape: f32[2,16,16,128], index: 0, kind: input, shape index: {}]
  %s1 = inlined_call_operand.hbm [shape: f32[25,128], index: 1, kind: input, shape index: {}]
  %s2 = inlined_call_operand.vmem [shape: f32[1,128], index: 2, kind: input, shape index: {}]
  %s3 = inlined_call_operand.hbm [shape: f32[49,128], index: 3, kind: input, shape index: {}]
  %s4 = inlined_call_operand.hbm [shape: f32[128,128], index: 4, kind: input, shape index: {}]
  %s5 = inlined_call_operand.vmem [shape: f32[1,128], index: 5, kind: input, shape index: {}]
  %s6 = inlined_call_operand.hbm [shape: f32[2,16,16,128], index: 6, kind: output, shape index: {}]
  %s7 = sld [smem:[#allocation0]]
  $region73: #{tpu_custom_call.1} parent=0
    _
  %s9 = ssub.s32 1, %s7
  %s10 = scalar_select 0, %s9, %s7
  $region1: #{tpu_custom_call.1} parent=0
    #allocation4 [shape = 'u8[262144]{0}', space=vmem, size = 0x40000, scoped, tag = 'input window, operand 0']
    #allocation5 [shape = 's32[2]{0}', space=sflag, size = 0x8, scoped, tag = 'scoped memory for tpu_custom_call.1']
    #allocation6 [shape = 's32[2]{0}', space=sflag, size = 0x8, scoped, tag = 'scoped memory for tpu_custom_call.1']
    #allocation7 [shape = 'u8[16384]{0}', space=vmem, size = 0x4000, scoped, tag = 'input window, operand 1, single buffered']
    #allocation8 [shape = 's32[1]{0}', space=sflag, size = 0x4, scoped, tag = 'scoped memory for tpu_custom_call.1']
    #allocation9 [shape = 'u8[28672]{0}', space=vmem, size = 0x7000, scoped, tag = 'input window, operand 3, single buffered']
    #allocation10 [shape = 'u8[65536]{0}', space=vmem, size = 0x10000, scoped, tag = 'input window, operand 4, single buffered']
    #allocation11 [shape = 's32[1]{0}', space=sflag, size = 0x4, scoped, tag = 'scoped memory for tpu_custom_call.1']
    #allocation12 [shape = 'u8[262144]{0}', space=vmem, size = 0x40000, scoped, tag = 'output window, operand 0']
    %11 = vsyncpa [#allocation5], 0
    %s12 = scalar_lea.sflag [#allocation5], 1
    %13 = vsyncpa %s12, 0
    %14 = vsyncpa [#allocation8], 0
    %15 = vsyncpa [#allocation11], 0
    %16 = vsyncpa [#allocation6], 0
    %s17 = scalar_lea.sflag [#allocation6], 1
    %18 = vsyncpa %s17, 0
    loop: start=0, step=1, limit=4
    $region2: #{tpu_custom_call.1} parent=1 // loop_pre_header
      _
    $region3: #{tpu_custom_call.1} parent=1 // loop_header
      %s20 = sphi 0, %s24
      %p21 = scmp.ge.s32.totalorder %s20, 4
      %s30 = sphi 0, %s32
      %s33 = sphi 0, %s30
      %s34 = sphi 0, %s33
      %s50 = sphi 0, %s34
      %s54 = sphi 0, %s54
      %s56 = sphi 0, %s54
      %s57 = sphi 0, %s56
      %s71 = sphi 0, %s57
      %s75 = sphi 0, %s75
      %s77 = sphi 0, %s75
      %s78 = sphi 0, %s77
      %s92 = sphi 0, %s78
      %s96 = sphi 0, %s96
      %s98 = sphi 0, %s96
      %s99 = sphi 0, %s98
      %s113 = sphi 0, %s99
      %s117 = sphi 0, %s117
      %s119 = sphi 0, %s117
      %s120 = sphi 0, %s119
      %s134 = sphi 0, %s120
      %s138 = sphi 0, %s138
      %s140 = sphi 0, %s138
      %s141 = sphi 0, %s140
      %s155 = sphi 0, %s141
      %s161 = sphi 0, %s163
      %s164 = sphi 0, %s161
      %s165 = sphi 0, %s164
      %s181 = sphi 0, %s165
    $region4: #{tpu_custom_call.1} parent=1 // loop_header_branch
      %23 = sbr.rel (%p21) target = $region8
    $region5: #{tpu_custom_call.1} parent=1 // loop_body
      %s25 = ssub.s32 %s20, 1
      %s26 = ssub.s32 %s20, 2
      %s27 = sadd.s32 %s20, 1
      %s28 = ssub.s32 %s20, %s27
      %p29 = scmp.eq.s32.totalorder %s28, 0
      %s31 = sadd.s32 %s30, 1
      %s32 = scalar_select %p29, %s30, %s31
      %p35 = pneg %p29
      %p36 = scmp.eq.s32.totalorder %s20, 1
      %p37 = por %p35, %p36
      %p38 = scmp.ne.s32.totalorder %s30, %s33
      %p39 = scmp.eq.s32.totalorder %s20, 0
      %p40 = por %p38, %p39
      %p41 = scmp.ne.s32.totalorder %s30, %s33
      %p42 = scmp.eq.s32.totalorder %s25, 1
      %p43 = por %p41, %p42
      %p44 = scmp.ne.s32.totalorder %s33, %s34
      %p45 = scmp.eq.s32.totalorder %s25, 0
      %p46 = por %p44, %p45
      %p47 = scmp.ne.s32.totalorder %s33, %s34
      %p48 = scmp.eq.s32.totalorder %s26, 1
      %p49 = por %p47, %p48
      %p51 = scmp.ne.s32.totalorder %s34, %s50
      %p52 = scmp.eq.s32.totalorder %s26, 0
      %p53 = por %p51, %p52
      %s55 = sadd.s32 %s54, 1
      %p58 = scmp.eq.s32.totalorder %s20, 1
      %p59 = scmp.ne.s32.totalorder %s54, %s56
      %p60 = scmp.eq.s32.totalorder %s20, 0
      %p61 = por %p59, %p60
      %p62 = scmp.ne.s32.totalorder %s54, %s56
      %p63 = scmp.eq.s32.totalorder %s25, 1
      %p64 = por %p62, %p63
      %p65 = scmp.ne.s32.totalorder %s56, %s57
      %p66 = scmp.eq.s32.totalorder %s25, 0
      %p67 = por %p65, %p66
      %p68 = scmp.ne.s32.totalorder %s56, %s57
      %p69 = scmp.eq.s32.totalorder %s26, 1
      %p70 = por %p68, %p69
      %p72 = scmp.ne.s32.totalorder %s57, %s71
      %p73 = scmp.eq.s32.totalorder %s26, 0
      %p74 = por %p72, %p73
      %s76 = sadd.s32 %s75, 1
      %p79 = scmp.eq.s32.totalorder %s20, 1
      %p80 = scmp.ne.s32.totalorder %s75, %s77
      %p81 = scmp.eq.s32.totalorder %s20, 0
      %p82 = por %p80, %p81
      %p83 = scmp.ne.s32.totalorder %s75, %s77
      %p84 = scmp.eq.s32.totalorder %s25, 1
      %p85 = por %p83, %p84
      %p86 = scmp.ne.s32.totalorder %s77, %s78
      %p87 = scmp.eq.s32.totalorder %s25, 0
      %p88 = por %p86, %p87
      %p89 = scmp.ne.s32.totalorder %s77, %s78
      %p90 = scmp.eq.s32.totalorder %s26, 1
      %p91 = por %p89, %p90
      %p93 = scmp.ne.s32.totalorder %s78, %s92
      %p94 = scmp.eq.s32.totalorder %s26, 0
      %p95 = por %p93, %p94
      %s97 = sadd.s32 %s96, 1
      %p100 = scmp.eq.s32.totalorder %s20, 1
      %p101 = scmp.ne.s32.totalorder %s96, %s98
      %p102 = scmp.eq.s32.totalorder %s20, 0
      %p103 = por %p101, %p102
      %p104 = scmp.ne.s32.totalorder %s96, %s98
      %p105 = scmp.eq.s32.totalorder %s25, 1
      %p106 = por %p104, %p105
      %p107 = scmp.ne.s32.totalorder %s98, %s99
      %p108 = scmp.eq.s32.totalorder %s25, 0
      %p109 = por %p107, %p108
      %p110 = scmp.ne.s32.totalorder %s98, %s99
      %p111 = scmp.eq.s32.totalorder %s26, 1
      %p112 = por %p110, %p111
      %p114 = scmp.ne.s32.totalorder %s99, %s113
      %p115 = scmp.eq.s32.totalorder %s26, 0
      %p116 = por %p114, %p115
      %s118 = sadd.s32 %s117, 1
      %p121 = scmp.eq.s32.totalorder %s20, 1
      %p122 = scmp.ne.s32.totalorder %s117, %s119
      %p123 = scmp.eq.s32.totalorder %s20, 0
      %p124 = por %p122, %p123
      %p125 = scmp.ne.s32.totalorder %s117, %s119
      %p126 = scmp.eq.s32.totalorder %s25, 1
      %p127 = por %p125, %p126
      %p128 = scmp.ne.s32.totalorder %s119, %s120
      %p129 = scmp.eq.s32.totalorder %s25, 0
      %p130 = por %p128, %p129
      %p131 = scmp.ne.s32.totalorder %s119, %s120
      %p132 = scmp.eq.s32.totalorder %s26, 1
      %p133 = por %p131, %p132
      %p135 = scmp.ne.s32.totalorder %s120, %s134
      %p136 = scmp.eq.s32.totalorder %s26, 0
      %p137 = por %p135, %p136
      %s139 = sadd.s32 %s138, 1
      %p142 = scmp.eq.s32.totalorder %s20, 1
      %p143 = scmp.ne.s32.totalorder %s138, %s140
      %p144 = scmp.eq.s32.totalorder %s20, 0
      %p145 = por %p143, %p144
      %p146 = scmp.ne.s32.totalorder %s138, %s140
      %p147 = scmp.eq.s32.totalorder %s25, 1
      %p148 = por %p146, %p147
      %p149 = scmp.ne.s32.totalorder %s140, %s141
      %p150 = scmp.eq.s32.totalorder %s25, 0
      %p151 = por %p149, %p150
      %p152 = scmp.ne.s32.totalorder %s140, %s141
      %p153 = scmp.eq.s32.totalorder %s26, 1
      %p154 = por %p152, %p153
      %p156 = scmp.ne.s32.totalorder %s141, %s155
      %p157 = scmp.eq.s32.totalorder %s26, 0
      %p158 = por %p156, %p157
      %s159 = ssub.s32 %s20, %s27
      %p160 = scmp.eq.s32.totalorder %s159, 0
      %s162 = sadd.s32 %s161, 1
      %s163 = scalar_select %p160, %s161, %s162
      %p166 = pneg %p160
      %p167 = scmp.eq.s32.totalorder %s20, 1
      %p168 = por %p166, %p167
      %p169 = scmp.ne.s32.totalorder %s161, %s164
      %p170 = scmp.eq.s32.totalorder %s20, 0
      %p171 = por %p169, %p170
      %p172 = scmp.ne.s32.totalorder %s161, %s164
      %p173 = scmp.eq.s32.totalorder %s25, 1
      %p174 = por %p172, %p173
      %p175 = scmp.ne.s32.totalorder %s164, %s165
      %p176 = scmp.eq.s32.totalorder %s25, 0
      %p177 = por %p175, %p176
      %p178 = scmp.ne.s32.totalorder %s164, %s165
      %p179 = scmp.eq.s32.totalorder %s26, 1
      %p180 = por %p178, %p179
      %p182 = scmp.ne.s32.totalorder %s165, %s181
      %p183 = scmp.eq.s32.totalorder %s26, 0
      %p184 = por %p182, %p183
      %p185 = scmp.le.s32.totalorder 1, %s20
      %p186 = scmp.lt.s32.totalorder %s20, 3
      %p187 = pnand %p185, %p186
      %p188 = pneg %p187
      // Predicated region
      $region9: #{tpu_custom_call.1} parent=5 // pred_check
        _
      $region10: #{tpu_custom_call.1} parent=5 // pred_check_branch
        %190 = sbr.rel (%p187) target = $region12
      $region11: #{tpu_custom_call.1} parent=5 // pred_region
        %s191 = ssub.s32 %s20, 1
        // Predicated region
        $region13: #{tpu_custom_call.1} parent=11 // pred_check
          %p192 = pneg %p67
        $region14: #{tpu_custom_call.1} parent=11 // pred_check_branch
          %194 = sbr.rel (%p192) target = $region16
        $region15: #{tpu_custom_call.1} parent=11 // pred_region
          %196 = vsyncadd [#allocation8], 0
          %s197 = sshll.u32 %s1, 4
          %s198 = int_to_ptr.hbm [resolvable:$true] %s197
          %s199 = sshll.u32 [#allocation7], 4
          %s200 = int_to_ptr.vmem [resolvable:$true] %s199
          %205 = dma.hbm_to_vmem [thread:$0]  %s198, 512, %s200, [#allocation8], 128, 128, 8
        $region16: #{tpu_custom_call.1} parent=11 // pred_fallthru
          _
        // Predicated region
        $region17: #{tpu_custom_call.1} parent=11 // pred_check
          %p206 = pneg %p88
        $region18: #{tpu_custom_call.1} parent=11 // pred_check_branch
          %208 = sbr.rel (%p206) target = $region20
        $region19: #{tpu_custom_call.1} parent=11 // pred_region
          _
        $region20: #{tpu_custom_call.1} parent=11 // pred_fallthru
          _
        // Predicated region
        $region21: #{tpu_custom_call.1} parent=11 // pred_check
          %p209 = pneg %p109
        $region22: #{tpu_custom_call.1} parent=11 // pred_check_branch
          %211 = sbr.rel (%p209) target = $region24
        $region23: #{tpu_custom_call.1} parent=11 // pred_region
          %213 = vsyncadd [#allocation8], 0
          %s214 = sshll.u32 %s3, 4
          %s215 = int_to_ptr.hbm [resolvable:$true] %s214
          %s216 = sshll.u32 [#allocation9], 4
          %s217 = int_to_ptr.vmem [resolvable:$true] %s216
          %222 = dma.hbm_to_vmem [thread:$0]  %s215, 896, %s217, [#allocation8], 128, 128, 8
        $region24: #{tpu_custom_call.1} parent=11 // pred_fallthru
          _
        // Predicated region
        $region25: #{tpu_custom_call.1} parent=11 // pred_check
          %p223 = pneg %p130
        $region26: #{tpu_custom_call.1} parent=11 // pred_check_branch
          %225 = sbr.rel (%p223) target = $region28
        $region27: #{tpu_custom_call.1} parent=11 // pred_region
          %227 = vsyncadd [#allocation11], 0
          %s228 = sshll.u32 %s4, 4
          %s229 = int_to_ptr.hbm [resolvable:$true] %s228
          %s230 = sshll.u32 [#allocation10], 4
          %s231 = int_to_ptr.vmem [resolvable:$true] %s230
          %236 = dma.hbm_to_vmem [thread:$0]  %s229, 2048, %s231, [#allocation11], 128, 128, 8
        $region28: #{tpu_custom_call.1} parent=11 // pred_fallthru
          _
        // Predicated region
        $region29: #{tpu_custom_call.1} parent=11 // pred_check
          %p237 = pneg %p151
        $region30: #{tpu_custom_call.1} parent=11 // pred_check_branch
          %239 = sbr.rel (%p237) target = $region32
        $region31: #{tpu_custom_call.1} parent=11 // pred_region
          _
        $region32: #{tpu_custom_call.1} parent=11 // pred_fallthru
          _
      $region12: #{tpu_custom_call.1} parent=5 // pred_fallthru
        _
      %p240 = scmp.lt.s32.totalorder %s20, 2
      // Predicated region
      $region33: #{tpu_custom_call.1} parent=5 // pred_check
        %p241 = pneg %p240
      $region34: #{tpu_custom_call.1} parent=5 // pred_check_branch
        %243 = sbr.rel (%p241) target = $region36
      $region35: #{tpu_custom_call.1} parent=5 // pred_region
        // Predicated region
        $region37: #{tpu_custom_call.1} parent=35 // pred_check
          %p244 = pneg %p40
        $region38: #{tpu_custom_call.1} parent=35 // pred_check_branch
          %246 = sbr.rel (%p244) target = $region40
        $region39: #{tpu_custom_call.1} parent=35 // pred_region
          %s247 = sand.u32 %s30, 1
          %s248 = scalar_lea.sflag [#allocation5], %s247
          %s249 = sand.u32 %s30, 1
          %s250 = smul.addr %s249, 256
          %s251 = scalar_lea.vmem [#allocation4], %s250
          %253 = vsyncadd %s248, 0
          %s254 = smul.addr %s20, 32
          %s255 = smul.addr %s254, 8
          %s256 = scalar_lea.hbm %s0, %s255
          %s257 = sshll.u32 %s256, 4
          %s258 = int_to_ptr.hbm [resolvable:$true] %s257
          %s259 = sshll.u32 %s251, 4
          %s260 = int_to_ptr.vmem [resolvable:$true] %s259
          %265 = dma.hbm_to_vmem [thread:$0]  %s258, 4096, %s260, %s248, 128, 128, 8
        $region40: #{tpu_custom_call.1} parent=35 // pred_fallthru
          _
      $region36: #{tpu_custom_call.1} parent=5 // pred_fallthru
        _
      %p266 = scmp.le.s32.totalorder 1, %s20
      %p267 = scmp.lt.s32.totalorder %s20, 3
      %p268 = pnand %p266, %p267
      %p269 = pneg %p268
      // Predicated region
      $region41: #{tpu_custom_call.1} parent=5 // pred_check
        _
      $region42: #{tpu_custom_call.1} parent=5 // pred_check_branch
        %271 = sbr.rel (%p268) target = $region44
      $region43: #{tpu_custom_call.1} parent=5 // pred_region
        %s272 = ssub.s32 %s20, 1
        %s273 = sand.u32 %s33, 1
        %s274 = scalar_lea.sflag [#allocation5], %s273
        %s275 = sand.u32 %s33, 1
        %s276 = smul.addr %s275, 256
        %s277 = scalar_lea.vmem [#allocation4], %s276
        // Predicated region
        $region45: #{tpu_custom_call.1} parent=43 // pred_check
          %p278 = pneg %p46
        $region46: #{tpu_custom_call.1} parent=43 // pred_check_branch
          %280 = sbr.rel (%p278) target = $region48
        $region47: #{tpu_custom_call.1} parent=43 // pred_region
          %282 = dma.done %s274, 4096
        $region48: #{tpu_custom_call.1} parent=43 // pred_fallthru
          _
        // Predicated region
        $region49: #{tpu_custom_call.1} parent=43 // pred_check
          %p283 = pneg %p67
        $region50: #{tpu_custom_call.1} parent=43 // pred_check_branch
          %285 = sbr.rel (%p283) target = $region52
        $region51: #{tpu_custom_call.1} parent=43 // pred_region
          %287 = dma.done [#allocation8], 512
        $region52: #{tpu_custom_call.1} parent=43 // pred_fallthru
          _
        // Predicated region
        $region53: #{tpu_custom_call.1} parent=43 // pred_check
          %p288 = pneg %p109
        $region54: #{tpu_custom_call.1} parent=43 // pred_check_branch
          %290 = sbr.rel (%p288) target = $region56
        $region55: #{tpu_custom_call.1} parent=43 // pred_region
          %292 = dma.done [#allocation8], 896
        $region56: #{tpu_custom_call.1} parent=43 // pred_fallthru
          _
        // Predicated region
        $region57: #{tpu_custom_call.1} parent=43 // pred_check
          %p293 = pneg %p130
        $region58: #{tpu_custom_call.1} parent=43 // pred_check_branch
          %295 = sbr.rel (%p293) target = $region60
        $region59: #{tpu_custom_call.1} parent=43 // pred_region
          %297 = dma.done [#allocation11], 2048
        $region60: #{tpu_custom_call.1} parent=43 // pred_fallthru
          _
        %s298 = sand.u32 %s33, 1
        %s299 = scalar_lea.sflag [#allocation5], %s298
        %s300 = sand.u32 %s33, 1
        %s301 = smul.addr %s300, 256
        %s302 = scalar_lea.vmem [#allocation4], %s301
        %p303 = pneg %p46
        %p304 = pneg %p43
        %p305 = pneg %p67
        %p306 = pneg %p64
        %p307 = pneg %p88
        %p308 = pneg %p85
        %p309 = pneg %p109
        %p310 = pneg %p106
        %p311 = pneg %p130
        %p312 = pneg %p127
        %p313 = pneg %p151
        %p314 = pneg %p148
        %p315 = pneg %p177
        %p316 = pneg %p174
        %s317 = sand.u32 %s164, 1
        %s318 = scalar_lea.sflag [#allocation6], %s317
        %s319 = sand.u32 %s164, 1
        %s320 = smul.addr %s319, 256
        %s321 = scalar_lea.vmem [#allocation12], %s320
        %322 = vst [vmem:[#allocation2] sm:$0xff] 0.0
        %323 = vst [vmem:[#allocation2 + $0x8] sm:$0xff] 0.0
        %324 = vst [vmem:[#allocation2 + $0x10] sm:$0xff] 0.0
        %325 = vst [vmem:[#allocation2 + $0x18] sm:$0xff] 0.0
        %326 = vst [vmem:[#allocation2 + $0x20] sm:$0xff] 0.0
        %327 = vst [vmem:[#allocation2 + $0x28] sm:$0xff] 0.0
        %328 = vst [vmem:[#allocation2 + $0x30] sm:$0xff] 0.0
        %329 = vst [vmem:[#allocation2 + $0x38] sm:$0xff] 0.0
        %s330 = scalar_lea.vmem [#allocation2], 576
        %331 = vst [vmem:[%s330] sm:$0xff] 0.0
        %332 = vst [vmem:[%s330 + $0x8] sm:$0xff] 0.0
        %333 = vst [vmem:[%s330 + $0x10] sm:$0xff] 0.0
        %334 = vst [vmem:[%s330 + $0x18] sm:$0xff] 0.0
        %335 = vst [vmem:[%s330 + $0x20] sm:$0xff] 0.0
        %336 = vst [vmem:[%s330 + $0x28] sm:$0xff] 0.0
        %337 = vst [vmem:[%s330 + $0x30] sm:$0xff] 0.0
        %338 = vst [vmem:[%s330 + $0x38] sm:$0xff] 0.0
        %s339 = scalar_lea.vmem [#allocation2], 64
        %340 = vst [vmem:[%s339] sm:$0xff] 0.0
        %341 = vst [vmem:[%s339 + $0x20] sm:$0xff] 0.0
        %342 = vst [vmem:[%s339 + $0x40] sm:$0xff] 0.0
        %343 = vst [vmem:[%s339 + $0x60] sm:$0xff] 0.0
        %344 = vst [vmem:[%s339 + $0x80] sm:$0xff] 0.0
        %345 = vst [vmem:[%s339 + $0xa0] sm:$0xff] 0.0
        %346 = vst [vmem:[%s339 + $0xc0] sm:$0xff] 0.0
        %347 = vst [vmem:[%s339 + $0xe0] sm:$0xff] 0.0
        %348 = vst [vmem:[%s339 + $0x100] sm:$0xff] 0.0
        %349 = vst [vmem:[%s339 + $0x120] sm:$0xff] 0.0
        %350 = vst [vmem:[%s339 + $0x140] sm:$0xff] 0.0
        %351 = vst [vmem:[%s339 + $0x160] sm:$0xff] 0.0
        %352 = vst [vmem:[%s339 + $0x180] sm:$0xff] 0.0
        %353 = vst [vmem:[%s339 + $0x1a0] sm:$0xff] 0.0
        %354 = vst [vmem:[%s339 + $0x1c0] sm:$0xff] 0.0
        %355 = vst [vmem:[%s339 + $0x1e0] sm:$0xff] 0.0
        %356 = vst [vmem:[%s339 + $0x18] sm:$0xff] 0.0
        %357 = vst [vmem:[%s339 + $0x38] sm:$0xff] 0.0
        %358 = vst [vmem:[%s339 + $0x58] sm:$0xff] 0.0
        %359 = vst [vmem:[%s339 + $0x78] sm:$0xff] 0.0
        %360 = vst [vmem:[%s339 + $0x98] sm:$0xff] 0.0
        %361 = vst [vmem:[%s339 + $0xb8] sm:$0xff] 0.0
        %362 = vst [vmem:[%s339 + $0xd8] sm:$0xff] 0.0
        %363 = vst [vmem:[%s339 + $0xf8] sm:$0xff] 0.0
        %364 = vst [vmem:[%s339 + $0x118] sm:$0xff] 0.0
        %365 = vst [vmem:[%s339 + $0x138] sm:$0xff] 0.0
        %366 = vst [vmem:[%s339 + $0x158] sm:$0xff] 0.0
        %367 = vst [vmem:[%s339 + $0x178] sm:$0xff] 0.0
        %368 = vst [vmem:[%s339 + $0x198] sm:$0xff] 0.0
        %369 = vst [vmem:[%s339 + $0x1b8] sm:$0xff] 0.0
        %370 = vst [vmem:[%s339 + $0x1d8] sm:$0xff] 0.0
        %371 = vst [vmem:[%s339 + $0x1f8] sm:$0xff] 0.0
        %372 = vst [vmem:[#allocation3] sm:$0xff] 0.0
        %373 = vst [vmem:[#allocation3 + $0x8] sm:$0xff] 0.0
        %374 = vst [vmem:[#allocation3 + $0x10] sm:$0xff] 0.0
        %375 = vst [vmem:[#allocation3 + $0x18] sm:$0xff] 0.0
        %376 = vst [vmem:[#allocation3 + $0x20] sm:$0xff] 0.0
        %377 = vst [vmem:[#allocation3 + $0x28] sm:$0xff] 0.0
        %378 = vst [vmem:[#allocation3 + $0x30] sm:$0xff] 0.0
        %379 = vst [vmem:[#allocation3 + $0x38] sm:$0xff] 0.0
        %380 = vst [vmem:[#allocation3 + $0x40] sm:$0xff] 0.0
        %381 = vst [vmem:[#allocation3 + $0x48] sm:$0xff] 0.0
        %382 = vst [vmem:[#allocation3 + $0x50] sm:$0xff] 0.0
        %383 = vst [vmem:[#allocation3 + $0x58] sm:$0xff] 0.0
        %384 = vst [vmem:[#allocation3 + $0x60] sm:$0xff] 0.0
        %385 = vst [vmem:[#allocation3 + $0x68] sm:$0xff] 0.0
        %386 = vst [vmem:[#allocation3 + $0x70] sm:$0xff] 0.0
        %387 = vst [vmem:[#allocation3 + $0x78] sm:$0xff] 0.0
        %388 = vst [vmem:[#allocation3 + $0x80] sm:$0xff] 0.0
        %389 = vst [vmem:[#allocation3 + $0x88] sm:$0xff] 0.0
        %390 = vst [vmem:[#allocation3 + $0x90] sm:$0xff] 0.0
        %391 = vst [vmem:[#allocation3 + $0x98] sm:$0xff] 0.0
        %392 = vst [vmem:[#allocation3 + $0xa0] sm:$0xff] 0.0
        %393 = vst [vmem:[#allocation3 + $0xa8] sm:$0xff] 0.0
        %394 = vst [vmem:[#allocation3 + $0xb0] sm:$0xff] 0.0
        %395 = vst [vmem:[#allocation3 + $0xb8] sm:$0xff] 0.0
        %396 = vst [vmem:[#allocation3 + $0xc0] sm:$0xff] 0.0
        %397 = vst [vmem:[#allocation3 + $0xc8] sm:$0xff] 0.0
        %398 = vst [vmem:[#allocation3 + $0xd0] sm:$0xff] 0.0
        %399 = vst [vmem:[#allocation3 + $0xd8] sm:$0xff] 0.0
        %400 = vst [vmem:[#allocation3 + $0xe0] sm:$0xff] 0.0
        %401 = vst [vmem:[#allocation3 + $0xe8] sm:$0xff] 0.0
        %402 = vst [vmem:[#allocation3 + $0xf0] sm:$0xff] 0.0
        %403 = vst [vmem:[#allocation3 + $0xf8] sm:$0xff] 0.0
        %404 = vst [vmem:[#allocation3 + $0x100] sm:$0xff] 0.0
        %405 = vst [vmem:[#allocation3 + $0x108] sm:$0xff] 0.0
        %406 = vst [vmem:[#allocation3 + $0x110] sm:$0xff] 0.0
        %407 = vst [vmem:[#allocation3 + $0x118] sm:$0xff] 0.0
        %408 = vst [vmem:[#allocation3 + $0x120] sm:$0xff] 0.0
        %409 = vst [vmem:[#allocation3 + $0x128] sm:$0xff] 0.0
        %410 = vst [vmem:[#allocation3 + $0x130] sm:$0xff] 0.0
        %411 = vst [vmem:[#allocation3 + $0x138] sm:$0xff] 0.0
        %412 = vst [vmem:[#allocation3 + $0x140] sm:$0xff] 0.0
        %413 = vst [vmem:[#allocation3 + $0x148] sm:$0xff] 0.0
        %414 = vst [vmem:[#allocation3 + $0x150] sm:$0xff] 0.0
        %415 = vst [vmem:[#allocation3 + $0x158] sm:$0xff] 0.0
        %416 = vst [vmem:[#allocation3 + $0x160] sm:$0xff] 0.0
        %417 = vst [vmem:[#allocation3 + $0x168] sm:$0xff] 0.0
        %418 = vst [vmem:[#allocation3 + $0x170] sm:$0xff] 0.0
        %419 = vst [vmem:[#allocation3 + $0x178] sm:$0xff] 0.0
        %420 = vst [vmem:[#allocation3 + $0x180] sm:$0xff] 0.0
        %421 = vst [vmem:[#allocation3 + $0x188] sm:$0xff] 0.0
        %422 = vst [vmem:[#allocation3 + $0x190] sm:$0xff] 0.0
        %423 = vst [vmem:[#allocation3 + $0x198] sm:$0xff] 0.0
        %424 = vst [vmem:[#allocation3 + $0x1a0] sm:$0xff] 0.0
        %425 = vst [vmem:[#allocation3 + $0x1a8] sm:$0xff] 0.0
        %s426 = scalar_lea.vmem [#allocation3], 1200
        %427 = vst [vmem:[%s426] sm:$0xff] 0.0
        %428 = vst [vmem:[%s426 + $0x8] sm:$0xff] 0.0
        %429 = vst [vmem:[%s426 + $0x10] sm:$0xff] 0.0
        %430 = vst [vmem:[%s426 + $0x18] sm:$0xff] 0.0
        %431 = vst [vmem:[%s426 + $0x20] sm:$0xff] 0.0
        %432 = vst [vmem:[%s426 + $0x28] sm:$0xff] 0.0
        %433 = vst [vmem:[%s426 + $0x30] sm:$0xff] 0.0
        %434 = vst [vmem:[%s426 + $0x38] sm:$0xff] 0.0
        %435 = vst [vmem:[%s426 + $0x40] sm:$0xff] 0.0
        %436 = vst [vmem:[%s426 + $0x48] sm:$0xff] 0.0
        %437 = vst [vmem:[%s426 + $0x50] sm:$0xff] 0.0
        %438 = vst [vmem:[%s426 + $0x58] sm:$0xff] 0.0
        %439 = vst [vmem:[%s426 + $0x60] sm:$0xff] 0.0
        %440 = vst [vmem:[%s426 + $0x68] sm:$0xff] 0.0
        %441 = vst [vmem:[%s426 + $0x70] sm:$0xff] 0.0
        %442 = vst [vmem:[%s426 + $0x78] sm:$0xff] 0.0
        %443 = vst [vmem:[%s426 + $0x80] sm:$0xff] 0.0
        %444 = vst [vmem:[%s426 + $0x88] sm:$0xff] 0.0
        %445 = vst [vmem:[%s426 + $0x90] sm:$0xff] 0.0
        %446 = vst [vmem:[%s426 + $0x98] sm:$0xff] 0.0
        %447 = vst [vmem:[%s426 + $0xa0] sm:$0xff] 0.0
        %448 = vst [vmem:[%s426 + $0xa8] sm:$0xff] 0.0
        %449 = vst [vmem:[%s426 + $0xb0] sm:$0xff] 0.0
        %450 = vst [vmem:[%s426 + $0xb8] sm:$0xff] 0.0
        %451 = vst [vmem:[%s426 + $0xc0] sm:$0xff] 0.0
        %452 = vst [vmem:[%s426 + $0xc8] sm:$0xff] 0.0
        %453 = vst [vmem:[%s426 + $0xd0] sm:$0xff] 0.0
        %454 = vst [vmem:[%s426 + $0xd8] sm:$0xff] 0.0
        %455 = vst [vmem:[%s426 + $0xe0] sm:$0xff] 0.0
        %456 = vst [vmem:[%s426 + $0xe8] sm:$0xff] 0.0
        %457 = vst [vmem:[%s426 + $0xf0] sm:$0xff] 0.0
        %458 = vst [vmem:[%s426 + $0xf8] sm:$0xff] 0.0
        %459 = vst [vmem:[%s426 + $0x100] sm:$0xff] 0.0
        %460 = vst [vmem:[%s426 + $0x108] sm:$0xff] 0.0
        %461 = vst [vmem:[%s426 + $0x110] sm:$0xff] 0.0
        %462 = vst [vmem:[%s426 + $0x118] sm:$0xff] 0.0
        %463 = vst [vmem:[%s426 + $0x120] sm:$0xff] 0.0
        %464 = vst [vmem:[%s426 + $0x128] sm:$0xff] 0.0
        %465 = vst [vmem:[%s426 + $0x130] sm:$0xff] 0.0
        %466 = vst [vmem:[%s426 + $0x138] sm:$0xff] 0.0
        %467 = vst [vmem:[%s426 + $0x140] sm:$0xff] 0.0
        %468 = vst [vmem:[%s426 + $0x148] sm:$0xff] 0.0
        %469 = vst [vmem:[%s426 + $0x150] sm:$0xff] 0.0
        %470 = vst [vmem:[%s426 + $0x158] sm:$0xff] 0.0
        %471 = vst [vmem:[%s426 + $0x160] sm:$0xff] 0.0
        %472 = vst [vmem:[%s426 + $0x168] sm:$0xff] 0.0
        %473 = vst [vmem:[%s426 + $0x170] sm:$0xff] 0.0
        %474 = vst [vmem:[%s426 + $0x178] sm:$0xff] 0.0
        %475 = vst [vmem:[%s426 + $0x180] sm:$0xff] 0.0
        %476 = vst [vmem:[%s426 + $0x188] sm:$0xff] 0.0
        %477 = vst [vmem:[%s426 + $0x190] sm:$0xff] 0.0
        %478 = vst [vmem:[%s426 + $0x198] sm:$0xff] 0.0
        %479 = vst [vmem:[%s426 + $0x1a0] sm:$0xff] 0.0
        %480 = vst [vmem:[%s426 + $0x1a8] sm:$0xff] 0.0
        %s481 = scalar_lea.vmem [#allocation3], 432
        %482 = vst [vmem:[%s481] sm:$0xff] 0.0
        %483 = vst [vmem:[%s481 + $0x8] sm:$0xff] 0.0
        %484 = vst [vmem:[%s481 + $0x30] sm:$0xff] 0.0
        %485 = vst [vmem:[%s481 + $0x38] sm:$0xff] 0.0
        %486 = vst [vmem:[%s481 + $0x60] sm:$0xff] 0.0
        %487 = vst [vmem:[%s481 + $0x68] sm:$0xff] 0.0
        %488 = vst [vmem:[%s481 + $0x90] sm:$0xff] 0.0
        %489 = vst [vmem:[%s481 + $0x98] sm:$0xff] 0.0
        %490 = vst [vmem:[%s481 + $0xc0] sm:$0xff] 0.0
        %491 = vst [vmem:[%s481 + $0xc8] sm:$0xff] 0.0
        %492 = vst [vmem:[%s481 + $0xf0] sm:$0xff] 0.0
        %493 = vst [vmem:[%s481 + $0xf8] sm:$0xff] 0.0
        %494 = vst [vmem:[%s481 + $0x120] sm:$0xff] 0.0
        %495 = vst [vmem:[%s481 + $0x128] sm:$0xff] 0.0
        %496 = vst [vmem:[%s481 + $0x150] sm:$0xff] 0.0
        %497 = vst [vmem:[%s481 + $0x158] sm:$0xff] 0.0
        %498 = vst [vmem:[%s481 + $0x180] sm:$0xff] 0.0
        %499 = vst [vmem:[%s481 + $0x188] sm:$0xff] 0.0
        %500 = vst [vmem:[%s481 + $0x1b0] sm:$0xff] 0.0
        %501 = vst [vmem:[%s481 + $0x1b8] sm:$0xff] 0.0
        %502 = vst [vmem:[%s481 + $0x1e0] sm:$0xff] 0.0
        %503 = vst [vmem:[%s481 + $0x1e8] sm:$0xff] 0.0
        %504 = vst [vmem:[%s481 + $0x210] sm:$0xff] 0.0
        %505 = vst [vmem:[%s481 + $0x218] sm:$0xff] 0.0
        %506 = vst [vmem:[%s481 + $0x240] sm:$0xff] 0.0
        %507 = vst [vmem:[%s481 + $0x248] sm:$0xff] 0.0
        %508 = vst [vmem:[%s481 + $0x270] sm:$0xff] 0.0
        %509 = vst [vmem:[%s481 + $0x278] sm:$0xff] 0.0
        %510 = vst [vmem:[%s481 + $0x2a0] sm:$0xff] 0.0
        %511 = vst [vmem:[%s481 + $0x2a8] sm:$0xff] 0.0
        %512 = vst [vmem:[%s481 + $0x2d0] sm:$0xff] 0.0
        %513 = vst [vmem:[%s481 + $0x2d8] sm:$0xff] 0.0
        %514 = vst [vmem:[%s481 + $0x20] sm:$0xff] 0.0
        %515 = vst [vmem:[%s481 + $0x28] sm:$0xff] 0.0
        %516 = vst [vmem:[%s481 + $0x50] sm:$0xff] 0.0
        %517 = vst [vmem:[%s481 + $0x58] sm:$0xff] 0.0
        %518 = vst [vmem:[%s481 + $0x80] sm:$0xff] 0.0
        %519 = vst [vmem:[%s481 + $0x88] sm:$0xff] 0.0
        %520 = vst [vmem:[%s481 + $0xb0] sm:$0xff] 0.0
        %521 = vst [vmem:[%s481 + $0xb8] sm:$0xff] 0.0
        %522 = vst [vmem:[%s481 + $0xe0] sm:$0xff] 0.0
        %523 = vst [vmem:[%s481 + $0xe8] sm:$0xff] 0.0
        %524 = vst [vmem:[%s481 + $0x110] sm:$0xff] 0.0
        %525 = vst [vmem:[%s481 + $0x118] sm:$0xff] 0.0
        %526 = vst [vmem:[%s481 + $0x140] sm:$0xff] 0.0
        %527 = vst [vmem:[%s481 + $0x148] sm:$0xff] 0.0
        %528 = vst [vmem:[%s481 + $0x170] sm:$0xff] 0.0
        %529 = vst [vmem:[%s481 + $0x178] sm:$0xff] 0.0
        %530 = vst [vmem:[%s481 + $0x1a0] sm:$0xff] 0.0
        %531 = vst [vmem:[%s481 + $0x1a8] sm:$0xff] 0.0
        %532 = vst [vmem:[%s481 + $0x1d0] sm:$0xff] 0.0
        %533 = vst [vmem:[%s481 + $0x1d8] sm:$0xff] 0.0
        %534 = vst [vmem:[%s481 + $0x200] sm:$0xff] 0.0
        %535 = vst [vmem:[%s481 + $0x208] sm:$0xff] 0.0
        %536 = vst [vmem:[%s481 + $0x230] sm:$0xff] 0.0
        %537 = vst [vmem:[%s481 + $0x238] sm:$0xff] 0.0
        %538 = vst [vmem:[%s481 + $0x260] sm:$0xff] 0.0
        %539 = vst [vmem:[%s481 + $0x268] sm:$0xff] 0.0
        %540 = vst [vmem:[%s481 + $0x290] sm:$0xff] 0.0
        %541 = vst [vmem:[%s481 + $0x298] sm:$0xff] 0.0
        %542 = vst [vmem:[%s481 + $0x2c0] sm:$0xff] 0.0
        %543 = vst [vmem:[%s481 + $0x2c8] sm:$0xff] 0.0
        %544 = vst [vmem:[%s481 + $0x2f0] sm:$0xff] 0.0
        %545 = vst [vmem:[%s481 + $0x2f8] sm:$0xff] 0.0
        %v546 = vld [vmem:[%s277] sm:$0xff]
        %v547 = vld [vmem:[%s277 + $0x8] sm:$0xff]
        %v548 = vld [vmem:[%s277 + $0x10] sm:$0xff]
        %v549 = vld [vmem:[%s277 + $0x18] sm:$0xff]
        %v550 = vld [vmem:[%s277 + $0x20] sm:$0xff]
        %v551 = vld [vmem:[%s277 + $0x28] sm:$0xff]
        %v552 = vld [vmem:[%s277 + $0x30] sm:$0xff]
        %v553 = vld [vmem:[%s277 + $0x38] sm:$0xff]
        %v554 = vld [vmem:[%s277 + $0x40] sm:$0xff]
        %v555 = vld [vmem:[%s277 + $0x48] sm:$0xff]
        %v556 = vld [vmem:[%s277 + $0x50] sm:$0xff]
        %v557 = vld [vmem:[%s277 + $0x58] sm:$0xff]
        %v558 = vld [vmem:[%s277 + $0x60] sm:$0xff]
        %v559 = vld [vmem:[%s277 + $0x68] sm:$0xff]
        %v560 = vld [vmem:[%s277 + $0x70] sm:$0xff]
        %v561 = vld [vmem:[%s277 + $0x78] sm:$0xff]
        %v562 = vld [vmem:[%s277 + $0x80] sm:$0xff]
        %v563 = vld [vmem:[%s277 + $0x88] sm:$0xff]
        %v564 = vld [vmem:[%s277 + $0x90] sm:$0xff]
        %v565 = vld [vmem:[%s277 + $0x98] sm:$0xff]
        %v566 = vld [vmem:[%s277 + $0xa0] sm:$0xff]
        %v567 = vld [vmem:[%s277 + $0xa8] sm:$0xff]
        %v568 = vld [vmem:[%s277 + $0xb0] sm:$0xff]
        %v569 = vld [vmem:[%s277 + $0xb8] sm:$0xff]
        %v570 = vld [vmem:[%s277 + $0xc0] sm:$0xff]
        %v571 = vld [vmem:[%s277 + $0xc8] sm:$0xff]
        %v572 = vld [vmem:[%s277 + $0xd0] sm:$0xff]
        %v573 = vld [vmem:[%s277 + $0xd8] sm:$0xff]
        %v574 = vld [vmem:[%s277 + $0xe0] sm:$0xff]
        %v575 = vld [vmem:[%s277 + $0xe8] sm:$0xff]
        %v576 = vld [vmem:[%s277 + $0xf0] sm:$0xff]
        %v577 = vld [vmem:[%s277 + $0xf8] sm:$0xff]
        %578 = vst [vmem:[%s339 + $0x8] sm:$0xff] %v546
        %579 = vst [vmem:[%s339 + $0x10] sm:$0xff] %v547
        %580 = vst [vmem:[%s339 + $0x28] sm:$0xff] %v548
        %581 = vst [vmem:[%s339 + $0x30] sm:$0xff] %v549
        %582 = vst [vmem:[%s339 + $0x48] sm:$0xff] %v550
        %583 = vst [vmem:[%s339 + $0x50] sm:$0xff] %v551
        %584 = vst [vmem:[%s339 + $0x68] sm:$0xff] %v552
        %585 = vst [vmem:[%s339 + $0x70] sm:$0xff] %v553
        %586 = vst [vmem:[%s339 + $0x88] sm:$0xff] %v554
        %587 = vst [vmem:[%s339 + $0x90] sm:$0xff] %v555
        %588 = vst [vmem:[%s339 + $0xa8] sm:$0xff] %v556
        %589 = vst [vmem:[%s339 + $0xb0] sm:$0xff] %v557
        %590 = vst [vmem:[%s339 + $0xc8] sm:$0xff] %v558
        %591 = vst [vmem:[%s339 + $0xd0] sm:$0xff] %v559
        %592 = vst [vmem:[%s339 + $0xe8] sm:$0xff] %v560
        %593 = vst [vmem:[%s339 + $0xf0] sm:$0xff] %v561
        %594 = vst [vmem:[%s339 + $0x108] sm:$0xff] %v562
        %595 = vst [vmem:[%s339 + $0x110] sm:$0xff] %v563
        %596 = vst [vmem:[%s339 + $0x128] sm:$0xff] %v564
        %597 = vst [vmem:[%s339 + $0x130] sm:$0xff] %v565
        %598 = vst [vmem:[%s339 + $0x148] sm:$0xff] %v566
        %599 = vst [vmem:[%s339 + $0x150] sm:$0xff] %v567
        %600 = vst [vmem:[%s339 + $0x168] sm:$0xff] %v568
        %601 = vst [vmem:[%s339 + $0x170] sm:$0xff] %v569
        %602 = vst [vmem:[%s339 + $0x188] sm:$0xff] %v570
        %603 = vst [vmem:[%s339 + $0x190] sm:$0xff] %v571
        %604 = vst [vmem:[%s339 + $0x1a8] sm:$0xff] %v572
        %605 = vst [vmem:[%s339 + $0x1b0] sm:$0xff] %v573
        %606 = vst [vmem:[%s339 + $0x1c8] sm:$0xff] %v574
        %607 = vst [vmem:[%s339 + $0x1d0] sm:$0xff] %v575
        %608 = vst [vmem:[%s339 + $0x1e8] sm:$0xff] %v576
        %609 = vst [vmem:[%s339 + $0x1f0] sm:$0xff] %v577
        %v610 = vld [vmem:[#allocation7] sm:$0xff]
        %v611 = vld [vmem:[#allocation7 + $0x8] sm:$0xff]
        %v612 = vld [vmem:[#allocation7 + $0x10] sm:$0xff]
        %v613 = vld [vmem:[#allocation7 + $0x18] sm:$0x1]
        %v614 = vld [vmem:[#allocation2] sm:$0xff]
        %v615 = vld [vmem:[#allocation2 + $0x8] sm:$0xff]
        %v616 = vld [vmem:[#allocation2 + $0x10] sm:$0xff]
        %v617 = vld [vmem:[#allocation2 + $0x18] sm:$0xff]
        %v618 = vld [vmem:[#allocation2 + $0x20] sm:$0xff]
        %v619 = vld [vmem:[#allocation2 + $0x28] sm:$0xff]
        %v620 = vld [vmem:[#allocation2 + $0x30] sm:$0xff]
        %v621 = vld [vmem:[#allocation2 + $0x38] sm:$0xff]
        %v622 = vld [vmem:[#allocation2 + $0x40] sm:$0xff]
        %v623 = vld [vmem:[#allocation2 + $0x48] sm:$0xff]
        %v624 = vld [vmem:[#allocation2 + $0x50] sm:$0xff]
        %v625 = vld [vmem:[#allocation2 + $0x58] sm:$0xff]
        %v626 = vld [vmem:[#allocation2 + $0x60] sm:$0xff]
        %v627 = vld [vmem:[#allocation2 + $0x68] sm:$0xff]
        %v628 = vld [vmem:[#allocation2 + $0x70] sm:$0xff]
        %v629 = vld [vmem:[#allocation2 + $0x78] sm:$0xff]
        %v630 = vld [vmem:[#allocation2 + $0x80] sm:$0xff]
        %v631 = vld [vmem:[#allocation2 + $0x88] sm:$0xff]
        %v632 = vld [vmem:[#allocation2 + $0x90] sm:$0xff]
        %v633 = vld [vmem:[#allocation2 + $0x98] sm:$0xff]
        %v634 = vld [vmem:[#allocation2 + $0xa0] sm:$0xff]
        %v635 = vld [vmem:[#allocation2 + $0xa8] sm:$0xff]
        %v636 = vld [vmem:[#allocation2 + $0xb0] sm:$0xff]
        %v637 = vld [vmem:[#allocation2 + $0xb8] sm:$0xff]
        %v638 = vld [vmem:[#allocation2 + $0xc0] sm:$0xff]
        %v639 = vld [vmem:[#allocation2 + $0xc8] sm:$0xff]
        %v640 = vld [vmem:[#allocation2 + $0xd0] sm:$0xff]
        %v641 = vld [vmem:[#allocation2 + $0xd8] sm:$0xff]
        %v642 = vld [vmem:[#allocation2 + $0xe0] sm:$0xff]
        %v643 = vld [vmem:[#allocation2 + $0xe8] sm:$0xff]
        %v644 = vld [vmem:[#allocation2 + $0xf0] sm:$0xff]
        %v645 = vld [vmem:[#allocation2 + $0xf8] sm:$0xff]
        %v646 = vld [vmem:[#allocation2 + $0x100] sm:$0xff]
        %v647 = vld [vmem:[#allocation2 + $0x108] sm:$0xff]
        %v648 = vld [vmem:[#allocation2 + $0x110] sm:$0xff]
        %v649 = vld [vmem:[#allocation2 + $0x118] sm:$0xff]
        %v650 = vld [vmem:[#allocation2 + $0x120] sm:$0xff]
        %v651 = vld [vmem:[#allocation2 + $0x128] sm:$0xff]
        %v652 = vld [vmem:[#allocation2 + $0x130] sm:$0xff]
        %v653 = vld [vmem:[#allocation2 + $0x138] sm:$0xff]
        %v654 = vld [vmem:[#allocation2 + $0x140] sm:$0xff]
        %v655 = vld [vmem:[#allocation2 + $0x148] sm:$0xff]
        %v656 = vld [vmem:[#allocation2 + $0x150] sm:$0xff]
        %v657 = vld [vmem:[#allocation2 + $0x158] sm:$0xff]
        %v658 = vld [vmem:[#allocation2 + $0x160] sm:$0xff]
        %v659 = vld [vmem:[#allocation2 + $0x168] sm:$0xff]
        %v660 = vld [vmem:[#allocation2 + $0x170] sm:$0xff]
        %v661 = vld [vmem:[#allocation2 + $0x178] sm:$0xff]
        %v662 = vld [vmem:[#allocation2 + $0x180] sm:$0xff]
        %v663 = vld [vmem:[#allocation2 + $0x188] sm:$0xff]
        %v664 = vld [vmem:[#allocation2 + $0x190] sm:$0xff]
        %v665 = vld [vmem:[#allocation2 + $0x198] sm:$0xff]
        %v666 = vld [vmem:[#allocation2 + $0x1a0] sm:$0xff]
        %v667 = vld [vmem:[#allocation2 + $0x1a8] sm:$0xff]
        %v668 = vld [vmem:[#allocation2 + $0x1b0] sm:$0xff]
        %v669 = vld [vmem:[#allocation2 + $0x1b8] sm:$0xff]
        %v670 = vld [vmem:[#allocation2 + $0x1c0] sm:$0xff]
        %v671 = vld [vmem:[#allocation2 + $0x1c8] sm:$0xff]
        %v672 = vld [vmem:[#allocation2 + $0x1d0] sm:$0xff]
        %v673 = vld [vmem:[#allocation2 + $0x1d8] sm:$0xff]
        %v674 = vld [vmem:[#allocation2 + $0x1e0] sm:$0xff]
        %v675 = vld [vmem:[#allocation2 + $0x1e8] sm:$0xff]
        %v676 = vld [vmem:[#allocation2 + $0x1f0] sm:$0xff]
        %v677 = vld [vmem:[#allocation2 + $0x1f8] sm:$0xff]
        %v678 = vld [vmem:[#allocation2 + $0x200] sm:$0xff]
        %v679 = vld [vmem:[#allocation2 + $0x208] sm:$0xff]
        %v680 = vld [vmem:[#allocation2 + $0x210] sm:$0xff]
        %v681 = vld [vmem:[#allocation2 + $0x218] sm:$0xff]
        %v682 = vld [vmem:[#allocation2 + $0x220] sm:$0xff]
        %v683 = vld [vmem:[#allocation2 + $0x228] sm:$0xff]
        %v684 = vld [vmem:[#allocation2 + $0x230] sm:$0xff]
        %v685 = vld [vmem:[#allocation2 + $0x238] sm:$0xff]
        %v686 = vld [vmem:[#allocation2 + $0x240] sm:$0xff]
        %v687 = vld [vmem:[#allocation2 + $0x248] sm:$0xff]
        %v688 = vld [vmem:[#allocation2 + $0x250] sm:$0xff]
        %v689 = vld [vmem:[#allocation2 + $0x258] sm:$0xff]
        %v690 = vld [vmem:[#allocation2 + $0x260] sm:$0xff]
        %v691 = vld [vmem:[#allocation2 + $0x268] sm:$0xff]
        %v692 = vld [vmem:[#allocation2 + $0x270] sm:$0xff]
        %v693 = vld [vmem:[#allocation2 + $0x278] sm:$0xff]
        %v694 = vrot.slane %v614, 6
        %v695 = vrot.slane %v618, 6
        %v696 = vrot.slane %v622, 6
        %v697 = vrot.slane %v626, 6
        %v698 = vrot.slane %v630, 6
        %v699 = vrot.slane %v634, 6
        %v700 = vrot.slane %v638, 6
        %v701 = vrot.slane %v642, 6
        %v702 = vrot.slane %v646, 6
        %v703 = vrot.slane %v650, 6
        %v704 = vrot.slane %v654, 6
        %v705 = vrot.slane %v658, 6
        %v706 = vrot.slane %v662, 6
        %v707 = vrot.slane %v666, 6
        %v708 = vrot.slane %v670, 6
        %v709 = vrot.slane %v674, 6
        %v710 = vrot.slane %v678, 6
        %v711 = vrot.slane %v682, 6
        %v712 = vrot.slane %v686, 6
        %v713 = vrot.slane %v690, 6
        %v714 = vrot.slane %v615, 6
        %v715 = vrot.slane %v619, 6
        %v716 = vrot.slane %v623, 6
        %v717 = vrot.slane %v627, 6
        %v718 = vrot.slane %v631, 6
        %v719 = vrot.slane %v635, 6
        %v720 = vrot.slane %v639, 6
        %v721 = vrot.slane %v643, 6
        %v722 = vrot.slane %v647, 6
        %v723 = vrot.slane %v651, 6
        %v724 = vrot.slane %v655, 6
        %v725 = vrot.slane %v659, 6
        %v726 = vrot.slane %v663, 6
        %v727 = vrot.slane %v667, 6
        %v728 = vrot.slane %v671, 6
        %v729 = vrot.slane %v675, 6
        %v730 = vrot.slane %v679, 6
        %v731 = vrot.slane %v683, 6
        %v732 = vrot.slane %v687, 6
        %v733 = vrot.slane %v691, 6
        %v734 = vrot.slane %v616, 6
        %v735 = vrot.slane %v620, 6
        %v736 = vrot.slane %v624, 6
        %v737 = vrot.slane %v628, 6
        %v738 = vrot.slane %v632, 6
        %v739 = vrot.slane %v636, 6
        %v740 = vrot.slane %v640, 6
        %v741 = vrot.slane %v644, 6
        %v742 = vrot.slane %v648, 6
        %v743 = vrot.slane %v652, 6
        %v744 = vrot.slane %v656, 6
        %v745 = vrot.slane %v660, 6
        %v746 = vrot.slane %v664, 6
        %v747 = vrot.slane %v668, 6
        %v748 = vrot.slane %v672, 6
        %v749 = vrot.slane %v676, 6
        %v750 = vrot.slane %v680, 6
        %v751 = vrot.slane %v684, 6
        %v752 = vrot.slane %v688, 6
        %v753 = vrot.slane %v692, 6
        %v754 = vlaneseq
        %v755 = vshrl.u32 %v754, 7
        %vm756 = vcmp.lt.s32.totalorder %v755, 2
        %v757 = vsel %vm756, %v714, %v734
        %v758 = vsel %vm756, %v715, %v735
        %v759 = vsel %vm756, %v716, %v736
        %v760 = vsel %vm756, %v717, %v737
        %v761 = vsel %vm756, %v718, %v738
        %v762 = vsel %vm756, %v719, %v739
        %v763 = vsel %vm756, %v720, %v740
        %v764 = vsel %vm756, %v721, %v741
        %v765 = vsel %vm756, %v722, %v742
        %v766 = vsel %vm756, %v723, %v743
        %v767 = vsel %vm756, %v724, %v744
        %v768 = vsel %vm756, %v725, %v745
        %v769 = vsel %vm756, %v726, %v746
        %v770 = vsel %vm756, %v727, %v747
        %v771 = vsel %vm756, %v728, %v748
        %v772 = vsel %vm756, %v729, %v749
        %v773 = vsel %vm756, %v730, %v750
        %v774 = vsel %vm756, %v731, %v751
        %v775 = vsel %vm756, %v732, %v752
        %v776 = vsel %vm756, %v733, %v753
        %v777 = vsel %vm756, %v694, %v714
        %v778 = vsel %vm756, %v695, %v715
        %v779 = vsel %vm756, %v696, %v716
        %v780 = vsel %vm756, %v697, %v717
        %v781 = vsel %vm756, %v698, %v718
        %v782 = vsel %vm756, %v699, %v719
        %v783 = vsel %vm756, %v700, %v720
        %v784 = vsel %vm756, %v701, %v721
        %v785 = vsel %vm756, %v702, %v722
        %v786 = vsel %vm756, %v703, %v723
        %v787 = vsel %vm756, %v704, %v724
        %v788 = vsel %vm756, %v705, %v725
        %v789 = vsel %vm756, %v706, %v726
        %v790 = vsel %vm756, %v707, %v727
        %v791 = vsel %vm756, %v708, %v728
        %v792 = vsel %vm756, %v709, %v729
        %v793 = vsel %vm756, %v710, %v730
        %v794 = vsel %vm756, %v711, %v731
        %v795 = vsel %vm756, %v712, %v732
        %v796 = vsel %vm756, %v713, %v733
        %v797 = vperm.slane %v610, 0
        %v798 = vmul.f32 %v777, %v797
        %v799 = vmul.f32 %v757, %v797
        %v800 = vmul.f32 %v778, %v797
        %v801 = vmul.f32 %v758, %v797
        %v802 = vmul.f32 %v779, %v797
        %v803 = vmul.f32 %v759, %v797
        %v804 = vmul.f32 %v780, %v797
        %v805 = vmul.f32 %v760, %v797
        %v806 = vmul.f32 %v781, %v797
        %v807 = vmul.f32 %v761, %v797
        %v808 = vmul.f32 %v782, %v797
        %v809 = vmul.f32 %v762, %v797
        %v810 = vmul.f32 %v783, %v797
        %v811 = vmul.f32 %v763, %v797
        %v812 = vmul.f32 %v784, %v797
        %v813 = vmul.f32 %v764, %v797
        %v814 = vmul.f32 %v785, %v797
        %v815 = vmul.f32 %v765, %v797
        %v816 = vmul.f32 %v786, %v797
        %v817 = vmul.f32 %v766, %v797
        %v818 = vmul.f32 %v787, %v797
        %v819 = vmul.f32 %v767, %v797
        %v820 = vmul.f32 %v788, %v797
        %v821 = vmul.f32 %v768, %v797
        %v822 = vmul.f32 %v789, %v797
        %v823 = vmul.f32 %v769, %v797
        %v824 = vmul.f32 %v790, %v797
        %v825 = vmul.f32 %v770, %v797
        %v826 = vmul.f32 %v791, %v797
        %v827 = vmul.f32 %v771, %v797
        %v828 = vmul.f32 %v792, %v797
        %v829 = vmul.f32 %v772, %v797
        %v830 = vadd.f32 %v798, 0.0
        %v831 = vadd.f32 %v799, 0.0
        %v832 = vadd.f32 %v800, 0.0
        %v833 = vadd.f32 %v801, 0.0
        %v834 = vadd.f32 %v802, 0.0
        %v835 = vadd.f32 %v803, 0.0
        %v836 = vadd.f32 %v804, 0.0
        %v837 = vadd.f32 %v805, 0.0
        %v838 = vadd.f32 %v806, 0.0
        %v839 = vadd.f32 %v807, 0.0
        %v840 = vadd.f32 %v808, 0.0
        %v841 = vadd.f32 %v809, 0.0
        %v842 = vadd.f32 %v810, 0.0
        %v843 = vadd.f32 %v811, 0.0
        %v844 = vadd.f32 %v812, 0.0
        %v845 = vadd.f32 %v813, 0.0
        %v846 = vadd.f32 %v814, 0.0
        %v847 = vadd.f32 %v815, 0.0
        %v848 = vadd.f32 %v816, 0.0
        %v849 = vadd.f32 %v817, 0.0
        %v850 = vadd.f32 %v818, 0.0
        %v851 = vadd.f32 %v819, 0.0
        %v852 = vadd.f32 %v820, 0.0
        %v853 = vadd.f32 %v821, 0.0
        %v854 = vadd.f32 %v822, 0.0
        %v855 = vadd.f32 %v823, 0.0
        %v856 = vadd.f32 %v824, 0.0
        %v857 = vadd.f32 %v825, 0.0
        %v858 = vadd.f32 %v826, 0.0
        %v859 = vadd.f32 %v827, 0.0
        %v860 = vadd.f32 %v828, 0.0
        %v861 = vadd.f32 %v829, 0.0
        %v862 = vperm.slane %v610, 5
        %v863 = vmul.f32 %v778, %v862
        %v864 = vmul.f32 %v758, %v862
        %v865 = vmul.f32 %v779, %v862
        %v866 = vmul.f32 %v759, %v862
        %v867 = vmul.f32 %v780, %v862
        %v868 = vmul.f32 %v760, %v862
        %v869 = vmul.f32 %v781, %v862
        %v870 = vmul.f32 %v761, %v862
        %v871 = vmul.f32 %v782, %v862
        %v872 = vmul.f32 %v762, %v862
        %v873 = vmul.f32 %v783, %v862
        %v874 = vmul.f32 %v763, %v862
        %v875 = vmul.f32 %v784, %v862
        %v876 = vmul.f32 %v764, %v862
        %v877 = vmul.f32 %v785, %v862
        %v878 = vmul.f32 %v765, %v862
        %v879 = vmul.f32 %v786, %v862
        %v880 = vmul.f32 %v766, %v862
        %v881 = vmul.f32 %v787, %v862
        %v882 = vmul.f32 %v767, %v862
        %v883 = vmul.f32 %v788, %v862
        %v884 = vmul.f32 %v768, %v862
        %v885 = vmul.f32 %v789, %v862
        %v886 = vmul.f32 %v769, %v862
        %v887 = vmul.f32 %v790, %v862
        %v888 = vmul.f32 %v770, %v862
        %v889 = vmul.f32 %v791, %v862
        %v890 = vmul.f32 %v771, %v862
        %v891 = vmul.f32 %v792, %v862
        %v892 = vmul.f32 %v772, %v862
        %v893 = vmul.f32 %v793, %v862
        %v894 = vmul.f32 %v773, %v862
        %v895 = vadd.f32 %v830, %v863
        %v896 = vadd.f32 %v831, %v864
        %v897 = vadd.f32 %v832, %v865
        %v898 = vadd.f32 %v833, %v866
        %v899 = vadd.f32 %v834, %v867
        %v900 = vadd.f32 %v835, %v868
        %v901 = vadd.f32 %v836, %v869
        %v902 = vadd.f32 %v837, %v870
        %v903 = vadd.f32 %v838, %v871
        %v904 = vadd.f32 %v839, %v872
        %v905 = vadd.f32 %v840, %v873
        %v906 = vadd.f32 %v841, %v874
        %v907 = vadd.f32 %v842, %v875
        %v908 = vadd.f32 %v843, %v876
        %v909 = vadd.f32 %v844, %v877
        %v910 = vadd.f32 %v845, %v878
        %v911 = vadd.f32 %v846, %v879
        %v912 = vadd.f32 %v847, %v880
        %v913 = vadd.f32 %v848, %v881
        %v914 = vadd.f32 %v849, %v882
        %v915 = vadd.f32 %v850, %v883
        %v916 = vadd.f32 %v851, %v884
        %v917 = vadd.f32 %v852, %v885
        %v918 = vadd.f32 %v853, %v886
        %v919 = vadd.f32 %v854, %v887
        %v920 = vadd.f32 %v855, %v888
        %v921 = vadd.f32 %v856, %v889
        %v922 = vadd.f32 %v857, %v890
        %v923 = vadd.f32 %v858, %v891
        %v924 = vadd.f32 %v859, %v892
        %v925 = vadd.f32 %v860, %v893
        %v926 = vadd.f32 %v861, %v894
        %v927 = vperm.slane %v611, 2
        %v928 = vmul.f32 %v779, %v927
        %v929 = vmul.f32 %v759, %v927
        %v930 = vmul.f32 %v780, %v927
        %v931 = vmul.f32 %v760, %v927
        %v932 = vmul.f32 %v781, %v927
        %v933 = vmul.f32 %v761, %v927
        %v934 = vmul.f32 %v782, %v927
        %v935 = vmul.f32 %v762, %v927
        %v936 = vmul.f32 %v783, %v927
        %v937 = vmul.f32 %v763, %v927
        %v938 = vmul.f32 %v784, %v927
        %v939 = vmul.f32 %v764, %v927
        %v940 = vmul.f32 %v785, %v927
        %v941 = vmul.f32 %v765, %v927
        %v942 = vmul.f32 %v786, %v927
        %v943 = vmul.f32 %v766, %v927
        %v944 = vmul.f32 %v787, %v927
        %v945 = vmul.f32 %v767, %v927
        %v946 = vmul.f32 %v788, %v927
        %v947 = vmul.f32 %v768, %v927
        %v948 = vmul.f32 %v789, %v927
        %v949 = vmul.f32 %v769, %v927
        %v950 = vmul.f32 %v790, %v927
        %v951 = vmul.f32 %v770, %v927
        %v952 = vmul.f32 %v791, %v927
        %v953 = vmul.f32 %v771, %v927
        %v954 = vmul.f32 %v792, %v927
        %v955 = vmul.f32 %v772, %v927
        %v956 = vmul.f32 %v793, %v927
        %v957 = vmul.f32 %v773, %v927
        %v958 = vmul.f32 %v794, %v927
        %v959 = vmul.f32 %v774, %v927
        %v960 = vadd.f32 %v895, %v928
        %v961 = vadd.f32 %v896, %v929
        %v962 = vadd.f32 %v897, %v930
        %v963 = vadd.f32 %v898, %v931
        %v964 = vadd.f32 %v899, %v932
        %v965 = vadd.f32 %v900, %v933
        %v966 = vadd.f32 %v901, %v934
        %v967 = vadd.f32 %v902, %v935
        %v968 = vadd.f32 %v903, %v936
        %v969 = vadd.f32 %v904, %v937
        %v970 = vadd.f32 %v905, %v938
        %v971 = vadd.f32 %v906, %v939
        %v972 = vadd.f32 %v907, %v940
        %v973 = vadd.f32 %v908, %v941
        %v974 = vadd.f32 %v909, %v942
        %v975 = vadd.f32 %v910, %v943
        %v976 = vadd.f32 %v911, %v944
        %v977 = vadd.f32 %v912, %v945
        %v978 = vadd.f32 %v913, %v946
        %v979 = vadd.f32 %v914, %v947
        %v980 = vadd.f32 %v915, %v948
        %v981 = vadd.f32 %v916, %v949
        %v982 = vadd.f32 %v917, %v950
        %v983 = vadd.f32 %v918, %v951
        %v984 = vadd.f32 %v919, %v952
        %v985 = vadd.f32 %v920, %v953
        %v986 = vadd.f32 %v921, %v954
        %v987 = vadd.f32 %v922, %v955
        %v988 = vadd.f32 %v923, %v956
        %v989 = vadd.f32 %v924, %v957
        %v990 = vadd.f32 %v925, %v958
        %v991 = vadd.f32 %v926, %v959
        %v992 = vperm.slane %v611, 7
        %v993 = vmul.f32 %v780, %v992
        %v994 = vmul.f32 %v760, %v992
        %v995 = vmul.f32 %v781, %v992
        %v996 = vmul.f32 %v761, %v992
        %v997 = vmul.f32 %v782, %v992
        %v998 = vmul.f32 %v762, %v992
        %v999 = vmul.f32 %v783, %v992
        %v1000 = vmul.f32 %v763, %v992
        %v1001 = vmul.f32 %v784, %v992
        %v1002 = vmul.f32 %v764, %v992
        %v1003 = vmul.f32 %v785, %v992
        %v1004 = vmul.f32 %v765, %v992
        %v1005 = vmul.f32 %v786, %v992
        %v1006 = vmul.f32 %v766, %v992
        %v1007 = vmul.f32 %v787, %v992
        %v1008 = vmul.f32 %v767, %v992
        %v1009 = vmul.f32 %v788, %v992
        %v1010 = vmul.f32 %v768, %v992
        %v1011 = vmul.f32 %v789, %v992
        %v1012 = vmul.f32 %v769, %v992
        %v1013 = vmul.f32 %v790, %v992
        %v1014 = vmul.f32 %v770, %v992
        %v1015 = vmul.f32 %v791, %v992
        %v1016 = vmul.f32 %v771, %v992
        %v1017 = vmul.f32 %v792, %v992
        %v1018 = vmul.f32 %v772, %v992
        %v1019 = vmul.f32 %v793, %v992
        %v1020 = vmul.f32 %v773, %v992
        %v1021 = vmul.f32 %v794, %v992
        %v1022 = vmul.f32 %v774, %v992
        %v1023 = vmul.f32 %v795, %v992
        %v1024 = vmul.f32 %v775, %v992
        %v1025 = vadd.f32 %v960, %v993
        %v1026 = vadd.f32 %v961, %v994
        %v1027 = vadd.f32 %v962, %v995
        %v1028 = vadd.f32 %v963, %v996
        %v1029 = vadd.f32 %v964, %v997
        %v1030 = vadd.f32 %v965, %v998
        %v1031 = vadd.f32 %v966, %v999
        %v1032 = vadd.f32 %v967, %v1000
        %v1033 = vadd.f32 %v968, %v1001
        %v1034 = vadd.f32 %v969, %v1002
        %v1035 = vadd.f32 %v970, %v1003
        %v1036 = vadd.f32 %v971, %v1004
        %v1037 = vadd.f32 %v972, %v1005
        %v1038 = vadd.f32 %v973, %v1006
        %v1039 = vadd.f32 %v974, %v1007
        %v1040 = vadd.f32 %v975, %v1008
        %v1041 = vadd.f32 %v976, %v1009
        %v1042 = vadd.f32 %v977, %v1010
        %v1043 = vadd.f32 %v978, %v1011
        %v1044 = vadd.f32 %v979, %v1012
        %v1045 = vadd.f32 %v980, %v1013
        %v1046 = vadd.f32 %v981, %v1014
        %v1047 = vadd.f32 %v982, %v1015
        %v1048 = vadd.f32 %v983, %v1016
        %v1049 = vadd.f32 %v984, %v1017
        %v1050 = vadd.f32 %v985, %v1018
        %v1051 = vadd.f32 %v986, %v1019
        %v1052 = vadd.f32 %v987, %v1020
        %v1053 = vadd.f32 %v988, %v1021
        %v1054 = vadd.f32 %v989, %v1022
        %v1055 = vadd.f32 %v990, %v1023
        %v1056 = vadd.f32 %v991, %v1024
        %v1057 = vperm.slane %v612, 4
        %v1058 = vmul.f32 %v781, %v1057
        %v1059 = vmul.f32 %v761, %v1057
        %v1060 = vmul.f32 %v782, %v1057
        %v1061 = vmul.f32 %v762, %v1057
        %v1062 = vmul.f32 %v783, %v1057
        %v1063 = vmul.f32 %v763, %v1057
        %v1064 = vmul.f32 %v784, %v1057
        %v1065 = vmul.f32 %v764, %v1057
        %v1066 = vmul.f32 %v785, %v1057
        %v1067 = vmul.f32 %v765, %v1057
        %v1068 = vmul.f32 %v786, %v1057
        %v1069 = vmul.f32 %v766, %v1057
        %v1070 = vmul.f32 %v787, %v1057
        %v1071 = vmul.f32 %v767, %v1057
        %v1072 = vmul.f32 %v788, %v1057
        %v1073 = vmul.f32 %v768, %v1057
        %v1074 = vmul.f32 %v789, %v1057
        %v1075 = vmul.f32 %v769, %v1057
        %v1076 = vmul.f32 %v790, %v1057
        %v1077 = vmul.f32 %v770, %v1057
        %v1078 = vmul.f32 %v791, %v1057
        %v1079 = vmul.f32 %v771, %v1057
        %v1080 = vmul.f32 %v792, %v1057
        %v1081 = vmul.f32 %v772, %v1057
        %v1082 = vmul.f32 %v793, %v1057
        %v1083 = vmul.f32 %v773, %v1057
        %v1084 = vmul.f32 %v794, %v1057
        %v1085 = vmul.f32 %v774, %v1057
        %v1086 = vmul.f32 %v795, %v1057
        %v1087 = vmul.f32 %v775, %v1057
        %v1088 = vmul.f32 %v796, %v1057
        %v1089 = vmul.f32 %v776, %v1057
        %v1090 = vadd.f32 %v1025, %v1058
        %v1091 = vadd.f32 %v1026, %v1059
        %v1092 = vadd.f32 %v1027, %v1060
        %v1093 = vadd.f32 %v1028, %v1061
        %v1094 = vadd.f32 %v1029, %v1062
        %v1095 = vadd.f32 %v1030, %v1063
        %v1096 = vadd.f32 %v1031, %v1064
        %v1097 = vadd.f32 %v1032, %v1065
        %v1098 = vadd.f32 %v1033, %v1066
        %v1099 = vadd.f32 %v1034, %v1067
        %v1100 = vadd.f32 %v1035, %v1068
        %v1101 = vadd.f32 %v1036, %v1069
        %v1102 = vadd.f32 %v1037, %v1070
        %v1103 = vadd.f32 %v1038, %v1071
        %v1104 = vadd.f32 %v1039, %v1072
        %v1105 = vadd.f32 %v1040, %v1073
        %v1106 = vadd.f32 %v1041, %v1074
        %v1107 = vadd.f32 %v1042, %v1075
        %v1108 = vadd.f32 %v1043, %v1076
        %v1109 = vadd.f32 %v1044, %v1077
        %v1110 = vadd.f32 %v1045, %v1078
        %v1111 = vadd.f32 %v1046, %v1079
        %v1112 = vadd.f32 %v1047, %v1080
        %v1113 = vadd.f32 %v1048, %v1081
        %v1114 = vadd.f32 %v1049, %v1082
        %v1115 = vadd.f32 %v1050, %v1083
        %v1116 = vadd.f32 %v1051, %v1084
        %v1117 = vadd.f32 %v1052, %v1085
        %v1118 = vadd.f32 %v1053, %v1086
        %v1119 = vadd.f32 %v1054, %v1087
        %v1120 = vadd.f32 %v1055, %v1088
        %v1121 = vadd.f32 %v1056, %v1089
        %v1122 = vrot.slane %v614, 7
        %v1123 = vrot.slane %v618, 7
        %v1124 = vrot.slane %v622, 7
        %v1125 = vrot.slane %v626, 7
        %v1126 = vrot.slane %v630, 7
        %v1127 = vrot.slane %v634, 7
        %v1128 = vrot.slane %v638, 7
        %v1129 = vrot.slane %v642, 7
        %v1130 = vrot.slane %v646, 7
        %v1131 = vrot.slane %v650, 7
        %v1132 = vrot.slane %v654, 7
        %v1133 = vrot.slane %v658, 7
        %v1134 = vrot.slane %v662, 7
        %v1135 = vrot.slane %v666, 7
        %v1136 = vrot.slane %v670, 7
        %v1137 = vrot.slane %v674, 7
        %v1138 = vrot.slane %v678, 7
        %v1139 = vrot.slane %v682, 7
        %v1140 = vrot.slane %v686, 7
        %v1141 = vrot.slane %v690, 7
        %v1142 = vrot.slane %v615, 7
        %v1143 = vrot.slane %v619, 7
        %v1144 = vrot.slane %v623, 7
        %v1145 = vrot.slane %v627, 7
        %v1146 = vrot.slane %v631, 7
        %v1147 = vrot.slane %v635, 7
        %v1148 = vrot.slane %v639, 7
        %v1149 = vrot.slane %v643, 7
        %v1150 = vrot.slane %v647, 7
        %v1151 = vrot.slane %v651, 7
        %v1152 = vrot.slane %v655, 7
        %v1153 = vrot.slane %v659, 7
        %v1154 = vrot.slane %v663, 7
        %v1155 = vrot.slane %v667, 7
        %v1156 = vrot.slane %v671, 7
        %v1157 = vrot.slane %v675, 7
        %v1158 = vrot.slane %v679, 7
        %v1159 = vrot.slane %v683, 7
        %v1160 = vrot.slane %v687, 7
        %v1161 = vrot.slane %v691, 7
        %v1162 = vrot.slane %v616, 7
        %v1163 = vrot.slane %v620, 7
        %v1164 = vrot.slane %v624, 7
        %v1165 = vrot.slane %v628, 7
        %v1166 = vrot.slane %v632, 7
        %v1167 = vrot.slane %v636, 7
        %v1168 = vrot.slane %v640, 7
        %v1169 = vrot.slane %v644, 7
        %v1170 = vrot.slane %v648, 7
        %v1171 = vrot.slane %v652, 7
        %v1172 = vrot.slane %v656, 7
        %v1173 = vrot.slane %v660, 7
        %v1174 = vrot.slane %v664, 7
        %v1175 = vrot.slane %v668, 7
        %v1176 = vrot.slane %v672, 7
        %v1177 = vrot.slane %v676, 7
        %v1178 = vrot.slane %v680, 7
        %v1179 = vrot.slane %v684, 7
        %v1180 = vrot.slane %v688, 7
        %v1181 = vrot.slane %v692, 7
        %vm1182 = vcmp.lt.s32.totalorder %v755, 1
        %v1183 = vsel %vm1182, %v1142, %v1162
        %v1184 = vsel %vm1182, %v1143, %v1163
        %v1185 = vsel %vm1182, %v1144, %v1164
        %v1186 = vsel %vm1182, %v1145, %v1165
        %v1187 = vsel %vm1182, %v1146, %v1166
        %v1188 = vsel %vm1182, %v1147, %v1167
        %v1189 = vsel %vm1182, %v1148, %v1168
        %v1190 = vsel %vm1182, %v1149, %v1169
        %v1191 = vsel %vm1182, %v1150, %v1170
        %v1192 = vsel %vm1182, %v1151, %v1171
        %v1193 = vsel %vm1182, %v1152, %v1172
        %v1194 = vsel %vm1182, %v1153, %v1173
        %v1195 = vsel %vm1182, %v1154, %v1174
        %v1196 = vsel %vm1182, %v1155, %v1175
        %v1197 = vsel %vm1182, %v1156, %v1176
        %v1198 = vsel %vm1182, %v1157, %v1177
        %v1199 = vsel %vm1182, %v1158, %v1178
        %v1200 = vsel %vm1182, %v1159, %v1179
        %v1201 = vsel %vm1182, %v1160, %v1180
        %v1202 = vsel %vm1182, %v1161, %v1181
        %v1203 = vsel %vm1182, %v1122, %v1142
        %v1204 = vsel %vm1182, %v1123, %v1143
        %v1205 = vsel %vm1182, %v1124, %v1144
        %v1206 = vsel %vm1182, %v1125, %v1145
        %v1207 = vsel %vm1182, %v1126, %v1146
        %v1208 = vsel %vm1182, %v1127, %v1147
        %v1209 = vsel %vm1182, %v1128, %v1148
        %v1210 = vsel %vm1182, %v1129, %v1149
        %v1211 = vsel %vm1182, %v1130, %v1150
        %v1212 = vsel %vm1182, %v1131, %v1151
        %v1213 = vsel %vm1182, %v1132, %v1152
        %v1214 = vsel %vm1182, %v1133, %v1153
        %v1215 = vsel %vm1182, %v1134, %v1154
        %v1216 = vsel %vm1182, %v1135, %v1155
        %v1217 = vsel %vm1182, %v1136, %v1156
        %v1218 = vsel %vm1182, %v1137, %v1157
        %v1219 = vsel %vm1182, %v1138, %v1158
        %v1220 = vsel %vm1182, %v1139, %v1159
        %v1221 = vsel %vm1182, %v1140, %v1160
        %v1222 = vsel %vm1182, %v1141, %v1161
        %v1223 = vperm.slane %v610, 1
        %v1224 = vmul.f32 %v1203, %v1223
        %v1225 = vmul.f32 %v1183, %v1223
        %v1226 = vmul.f32 %v1204, %v1223
        %v1227 = vmul.f32 %v1184, %v1223
        %v1228 = vmul.f32 %v1205, %v1223
        %v1229 = vmul.f32 %v1185, %v1223
        %v1230 = vmul.f32 %v1206, %v1223
        %v1231 = vmul.f32 %v1186, %v1223
        %v1232 = vmul.f32 %v1207, %v1223
        %v1233 = vmul.f32 %v1187, %v1223
        %v1234 = vmul.f32 %v1208, %v1223
        %v1235 = vmul.f32 %v1188, %v1223
        %v1236 = vmul.f32 %v1209, %v1223
        %v1237 = vmul.f32 %v1189, %v1223
        %v1238 = vmul.f32 %v1210, %v1223
        %v1239 = vmul.f32 %v1190, %v1223
        %v1240 = vmul.f32 %v1211, %v1223
        %v1241 = vmul.f32 %v1191, %v1223
        %v1242 = vmul.f32 %v1212, %v1223
        %v1243 = vmul.f32 %v1192, %v1223
        %v1244 = vmul.f32 %v1213, %v1223
        %v1245 = vmul.f32 %v1193, %v1223
        %v1246 = vmul.f32 %v1214, %v1223
        %v1247 = vmul.f32 %v1194, %v1223
        %v1248 = vmul.f32 %v1215, %v1223
        %v1249 = vmul.f32 %v1195, %v1223
        %v1250 = vmul.f32 %v1216, %v1223
        %v1251 = vmul.f32 %v1196, %v1223
        %v1252 = vmul.f32 %v1217, %v1223
        %v1253 = vmul.f32 %v1197, %v1223
        %v1254 = vmul.f32 %v1218, %v1223
        %v1255 = vmul.f32 %v1198, %v1223
        %v1256 = vadd.f32 %v1090, %v1224
        %v1257 = vadd.f32 %v1091, %v1225
        %v1258 = vadd.f32 %v1092, %v1226
        %v1259 = vadd.f32 %v1093, %v1227
        %v1260 = vadd.f32 %v1094, %v1228
        %v1261 = vadd.f32 %v1095, %v1229
        %v1262 = vadd.f32 %v1096, %v1230
        %v1263 = vadd.f32 %v1097, %v1231
        %v1264 = vadd.f32 %v1098, %v1232
        %v1265 = vadd.f32 %v1099, %v1233
        %v1266 = vadd.f32 %v1100, %v1234
        %v1267 = vadd.f32 %v1101, %v1235
        %v1268 = vadd.f32 %v1102, %v1236
        %v1269 = vadd.f32 %v1103, %v1237
        %v1270 = vadd.f32 %v1104, %v1238
        %v1271 = vadd.f32 %v1105, %v1239
        %v1272 = vadd.f32 %v1106, %v1240
        %v1273 = vadd.f32 %v1107, %v1241
        %v1274 = vadd.f32 %v1108, %v1242
        %v1275 = vadd.f32 %v1109, %v1243
        %v1276 = vadd.f32 %v1110, %v1244
        %v1277 = vadd.f32 %v1111, %v1245
        %v1278 = vadd.f32 %v1112, %v1246
        %v1279 = vadd.f32 %v1113, %v1247
        %v1280 = vadd.f32 %v1114, %v1248
        %v1281 = vadd.f32 %v1115, %v1249
        %v1282 = vadd.f32 %v1116, %v1250
        %v1283 = vadd.f32 %v1117, %v1251
        %v1284 = vadd.f32 %v1118, %v1252
        %v1285 = vadd.f32 %v1119, %v1253
        %v1286 = vadd.f32 %v1120, %v1254
        %v1287 = vadd.f32 %v1121, %v1255
        %v1288 = vperm.slane %v610, 6
        %v1289 = vmul.f32 %v1204, %v1288
        %v1290 = vmul.f32 %v1184, %v1288
        %v1291 = vmul.f32 %v1205, %v1288
        %v1292 = vmul.f32 %v1185, %v1288
        %v1293 = vmul.f32 %v1206, %v1288
        %v1294 = vmul.f32 %v1186, %v1288
        %v1295 = vmul.f32 %v1207, %v1288
        %v1296 = vmul.f32 %v1187, %v1288
        %v1297 = vmul.f32 %v1208, %v1288
        %v1298 = vmul.f32 %v1188, %v1288
        %v1299 = vmul.f32 %v1209, %v1288
        %v1300 = vmul.f32 %v1189, %v1288
        %v1301 = vmul.f32 %v1210, %v1288
        %v1302 = vmul.f32 %v1190, %v1288
        %v1303 = vmul.f32 %v1211, %v1288
        %v1304 = vmul.f32 %v1191, %v1288
        %v1305 = vmul.f32 %v1212, %v1288
        %v1306 = vmul.f32 %v1192, %v1288
        %v1307 = vmul.f32 %v1213, %v1288
        %v1308 = vmul.f32 %v1193, %v1288
        %v1309 = vmul.f32 %v1214, %v1288
        %v1310 = vmul.f32 %v1194, %v1288
        %v1311 = vmul.f32 %v1215, %v1288
        %v1312 = vmul.f32 %v1195, %v1288
        %v1313 = vmul.f32 %v1216, %v1288
        %v1314 = vmul.f32 %v1196, %v1288
        %v1315 = vmul.f32 %v1217, %v1288
        %v1316 = vmul.f32 %v1197, %v1288
        %v1317 = vmul.f32 %v1218, %v1288
        %v1318 = vmul.f32 %v1198, %v1288
        %v1319 = vmul.f32 %v1219, %v1288
        %v1320 = vmul.f32 %v1199, %v1288
        %v1321 = vadd.f32 %v1256, %v1289
        %v1322 = vadd.f32 %v1257, %v1290
        %v1323 = vadd.f32 %v1258, %v1291
        %v1324 = vadd.f32 %v1259, %v1292
        %v1325 = vadd.f32 %v1260, %v1293
        %v1326 = vadd.f32 %v1261, %v1294
        %v1327 = vadd.f32 %v1262, %v1295
        %v1328 = vadd.f32 %v1263, %v1296
        %v1329 = vadd.f32 %v1264, %v1297
        %v1330 = vadd.f32 %v1265, %v1298
        %v1331 = vadd.f32 %v1266, %v1299
        %v1332 = vadd.f32 %v1267, %v1300
        %v1333 = vadd.f32 %v1268, %v1301
        %v1334 = vadd.f32 %v1269, %v1302
        %v1335 = vadd.f32 %v1270, %v1303
        %v1336 = vadd.f32 %v1271, %v1304
        %v1337 = vadd.f32 %v1272, %v1305
        %v1338 = vadd.f32 %v1273, %v1306
        %v1339 = vadd.f32 %v1274, %v1307
        %v1340 = vadd.f32 %v1275, %v1308
        %v1341 = vadd.f32 %v1276, %v1309
        %v1342 = vadd.f32 %v1277, %v1310
        %v1343 = vadd.f32 %v1278, %v1311
        %v1344 = vadd.f32 %v1279, %v1312
        %v1345 = vadd.f32 %v1280, %v1313
        %v1346 = vadd.f32 %v1281, %v1314
        %v1347 = vadd.f32 %v1282, %v1315
        %v1348 = vadd.f32 %v1283, %v1316
        %v1349 = vadd.f32 %v1284, %v1317
        %v1350 = vadd.f32 %v1285, %v1318
        %v1351 = vadd.f32 %v1286, %v1319
        %v1352 = vadd.f32 %v1287, %v1320
        %v1353 = vperm.slane %v611, 3
        %v1354 = vmul.f32 %v1205, %v1353
        %v1355 = vmul.f32 %v1185, %v1353
        %v1356 = vmul.f32 %v1206, %v1353
        %v1357 = vmul.f32 %v1186, %v1353
        %v1358 = vmul.f32 %v1207, %v1353
        %v1359 = vmul.f32 %v1187, %v1353
        %v1360 = vmul.f32 %v1208, %v1353
        %v1361 = vmul.f32 %v1188, %v1353
        %v1362 = vmul.f32 %v1209, %v1353
        %v1363 = vmul.f32 %v1189, %v1353
        %v1364 = vmul.f32 %v1210, %v1353
        %v1365 = vmul.f32 %v1190, %v1353
        %v1366 = vmul.f32 %v1211, %v1353
        %v1367 = vmul.f32 %v1191, %v1353
        %v1368 = vmul.f32 %v1212, %v1353
        %v1369 = vmul.f32 %v1192, %v1353
        %v1370 = vmul.f32 %v1213, %v1353
        %v1371 = vmul.f32 %v1193, %v1353
        %v1372 = vmul.f32 %v1214, %v1353
        %v1373 = vmul.f32 %v1194, %v1353
        %v1374 = vmul.f32 %v1215, %v1353
        %v1375 = vmul.f32 %v1195, %v1353
        %v1376 = vmul.f32 %v1216, %v1353
        %v1377 = vmul.f32 %v1196, %v1353
        %v1378 = vmul.f32 %v1217, %v1353
        %v1379 = vmul.f32 %v1197, %v1353
        %v1380 = vmul.f32 %v1218, %v1353
        %v1381 = vmul.f32 %v1198, %v1353
        %v1382 = vmul.f32 %v1219, %v1353
        %v1383 = vmul.f32 %v1199, %v1353
        %v1384 = vmul.f32 %v1220, %v1353
        %v1385 = vmul.f32 %v1200, %v1353
        %v1386 = vadd.f32 %v1321, %v1354
        %v1387 = vadd.f32 %v1322, %v1355
        %v1388 = vadd.f32 %v1323, %v1356
        %v1389 = vadd.f32 %v1324, %v1357
        %v1390 = vadd.f32 %v1325, %v1358
        %v1391 = vadd.f32 %v1326, %v1359
        %v1392 = vadd.f32 %v1327, %v1360
        %v1393 = vadd.f32 %v1328, %v1361
        %v1394 = vadd.f32 %v1329, %v1362
        %v1395 = vadd.f32 %v1330, %v1363
        %v1396 = vadd.f32 %v1331, %v1364
        %v1397 = vadd.f32 %v1332, %v1365
        %v1398 = vadd.f32 %v1333, %v1366
        %v1399 = vadd.f32 %v1334, %v1367
        %v1400 = vadd.f32 %v1335, %v1368
        %v1401 = vadd.f32 %v1336, %v1369
        %v1402 = vadd.f32 %v1337, %v1370
        %v1403 = vadd.f32 %v1338, %v1371
        %v1404 = vadd.f32 %v1339, %v1372
        %v1405 = vadd.f32 %v1340, %v1373
        %v1406 = vadd.f32 %v1341, %v1374
        %v1407 = vadd.f32 %v1342, %v1375
        %v1408 = vadd.f32 %v1343, %v1376
        %v1409 = vadd.f32 %v1344, %v1377
        %v1410 = vadd.f32 %v1345, %v1378
        %v1411 = vadd.f32 %v1346, %v1379
        %v1412 = vadd.f32 %v1347, %v1380
        %v1413 = vadd.f32 %v1348, %v1381
        %v1414 = vadd.f32 %v1349, %v1382
        %v1415 = vadd.f32 %v1350, %v1383
        %v1416 = vadd.f32 %v1351, %v1384
        %v1417 = vadd.f32 %v1352, %v1385
        %v1418 = vperm.slane %v612, 0
        %v1419 = vmul.f32 %v1206, %v1418
        %v1420 = vmul.f32 %v1186, %v1418
        %v1421 = vmul.f32 %v1207, %v1418
        %v1422 = vmul.f32 %v1187, %v1418
        %v1423 = vmul.f32 %v1208, %v1418
        %v1424 = vmul.f32 %v1188, %v1418
        %v1425 = vmul.f32 %v1209, %v1418
        %v1426 = vmul.f32 %v1189, %v1418
        %v1427 = vmul.f32 %v1210, %v1418
        %v1428 = vmul.f32 %v1190, %v1418
        %v1429 = vmul.f32 %v1211, %v1418
        %v1430 = vmul.f32 %v1191, %v1418
        %v1431 = vmul.f32 %v1212, %v1418
        %v1432 = vmul.f32 %v1192, %v1418
        %v1433 = vmul.f32 %v1213, %v1418
        %v1434 = vmul.f32 %v1193, %v1418
        %v1435 = vmul.f32 %v1214, %v1418
        %v1436 = vmul.f32 %v1194, %v1418
        %v1437 = vmul.f32 %v1215, %v1418
        %v1438 = vmul.f32 %v1195, %v1418
        %v1439 = vmul.f32 %v1216, %v1418
        %v1440 = vmul.f32 %v1196, %v1418
        %v1441 = vmul.f32 %v1217, %v1418
        %v1442 = vmul.f32 %v1197, %v1418
        %v1443 = vmul.f32 %v1218, %v1418
        %v1444 = vmul.f32 %v1198, %v1418
        %v1445 = vmul.f32 %v1219, %v1418
        %v1446 = vmul.f32 %v1199, %v1418
        %v1447 = vmul.f32 %v1220, %v1418
        %v1448 = vmul.f32 %v1200, %v1418
        %v1449 = vmul.f32 %v1221, %v1418
        %v1450 = vmul.f32 %v1201, %v1418
        %v1451 = vadd.f32 %v1386, %v1419
        %v1452 = vadd.f32 %v1387, %v1420
        %v1453 = vadd.f32 %v1388, %v1421
        %v1454 = vadd.f32 %v1389, %v1422
        %v1455 = vadd.f32 %v1390, %v1423
        %v1456 = vadd.f32 %v1391, %v1424
        %v1457 = vadd.f32 %v1392, %v1425
        %v1458 = vadd.f32 %v1393, %v1426
        %v1459 = vadd.f32 %v1394, %v1427
        %v1460 = vadd.f32 %v1395, %v1428
        %v1461 = vadd.f32 %v1396, %v1429
        %v1462 = vadd.f32 %v1397, %v1430
        %v1463 = vadd.f32 %v1398, %v1431
        %v1464 = vadd.f32 %v1399, %v1432
        %v1465 = vadd.f32 %v1400, %v1433
        %v1466 = vadd.f32 %v1401, %v1434
        %v1467 = vadd.f32 %v1402, %v1435
        %v1468 = vadd.f32 %v1403, %v1436
        %v1469 = vadd.f32 %v1404, %v1437
        %v1470 = vadd.f32 %v1405, %v1438
        %v1471 = vadd.f32 %v1406, %v1439
        %v1472 = vadd.f32 %v1407, %v1440
        %v1473 = vadd.f32 %v1408, %v1441
        %v1474 = vadd.f32 %v1409, %v1442
        %v1475 = vadd.f32 %v1410, %v1443
        %v1476 = vadd.f32 %v1411, %v1444
        %v1477 = vadd.f32 %v1412, %v1445
        %v1478 = vadd.f32 %v1413, %v1446
        %v1479 = vadd.f32 %v1414, %v1447
        %v1480 = vadd.f32 %v1415, %v1448
        %v1481 = vadd.f32 %v1416, %v1449
        %v1482 = vadd.f32 %v1417, %v1450
        %v1483 = vperm.slane %v612, 5
        %v1484 = vmul.f32 %v1207, %v1483
        %v1485 = vmul.f32 %v1187, %v1483
        %v1486 = vmul.f32 %v1208, %v1483
        %v1487 = vmul.f32 %v1188, %v1483
        %v1488 = vmul.f32 %v1209, %v1483
        %v1489 = vmul.f32 %v1189, %v1483
        %v1490 = vmul.f32 %v1210, %v1483
        %v1491 = vmul.f32 %v1190, %v1483
        %v1492 = vmul.f32 %v1211, %v1483
        %v1493 = vmul.f32 %v1191, %v1483
        %v1494 = vmul.f32 %v1212, %v1483
        %v1495 = vmul.f32 %v1192, %v1483
        %v1496 = vmul.f32 %v1213, %v1483
        %v1497 = vmul.f32 %v1193, %v1483
        %v1498 = vmul.f32 %v1214, %v1483
        %v1499 = vmul.f32 %v1194, %v1483
        %v1500 = vmul.f32 %v1215, %v1483
        %v1501 = vmul.f32 %v1195, %v1483
        %v1502 = vmul.f32 %v1216, %v1483
        %v1503 = vmul.f32 %v1196, %v1483
        %v1504 = vmul.f32 %v1217, %v1483
        %v1505 = vmul.f32 %v1197, %v1483
        %v1506 = vmul.f32 %v1218, %v1483
        %v1507 = vmul.f32 %v1198, %v1483
        %v1508 = vmul.f32 %v1219, %v1483
        %v1509 = vmul.f32 %v1199, %v1483
        %v1510 = vmul.f32 %v1220, %v1483
        %v1511 = vmul.f32 %v1200, %v1483
        %v1512 = vmul.f32 %v1221, %v1483
        %v1513 = vmul.f32 %v1201, %v1483
        %v1514 = vmul.f32 %v1222, %v1483
        %v1515 = vmul.f32 %v1202, %v1483
        %v1516 = vadd.f32 %v1451, %v1484
        %v1517 = vadd.f32 %v1452, %v1485
        %v1518 = vadd.f32 %v1453, %v1486
        %v1519 = vadd.f32 %v1454, %v1487
        %v1520 = vadd.f32 %v1455, %v1488
        %v1521 = vadd.f32 %v1456, %v1489
        %v1522 = vadd.f32 %v1457, %v1490
        %v1523 = vadd.f32 %v1458, %v1491
        %v1524 = vadd.f32 %v1459, %v1492
        %v1525 = vadd.f32 %v1460, %v1493
        %v1526 = vadd.f32 %v1461, %v1494
        %v1527 = vadd.f32 %v1462, %v1495
        %v1528 = vadd.f32 %v1463, %v1496
        %v1529 = vadd.f32 %v1464, %v1497
        %v1530 = vadd.f32 %v1465, %v1498
        %v1531 = vadd.f32 %v1466, %v1499
        %v1532 = vadd.f32 %v1467, %v1500
        %v1533 = vadd.f32 %v1468, %v1501
        %v1534 = vadd.f32 %v1469, %v1502
        %v1535 = vadd.f32 %v1470, %v1503
        %v1536 = vadd.f32 %v1471, %v1504
        %v1537 = vadd.f32 %v1472, %v1505
        %v1538 = vadd.f32 %v1473, %v1506
        %v1539 = vadd.f32 %v1474, %v1507
        %v1540 = vadd.f32 %v1475, %v1508
        %v1541 = vadd.f32 %v1476, %v1509
        %v1542 = vadd.f32 %v1477, %v1510
        %v1543 = vadd.f32 %v1478, %v1511
        %v1544 = vadd.f32 %v1479, %v1512
        %v1545 = vadd.f32 %v1480, %v1513
        %v1546 = vadd.f32 %v1481, %v1514
        %v1547 = vadd.f32 %v1482, %v1515
        %v1548 = vperm.slane %v610, 2
        %v1549 = vmul.f32 %v615, %v1548
        %v1550 = vmul.f32 %v616, %v1548
        %v1551 = vmul.f32 %v619, %v1548
        %v1552 = vmul.f32 %v620, %v1548
        %v1553 = vmul.f32 %v623, %v1548
        %v1554 = vmul.f32 %v624, %v1548
        %v1555 = vmul.f32 %v627, %v1548
        %v1556 = vmul.f32 %v628, %v1548
        %v1557 = vmul.f32 %v631, %v1548
        %v1558 = vmul.f32 %v632, %v1548
        %v1559 = vmul.f32 %v635, %v1548
        %v1560 = vmul.f32 %v636, %v1548
        %v1561 = vmul.f32 %v639, %v1548
        %v1562 = vmul.f32 %v640, %v1548
        %v1563 = vmul.f32 %v643, %v1548
        %v1564 = vmul.f32 %v644, %v1548
        %v1565 = vmul.f32 %v647, %v1548
        %v1566 = vmul.f32 %v648, %v1548
        %v1567 = vmul.f32 %v651, %v1548
        %v1568 = vmul.f32 %v652, %v1548
        %v1569 = vmul.f32 %v655, %v1548
        %v1570 = vmul.f32 %v656, %v1548
        %v1571 = vmul.f32 %v659, %v1548
        %v1572 = vmul.f32 %v660, %v1548
        %v1573 = vmul.f32 %v663, %v1548
        %v1574 = vmul.f32 %v664, %v1548
        %v1575 = vmul.f32 %v667, %v1548
        %v1576 = vmul.f32 %v668, %v1548
        %v1577 = vmul.f32 %v671, %v1548
        %v1578 = vmul.f32 %v672, %v1548
        %v1579 = vmul.f32 %v675, %v1548
        %v1580 = vmul.f32 %v676, %v1548
        %v1581 = vadd.f32 %v1516, %v1549
        %v1582 = vadd.f32 %v1517, %v1550
        %v1583 = vadd.f32 %v1518, %v1551
        %v1584 = vadd.f32 %v1519, %v1552
        %v1585 = vadd.f32 %v1520, %v1553
        %v1586 = vadd.f32 %v1521, %v1554
        %v1587 = vadd.f32 %v1522, %v1555
        %v1588 = vadd.f32 %v1523, %v1556
        %v1589 = vadd.f32 %v1524, %v1557
        %v1590 = vadd.f32 %v1525, %v1558
        %v1591 = vadd.f32 %v1526, %v1559
        %v1592 = vadd.f32 %v1527, %v1560
        %v1593 = vadd.f32 %v1528, %v1561
        %v1594 = vadd.f32 %v1529, %v1562
        %v1595 = vadd.f32 %v1530, %v1563
        %v1596 = vadd.f32 %v1531, %v1564
        %v1597 = vadd.f32 %v1532, %v1565
        %v1598 = vadd.f32 %v1533, %v1566
        %v1599 = vadd.f32 %v1534, %v1567
        %v1600 = vadd.f32 %v1535, %v1568
        %v1601 = vadd.f32 %v1536, %v1569
        %v1602 = vadd.f32 %v1537, %v1570
        %v1603 = vadd.f32 %v1538, %v1571
        %v1604 = vadd.f32 %v1539, %v1572
        %v1605 = vadd.f32 %v1540, %v1573
        %v1606 = vadd.f32 %v1541, %v1574
        %v1607 = vadd.f32 %v1542, %v1575
        %v1608 = vadd.f32 %v1543, %v1576
        %v1609 = vadd.f32 %v1544, %v1577
        %v1610 = vadd.f32 %v1545, %v1578
        %v1611 = vadd.f32 %v1546, %v1579
        %v1612 = vadd.f32 %v1547, %v1580
        %v1613 = vperm.slane %v610, 7
        %v1614 = vmul.f32 %v619, %v1613
        %v1615 = vmul.f32 %v620, %v1613
        %v1616 = vmul.f32 %v623, %v1613
        %v1617 = vmul.f32 %v624, %v1613
        %v1618 = vmul.f32 %v627, %v1613
        %v1619 = vmul.f32 %v628, %v1613
        %v1620 = vmul.f32 %v631, %v1613
        %v1621 = vmul.f32 %v632, %v1613
        %v1622 = vmul.f32 %v635, %v1613
        %v1623 = vmul.f32 %v636, %v1613
        %v1624 = vmul.f32 %v639, %v1613
        %v1625 = vmul.f32 %v640, %v1613
        %v1626 = vmul.f32 %v643, %v1613
        %v1627 = vmul.f32 %v644, %v1613
        %v1628 = vmul.f32 %v647, %v1613
        %v1629 = vmul.f32 %v648, %v1613
        %v1630 = vmul.f32 %v651, %v1613
        %v1631 = vmul.f32 %v652, %v1613
        %v1632 = vmul.f32 %v655, %v1613
        %v1633 = vmul.f32 %v656, %v1613
        %v1634 = vmul.f32 %v659, %v1613
        %v1635 = vmul.f32 %v660, %v1613
        %v1636 = vmul.f32 %v663, %v1613
        %v1637 = vmul.f32 %v664, %v1613
        %v1638 = vmul.f32 %v667, %v1613
        %v1639 = vmul.f32 %v668, %v1613
        %v1640 = vmul.f32 %v671, %v1613
        %v1641 = vmul.f32 %v672, %v1613
        %v1642 = vmul.f32 %v675, %v1613
        %v1643 = vmul.f32 %v676, %v1613
        %v1644 = vmul.f32 %v679, %v1613
        %v1645 = vmul.f32 %v680, %v1613
        %v1646 = vadd.f32 %v1581, %v1614
        %v1647 = vadd.f32 %v1582, %v1615
        %v1648 = vadd.f32 %v1583, %v1616
        %v1649 = vadd.f32 %v1584, %v1617
        %v1650 = vadd.f32 %v1585, %v1618
        %v1651 = vadd.f32 %v1586, %v1619
        %v1652 = vadd.f32 %v1587, %v1620
        %v1653 = vadd.f32 %v1588, %v1621
        %v1654 = vadd.f32 %v1589, %v1622
        %v1655 = vadd.f32 %v1590, %v1623
        %v1656 = vadd.f32 %v1591, %v1624
        %v1657 = vadd.f32 %v1592, %v1625
        %v1658 = vadd.f32 %v1593, %v1626
        %v1659 = vadd.f32 %v1594, %v1627
        %v1660 = vadd.f32 %v1595, %v1628
        %v1661 = vadd.f32 %v1596, %v1629
        %v1662 = vadd.f32 %v1597, %v1630
        %v1663 = vadd.f32 %v1598, %v1631
        %v1664 = vadd.f32 %v1599, %v1632
        %v1665 = vadd.f32 %v1600, %v1633
        %v1666 = vadd.f32 %v1601, %v1634
        %v1667 = vadd.f32 %v1602, %v1635
        %v1668 = vadd.f32 %v1603, %v1636
        %v1669 = vadd.f32 %v1604, %v1637
        %v1670 = vadd.f32 %v1605, %v1638
        %v1671 = vadd.f32 %v1606, %v1639
        %v1672 = vadd.f32 %v1607, %v1640
        %v1673 = vadd.f32 %v1608, %v1641
        %v1674 = vadd.f32 %v1609, %v1642
        %v1675 = vadd.f32 %v1610, %v1643
        %v1676 = vadd.f32 %v1611, %v1644
        %v1677 = vadd.f32 %v1612, %v1645
        %v1678 = vperm.slane %v611, 4
        %v1679 = vmul.f32 %v623, %v1678
        %v1680 = vmul.f32 %v624, %v1678
        %v1681 = vmul.f32 %v627, %v1678
        %v1682 = vmul.f32 %v628, %v1678
        %v1683 = vmul.f32 %v631, %v1678
        %v1684 = vmul.f32 %v632, %v1678
        %v1685 = vmul.f32 %v635, %v1678
        %v1686 = vmul.f32 %v636, %v1678
        %v1687 = vmul.f32 %v639, %v1678
        %v1688 = vmul.f32 %v640, %v1678
        %v1689 = vmul.f32 %v643, %v1678
        %v1690 = vmul.f32 %v644, %v1678
        %v1691 = vmul.f32 %v647, %v1678
        %v1692 = vmul.f32 %v648, %v1678
        %v1693 = vmul.f32 %v651, %v1678
        %v1694 = vmul.f32 %v652, %v1678
        %v1695 = vmul.f32 %v655, %v1678
        %v1696 = vmul.f32 %v656, %v1678
        %v1697 = vmul.f32 %v659, %v1678
        %v1698 = vmul.f32 %v660, %v1678
        %v1699 = vmul.f32 %v663, %v1678
        %v1700 = vmul.f32 %v664, %v1678
        %v1701 = vmul.f32 %v667, %v1678
        %v1702 = vmul.f32 %v668, %v1678
        %v1703 = vmul.f32 %v671, %v1678
        %v1704 = vmul.f32 %v672, %v1678
        %v1705 = vmul.f32 %v675, %v1678
        %v1706 = vmul.f32 %v676, %v1678
        %v1707 = vmul.f32 %v679, %v1678
        %v1708 = vmul.f32 %v680, %v1678
        %v1709 = vmul.f32 %v683, %v1678
        %v1710 = vmul.f32 %v684, %v1678
        %v1711 = vadd.f32 %v1646, %v1679
        %v1712 = vadd.f32 %v1647, %v1680
        %v1713 = vadd.f32 %v1648, %v1681
        %v1714 = vadd.f32 %v1649, %v1682
        %v1715 = vadd.f32 %v1650, %v1683
        %v1716 = vadd.f32 %v1651, %v1684
        %v1717 = vadd.f32 %v1652, %v1685
        %v1718 = vadd.f32 %v1653, %v1686
        %v1719 = vadd.f32 %v1654, %v1687
        %v1720 = vadd.f32 %v1655, %v1688
        %v1721 = vadd.f32 %v1656, %v1689
        %v1722 = vadd.f32 %v1657, %v1690
        %v1723 = vadd.f32 %v1658, %v1691
        %v1724 = vadd.f32 %v1659, %v1692
        %v1725 = vadd.f32 %v1660, %v1693
        %v1726 = vadd.f32 %v1661, %v1694
        %v1727 = vadd.f32 %v1662, %v1695
        %v1728 = vadd.f32 %v1663, %v1696
        %v1729 = vadd.f32 %v1664, %v1697
        %v1730 = vadd.f32 %v1665, %v1698
        %v1731 = vadd.f32 %v1666, %v1699
        %v1732 = vadd.f32 %v1667, %v1700
        %v1733 = vadd.f32 %v1668, %v1701
        %v1734 = vadd.f32 %v1669, %v1702
        %v1735 = vadd.f32 %v1670, %v1703
        %v1736 = vadd.f32 %v1671, %v1704
        %v1737 = vadd.f32 %v1672, %v1705
        %v1738 = vadd.f32 %v1673, %v1706
        %v1739 = vadd.f32 %v1674, %v1707
        %v1740 = vadd.f32 %v1675, %v1708
        %v1741 = vadd.f32 %v1676, %v1709
        %v1742 = vadd.f32 %v1677, %v1710
        %v1743 = vperm.slane %v612, 1
        %v1744 = vmul.f32 %v627, %v1743
        %v1745 = vmul.f32 %v628, %v1743
        %v1746 = vmul.f32 %v631, %v1743
        %v1747 = vmul.f32 %v632, %v1743
        %v1748 = vmul.f32 %v635, %v1743
        %v1749 = vmul.f32 %v636, %v1743
        %v1750 = vmul.f32 %v639, %v1743
        %v1751 = vmul.f32 %v640, %v1743
        %v1752 = vmul.f32 %v643, %v1743
        %v1753 = vmul.f32 %v644, %v1743
        %v1754 = vmul.f32 %v647, %v1743
        %v1755 = vmul.f32 %v648, %v1743
        %v1756 = vmul.f32 %v651, %v1743
        %v1757 = vmul.f32 %v652, %v1743
        %v1758 = vmul.f32 %v655, %v1743
        %v1759 = vmul.f32 %v656, %v1743
        %v1760 = vmul.f32 %v659, %v1743
        %v1761 = vmul.f32 %v660, %v1743
        %v1762 = vmul.f32 %v663, %v1743
        %v1763 = vmul.f32 %v664, %v1743
        %v1764 = vmul.f32 %v667, %v1743
        %v1765 = vmul.f32 %v668, %v1743
        %v1766 = vmul.f32 %v671, %v1743
        %v1767 = vmul.f32 %v672, %v1743
        %v1768 = vmul.f32 %v675, %v1743
        %v1769 = vmul.f32 %v676, %v1743
        %v1770 = vmul.f32 %v679, %v1743
        %v1771 = vmul.f32 %v680, %v1743
        %v1772 = vmul.f32 %v683, %v1743
        %v1773 = vmul.f32 %v684, %v1743
        %v1774 = vmul.f32 %v687, %v1743
        %v1775 = vmul.f32 %v688, %v1743
        %v1776 = vadd.f32 %v1711, %v1744
        %v1777 = vadd.f32 %v1712, %v1745
        %v1778 = vadd.f32 %v1713, %v1746
        %v1779 = vadd.f32 %v1714, %v1747
        %v1780 = vadd.f32 %v1715, %v1748
        %v1781 = vadd.f32 %v1716, %v1749
        %v1782 = vadd.f32 %v1717, %v1750
        %v1783 = vadd.f32 %v1718, %v1751
        %v1784 = vadd.f32 %v1719, %v1752
        %v1785 = vadd.f32 %v1720, %v1753
        %v1786 = vadd.f32 %v1721, %v1754
        %v1787 = vadd.f32 %v1722, %v1755
        %v1788 = vadd.f32 %v1723, %v1756
        %v1789 = vadd.f32 %v1724, %v1757
        %v1790 = vadd.f32 %v1725, %v1758
        %v1791 = vadd.f32 %v1726, %v1759
        %v1792 = vadd.f32 %v1727, %v1760
        %v1793 = vadd.f32 %v1728, %v1761
        %v1794 = vadd.f32 %v1729, %v1762
        %v1795 = vadd.f32 %v1730, %v1763
        %v1796 = vadd.f32 %v1731, %v1764
        %v1797 = vadd.f32 %v1732, %v1765
        %v1798 = vadd.f32 %v1733, %v1766
        %v1799 = vadd.f32 %v1734, %v1767
        %v1800 = vadd.f32 %v1735, %v1768
        %v1801 = vadd.f32 %v1736, %v1769
        %v1802 = vadd.f32 %v1737, %v1770
        %v1803 = vadd.f32 %v1738, %v1771
        %v1804 = vadd.f32 %v1739, %v1772
        %v1805 = vadd.f32 %v1740, %v1773
        %v1806 = vadd.f32 %v1741, %v1774
        %v1807 = vadd.f32 %v1742, %v1775
        %v1808 = vperm.slane %v612, 6
        %v1809 = vmul.f32 %v631, %v1808
        %v1810 = vmul.f32 %v632, %v1808
        %v1811 = vmul.f32 %v635, %v1808
        %v1812 = vmul.f32 %v636, %v1808
        %v1813 = vmul.f32 %v639, %v1808
        %v1814 = vmul.f32 %v640, %v1808
        %v1815 = vmul.f32 %v643, %v1808
        %v1816 = vmul.f32 %v644, %v1808
        %v1817 = vmul.f32 %v647, %v1808
        %v1818 = vmul.f32 %v648, %v1808
        %v1819 = vmul.f32 %v651, %v1808
        %v1820 = vmul.f32 %v652, %v1808
        %v1821 = vmul.f32 %v655, %v1808
        %v1822 = vmul.f32 %v656, %v1808
        %v1823 = vmul.f32 %v659, %v1808
        %v1824 = vmul.f32 %v660, %v1808
        %v1825 = vmul.f32 %v663, %v1808
        %v1826 = vmul.f32 %v664, %v1808
        %v1827 = vmul.f32 %v667, %v1808
        %v1828 = vmul.f32 %v668, %v1808
        %v1829 = vmul.f32 %v671, %v1808
        %v1830 = vmul.f32 %v672, %v1808
        %v1831 = vmul.f32 %v675, %v1808
        %v1832 = vmul.f32 %v676, %v1808
        %v1833 = vmul.f32 %v679, %v1808
        %v1834 = vmul.f32 %v680, %v1808
        %v1835 = vmul.f32 %v683, %v1808
        %v1836 = vmul.f32 %v684, %v1808
        %v1837 = vmul.f32 %v687, %v1808
        %v1838 = vmul.f32 %v688, %v1808
        %v1839 = vmul.f32 %v691, %v1808
        %v1840 = vmul.f32 %v692, %v1808
        %v1841 = vadd.f32 %v1776, %v1809
        %v1842 = vadd.f32 %v1777, %v1810
        %v1843 = vadd.f32 %v1778, %v1811
        %v1844 = vadd.f32 %v1779, %v1812
        %v1845 = vadd.f32 %v1780, %v1813
        %v1846 = vadd.f32 %v1781, %v1814
        %v1847 = vadd.f32 %v1782, %v1815
        %v1848 = vadd.f32 %v1783, %v1816
        %v1849 = vadd.f32 %v1784, %v1817
        %v1850 = vadd.f32 %v1785, %v1818
        %v1851 = vadd.f32 %v1786, %v1819
        %v1852 = vadd.f32 %v1787, %v1820
        %v1853 = vadd.f32 %v1788, %v1821
        %v1854 = vadd.f32 %v1789, %v1822
        %v1855 = vadd.f32 %v1790, %v1823
        %v1856 = vadd.f32 %v1791, %v1824
        %v1857 = vadd.f32 %v1792, %v1825
        %v1858 = vadd.f32 %v1793, %v1826
        %v1859 = vadd.f32 %v1794, %v1827
        %v1860 = vadd.f32 %v1795, %v1828
        %v1861 = vadd.f32 %v1796, %v1829
        %v1862 = vadd.f32 %v1797, %v1830
        %v1863 = vadd.f32 %v1798, %v1831
        %v1864 = vadd.f32 %v1799, %v1832
        %v1865 = vadd.f32 %v1800, %v1833
        %v1866 = vadd.f32 %v1801, %v1834
        %v1867 = vadd.f32 %v1802, %v1835
        %v1868 = vadd.f32 %v1803, %v1836
        %v1869 = vadd.f32 %v1804, %v1837
        %v1870 = vadd.f32 %v1805, %v1838
        %v1871 = vadd.f32 %v1806, %v1839
        %v1872 = vadd.f32 %v1807, %v1840
        %v1873 = vrot.slane %v615, 1
        %v1874 = vrot.slane %v619, 1
        %v1875 = vrot.slane %v623, 1
        %v1876 = vrot.slane %v627, 1
        %v1877 = vrot.slane %v631, 1
        %v1878 = vrot.slane %v635, 1
        %v1879 = vrot.slane %v639, 1
        %v1880 = vrot.slane %v643, 1
        %v1881 = vrot.slane %v647, 1
        %v1882 = vrot.slane %v651, 1
        %v1883 = vrot.slane %v655, 1
        %v1884 = vrot.slane %v659, 1
        %v1885 = vrot.slane %v663, 1
        %v1886 = vrot.slane %v667, 1
        %v1887 = vrot.slane %v671, 1
        %v1888 = vrot.slane %v675, 1
        %v1889 = vrot.slane %v679, 1
        %v1890 = vrot.slane %v683, 1
        %v1891 = vrot.slane %v687, 1
        %v1892 = vrot.slane %v691, 1
        %v1893 = vrot.slane %v616, 1
        %v1894 = vrot.slane %v620, 1
        %v1895 = vrot.slane %v624, 1
        %v1896 = vrot.slane %v628, 1
        %v1897 = vrot.slane %v632, 1
        %v1898 = vrot.slane %v636, 1
        %v1899 = vrot.slane %v640, 1
        %v1900 = vrot.slane %v644, 1
        %v1901 = vrot.slane %v648, 1
        %v1902 = vrot.slane %v652, 1
        %v1903 = vrot.slane %v656, 1
        %v1904 = vrot.slane %v660, 1
        %v1905 = vrot.slane %v664, 1
        %v1906 = vrot.slane %v668, 1
        %v1907 = vrot.slane %v672, 1
        %v1908 = vrot.slane %v676, 1
        %v1909 = vrot.slane %v680, 1
        %v1910 = vrot.slane %v684, 1
        %v1911 = vrot.slane %v688, 1
        %v1912 = vrot.slane %v692, 1
        %v1913 = vrot.slane %v617, 1
        %v1914 = vrot.slane %v621, 1
        %v1915 = vrot.slane %v625, 1
        %v1916 = vrot.slane %v629, 1
        %v1917 = vrot.slane %v633, 1
        %v1918 = vrot.slane %v637, 1
        %v1919 = vrot.slane %v641, 1
        %v1920 = vrot.slane %v645, 1
        %v1921 = vrot.slane %v649, 1
        %v1922 = vrot.slane %v653, 1
        %v1923 = vrot.slane %v657, 1
        %v1924 = vrot.slane %v661, 1
        %v1925 = vrot.slane %v665, 1
        %v1926 = vrot.slane %v669, 1
        %v1927 = vrot.slane %v673, 1
        %v1928 = vrot.slane %v677, 1
        %v1929 = vrot.slane %v681, 1
        %v1930 = vrot.slane %v685, 1
        %v1931 = vrot.slane %v689, 1
        %v1932 = vrot.slane %v693, 1
        %vm1933 = vcmp.lt.s32.totalorder %v755, 7
        %v1934 = vsel %vm1933, %v1893, %v1913
        %v1935 = vsel %vm1933, %v1894, %v1914
        %v1936 = vsel %vm1933, %v1895, %v1915
        %v1937 = vsel %vm1933, %v1896, %v1916
        %v1938 = vsel %vm1933, %v1897, %v1917
        %v1939 = vsel %vm1933, %v1898, %v1918
        %v1940 = vsel %vm1933, %v1899, %v1919
        %v1941 = vsel %vm1933, %v1900, %v1920
        %v1942 = vsel %vm1933, %v1901, %v1921
        %v1943 = vsel %vm1933, %v1902, %v1922
        %v1944 = vsel %vm1933, %v1903, %v1923
        %v1945 = vsel %vm1933, %v1904, %v1924
        %v1946 = vsel %vm1933, %v1905, %v1925
        %v1947 = vsel %vm1933, %v1906, %v1926
        %v1948 = vsel %vm1933, %v1907, %v1927
        %v1949 = vsel %vm1933, %v1908, %v1928
        %v1950 = vsel %vm1933, %v1909, %v1929
        %v1951 = vsel %vm1933, %v1910, %v1930
        %v1952 = vsel %vm1933, %v1911, %v1931
        %v1953 = vsel %vm1933, %v1912, %v1932
        %v1954 = vsel %vm1933, %v1873, %v1893
        %v1955 = vsel %vm1933, %v1874, %v1894
        %v1956 = vsel %vm1933, %v1875, %v1895
        %v1957 = vsel %vm1933, %v1876, %v1896
        %v1958 = vsel %vm1933, %v1877, %v1897
        %v1959 = vsel %vm1933, %v1878, %v1898
        %v1960 = vsel %vm1933, %v1879, %v1899
        %v1961 = vsel %vm1933, %v1880, %v1900
        %v1962 = vsel %vm1933, %v1881, %v1901
        %v1963 = vsel %vm1933, %v1882, %v1902
        %v1964 = vsel %vm1933, %v1883, %v1903
        %v1965 = vsel %vm1933, %v1884, %v1904
        %v1966 = vsel %vm1933, %v1885, %v1905
        %v1967 = vsel %vm1933, %v1886, %v1906
        %v1968 = vsel %vm1933, %v1887, %v1907
        %v1969 = vsel %vm1933, %v1888, %v1908
        %v1970 = vsel %vm1933, %v1889, %v1909
        %v1971 = vsel %vm1933, %v1890, %v1910
        %v1972 = vsel %vm1933, %v1891, %v1911
        %v1973 = vsel %vm1933, %v1892, %v1912
        %v1974 = vperm.slane %v610, 3
        %v1975 = vmul.f32 %v1954, %v1974
        %v1976 = vmul.f32 %v1934, %v1974
        %v1977 = vmul.f32 %v1955, %v1974
        %v1978 = vmul.f32 %v1935, %v1974
        %v1979 = vmul.f32 %v1956, %v1974
        %v1980 = vmul.f32 %v1936, %v1974
        %v1981 = vmul.f32 %v1957, %v1974
        %v1982 = vmul.f32 %v1937, %v1974
        %v1983 = vmul.f32 %v1958, %v1974
        %v1984 = vmul.f32 %v1938, %v1974
        %v1985 = vmul.f32 %v1959, %v1974
        %v1986 = vmul.f32 %v1939, %v1974
        %v1987 = vmul.f32 %v1960, %v1974
        %v1988 = vmul.f32 %v1940, %v1974
        %v1989 = vmul.f32 %v1961, %v1974
        %v1990 = vmul.f32 %v1941, %v1974
        %v1991 = vmul.f32 %v1962, %v1974
        %v1992 = vmul.f32 %v1942, %v1974
        %v1993 = vmul.f32 %v1963, %v1974
        %v1994 = vmul.f32 %v1943, %v1974
        %v1995 = vmul.f32 %v1964, %v1974
        %v1996 = vmul.f32 %v1944, %v1974
        %v1997 = vmul.f32 %v1965, %v1974
        %v1998 = vmul.f32 %v1945, %v1974
        %v1999 = vmul.f32 %v1966, %v1974
        %v2000 = vmul.f32 %v1946, %v1974
        %v2001 = vmul.f32 %v1967, %v1974
        %v2002 = vmul.f32 %v1947, %v1974
        %v2003 = vmul.f32 %v1968, %v1974
        %v2004 = vmul.f32 %v1948, %v1974
        %v2005 = vmul.f32 %v1969, %v1974
        %v2006 = vmul.f32 %v1949, %v1974
        %v2007 = vadd.f32 %v1841, %v1975
        %v2008 = vadd.f32 %v1842, %v1976
        %v2009 = vadd.f32 %v1843, %v1977
        %v2010 = vadd.f32 %v1844, %v1978
        %v2011 = vadd.f32 %v1845, %v1979
        %v2012 = vadd.f32 %v1846, %v1980
        %v2013 = vadd.f32 %v1847, %v1981
        %v2014 = vadd.f32 %v1848, %v1982
        %v2015 = vadd.f32 %v1849, %v1983
        %v2016 = vadd.f32 %v1850, %v1984
        %v2017 = vadd.f32 %v1851, %v1985
        %v2018 = vadd.f32 %v1852, %v1986
        %v2019 = vadd.f32 %v1853, %v1987
        %v2020 = vadd.f32 %v1854, %v1988
        %v2021 = vadd.f32 %v1855, %v1989
        %v2022 = vadd.f32 %v1856, %v1990
        %v2023 = vadd.f32 %v1857, %v1991
        %v2024 = vadd.f32 %v1858, %v1992
        %v2025 = vadd.f32 %v1859, %v1993
        %v2026 = vadd.f32 %v1860, %v1994
        %v2027 = vadd.f32 %v1861, %v1995
        %v2028 = vadd.f32 %v1862, %v1996
        %v2029 = vadd.f32 %v1863, %v1997
        %v2030 = vadd.f32 %v1864, %v1998
        %v2031 = vadd.f32 %v1865, %v1999
        %v2032 = vadd.f32 %v1866, %v2000
        %v2033 = vadd.f32 %v1867, %v2001
        %v2034 = vadd.f32 %v1868, %v2002
        %v2035 = vadd.f32 %v1869, %v2003
        %v2036 = vadd.f32 %v1870, %v2004
        %v2037 = vadd.f32 %v1871, %v2005
        %v2038 = vadd.f32 %v1872, %v2006
        %v2039 = vperm.slane %v611, 0
        %v2040 = vmul.f32 %v1955, %v2039
        %v2041 = vmul.f32 %v1935, %v2039
        %v2042 = vmul.f32 %v1956, %v2039
        %v2043 = vmul.f32 %v1936, %v2039
        %v2044 = vmul.f32 %v1957, %v2039
        %v2045 = vmul.f32 %v1937, %v2039
        %v2046 = vmul.f32 %v1958, %v2039
        %v2047 = vmul.f32 %v1938, %v2039
        %v2048 = vmul.f32 %v1959, %v2039
        %v2049 = vmul.f32 %v1939, %v2039
        %v2050 = vmul.f32 %v1960, %v2039
        %v2051 = vmul.f32 %v1940, %v2039
        %v2052 = vmul.f32 %v1961, %v2039
        %v2053 = vmul.f32 %v1941, %v2039
        %v2054 = vmul.f32 %v1962, %v2039
        %v2055 = vmul.f32 %v1942, %v2039
        %v2056 = vmul.f32 %v1963, %v2039
        %v2057 = vmul.f32 %v1943, %v2039
        %v2058 = vmul.f32 %v1964, %v2039
        %v2059 = vmul.f32 %v1944, %v2039
        %v2060 = vmul.f32 %v1965, %v2039
        %v2061 = vmul.f32 %v1945, %v2039
        %v2062 = vmul.f32 %v1966, %v2039
        %v2063 = vmul.f32 %v1946, %v2039
        %v2064 = vmul.f32 %v1967, %v2039
        %v2065 = vmul.f32 %v1947, %v2039
        %v2066 = vmul.f32 %v1968, %v2039
        %v2067 = vmul.f32 %v1948, %v2039
        %v2068 = vmul.f32 %v1969, %v2039
        %v2069 = vmul.f32 %v1949, %v2039
        %v2070 = vmul.f32 %v1970, %v2039
        %v2071 = vmul.f32 %v1950, %v2039
        %v2072 = vadd.f32 %v2007, %v2040
        %v2073 = vadd.f32 %v2008, %v2041
        %v2074 = vadd.f32 %v2009, %v2042
        %v2075 = vadd.f32 %v2010, %v2043
        %v2076 = vadd.f32 %v2011, %v2044
        %v2077 = vadd.f32 %v2012, %v2045
        %v2078 = vadd.f32 %v2013, %v2046
        %v2079 = vadd.f32 %v2014, %v2047
        %v2080 = vadd.f32 %v2015, %v2048
        %v2081 = vadd.f32 %v2016, %v2049
        %v2082 = vadd.f32 %v2017, %v2050
        %v2083 = vadd.f32 %v2018, %v2051
        %v2084 = vadd.f32 %v2019, %v2052
        %v2085 = vadd.f32 %v2020, %v2053
        %v2086 = vadd.f32 %v2021, %v2054
        %v2087 = vadd.f32 %v2022, %v2055
        %v2088 = vadd.f32 %v2023, %v2056
        %v2089 = vadd.f32 %v2024, %v2057
        %v2090 = vadd.f32 %v2025, %v2058
        %v2091 = vadd.f32 %v2026, %v2059
        %v2092 = vadd.f32 %v2027, %v2060
        %v2093 = vadd.f32 %v2028, %v2061
        %v2094 = vadd.f32 %v2029, %v2062
        %v2095 = vadd.f32 %v2030, %v2063
        %v2096 = vadd.f32 %v2031, %v2064
        %v2097 = vadd.f32 %v2032, %v2065
        %v2098 = vadd.f32 %v2033, %v2066
        %v2099 = vadd.f32 %v2034, %v2067
        %v2100 = vadd.f32 %v2035, %v2068
        %v2101 = vadd.f32 %v2036, %v2069
        %v2102 = vadd.f32 %v2037, %v2070
        %v2103 = vadd.f32 %v2038, %v2071
        %v2104 = vperm.slane %v611, 5
        %v2105 = vmul.f32 %v1956, %v2104
        %v2106 = vmul.f32 %v1936, %v2104
        %v2107 = vmul.f32 %v1957, %v2104
        %v2108 = vmul.f32 %v1937, %v2104
        %v2109 = vmul.f32 %v1958, %v2104
        %v2110 = vmul.f32 %v1938, %v2104
        %v2111 = vmul.f32 %v1959, %v2104
        %v2112 = vmul.f32 %v1939, %v2104
        %v2113 = vmul.f32 %v1960, %v2104
        %v2114 = vmul.f32 %v1940, %v2104
        %v2115 = vmul.f32 %v1961, %v2104
        %v2116 = vmul.f32 %v1941, %v2104
        %v2117 = vmul.f32 %v1962, %v2104
        %v2118 = vmul.f32 %v1942, %v2104
        %v2119 = vmul.f32 %v1963, %v2104
        %v2120 = vmul.f32 %v1943, %v2104
        %v2121 = vmul.f32 %v1964, %v2104
        %v2122 = vmul.f32 %v1944, %v2104
        %v2123 = vmul.f32 %v1965, %v2104
        %v2124 = vmul.f32 %v1945, %v2104
        %v2125 = vmul.f32 %v1966, %v2104
        %v2126 = vmul.f32 %v1946, %v2104
        %v2127 = vmul.f32 %v1967, %v2104
        %v2128 = vmul.f32 %v1947, %v2104
        %v2129 = vmul.f32 %v1968, %v2104
        %v2130 = vmul.f32 %v1948, %v2104
        %v2131 = vmul.f32 %v1969, %v2104
        %v2132 = vmul.f32 %v1949, %v2104
        %v2133 = vmul.f32 %v1970, %v2104
        %v2134 = vmul.f32 %v1950, %v2104
        %v2135 = vmul.f32 %v1971, %v2104
        %v2136 = vmul.f32 %v1951, %v2104
        %v2137 = vadd.f32 %v2072, %v2105
        %v2138 = vadd.f32 %v2073, %v2106
        %v2139 = vadd.f32 %v2074, %v2107
        %v2140 = vadd.f32 %v2075, %v2108
        %v2141 = vadd.f32 %v2076, %v2109
        %v2142 = vadd.f32 %v2077, %v2110
        %v2143 = vadd.f32 %v2078, %v2111
        %v2144 = vadd.f32 %v2079, %v2112
        %v2145 = vadd.f32 %v2080, %v2113
        %v2146 = vadd.f32 %v2081, %v2114
        %v2147 = vadd.f32 %v2082, %v2115
        %v2148 = vadd.f32 %v2083, %v2116
        %v2149 = vadd.f32 %v2084, %v2117
        %v2150 = vadd.f32 %v2085, %v2118
        %v2151 = vadd.f32 %v2086, %v2119
        %v2152 = vadd.f32 %v2087, %v2120
        %v2153 = vadd.f32 %v2088, %v2121
        %v2154 = vadd.f32 %v2089, %v2122
        %v2155 = vadd.f32 %v2090, %v2123
        %v2156 = vadd.f32 %v2091, %v2124
        %v2157 = vadd.f32 %v2092, %v2125
        %v2158 = vadd.f32 %v2093, %v2126
        %v2159 = vadd.f32 %v2094, %v2127
        %v2160 = vadd.f32 %v2095, %v2128
        %v2161 = vadd.f32 %v2096, %v2129
        %v2162 = vadd.f32 %v2097, %v2130
        %v2163 = vadd.f32 %v2098, %v2131
        %v2164 = vadd.f32 %v2099, %v2132
        %v2165 = vadd.f32 %v2100, %v2133
        %v2166 = vadd.f32 %v2101, %v2134
        %v2167 = vadd.f32 %v2102, %v2135
        %v2168 = vadd.f32 %v2103, %v2136
        %v2169 = vperm.slane %v612, 2
        %v2170 = vmul.f32 %v1957, %v2169
        %v2171 = vmul.f32 %v1937, %v2169
        %v2172 = vmul.f32 %v1958, %v2169
        %v2173 = vmul.f32 %v1938, %v2169
        %v2174 = vmul.f32 %v1959, %v2169
        %v2175 = vmul.f32 %v1939, %v2169
        %v2176 = vmul.f32 %v1960, %v2169
        %v2177 = vmul.f32 %v1940, %v2169
        %v2178 = vmul.f32 %v1961, %v2169
        %v2179 = vmul.f32 %v1941, %v2169
        %v2180 = vmul.f32 %v1962, %v2169
        %v2181 = vmul.f32 %v1942, %v2169
        %v2182 = vmul.f32 %v1963, %v2169
        %v2183 = vmul.f32 %v1943, %v2169
        %v2184 = vmul.f32 %v1964, %v2169
        %v2185 = vmul.f32 %v1944, %v2169
        %v2186 = vmul.f32 %v1965, %v2169
        %v2187 = vmul.f32 %v1945, %v2169
        %v2188 = vmul.f32 %v1966, %v2169
        %v2189 = vmul.f32 %v1946, %v2169
        %v2190 = vmul.f32 %v1967, %v2169
        %v2191 = vmul.f32 %v1947, %v2169
        %v2192 = vmul.f32 %v1968, %v2169
        %v2193 = vmul.f32 %v1948, %v2169
        %v2194 = vmul.f32 %v1969, %v2169
        %v2195 = vmul.f32 %v1949, %v2169
        %v2196 = vmul.f32 %v1970, %v2169
        %v2197 = vmul.f32 %v1950, %v2169
        %v2198 = vmul.f32 %v1971, %v2169
        %v2199 = vmul.f32 %v1951, %v2169
        %v2200 = vmul.f32 %v1972, %v2169
        %v2201 = vmul.f32 %v1952, %v2169
        %v2202 = vadd.f32 %v2137, %v2170
        %v2203 = vadd.f32 %v2138, %v2171
        %v2204 = vadd.f32 %v2139, %v2172
        %v2205 = vadd.f32 %v2140, %v2173
        %v2206 = vadd.f32 %v2141, %v2174
        %v2207 = vadd.f32 %v2142, %v2175
        %v2208 = vadd.f32 %v2143, %v2176
        %v2209 = vadd.f32 %v2144, %v2177
        %v2210 = vadd.f32 %v2145, %v2178
        %v2211 = vadd.f32 %v2146, %v2179
        %v2212 = vadd.f32 %v2147, %v2180
        %v2213 = vadd.f32 %v2148, %v2181
        %v2214 = vadd.f32 %v2149, %v2182
        %v2215 = vadd.f32 %v2150, %v2183
        %v2216 = vadd.f32 %v2151, %v2184
        %v2217 = vadd.f32 %v2152, %v2185
        %v2218 = vadd.f32 %v2153, %v2186
        %v2219 = vadd.f32 %v2154, %v2187
        %v2220 = vadd.f32 %v2155, %v2188
        %v2221 = vadd.f32 %v2156, %v2189
        %v2222 = vadd.f32 %v2157, %v2190
        %v2223 = vadd.f32 %v2158, %v2191
        %v2224 = vadd.f32 %v2159, %v2192
        %v2225 = vadd.f32 %v2160, %v2193
        %v2226 = vadd.f32 %v2161, %v2194
        %v2227 = vadd.f32 %v2162, %v2195
        %v2228 = vadd.f32 %v2163, %v2196
        %v2229 = vadd.f32 %v2164, %v2197
        %v2230 = vadd.f32 %v2165, %v2198
        %v2231 = vadd.f32 %v2166, %v2199
        %v2232 = vadd.f32 %v2167, %v2200
        %v2233 = vadd.f32 %v2168, %v2201
        %v2234 = vperm.slane %v612, 7
        %v2235 = vmul.f32 %v1958, %v2234
        %v2236 = vmul.f32 %v1938, %v2234
        %v2237 = vmul.f32 %v1959, %v2234
        %v2238 = vmul.f32 %v1939, %v2234
        %v2239 = vmul.f32 %v1960, %v2234
        %v2240 = vmul.f32 %v1940, %v2234
        %v2241 = vmul.f32 %v1961, %v2234
        %v2242 = vmul.f32 %v1941, %v2234
        %v2243 = vmul.f32 %v1962, %v2234
        %v2244 = vmul.f32 %v1942, %v2234
        %v2245 = vmul.f32 %v1963, %v2234
        %v2246 = vmul.f32 %v1943, %v2234
        %v2247 = vmul.f32 %v1964, %v2234
        %v2248 = vmul.f32 %v1944, %v2234
        %v2249 = vmul.f32 %v1965, %v2234
        %v2250 = vmul.f32 %v1945, %v2234
        %v2251 = vmul.f32 %v1966, %v2234
        %v2252 = vmul.f32 %v1946, %v2234
        %v2253 = vmul.f32 %v1967, %v2234
        %v2254 = vmul.f32 %v1947, %v2234
        %v2255 = vmul.f32 %v1968, %v2234
        %v2256 = vmul.f32 %v1948, %v2234
        %v2257 = vmul.f32 %v1969, %v2234
        %v2258 = vmul.f32 %v1949, %v2234
        %v2259 = vmul.f32 %v1970, %v2234
        %v2260 = vmul.f32 %v1950, %v2234
        %v2261 = vmul.f32 %v1971, %v2234
        %v2262 = vmul.f32 %v1951, %v2234
        %v2263 = vmul.f32 %v1972, %v2234
        %v2264 = vmul.f32 %v1952, %v2234
        %v2265 = vmul.f32 %v1973, %v2234
        %v2266 = vmul.f32 %v1953, %v2234
        %v2267 = vadd.f32 %v2202, %v2235
        %v2268 = vadd.f32 %v2203, %v2236
        %v2269 = vadd.f32 %v2204, %v2237
        %v2270 = vadd.f32 %v2205, %v2238
        %v2271 = vadd.f32 %v2206, %v2239
        %v2272 = vadd.f32 %v2207, %v2240
        %v2273 = vadd.f32 %v2208, %v2241
        %v2274 = vadd.f32 %v2209, %v2242
        %v2275 = vadd.f32 %v2210, %v2243
        %v2276 = vadd.f32 %v2211, %v2244
        %v2277 = vadd.f32 %v2212, %v2245
        %v2278 = vadd.f32 %v2213, %v2246
        %v2279 = vadd.f32 %v2214, %v2247
        %v2280 = vadd.f32 %v2215, %v2248
        %v2281 = vadd.f32 %v2216, %v2249
        %v2282 = vadd.f32 %v2217, %v2250
        %v2283 = vadd.f32 %v2218, %v2251
        %v2284 = vadd.f32 %v2219, %v2252
        %v2285 = vadd.f32 %v2220, %v2253
        %v2286 = vadd.f32 %v2221, %v2254
        %v2287 = vadd.f32 %v2222, %v2255
        %v2288 = vadd.f32 %v2223, %v2256
        %v2289 = vadd.f32 %v2224, %v2257
        %v2290 = vadd.f32 %v2225, %v2258
        %v2291 = vadd.f32 %v2226, %v2259
        %v2292 = vadd.f32 %v2227, %v2260
        %v2293 = vadd.f32 %v2228, %v2261
        %v2294 = vadd.f32 %v2229, %v2262
        %v2295 = vadd.f32 %v2230, %v2263
        %v2296 = vadd.f32 %v2231, %v2264
        %v2297 = vadd.f32 %v2232, %v2265
        %v2298 = vadd.f32 %v2233, %v2266
        %v2299 = vrot.slane %v615, 2
        %v2300 = vrot.slane %v619, 2
        %v2301 = vrot.slane %v623, 2
        %v2302 = vrot.slane %v627, 2
        %v2303 = vrot.slane %v631, 2
        %v2304 = vrot.slane %v635, 2
        %v2305 = vrot.slane %v639, 2
        %v2306 = vrot.slane %v643, 2
        %v2307 = vrot.slane %v647, 2
        %v2308 = vrot.slane %v651, 2
        %v2309 = vrot.slane %v655, 2
        %v2310 = vrot.slane %v659, 2
        %v2311 = vrot.slane %v663, 2
        %v2312 = vrot.slane %v667, 2
        %v2313 = vrot.slane %v671, 2
        %v2314 = vrot.slane %v675, 2
        %v2315 = vrot.slane %v679, 2
        %v2316 = vrot.slane %v683, 2
        %v2317 = vrot.slane %v687, 2
        %v2318 = vrot.slane %v691, 2
        %v2319 = vrot.slane %v616, 2
        %v2320 = vrot.slane %v620, 2
        %v2321 = vrot.slane %v624, 2
        %v2322 = vrot.slane %v628, 2
        %v2323 = vrot.slane %v632, 2
        %v2324 = vrot.slane %v636, 2
        %v2325 = vrot.slane %v640, 2
        %v2326 = vrot.slane %v644, 2
        %v2327 = vrot.slane %v648, 2
        %v2328 = vrot.slane %v652, 2
        %v2329 = vrot.slane %v656, 2
        %v2330 = vrot.slane %v660, 2
        %v2331 = vrot.slane %v664, 2
        %v2332 = vrot.slane %v668, 2
        %v2333 = vrot.slane %v672, 2
        %v2334 = vrot.slane %v676, 2
        %v2335 = vrot.slane %v680, 2
        %v2336 = vrot.slane %v684, 2
        %v2337 = vrot.slane %v688, 2
        %v2338 = vrot.slane %v692, 2
        %v2339 = vrot.slane %v617, 2
        %v2340 = vrot.slane %v621, 2
        %v2341 = vrot.slane %v625, 2
        %v2342 = vrot.slane %v629, 2
        %v2343 = vrot.slane %v633, 2
        %v2344 = vrot.slane %v637, 2
        %v2345 = vrot.slane %v641, 2
        %v2346 = vrot.slane %v645, 2
        %v2347 = vrot.slane %v649, 2
        %v2348 = vrot.slane %v653, 2
        %v2349 = vrot.slane %v657, 2
        %v2350 = vrot.slane %v661, 2
        %v2351 = vrot.slane %v665, 2
        %v2352 = vrot.slane %v669, 2
        %v2353 = vrot.slane %v673, 2
        %v2354 = vrot.slane %v677, 2
        %v2355 = vrot.slane %v681, 2
        %v2356 = vrot.slane %v685, 2
        %v2357 = vrot.slane %v689, 2
        %v2358 = vrot.slane %v693, 2
        %vm2359 = vcmp.lt.s32.totalorder %v755, 6
        %v2360 = vsel %vm2359, %v2319, %v2339
        %v2361 = vsel %vm2359, %v2320, %v2340
        %v2362 = vsel %vm2359, %v2321, %v2341
        %v2363 = vsel %vm2359, %v2322, %v2342
        %v2364 = vsel %vm2359, %v2323, %v2343
        %v2365 = vsel %vm2359, %v2324, %v2344
        %v2366 = vsel %vm2359, %v2325, %v2345
        %v2367 = vsel %vm2359, %v2326, %v2346
        %v2368 = vsel %vm2359, %v2327, %v2347
        %v2369 = vsel %vm2359, %v2328, %v2348
        %v2370 = vsel %vm2359, %v2329, %v2349
        %v2371 = vsel %vm2359, %v2330, %v2350
        %v2372 = vsel %vm2359, %v2331, %v2351
        %v2373 = vsel %vm2359, %v2332, %v2352
        %v2374 = vsel %vm2359, %v2333, %v2353
        %v2375 = vsel %vm2359, %v2334, %v2354
        %v2376 = vsel %vm2359, %v2335, %v2355
        %v2377 = vsel %vm2359, %v2336, %v2356
        %v2378 = vsel %vm2359, %v2337, %v2357
        %v2379 = vsel %vm2359, %v2338, %v2358
        %v2380 = vsel %vm2359, %v2299, %v2319
        %v2381 = vsel %vm2359, %v2300, %v2320
        %v2382 = vsel %vm2359, %v2301, %v2321
        %v2383 = vsel %vm2359, %v2302, %v2322
        %v2384 = vsel %vm2359, %v2303, %v2323
        %v2385 = vsel %vm2359, %v2304, %v2324
        %v2386 = vsel %vm2359, %v2305, %v2325
        %v2387 = vsel %vm2359, %v2306, %v2326
        %v2388 = vsel %vm2359, %v2307, %v2327
        %v2389 = vsel %vm2359, %v2308, %v2328
        %v2390 = vsel %vm2359, %v2309, %v2329
        %v2391 = vsel %vm2359, %v2310, %v2330
        %v2392 = vsel %vm2359, %v2311, %v2331
        %v2393 = vsel %vm2359, %v2312, %v2332
        %v2394 = vsel %vm2359, %v2313, %v2333
        %v2395 = vsel %vm2359, %v2314, %v2334
        %v2396 = vsel %vm2359, %v2315, %v2335
        %v2397 = vsel %vm2359, %v2316, %v2336
        %v2398 = vsel %vm2359, %v2317, %v2337
        %v2399 = vsel %vm2359, %v2318, %v2338
        %v2400 = vperm.slane %v610, 4
        %v2401 = vmul.f32 %v2380, %v2400
        %v2402 = vmul.f32 %v2360, %v2400
        %v2403 = vmul.f32 %v2381, %v2400
        %v2404 = vmul.f32 %v2361, %v2400
        %v2405 = vmul.f32 %v2382, %v2400
        %v2406 = vmul.f32 %v2362, %v2400
        %v2407 = vmul.f32 %v2383, %v2400
        %v2408 = vmul.f32 %v2363, %v2400
        %v2409 = vmul.f32 %v2384, %v2400
        %v2410 = vmul.f32 %v2364, %v2400
        %v2411 = vmul.f32 %v2385, %v2400
        %v2412 = vmul.f32 %v2365, %v2400
        %v2413 = vmul.f32 %v2386, %v2400
        %v2414 = vmul.f32 %v2366, %v2400
        %v2415 = vmul.f32 %v2387, %v2400
        %v2416 = vmul.f32 %v2367, %v2400
        %v2417 = vmul.f32 %v2388, %v2400
        %v2418 = vmul.f32 %v2368, %v2400
        %v2419 = vmul.f32 %v2389, %v2400
        %v2420 = vmul.f32 %v2369, %v2400
        %v2421 = vmul.f32 %v2390, %v2400
        %v2422 = vmul.f32 %v2370, %v2400
        %v2423 = vmul.f32 %v2391, %v2400
        %v2424 = vmul.f32 %v2371, %v2400
        %v2425 = vmul.f32 %v2392, %v2400
        %v2426 = vmul.f32 %v2372, %v2400
        %v2427 = vmul.f32 %v2393, %v2400
        %v2428 = vmul.f32 %v2373, %v2400
        %v2429 = vmul.f32 %v2394, %v2400
        %v2430 = vmul.f32 %v2374, %v2400
        %v2431 = vmul.f32 %v2395, %v2400
        %v2432 = vmul.f32 %v2375, %v2400
        %v2433 = vadd.f32 %v2267, %v2401
        %v2434 = vadd.f32 %v2268, %v2402
        %v2435 = vadd.f32 %v2269, %v2403
        %v2436 = vadd.f32 %v2270, %v2404
        %v2437 = vadd.f32 %v2271, %v2405
        %v2438 = vadd.f32 %v2272, %v2406
        %v2439 = vadd.f32 %v2273, %v2407
        %v2440 = vadd.f32 %v2274, %v2408
        %v2441 = vadd.f32 %v2275, %v2409
        %v2442 = vadd.f32 %v2276, %v2410
        %v2443 = vadd.f32 %v2277, %v2411
        %v2444 = vadd.f32 %v2278, %v2412
        %v2445 = vadd.f32 %v2279, %v2413
        %v2446 = vadd.f32 %v2280, %v2414
        %v2447 = vadd.f32 %v2281, %v2415
        %v2448 = vadd.f32 %v2282, %v2416
        %v2449 = vadd.f32 %v2283, %v2417
        %v2450 = vadd.f32 %v2284, %v2418
        %v2451 = vadd.f32 %v2285, %v2419
        %v2452 = vadd.f32 %v2286, %v2420
        %v2453 = vadd.f32 %v2287, %v2421
        %v2454 = vadd.f32 %v2288, %v2422
        %v2455 = vadd.f32 %v2289, %v2423
        %v2456 = vadd.f32 %v2290, %v2424
        %v2457 = vadd.f32 %v2291, %v2425
        %v2458 = vadd.f32 %v2292, %v2426
        %v2459 = vadd.f32 %v2293, %v2427
        %v2460 = vadd.f32 %v2294, %v2428
        %v2461 = vadd.f32 %v2295, %v2429
        %v2462 = vadd.f32 %v2296, %v2430
        %v2463 = vadd.f32 %v2297, %v2431
        %v2464 = vadd.f32 %v2298, %v2432
        %v2465 = vperm.slane %v611, 1
        %v2466 = vmul.f32 %v2381, %v2465
        %v2467 = vmul.f32 %v2361, %v2465
        %v2468 = vmul.f32 %v2382, %v2465
        %v2469 = vmul.f32 %v2362, %v2465
        %v2470 = vmul.f32 %v2383, %v2465
        %v2471 = vmul.f32 %v2363, %v2465
        %v2472 = vmul.f32 %v2384, %v2465
        %v2473 = vmul.f32 %v2364, %v2465
        %v2474 = vmul.f32 %v2385, %v2465
        %v2475 = vmul.f32 %v2365, %v2465
        %v2476 = vmul.f32 %v2386, %v2465
        %v2477 = vmul.f32 %v2366, %v2465
        %v2478 = vmul.f32 %v2387, %v2465
        %v2479 = vmul.f32 %v2367, %v2465
        %v2480 = vmul.f32 %v2388, %v2465
        %v2481 = vmul.f32 %v2368, %v2465
        %v2482 = vmul.f32 %v2389, %v2465
        %v2483 = vmul.f32 %v2369, %v2465
        %v2484 = vmul.f32 %v2390, %v2465
        %v2485 = vmul.f32 %v2370, %v2465
        %v2486 = vmul.f32 %v2391, %v2465
        %v2487 = vmul.f32 %v2371, %v2465
        %v2488 = vmul.f32 %v2392, %v2465
        %v2489 = vmul.f32 %v2372, %v2465
        %v2490 = vmul.f32 %v2393, %v2465
        %v2491 = vmul.f32 %v2373, %v2465
        %v2492 = vmul.f32 %v2394, %v2465
        %v2493 = vmul.f32 %v2374, %v2465
        %v2494 = vmul.f32 %v2395, %v2465
        %v2495 = vmul.f32 %v2375, %v2465
        %v2496 = vmul.f32 %v2396, %v2465
        %v2497 = vmul.f32 %v2376, %v2465
        %v2498 = vadd.f32 %v2433, %v2466
        %v2499 = vadd.f32 %v2434, %v2467
        %v2500 = vadd.f32 %v2435, %v2468
        %v2501 = vadd.f32 %v2436, %v2469
        %v2502 = vadd.f32 %v2437, %v2470
        %v2503 = vadd.f32 %v2438, %v2471
        %v2504 = vadd.f32 %v2439, %v2472
        %v2505 = vadd.f32 %v2440, %v2473
        %v2506 = vadd.f32 %v2441, %v2474
        %v2507 = vadd.f32 %v2442, %v2475
        %v2508 = vadd.f32 %v2443, %v2476
        %v2509 = vadd.f32 %v2444, %v2477
        %v2510 = vadd.f32 %v2445, %v2478
        %v2511 = vadd.f32 %v2446, %v2479
        %v2512 = vadd.f32 %v2447, %v2480
        %v2513 = vadd.f32 %v2448, %v2481
        %v2514 = vadd.f32 %v2449, %v2482
        %v2515 = vadd.f32 %v2450, %v2483
        %v2516 = vadd.f32 %v2451, %v2484
        %v2517 = vadd.f32 %v2452, %v2485
        %v2518 = vadd.f32 %v2453, %v2486
        %v2519 = vadd.f32 %v2454, %v2487
        %v2520 = vadd.f32 %v2455, %v2488
        %v2521 = vadd.f32 %v2456, %v2489
        %v2522 = vadd.f32 %v2457, %v2490
        %v2523 = vadd.f32 %v2458, %v2491
        %v2524 = vadd.f32 %v2459, %v2492
        %v2525 = vadd.f32 %v2460, %v2493
        %v2526 = vadd.f32 %v2461, %v2494
        %v2527 = vadd.f32 %v2462, %v2495
        %v2528 = vadd.f32 %v2463, %v2496
        %v2529 = vadd.f32 %v2464, %v2497
        %v2530 = vperm.slane %v611, 6
        %v2531 = vmul.f32 %v2382, %v2530
        %v2532 = vmul.f32 %v2362, %v2530
        %v2533 = vmul.f32 %v2383, %v2530
        %v2534 = vmul.f32 %v2363, %v2530
        %v2535 = vmul.f32 %v2384, %v2530
        %v2536 = vmul.f32 %v2364, %v2530
        %v2537 = vmul.f32 %v2385, %v2530
        %v2538 = vmul.f32 %v2365, %v2530
        %v2539 = vmul.f32 %v2386, %v2530
        %v2540 = vmul.f32 %v2366, %v2530
        %v2541 = vmul.f32 %v2387, %v2530
        %v2542 = vmul.f32 %v2367, %v2530
        %v2543 = vmul.f32 %v2388, %v2530
        %v2544 = vmul.f32 %v2368, %v2530
        %v2545 = vmul.f32 %v2389, %v2530
        %v2546 = vmul.f32 %v2369, %v2530
        %v2547 = vmul.f32 %v2390, %v2530
        %v2548 = vmul.f32 %v2370, %v2530
        %v2549 = vmul.f32 %v2391, %v2530
        %v2550 = vmul.f32 %v2371, %v2530
        %v2551 = vmul.f32 %v2392, %v2530
        %v2552 = vmul.f32 %v2372, %v2530
        %v2553 = vmul.f32 %v2393, %v2530
        %v2554 = vmul.f32 %v2373, %v2530
        %v2555 = vmul.f32 %v2394, %v2530
        %v2556 = vmul.f32 %v2374, %v2530
        %v2557 = vmul.f32 %v2395, %v2530
        %v2558 = vmul.f32 %v2375, %v2530
        %v2559 = vmul.f32 %v2396, %v2530
        %v2560 = vmul.f32 %v2376, %v2530
        %v2561 = vmul.f32 %v2397, %v2530
        %v2562 = vmul.f32 %v2377, %v2530
        %v2563 = vadd.f32 %v2498, %v2531
        %v2564 = vadd.f32 %v2499, %v2532
        %v2565 = vadd.f32 %v2500, %v2533
        %v2566 = vadd.f32 %v2501, %v2534
        %v2567 = vadd.f32 %v2502, %v2535
        %v2568 = vadd.f32 %v2503, %v2536
        %v2569 = vadd.f32 %v2504, %v2537
        %v2570 = vadd.f32 %v2505, %v2538
        %v2571 = vadd.f32 %v2506, %v2539
        %v2572 = vadd.f32 %v2507, %v2540
        %v2573 = vadd.f32 %v2508, %v2541
        %v2574 = vadd.f32 %v2509, %v2542
        %v2575 = vadd.f32 %v2510, %v2543
        %v2576 = vadd.f32 %v2511, %v2544
        %v2577 = vadd.f32 %v2512, %v2545
        %v2578 = vadd.f32 %v2513, %v2546
        %v2579 = vadd.f32 %v2514, %v2547
        %v2580 = vadd.f32 %v2515, %v2548
        %v2581 = vadd.f32 %v2516, %v2549
        %v2582 = vadd.f32 %v2517, %v2550
        %v2583 = vadd.f32 %v2518, %v2551
        %v2584 = vadd.f32 %v2519, %v2552
        %v2585 = vadd.f32 %v2520, %v2553
        %v2586 = vadd.f32 %v2521, %v2554
        %v2587 = vadd.f32 %v2522, %v2555
        %v2588 = vadd.f32 %v2523, %v2556
        %v2589 = vadd.f32 %v2524, %v2557
        %v2590 = vadd.f32 %v2525, %v2558
        %v2591 = vadd.f32 %v2526, %v2559
        %v2592 = vadd.f32 %v2527, %v2560
        %v2593 = vadd.f32 %v2528, %v2561
        %v2594 = vadd.f32 %v2529, %v2562
        %v2595 = vperm.slane %v612, 3
        %v2596 = vmul.f32 %v2383, %v2595
        %v2597 = vmul.f32 %v2363, %v2595
        %v2598 = vmul.f32 %v2384, %v2595
        %v2599 = vmul.f32 %v2364, %v2595
        %v2600 = vmul.f32 %v2385, %v2595
        %v2601 = vmul.f32 %v2365, %v2595
        %v2602 = vmul.f32 %v2386, %v2595
        %v2603 = vmul.f32 %v2366, %v2595
        %v2604 = vmul.f32 %v2387, %v2595
        %v2605 = vmul.f32 %v2367, %v2595
        %v2606 = vmul.f32 %v2388, %v2595
        %v2607 = vmul.f32 %v2368, %v2595
        %v2608 = vmul.f32 %v2389, %v2595
        %v2609 = vmul.f32 %v2369, %v2595
        %v2610 = vmul.f32 %v2390, %v2595
        %v2611 = vmul.f32 %v2370, %v2595
        %v2612 = vmul.f32 %v2391, %v2595
        %v2613 = vmul.f32 %v2371, %v2595
        %v2614 = vmul.f32 %v2392, %v2595
        %v2615 = vmul.f32 %v2372, %v2595
        %v2616 = vmul.f32 %v2393, %v2595
        %v2617 = vmul.f32 %v2373, %v2595
        %v2618 = vmul.f32 %v2394, %v2595
        %v2619 = vmul.f32 %v2374, %v2595
        %v2620 = vmul.f32 %v2395, %v2595
        %v2621 = vmul.f32 %v2375, %v2595
        %v2622 = vmul.f32 %v2396, %v2595
        %v2623 = vmul.f32 %v2376, %v2595
        %v2624 = vmul.f32 %v2397, %v2595
        %v2625 = vmul.f32 %v2377, %v2595
        %v2626 = vmul.f32 %v2398, %v2595
        %v2627 = vmul.f32 %v2378, %v2595
        %v2628 = vadd.f32 %v2563, %v2596
        %v2629 = vadd.f32 %v2564, %v2597
        %v2630 = vadd.f32 %v2565, %v2598
        %v2631 = vadd.f32 %v2566, %v2599
        %v2632 = vadd.f32 %v2567, %v2600
        %v2633 = vadd.f32 %v2568, %v2601
        %v2634 = vadd.f32 %v2569, %v2602
        %v2635 = vadd.f32 %v2570, %v2603
        %v2636 = vadd.f32 %v2571, %v2604
        %v2637 = vadd.f32 %v2572, %v2605
        %v2638 = vadd.f32 %v2573, %v2606
        %v2639 = vadd.f32 %v2574, %v2607
        %v2640 = vadd.f32 %v2575, %v2608
        %v2641 = vadd.f32 %v2576, %v2609
        %v2642 = vadd.f32 %v2577, %v2610
        %v2643 = vadd.f32 %v2578, %v2611
        %v2644 = vadd.f32 %v2579, %v2612
        %v2645 = vadd.f32 %v2580, %v2613
        %v2646 = vadd.f32 %v2581, %v2614
        %v2647 = vadd.f32 %v2582, %v2615
        %v2648 = vadd.f32 %v2583, %v2616
        %v2649 = vadd.f32 %v2584, %v2617
        %v2650 = vadd.f32 %v2585, %v2618
        %v2651 = vadd.f32 %v2586, %v2619
        %v2652 = vadd.f32 %v2587, %v2620
        %v2653 = vadd.f32 %v2588, %v2621
        %v2654 = vadd.f32 %v2589, %v2622
        %v2655 = vadd.f32 %v2590, %v2623
        %v2656 = vadd.f32 %v2591, %v2624
        %v2657 = vadd.f32 %v2592, %v2625
        %v2658 = vadd.f32 %v2593, %v2626
        %v2659 = vadd.f32 %v2594, %v2627
        %v2660 = vperm.slane %v613, 0
        %v2661 = vmul.f32 %v2384, %v2660
        %v2662 = vmul.f32 %v2364, %v2660
        %v2663 = vmul.f32 %v2385, %v2660
        %v2664 = vmul.f32 %v2365, %v2660
        %v2665 = vmul.f32 %v2386, %v2660
        %v2666 = vmul.f32 %v2366, %v2660
        %v2667 = vmul.f32 %v2387, %v2660
        %v2668 = vmul.f32 %v2367, %v2660
        %v2669 = vmul.f32 %v2388, %v2660
        %v2670 = vmul.f32 %v2368, %v2660
        %v2671 = vmul.f32 %v2389, %v2660
        %v2672 = vmul.f32 %v2369, %v2660
        %v2673 = vmul.f32 %v2390, %v2660
        %v2674 = vmul.f32 %v2370, %v2660
        %v2675 = vmul.f32 %v2391, %v2660
        %v2676 = vmul.f32 %v2371, %v2660
        %v2677 = vmul.f32 %v2392, %v2660
        %v2678 = vmul.f32 %v2372, %v2660
        %v2679 = vmul.f32 %v2393, %v2660
        %v2680 = vmul.f32 %v2373, %v2660
        %v2681 = vmul.f32 %v2394, %v2660
        %v2682 = vmul.f32 %v2374, %v2660
        %v2683 = vmul.f32 %v2395, %v2660
        %v2684 = vmul.f32 %v2375, %v2660
        %v2685 = vmul.f32 %v2396, %v2660
        %v2686 = vmul.f32 %v2376, %v2660
        %v2687 = vmul.f32 %v2397, %v2660
        %v2688 = vmul.f32 %v2377, %v2660
        %v2689 = vmul.f32 %v2398, %v2660
        %v2690 = vmul.f32 %v2378, %v2660
        %v2691 = vmul.f32 %v2399, %v2660
        %v2692 = vmul.f32 %v2379, %v2660
        %v2693 = vadd.f32 %v2628, %v2661
        %v2694 = vadd.f32 %v2629, %v2662
        %v2695 = vadd.f32 %v2630, %v2663
        %v2696 = vadd.f32 %v2631, %v2664
        %v2697 = vadd.f32 %v2632, %v2665
        %v2698 = vadd.f32 %v2633, %v2666
        %v2699 = vadd.f32 %v2634, %v2667
        %v2700 = vadd.f32 %v2635, %v2668
        %v2701 = vadd.f32 %v2636, %v2669
        %v2702 = vadd.f32 %v2637, %v2670
        %v2703 = vadd.f32 %v2638, %v2671
        %v2704 = vadd.f32 %v2639, %v2672
        %v2705 = vadd.f32 %v2640, %v2673
        %v2706 = vadd.f32 %v2641, %v2674
        %v2707 = vadd.f32 %v2642, %v2675
        %v2708 = vadd.f32 %v2643, %v2676
        %v2709 = vadd.f32 %v2644, %v2677
        %v2710 = vadd.f32 %v2645, %v2678
        %v2711 = vadd.f32 %v2646, %v2679
        %v2712 = vadd.f32 %v2647, %v2680
        %v2713 = vadd.f32 %v2648, %v2681
        %v2714 = vadd.f32 %v2649, %v2682
        %v2715 = vadd.f32 %v2650, %v2683
        %v2716 = vadd.f32 %v2651, %v2684
        %v2717 = vadd.f32 %v2652, %v2685
        %v2718 = vadd.f32 %v2653, %v2686
        %v2719 = vadd.f32 %v2654, %v2687
        %v2720 = vadd.f32 %v2655, %v2688
        %v2721 = vadd.f32 %v2656, %v2689
        %v2722 = vadd.f32 %v2657, %v2690
        %v2723 = vadd.f32 %v2658, %v2691
        %v2724 = vadd.f32 %v2659, %v2692
        %v2725 = vld [vmem:[%s2] sm:$0x1]
        %v2727 = vperm.slane %v2725, 0
        %v2729 = vadd.f32 %v2693, %v2727
        %v2730 = vadd.f32 %v2694, %v2727
        %v2731 = vadd.f32 %v2695, %v2727
        %v2732 = vadd.f32 %v2696, %v2727
        %v2733 = vadd.f32 %v2697, %v2727
        %v2734 = vadd.f32 %v2698, %v2727
        %v2735 = vadd.f32 %v2699, %v2727
        %v2736 = vadd.f32 %v2700, %v2727
        %v2737 = vadd.f32 %v2701, %v2727
        %v2738 = vadd.f32 %v2702, %v2727
        %v2739 = vadd.f32 %v2703, %v2727
        %v2740 = vadd.f32 %v2704, %v2727
        %v2741 = vadd.f32 %v2705, %v2727
        %v2742 = vadd.f32 %v2706, %v2727
        %v2743 = vadd.f32 %v2707, %v2727
        %v2744 = vadd.f32 %v2708, %v2727
        %v2745 = vadd.f32 %v2709, %v2727
        %v2746 = vadd.f32 %v2710, %v2727
        %v2747 = vadd.f32 %v2711, %v2727
        %v2748 = vadd.f32 %v2712, %v2727
        %v2749 = vadd.f32 %v2713, %v2727
        %v2750 = vadd.f32 %v2714, %v2727
        %v2751 = vadd.f32 %v2715, %v2727
        %v2752 = vadd.f32 %v2716, %v2727
        %v2753 = vadd.f32 %v2717, %v2727
        %v2754 = vadd.f32 %v2718, %v2727
        %v2755 = vadd.f32 %v2719, %v2727
        %v2756 = vadd.f32 %v2720, %v2727
        %v2757 = vadd.f32 %v2721, %v2727
        %v2758 = vadd.f32 %v2722, %v2727
        %v2759 = vadd.f32 %v2723, %v2727
        %v2760 = vadd.f32 %v2724, %v2727
        %2761 = vst [vmem:[%s481 + $0x10] sm:$0xff] %v2729
        %2762 = vst [vmem:[%s481 + $0x18] sm:$0xff] %v2730
        %2763 = vst [vmem:[%s481 + $0x40] sm:$0xff] %v2731
        %2764 = vst [vmem:[%s481 + $0x48] sm:$0xff] %v2732
        %2765 = vst [vmem:[%s481 + $0x70] sm:$0xff] %v2733
        %2766 = vst [vmem:[%s481 + $0x78] sm:$0xff] %v2734
        %2767 = vst [vmem:[%s481 + $0xa0] sm:$0xff] %v2735
        %2768 = vst [vmem:[%s481 + $0xa8] sm:$0xff] %v2736
        %2769 = vst [vmem:[%s481 + $0xd0] sm:$0xff] %v2737
        %2770 = vst [vmem:[%s481 + $0xd8] sm:$0xff] %v2738
        %2771 = vst [vmem:[%s481 + $0x100] sm:$0xff] %v2739
        %2772 = vst [vmem:[%s481 + $0x108] sm:$0xff] %v2740
        %2773 = vst [vmem:[%s481 + $0x130] sm:$0xff] %v2741
        %2774 = vst [vmem:[%s481 + $0x138] sm:$0xff] %v2742
        %2775 = vst [vmem:[%s481 + $0x160] sm:$0xff] %v2743
        %2776 = vst [vmem:[%s481 + $0x168] sm:$0xff] %v2744
        %2777 = vst [vmem:[%s481 + $0x190] sm:$0xff] %v2745
        %2778 = vst [vmem:[%s481 + $0x198] sm:$0xff] %v2746
        %2779 = vst [vmem:[%s481 + $0x1c0] sm:$0xff] %v2747
        %2780 = vst [vmem:[%s481 + $0x1c8] sm:$0xff] %v2748
        %2781 = vst [vmem:[%s481 + $0x1f0] sm:$0xff] %v2749
        %2782 = vst [vmem:[%s481 + $0x1f8] sm:$0xff] %v2750
        %2783 = vst [vmem:[%s481 + $0x220] sm:$0xff] %v2751
        %2784 = vst [vmem:[%s481 + $0x228] sm:$0xff] %v2752
        %2785 = vst [vmem:[%s481 + $0x250] sm:$0xff] %v2753
        %2786 = vst [vmem:[%s481 + $0x258] sm:$0xff] %v2754
        %2787 = vst [vmem:[%s481 + $0x280] sm:$0xff] %v2755
        %2788 = vst [vmem:[%s481 + $0x288] sm:$0xff] %v2756
        %2789 = vst [vmem:[%s481 + $0x2b0] sm:$0xff] %v2757
        %2790 = vst [vmem:[%s481 + $0x2b8] sm:$0xff] %v2758
        %2791 = vst [vmem:[%s481 + $0x2e0] sm:$0xff] %v2759
        %2792 = vst [vmem:[%s481 + $0x2e8] sm:$0xff] %v2760
        %v2793 = vld [vmem:[#allocation9] sm:$0xff]
        %v2794 = vld [vmem:[#allocation9 + $0x8] sm:$0xff]
        %v2795 = vld [vmem:[#allocation9 + $0x10] sm:$0xff]
        %v2796 = vld [vmem:[#allocation9 + $0x18] sm:$0xff]
        %v2797 = vld [vmem:[#allocation9 + $0x20] sm:$0xff]
        %v2798 = vld [vmem:[#allocation9 + $0x28] sm:$0xff]
        %v2799 = vld [vmem:[#allocation9 + $0x30] sm:$0x1]
        %v2800 = vld [vmem:[#allocation3] sm:$0xff]
        %v2801 = vld [vmem:[#allocation3 + $0x8] sm:$0xff]
        %v2802 = vld [vmem:[#allocation3 + $0x10] sm:$0xff]
        %v2803 = vld [vmem:[#allocation3 + $0x18] sm:$0xff]
        %v2804 = vld [vmem:[#allocation3 + $0x20] sm:$0xff]
        %v2805 = vld [vmem:[#allocation3 + $0x28] sm:$0xff]
        %v2806 = vld [vmem:[#allocation3 + $0x30] sm:$0xff]
        %v2807 = vld [vmem:[#allocation3 + $0x38] sm:$0xff]
        %v2808 = vld [vmem:[#allocation3 + $0x40] sm:$0xff]
        %v2809 = vld [vmem:[#allocation3 + $0x48] sm:$0xff]
        %v2810 = vld [vmem:[#allocation3 + $0x50] sm:$0xff]
        %v2811 = vld [vmem:[#allocation3 + $0x58] sm:$0xff]
        %v2812 = vld [vmem:[#allocation3 + $0x60] sm:$0xff]
        %v2813 = vld [vmem:[#allocation3 + $0x68] sm:$0xff]
        %v2814 = vld [vmem:[#allocation3 + $0x70] sm:$0xff]
        %v2815 = vld [vmem:[#allocation3 + $0x78] sm:$0xff]
        %v2816 = vld [vmem:[#allocation3 + $0x80] sm:$0xff]
        %v2817 = vld [vmem:[#allocation3 + $0x88] sm:$0xff]
        %v2818 = vld [vmem:[#allocation3 + $0x90] sm:$0xff]
        %v2819 = vld [vmem:[#allocation3 + $0x98] sm:$0xff]
        %v2820 = vld [vmem:[#allocation3 + $0xa0] sm:$0xff]
        %v2821 = vld [vmem:[#allocation3 + $0xa8] sm:$0xff]
        %v2822 = vld [vmem:[#allocation3 + $0xb0] sm:$0xff]
        %v2823 = vld [vmem:[#allocation3 + $0xb8] sm:$0xff]
        %v2824 = vld [vmem:[#allocation3 + $0xc0] sm:$0xff]
        %v2825 = vld [vmem:[#allocation3 + $0xc8] sm:$0xff]
        %v2826 = vld [vmem:[#allocation3 + $0xd0] sm:$0xff]
        %v2827 = vld [vmem:[#allocation3 + $0xd8] sm:$0xff]
        %v2828 = vld [vmem:[#allocation3 + $0xe0] sm:$0xff]
        %v2829 = vld [vmem:[#allocation3 + $0xe8] sm:$0xff]
        %v2830 = vld [vmem:[#allocation3 + $0xf0] sm:$0xff]
        %v2831 = vld [vmem:[#allocation3 + $0xf8] sm:$0xff]
        %v2832 = vld [vmem:[#allocation3 + $0x100] sm:$0xff]
        %v2833 = vld [vmem:[#allocation3 + $0x108] sm:$0xff]
        %v2834 = vld [vmem:[#allocation3 + $0x110] sm:$0xff]
        %v2835 = vld [vmem:[#allocation3 + $0x118] sm:$0xff]
        %v2836 = vld [vmem:[#allocation3 + $0x120] sm:$0xff]
        %v2837 = vld [vmem:[#allocation3 + $0x128] sm:$0xff]
        %v2838 = vld [vmem:[#allocation3 + $0x130] sm:$0xff]
        %v2839 = vld [vmem:[#allocation3 + $0x138] sm:$0xff]
        %v2840 = vld [vmem:[#allocation3 + $0x140] sm:$0xff]
        %v2841 = vld [vmem:[#allocation3 + $0x148] sm:$0xff]
        %v2842 = vld [vmem:[#allocation3 + $0x150] sm:$0xff]
        %v2843 = vld [vmem:[#allocation3 + $0x158] sm:$0xff]
        %v2844 = vld [vmem:[#allocation3 + $0x160] sm:$0xff]
        %v2845 = vld [vmem:[#allocation3 + $0x168] sm:$0xff]
        %v2846 = vld [vmem:[#allocation3 + $0x170] sm:$0xff]
        %v2847 = vld [vmem:[#allocation3 + $0x178] sm:$0xff]
        %v2848 = vld [vmem:[#allocation3 + $0x180] sm:$0xff]
        %v2849 = vld [vmem:[#allocation3 + $0x188] sm:$0xff]
        %v2850 = vld [vmem:[#allocation3 + $0x190] sm:$0xff]
        %v2851 = vld [vmem:[#allocation3 + $0x198] sm:$0xff]
        %v2852 = vld [vmem:[#allocation3 + $0x1a0] sm:$0xff]
        %v2853 = vld [vmem:[#allocation3 + $0x1a8] sm:$0xff]
        %v2854 = vld [vmem:[#allocation3 + $0x1b0] sm:$0xff]
        %v2855 = vld [vmem:[#allocation3 + $0x1b8] sm:$0xff]
        %v2856 = vld [vmem:[#allocation3 + $0x1c0] sm:$0xff]
        %v2857 = vld [vmem:[#allocation3 + $0x1c8] sm:$0xff]
        %v2858 = vld [vmem:[#allocation3 + $0x1d0] sm:$0xff]
        %v2859 = vld [vmem:[#allocation3 + $0x1d8] sm:$0xff]
        %v2860 = vld [vmem:[#allocation3 + $0x1e0] sm:$0xff]
        %v2861 = vld [vmem:[#allocation3 + $0x1e8] sm:$0xff]
        %v2862 = vld [vmem:[#allocation3 + $0x1f0] sm:$0xff]
        %v2863 = vld [vmem:[#allocation3 + $0x1f8] sm:$0xff]
        %v2864 = vld [vmem:[#allocation3 + $0x200] sm:$0xff]
        %v2865 = vld [vmem:[#allocation3 + $0x208] sm:$0xff]
        %v2866 = vld [vmem:[#allocation3 + $0x210] sm:$0xff]
        %v2867 = vld [vmem:[#allocation3 + $0x218] sm:$0xff]
        %v2868 = vld [vmem:[#allocation3 + $0x220] sm:$0xff]
        %v2869 = vld [vmem:[#allocation3 + $0x228] sm:$0xff]
        %v2870 = vld [vmem:[#allocation3 + $0x230] sm:$0xff]
        %v2871 = vld [vmem:[#allocation3 + $0x238] sm:$0xff]
        %v2872 = vld [vmem:[#allocation3 + $0x240] sm:$0xff]
        %v2873 = vld [vmem:[#allocation3 + $0x248] sm:$0xff]
        %v2874 = vld [vmem:[#allocation3 + $0x250] sm:$0xff]
        %v2875 = vld [vmem:[#allocation3 + $0x258] sm:$0xff]
        %v2876 = vld [vmem:[#allocation3 + $0x260] sm:$0xff]
        %v2877 = vld [vmem:[#allocation3 + $0x268] sm:$0xff]
        %v2878 = vld [vmem:[#allocation3 + $0x270] sm:$0xff]
        %v2879 = vld [vmem:[#allocation3 + $0x278] sm:$0xff]
        %v2880 = vld [vmem:[#allocation3 + $0x280] sm:$0xff]
        %v2881 = vld [vmem:[#allocation3 + $0x288] sm:$0xff]
        %v2882 = vld [vmem:[#allocation3 + $0x290] sm:$0xff]
        %v2883 = vld [vmem:[#allocation3 + $0x298] sm:$0xff]
        %v2884 = vld [vmem:[#allocation3 + $0x2a0] sm:$0xff]
        %v2885 = vld [vmem:[#allocation3 + $0x2a8] sm:$0xff]
        %v2886 = vld [vmem:[#allocation3 + $0x2b0] sm:$0xff]
        %v2887 = vld [vmem:[#allocation3 + $0x2b8] sm:$0xff]
        %v2888 = vld [vmem:[#allocation3 + $0x2c0] sm:$0xff]
        %v2889 = vld [vmem:[#allocation3 + $0x2c8] sm:$0xff]
        %v2890 = vld [vmem:[#allocation3 + $0x2d0] sm:$0xff]
        %v2891 = vld [vmem:[#allocation3 + $0x2d8] sm:$0xff]
        %v2892 = vld [vmem:[#allocation3 + $0x2e0] sm:$0xff]
        %v2893 = vld [vmem:[#allocation3 + $0x2e8] sm:$0xff]
        %v2894 = vld [vmem:[#allocation3 + $0x2f0] sm:$0xff]
        %v2895 = vld [vmem:[#allocation3 + $0x2f8] sm:$0xff]
        %v2896 = vld [vmem:[#allocation3 + $0x300] sm:$0xff]
        %v2897 = vld [vmem:[#allocation3 + $0x308] sm:$0xff]
        %v2898 = vld [vmem:[#allocation3 + $0x310] sm:$0xff]
        %v2899 = vld [vmem:[#allocation3 + $0x318] sm:$0xff]
        %v2900 = vld [vmem:[#allocation3 + $0x320] sm:$0xff]
        %v2901 = vld [vmem:[#allocation3 + $0x328] sm:$0xff]
        %v2902 = vld [vmem:[#allocation3 + $0x330] sm:$0xff]
        %v2903 = vld [vmem:[#allocation3 + $0x338] sm:$0xff]
        %v2904 = vld [vmem:[#allocation3 + $0x340] sm:$0xff]
        %v2905 = vld [vmem:[#allocation3 + $0x348] sm:$0xff]
        %v2906 = vld [vmem:[#allocation3 + $0x350] sm:$0xff]
        %v2907 = vld [vmem:[#allocation3 + $0x358] sm:$0xff]
        %v2908 = vld [vmem:[#allocation3 + $0x360] sm:$0xff]
        %v2909 = vld [vmem:[#allocation3 + $0x368] sm:$0xff]
        %v2910 = vld [vmem:[#allocation3 + $0x370] sm:$0xff]
        %v2911 = vld [vmem:[#allocation3 + $0x378] sm:$0xff]
        %v2912 = vld [vmem:[#allocation3 + $0x380] sm:$0xff]
        %v2913 = vld [vmem:[#allocation3 + $0x388] sm:$0xff]
        %v2914 = vld [vmem:[#allocation3 + $0x390] sm:$0xff]
        %v2915 = vld [vmem:[#allocation3 + $0x398] sm:$0xff]
        %v2916 = vld [vmem:[#allocation3 + $0x3a0] sm:$0xff]
        %v2917 = vld [vmem:[#allocation3 + $0x3a8] sm:$0xff]
        %v2918 = vld [vmem:[#allocation3 + $0x3b0] sm:$0xff]
        %v2919 = vld [vmem:[#allocation3 + $0x3b8] sm:$0xff]
        %v2920 = vld [vmem:[#allocation3 + $0x3c0] sm:$0xff]
        %v2921 = vld [vmem:[#allocation3 + $0x3c8] sm:$0xff]
        %v2922 = vld [vmem:[#allocation3 + $0x3d0] sm:$0xff]
        %v2923 = vld [vmem:[#allocation3 + $0x3d8] sm:$0xff]
        %v2924 = vld [vmem:[#allocation3 + $0x3e0] sm:$0xff]
        %v2925 = vld [vmem:[#allocation3 + $0x3e8] sm:$0xff]
        %v2926 = vld [vmem:[#allocation3 + $0x3f0] sm:$0xff]
        %v2927 = vld [vmem:[#allocation3 + $0x3f8] sm:$0xff]
        %v2928 = vld [vmem:[#allocation3 + $0x400] sm:$0xff]
        %v2929 = vld [vmem:[#allocation3 + $0x408] sm:$0xff]
        %v2930 = vld [vmem:[#allocation3 + $0x410] sm:$0xff]
        %v2931 = vld [vmem:[#allocation3 + $0x418] sm:$0xff]
        %v2932 = vld [vmem:[#allocation3 + $0x420] sm:$0xff]
        %v2933 = vld [vmem:[#allocation3 + $0x428] sm:$0xff]
        %v2934 = vld [vmem:[#allocation3 + $0x430] sm:$0xff]
        %v2935 = vld [vmem:[#allocation3 + $0x438] sm:$0xff]
        %v2936 = vld [vmem:[#allocation3 + $0x440] sm:$0xff]
        %v2937 = vld [vmem:[#allocation3 + $0x448] sm:$0xff]
        %v2938 = vld [vmem:[#allocation3 + $0x450] sm:$0xff]
        %v2939 = vld [vmem:[#allocation3 + $0x458] sm:$0xff]
        %v2940 = vld [vmem:[#allocation3 + $0x460] sm:$0xff]
        %v2941 = vld [vmem:[#allocation3 + $0x468] sm:$0xff]
        %v2942 = vld [vmem:[#allocation3 + $0x470] sm:$0xff]
        %v2943 = vld [vmem:[#allocation3 + $0x478] sm:$0xff]
        %v2944 = vld [vmem:[#allocation3 + $0x480] sm:$0xff]
        %v2945 = vld [vmem:[#allocation3 + $0x488] sm:$0xff]
        %v2946 = vld [vmem:[#allocation3 + $0x490] sm:$0xff]
        %v2947 = vld [vmem:[#allocation3 + $0x498] sm:$0xff]
        %v2948 = vld [vmem:[#allocation3 + $0x4a0] sm:$0xff]
        %v2949 = vld [vmem:[#allocation3 + $0x4a8] sm:$0xff]
        %v2950 = vld [vmem:[#allocation3 + $0x4b0] sm:$0xff]
        %v2951 = vld [vmem:[#allocation3 + $0x4b8] sm:$0xff]
        %v2952 = vld [vmem:[#allocation3 + $0x4c0] sm:$0xff]
        %v2953 = vld [vmem:[#allocation3 + $0x4c8] sm:$0xff]
        %v2954 = vld [vmem:[#allocation3 + $0x4d0] sm:$0xff]
        %v2955 = vld [vmem:[#allocation3 + $0x4d8] sm:$0xff]
        %v2956 = vld [vmem:[#allocation3 + $0x4e0] sm:$0xff]
        %v2957 = vld [vmem:[#allocation3 + $0x4e8] sm:$0xff]
        %v2958 = vld [vmem:[#allocation3 + $0x4f0] sm:$0xff]
        %v2959 = vld [vmem:[#allocation3 + $0x4f8] sm:$0xff]
        %v2960 = vld [vmem:[#allocation3 + $0x500] sm:$0xff]
        %v2961 = vld [vmem:[#allocation3 + $0x508] sm:$0xff]
        %v2962 = vld [vmem:[#allocation3 + $0x510] sm:$0xff]
        %v2963 = vld [vmem:[#allocation3 + $0x518] sm:$0xff]
        %v2964 = vld [vmem:[#allocation3 + $0x520] sm:$0xff]
        %v2965 = vld [vmem:[#allocation3 + $0x528] sm:$0xff]
        %v2966 = vld [vmem:[#allocation3 + $0x530] sm:$0xff]
        %v2967 = vld [vmem:[#allocation3 + $0x538] sm:$0xff]
        %v2968 = vld [vmem:[#allocation3 + $0x540] sm:$0xff]
        %v2969 = vld [vmem:[#allocation3 + $0x548] sm:$0xff]
        %v2970 = vld [vmem:[#allocation3 + $0x550] sm:$0xff]
        %v2971 = vld [vmem:[#allocation3 + $0x558] sm:$0xff]
        %v2972 = vld [vmem:[#allocation3 + $0x560] sm:$0xff]
        %v2973 = vld [vmem:[#allocation3 + $0x568] sm:$0xff]
        %v2974 = vld [vmem:[#allocation3 + $0x570] sm:$0xff]
        %v2975 = vld [vmem:[#allocation3 + $0x578] sm:$0xff]
        %v2976 = vld [vmem:[#allocation3 + $0x580] sm:$0xff]
        %v2977 = vld [vmem:[#allocation3 + $0x588] sm:$0xff]
        %v2978 = vld [vmem:[#allocation3 + $0x590] sm:$0xff]
        %v2979 = vld [vmem:[#allocation3 + $0x598] sm:$0xff]
        %v2980 = vld [vmem:[#allocation3 + $0x5a0] sm:$0xff]
        %v2981 = vld [vmem:[#allocation3 + $0x5a8] sm:$0xff]
        %v2982 = vld [vmem:[#allocation3 + $0x5b0] sm:$0xff]
        %v2983 = vld [vmem:[#allocation3 + $0x5b8] sm:$0xff]
        %v2984 = vld [vmem:[#allocation3 + $0x5c0] sm:$0xff]
        %v2985 = vld [vmem:[#allocation3 + $0x5c8] sm:$0xff]
        %v2986 = vld [vmem:[#allocation3 + $0x5d0] sm:$0xff]
        %v2987 = vld [vmem:[#allocation3 + $0x5d8] sm:$0xff]
        %v2988 = vld [vmem:[#allocation3 + $0x5e0] sm:$0xff]
        %v2989 = vld [vmem:[#allocation3 + $0x5e8] sm:$0xff]
        %v2990 = vld [vmem:[#allocation3 + $0x5f0] sm:$0xff]
        %v2991 = vld [vmem:[#allocation3 + $0x5f8] sm:$0xff]
        %v2992 = vld [vmem:[#allocation3 + $0x600] sm:$0xff]
        %v2993 = vld [vmem:[#allocation3 + $0x608] sm:$0xff]
        %v2994 = vld [vmem:[#allocation3 + $0x610] sm:$0xff]
        %v2995 = vld [vmem:[#allocation3 + $0x618] sm:$0xff]
        %v2996 = vld [vmem:[#allocation3 + $0x620] sm:$0xff]
        %v2997 = vld [vmem:[#allocation3 + $0x628] sm:$0xff]
        %v2998 = vld [vmem:[#allocation3 + $0x630] sm:$0xff]
        %v2999 = vld [vmem:[#allocation3 + $0x638] sm:$0xff]
        %v3000 = vld [vmem:[#allocation3 + $0x640] sm:$0xff]
        %v3001 = vld [vmem:[#allocation3 + $0x648] sm:$0xff]
        %v3002 = vld [vmem:[#allocation3 + $0x650] sm:$0xff]
        %v3003 = vld [vmem:[#allocation3 + $0x658] sm:$0xff]
        %v3004 = vrot.slane %v2800, 7
        %v3005 = vrot.slane %v2806, 7
        %v3006 = vrot.slane %v2812, 7
        %v3007 = vrot.slane %v2818, 7
        %v3008 = vrot.slane %v2824, 7
        %v3009 = vrot.slane %v2830, 7
        %v3010 = vrot.slane %v2836, 7
        %v3011 = vrot.slane %v2842, 7
        %v3012 = vrot.slane %v2848, 7
        %v3013 = vrot.slane %v2854, 7
        %v3014 = vrot.slane %v2860, 7
        %v3015 = vrot.slane %v2866, 7
        %v3016 = vrot.slane %v2872, 7
        %v3017 = vrot.slane %v2878, 7
        %v3018 = vrot.slane %v2884, 7
        %v3019 = vrot.slane %v2890, 7
        %v3020 = vrot.slane %v2896, 7
        %v3021 = vrot.slane %v2902, 7
        %v3022 = vrot.slane %v2908, 7
        %v3023 = vrot.slane %v2914, 7
        %v3024 = vrot.slane %v2920, 7
        %v3025 = vrot.slane %v2926, 7
        %v3026 = vrot.slane %v2932, 7
        %v3027 = vrot.slane %v2938, 7
        %v3028 = vrot.slane %v2944, 7
        %v3029 = vrot.slane %v2950, 7
        %v3030 = vrot.slane %v2956, 7
        %v3031 = vrot.slane %v2962, 7
        %v3032 = vrot.slane %v2968, 7
        %v3033 = vrot.slane %v2974, 7
        %v3034 = vrot.slane %v2980, 7
        %v3035 = vrot.slane %v2986, 7
        %v3036 = vrot.slane %v2992, 7
        %v3037 = vrot.slane %v2998, 7
        %v3038 = vrot.slane %v2801, 7
        %v3039 = vrot.slane %v2807, 7
        %v3040 = vrot.slane %v2813, 7
        %v3041 = vrot.slane %v2819, 7
        %v3042 = vrot.slane %v2825, 7
        %v3043 = vrot.slane %v2831, 7
        %v3044 = vrot.slane %v2837, 7
        %v3045 = vrot.slane %v2843, 7
        %v3046 = vrot.slane %v2849, 7
        %v3047 = vrot.slane %v2855, 7
        %v3048 = vrot.slane %v2861, 7
        %v3049 = vrot.slane %v2867, 7
        %v3050 = vrot.slane %v2873, 7
        %v3051 = vrot.slane %v2879, 7
        %v3052 = vrot.slane %v2885, 7
        %v3053 = vrot.slane %v2891, 7
        %v3054 = vrot.slane %v2897, 7
        %v3055 = vrot.slane %v2903, 7
        %v3056 = vrot.slane %v2909, 7
        %v3057 = vrot.slane %v2915, 7
        %v3058 = vrot.slane %v2921, 7
        %v3059 = vrot.slane %v2927, 7
        %v3060 = vrot.slane %v2933, 7
        %v3061 = vrot.slane %v2939, 7
        %v3062 = vrot.slane %v2945, 7
        %v3063 = vrot.slane %v2951, 7
        %v3064 = vrot.slane %v2957, 7
        %v3065 = vrot.slane %v2963, 7
        %v3066 = vrot.slane %v2969, 7
        %v3067 = vrot.slane %v2975, 7
        %v3068 = vrot.slane %v2981, 7
        %v3069 = vrot.slane %v2987, 7
        %v3070 = vrot.slane %v2993, 7
        %v3071 = vrot.slane %v2999, 7
        %v3072 = vrot.slane %v2802, 7
        %v3073 = vrot.slane %v2808, 7
        %v3074 = vrot.slane %v2814, 7
        %v3075 = vrot.slane %v2820, 7
        %v3076 = vrot.slane %v2826, 7
        %v3077 = vrot.slane %v2832, 7
        %v3078 = vrot.slane %v2838, 7
        %v3079 = vrot.slane %v2844, 7
        %v3080 = vrot.slane %v2850, 7
        %v3081 = vrot.slane %v2856, 7
        %v3082 = vrot.slane %v2862, 7
        %v3083 = vrot.slane %v2868, 7
        %v3084 = vrot.slane %v2874, 7
        %v3085 = vrot.slane %v2880, 7
        %v3086 = vrot.slane %v2886, 7
        %v3087 = vrot.slane %v2892, 7
        %v3088 = vrot.slane %v2898, 7
        %v3089 = vrot.slane %v2904, 7
        %v3090 = vrot.slane %v2910, 7
        %v3091 = vrot.slane %v2916, 7
        %v3092 = vrot.slane %v2922, 7
        %v3093 = vrot.slane %v2928, 7
        %v3094 = vrot.slane %v2934, 7
        %v3095 = vrot.slane %v2940, 7
        %v3096 = vrot.slane %v2946, 7
        %v3097 = vrot.slane %v2952, 7
        %v3098 = vrot.slane %v2958, 7
        %v3099 = vrot.slane %v2964, 7
        %v3100 = vrot.slane %v2970, 7
        %v3101 = vrot.slane %v2976, 7
        %v3102 = vrot.slane %v2982, 7
        %v3103 = vrot.slane %v2988, 7
        %v3104 = vrot.slane %v2994, 7
        %v3105 = vrot.slane %v3000, 7
        %v3106 = vsel %vm1182, %v3038, %v3072
        %v3107 = vsel %vm1182, %v3039, %v3073
        %v3108 = vsel %vm1182, %v3040, %v3074
        %v3109 = vsel %vm1182, %v3041, %v3075
        %v3110 = vsel %vm1182, %v3042, %v3076
        %v3111 = vsel %vm1182, %v3043, %v3077
        %v3112 = vsel %vm1182, %v3044, %v3078
        %v3113 = vsel %vm1182, %v3045, %v3079
        %v3114 = vsel %vm1182, %v3046, %v3080
        %v3115 = vsel %vm1182, %v3047, %v3081
        %v3116 = vsel %vm1182, %v3048, %v3082
        %v3117 = vsel %vm1182, %v3049, %v3083
        %v3118 = vsel %vm1182, %v3050, %v3084
        %v3119 = vsel %vm1182, %v3051, %v3085
        %v3120 = vsel %vm1182, %v3052, %v3086
        %v3121 = vsel %vm1182, %v3053, %v3087
        %v3122 = vsel %vm1182, %v3054, %v3088
        %v3123 = vsel %vm1182, %v3055, %v3089
        %v3124 = vsel %vm1182, %v3056, %v3090
        %v3125 = vsel %vm1182, %v3057, %v3091
        %v3126 = vsel %vm1182, %v3058, %v3092
        %v3127 = vsel %vm1182, %v3059, %v3093
        %v3128 = vsel %vm1182, %v3060, %v3094
        %v3129 = vsel %vm1182, %v3061, %v3095
        %v3130 = vsel %vm1182, %v3062, %v3096
        %v3131 = vsel %vm1182, %v3063, %v3097
        %v3132 = vsel %vm1182, %v3064, %v3098
        %v3133 = vsel %vm1182, %v3065, %v3099
        %v3134 = vsel %vm1182, %v3066, %v3100
        %v3135 = vsel %vm1182, %v3067, %v3101
        %v3136 = vsel %vm1182, %v3068, %v3102
        %v3137 = vsel %vm1182, %v3069, %v3103
        %v3138 = vsel %vm1182, %v3070, %v3104
        %v3139 = vsel %vm1182, %v3071, %v3105
        %v3140 = vsel %vm1182, %v3004, %v3038
        %v3141 = vsel %vm1182, %v3005, %v3039
        %v3142 = vsel %vm1182, %v3006, %v3040
        %v3143 = vsel %vm1182, %v3007, %v3041
        %v3144 = vsel %vm1182, %v3008, %v3042
        %v3145 = vsel %vm1182, %v3009, %v3043
        %v3146 = vsel %vm1182, %v3010, %v3044
        %v3147 = vsel %vm1182, %v3011, %v3045
        %v3148 = vsel %vm1182, %v3012, %v3046
        %v3149 = vsel %vm1182, %v3013, %v3047
        %v3150 = vsel %vm1182, %v3014, %v3048
        %v3151 = vsel %vm1182, %v3015, %v3049
        %v3152 = vsel %vm1182, %v3016, %v3050
        %v3153 = vsel %vm1182, %v3017, %v3051
        %v3154 = vsel %vm1182, %v3018, %v3052
        %v3155 = vsel %vm1182, %v3019, %v3053
        %v3156 = vsel %vm1182, %v3020, %v3054
        %v3157 = vsel %vm1182, %v3021, %v3055
        %v3158 = vsel %vm1182, %v3022, %v3056
        %v3159 = vsel %vm1182, %v3023, %v3057
        %v3160 = vsel %vm1182, %v3024, %v3058
        %v3161 = vsel %vm1182, %v3025, %v3059
        %v3162 = vsel %vm1182, %v3026, %v3060
        %v3163 = vsel %vm1182, %v3027, %v3061
        %v3164 = vsel %vm1182, %v3028, %v3062
        %v3165 = vsel %vm1182, %v3029, %v3063
        %v3166 = vsel %vm1182, %v3030, %v3064
        %v3167 = vsel %vm1182, %v3031, %v3065
        %v3168 = vsel %vm1182, %v3032, %v3066
        %v3169 = vsel %vm1182, %v3033, %v3067
        %v3170 = vsel %vm1182, %v3034, %v3068
        %v3171 = vsel %vm1182, %v3035, %v3069
        %v3172 = vsel %vm1182, %v3036, %v3070
        %v3173 = vsel %vm1182, %v3037, %v3071
        %v3174 = vperm.slane %v2793, 0
        %v3175 = vmul.f32 %v3140, %v3174
        %v3176 = vmul.f32 %v3106, %v3174
        %v3177 = vmul.f32 %v3141, %v3174
        %v3178 = vmul.f32 %v3107, %v3174
        %v3179 = vmul.f32 %v3142, %v3174
        %v3180 = vmul.f32 %v3108, %v3174
        %v3181 = vmul.f32 %v3143, %v3174
        %v3182 = vmul.f32 %v3109, %v3174
        %v3183 = vmul.f32 %v3144, %v3174
        %v3184 = vmul.f32 %v3110, %v3174
        %v3185 = vmul.f32 %v3145, %v3174
        %v3186 = vmul.f32 %v3111, %v3174
        %v3187 = vmul.f32 %v3146, %v3174
        %v3188 = vmul.f32 %v3112, %v3174
        %v3189 = vmul.f32 %v3147, %v3174
        %v3190 = vmul.f32 %v3113, %v3174
        %v3191 = vmul.f32 %v3148, %v3174
        %v3192 = vmul.f32 %v3114, %v3174
        %v3193 = vmul.f32 %v3149, %v3174
        %v3194 = vmul.f32 %v3115, %v3174
        %v3195 = vmul.f32 %v3150, %v3174
        %v3196 = vmul.f32 %v3116, %v3174
        %v3197 = vmul.f32 %v3151, %v3174
        %v3198 = vmul.f32 %v3117, %v3174
        %v3199 = vmul.f32 %v3152, %v3174
        %v3200 = vmul.f32 %v3118, %v3174
        %v3201 = vmul.f32 %v3153, %v3174
        %v3202 = vmul.f32 %v3119, %v3174
        %v3203 = vmul.f32 %v3154, %v3174
        %v3204 = vmul.f32 %v3120, %v3174
        %v3205 = vmul.f32 %v3155, %v3174
        %v3206 = vmul.f32 %v3121, %v3174
        %v3207 = vadd.f32 %v3175, 0.0
        %v3208 = vadd.f32 %v3176, 0.0
        %v3209 = vadd.f32 %v3177, 0.0
        %v3210 = vadd.f32 %v3178, 0.0
        %v3211 = vadd.f32 %v3179, 0.0
        %v3212 = vadd.f32 %v3180, 0.0
        %v3213 = vadd.f32 %v3181, 0.0
        %v3214 = vadd.f32 %v3182, 0.0
        %v3215 = vadd.f32 %v3183, 0.0
        %v3216 = vadd.f32 %v3184, 0.0
        %v3217 = vadd.f32 %v3185, 0.0
        %v3218 = vadd.f32 %v3186, 0.0
        %v3219 = vadd.f32 %v3187, 0.0
        %v3220 = vadd.f32 %v3188, 0.0
        %v3221 = vadd.f32 %v3189, 0.0
        %v3222 = vadd.f32 %v3190, 0.0
        %v3223 = vadd.f32 %v3191, 0.0
        %v3224 = vadd.f32 %v3192, 0.0
        %v3225 = vadd.f32 %v3193, 0.0
        %v3226 = vadd.f32 %v3194, 0.0
        %v3227 = vadd.f32 %v3195, 0.0
        %v3228 = vadd.f32 %v3196, 0.0
        %v3229 = vadd.f32 %v3197, 0.0
        %v3230 = vadd.f32 %v3198, 0.0
        %v3231 = vadd.f32 %v3199, 0.0
        %v3232 = vadd.f32 %v3200, 0.0
        %v3233 = vadd.f32 %v3201, 0.0
        %v3234 = vadd.f32 %v3202, 0.0
        %v3235 = vadd.f32 %v3203, 0.0
        %v3236 = vadd.f32 %v3204, 0.0
        %v3237 = vadd.f32 %v3205, 0.0
        %v3238 = vadd.f32 %v3206, 0.0
        %v3239 = vperm.slane %v2793, 7
        %v3240 = vmul.f32 %v3143, %v3239
        %v3241 = vmul.f32 %v3109, %v3239
        %v3242 = vmul.f32 %v3144, %v3239
        %v3243 = vmul.f32 %v3110, %v3239
        %v3244 = vmul.f32 %v3145, %v3239
        %v3245 = vmul.f32 %v3111, %v3239
        %v3246 = vmul.f32 %v3146, %v3239
        %v3247 = vmul.f32 %v3112, %v3239
        %v3248 = vmul.f32 %v3147, %v3239
        %v3249 = vmul.f32 %v3113, %v3239
        %v3250 = vmul.f32 %v3148, %v3239
        %v3251 = vmul.f32 %v3114, %v3239
        %v3252 = vmul.f32 %v3149, %v3239
        %v3253 = vmul.f32 %v3115, %v3239
        %v3254 = vmul.f32 %v3150, %v3239
        %v3255 = vmul.f32 %v3116, %v3239
        %v3256 = vmul.f32 %v3151, %v3239
        %v3257 = vmul.f32 %v3117, %v3239
        %v3258 = vmul.f32 %v3152, %v3239
        %v3259 = vmul.f32 %v3118, %v3239
        %v3260 = vmul.f32 %v3153, %v3239
        %v3261 = vmul.f32 %v3119, %v3239
        %v3262 = vmul.f32 %v3154, %v3239
        %v3263 = vmul.f32 %v3120, %v3239
        %v3264 = vmul.f32 %v3155, %v3239
        %v3265 = vmul.f32 %v3121, %v3239
        %v3266 = vmul.f32 %v3156, %v3239
        %v3267 = vmul.f32 %v3122, %v3239
        %v3268 = vmul.f32 %v3157, %v3239
        %v3269 = vmul.f32 %v3123, %v3239
        %v3270 = vmul.f32 %v3158, %v3239
        %v3271 = vmul.f32 %v3124, %v3239
        %v3272 = vadd.f32 %v3207, %v3240
        %v3273 = vadd.f32 %v3208, %v3241
        %v3274 = vadd.f32 %v3209, %v3242
        %v3275 = vadd.f32 %v3210, %v3243
        %v3276 = vadd.f32 %v3211, %v3244
        %v3277 = vadd.f32 %v3212, %v3245
        %v3278 = vadd.f32 %v3213, %v3246
        %v3279 = vadd.f32 %v3214, %v3247
        %v3280 = vadd.f32 %v3215, %v3248
        %v3281 = vadd.f32 %v3216, %v3249
        %v3282 = vadd.f32 %v3217, %v3250
        %v3283 = vadd.f32 %v3218, %v3251
        %v3284 = vadd.f32 %v3219, %v3252
        %v3285 = vadd.f32 %v3220, %v3253
        %v3286 = vadd.f32 %v3221, %v3254
        %v3287 = vadd.f32 %v3222, %v3255
        %v3288 = vadd.f32 %v3223, %v3256
        %v3289 = vadd.f32 %v3224, %v3257
        %v3290 = vadd.f32 %v3225, %v3258
        %v3291 = vadd.f32 %v3226, %v3259
        %v3292 = vadd.f32 %v3227, %v3260
        %v3293 = vadd.f32 %v3228, %v3261
        %v3294 = vadd.f32 %v3229, %v3262
        %v3295 = vadd.f32 %v3230, %v3263
        %v3296 = vadd.f32 %v3231, %v3264
        %v3297 = vadd.f32 %v3232, %v3265
        %v3298 = vadd.f32 %v3233, %v3266
        %v3299 = vadd.f32 %v3234, %v3267
        %v3300 = vadd.f32 %v3235, %v3268
        %v3301 = vadd.f32 %v3236, %v3269
        %v3302 = vadd.f32 %v3237, %v3270
        %v3303 = vadd.f32 %v3238, %v3271
        %v3304 = vperm.slane %v2794, 6
        %v3305 = vmul.f32 %v3146, %v3304
        %v3306 = vmul.f32 %v3112, %v3304
        %v3307 = vmul.f32 %v3147, %v3304
        %v3308 = vmul.f32 %v3113, %v3304
        %v3309 = vmul.f32 %v3148, %v3304
        %v3310 = vmul.f32 %v3114, %v3304
        %v3311 = vmul.f32 %v3149, %v3304
        %v3312 = vmul.f32 %v3115, %v3304
        %v3313 = vmul.f32 %v3150, %v3304
        %v3314 = vmul.f32 %v3116, %v3304
        %v3315 = vmul.f32 %v3151, %v3304
        %v3316 = vmul.f32 %v3117, %v3304
        %v3317 = vmul.f32 %v3152, %v3304
        %v3318 = vmul.f32 %v3118, %v3304
        %v3319 = vmul.f32 %v3153, %v3304
        %v3320 = vmul.f32 %v3119, %v3304
        %v3321 = vmul.f32 %v3154, %v3304
        %v3322 = vmul.f32 %v3120, %v3304
        %v3323 = vmul.f32 %v3155, %v3304
        %v3324 = vmul.f32 %v3121, %v3304
        %v3325 = vmul.f32 %v3156, %v3304
        %v3326 = vmul.f32 %v3122, %v3304
        %v3327 = vmul.f32 %v3157, %v3304
        %v3328 = vmul.f32 %v3123, %v3304
        %v3329 = vmul.f32 %v3158, %v3304
        %v3330 = vmul.f32 %v3124, %v3304
        %v3331 = vmul.f32 %v3159, %v3304
        %v3332 = vmul.f32 %v3125, %v3304
        %v3333 = vmul.f32 %v3160, %v3304
        %v3334 = vmul.f32 %v3126, %v3304
        %v3335 = vmul.f32 %v3161, %v3304
        %v3336 = vmul.f32 %v3127, %v3304
        %v3337 = vadd.f32 %v3272, %v3305
        %v3338 = vadd.f32 %v3273, %v3306
        %v3339 = vadd.f32 %v3274, %v3307
        %v3340 = vadd.f32 %v3275, %v3308
        %v3341 = vadd.f32 %v3276, %v3309
        %v3342 = vadd.f32 %v3277, %v3310
        %v3343 = vadd.f32 %v3278, %v3311
        %v3344 = vadd.f32 %v3279, %v3312
        %v3345 = vadd.f32 %v3280, %v3313
        %v3346 = vadd.f32 %v3281, %v3314
        %v3347 = vadd.f32 %v3282, %v3315
        %v3348 = vadd.f32 %v3283, %v3316
        %v3349 = vadd.f32 %v3284, %v3317
        %v3350 = vadd.f32 %v3285, %v3318
        %v3351 = vadd.f32 %v3286, %v3319
        %v3352 = vadd.f32 %v3287, %v3320
        %v3353 = vadd.f32 %v3288, %v3321
        %v3354 = vadd.f32 %v3289, %v3322
        %v3355 = vadd.f32 %v3290, %v3323
        %v3356 = vadd.f32 %v3291, %v3324
        %v3357 = vadd.f32 %v3292, %v3325
        %v3358 = vadd.f32 %v3293, %v3326
        %v3359 = vadd.f32 %v3294, %v3327
        %v3360 = vadd.f32 %v3295, %v3328
        %v3361 = vadd.f32 %v3296, %v3329
        %v3362 = vadd.f32 %v3297, %v3330
        %v3363 = vadd.f32 %v3298, %v3331
        %v3364 = vadd.f32 %v3299, %v3332
        %v3365 = vadd.f32 %v3300, %v3333
        %v3366 = vadd.f32 %v3301, %v3334
        %v3367 = vadd.f32 %v3302, %v3335
        %v3368 = vadd.f32 %v3303, %v3336
        %v3369 = vperm.slane %v2795, 5
        %v3370 = vmul.f32 %v3149, %v3369
        %v3371 = vmul.f32 %v3115, %v3369
        %v3372 = vmul.f32 %v3150, %v3369
        %v3373 = vmul.f32 %v3116, %v3369
        %v3374 = vmul.f32 %v3151, %v3369
        %v3375 = vmul.f32 %v3117, %v3369
        %v3376 = vmul.f32 %v3152, %v3369
        %v3377 = vmul.f32 %v3118, %v3369
        %v3378 = vmul.f32 %v3153, %v3369
        %v3379 = vmul.f32 %v3119, %v3369
        %v3380 = vmul.f32 %v3154, %v3369
        %v3381 = vmul.f32 %v3120, %v3369
        %v3382 = vmul.f32 %v3155, %v3369
        %v3383 = vmul.f32 %v3121, %v3369
        %v3384 = vmul.f32 %v3156, %v3369
        %v3385 = vmul.f32 %v3122, %v3369
        %v3386 = vmul.f32 %v3157, %v3369
        %v3387 = vmul.f32 %v3123, %v3369
        %v3388 = vmul.f32 %v3158, %v3369
        %v3389 = vmul.f32 %v3124, %v3369
        %v3390 = vmul.f32 %v3159, %v3369
        %v3391 = vmul.f32 %v3125, %v3369
        %v3392 = vmul.f32 %v3160, %v3369
        %v3393 = vmul.f32 %v3126, %v3369
        %v3394 = vmul.f32 %v3161, %v3369
        %v3395 = vmul.f32 %v3127, %v3369
        %v3396 = vmul.f32 %v3162, %v3369
        %v3397 = vmul.f32 %v3128, %v3369
        %v3398 = vmul.f32 %v3163, %v3369
        %v3399 = vmul.f32 %v3129, %v3369
        %v3400 = vmul.f32 %v3164, %v3369
        %v3401 = vmul.f32 %v3130, %v3369
        %v3402 = vadd.f32 %v3337, %v3370
        %v3403 = vadd.f32 %v3338, %v3371
        %v3404 = vadd.f32 %v3339, %v3372
        %v3405 = vadd.f32 %v3340, %v3373
        %v3406 = vadd.f32 %v3341, %v3374
        %v3407 = vadd.f32 %v3342, %v3375
        %v3408 = vadd.f32 %v3343, %v3376
        %v3409 = vadd.f32 %v3344, %v3377
        %v3410 = vadd.f32 %v3345, %v3378
        %v3411 = vadd.f32 %v3346, %v3379
        %v3412 = vadd.f32 %v3347, %v3380
        %v3413 = vadd.f32 %v3348, %v3381
        %v3414 = vadd.f32 %v3349, %v3382
        %v3415 = vadd.f32 %v3350, %v3383
        %v3416 = vadd.f32 %v3351, %v3384
        %v3417 = vadd.f32 %v3352, %v3385
        %v3418 = vadd.f32 %v3353, %v3386
        %v3419 = vadd.f32 %v3354, %v3387
        %v3420 = vadd.f32 %v3355, %v3388
        %v3421 = vadd.f32 %v3356, %v3389
        %v3422 = vadd.f32 %v3357, %v3390
        %v3423 = vadd.f32 %v3358, %v3391
        %v3424 = vadd.f32 %v3359, %v3392
        %v3425 = vadd.f32 %v3360, %v3393
        %v3426 = vadd.f32 %v3361, %v3394
        %v3427 = vadd.f32 %v3362, %v3395
        %v3428 = vadd.f32 %v3363, %v3396
        %v3429 = vadd.f32 %v3364, %v3397
        %v3430 = vadd.f32 %v3365, %v3398
        %v3431 = vadd.f32 %v3366, %v3399
        %v3432 = vadd.f32 %v3367, %v3400
        %v3433 = vadd.f32 %v3368, %v3401
        %v3434 = vperm.slane %v2796, 4
        %v3435 = vmul.f32 %v3152, %v3434
        %v3436 = vmul.f32 %v3118, %v3434
        %v3437 = vmul.f32 %v3153, %v3434
        %v3438 = vmul.f32 %v3119, %v3434
        %v3439 = vmul.f32 %v3154, %v3434
        %v3440 = vmul.f32 %v3120, %v3434
        %v3441 = vmul.f32 %v3155, %v3434
        %v3442 = vmul.f32 %v3121, %v3434
        %v3443 = vmul.f32 %v3156, %v3434
        %v3444 = vmul.f32 %v3122, %v3434
        %v3445 = vmul.f32 %v3157, %v3434
        %v3446 = vmul.f32 %v3123, %v3434
        %v3447 = vmul.f32 %v3158, %v3434
        %v3448 = vmul.f32 %v3124, %v3434
        %v3449 = vmul.f32 %v3159, %v3434
        %v3450 = vmul.f32 %v3125, %v3434
        %v3451 = vmul.f32 %v3160, %v3434
        %v3452 = vmul.f32 %v3126, %v3434
        %v3453 = vmul.f32 %v3161, %v3434
        %v3454 = vmul.f32 %v3127, %v3434
        %v3455 = vmul.f32 %v3162, %v3434
        %v3456 = vmul.f32 %v3128, %v3434
        %v3457 = vmul.f32 %v3163, %v3434
        %v3458 = vmul.f32 %v3129, %v3434
        %v3459 = vmul.f32 %v3164, %v3434
        %v3460 = vmul.f32 %v3130, %v3434
        %v3461 = vmul.f32 %v3165, %v3434
        %v3462 = vmul.f32 %v3131, %v3434
        %v3463 = vmul.f32 %v3166, %v3434
        %v3464 = vmul.f32 %v3132, %v3434
        %v3465 = vmul.f32 %v3167, %v3434
        %v3466 = vmul.f32 %v3133, %v3434
        %v3467 = vadd.f32 %v3402, %v3435
        %v3468 = vadd.f32 %v3403, %v3436
        %v3469 = vadd.f32 %v3404, %v3437
        %v3470 = vadd.f32 %v3405, %v3438
        %v3471 = vadd.f32 %v3406, %v3439
        %v3472 = vadd.f32 %v3407, %v3440
        %v3473 = vadd.f32 %v3408, %v3441
        %v3474 = vadd.f32 %v3409, %v3442
        %v3475 = vadd.f32 %v3410, %v3443
        %v3476 = vadd.f32 %v3411, %v3444
        %v3477 = vadd.f32 %v3412, %v3445
        %v3478 = vadd.f32 %v3413, %v3446
        %v3479 = vadd.f32 %v3414, %v3447
        %v3480 = vadd.f32 %v3415, %v3448
        %v3481 = vadd.f32 %v3416, %v3449
        %v3482 = vadd.f32 %v3417, %v3450
        %v3483 = vadd.f32 %v3418, %v3451
        %v3484 = vadd.f32 %v3419, %v3452
        %v3485 = vadd.f32 %v3420, %v3453
        %v3486 = vadd.f32 %v3421, %v3454
        %v3487 = vadd.f32 %v3422, %v3455
        %v3488 = vadd.f32 %v3423, %v3456
        %v3489 = vadd.f32 %v3424, %v3457
        %v3490 = vadd.f32 %v3425, %v3458
        %v3491 = vadd.f32 %v3426, %v3459
        %v3492 = vadd.f32 %v3427, %v3460
        %v3493 = vadd.f32 %v3428, %v3461
        %v3494 = vadd.f32 %v3429, %v3462
        %v3495 = vadd.f32 %v3430, %v3463
        %v3496 = vadd.f32 %v3431, %v3464
        %v3497 = vadd.f32 %v3432, %v3465
        %v3498 = vadd.f32 %v3433, %v3466
        %v3499 = vperm.slane %v2797, 3
        %v3500 = vmul.f32 %v3155, %v3499
        %v3501 = vmul.f32 %v3121, %v3499
        %v3502 = vmul.f32 %v3156, %v3499
        %v3503 = vmul.f32 %v3122, %v3499
        %v3504 = vmul.f32 %v3157, %v3499
        %v3505 = vmul.f32 %v3123, %v3499
        %v3506 = vmul.f32 %v3158, %v3499
        %v3507 = vmul.f32 %v3124, %v3499
        %v3508 = vmul.f32 %v3159, %v3499
        %v3509 = vmul.f32 %v3125, %v3499
        %v3510 = vmul.f32 %v3160, %v3499
        %v3511 = vmul.f32 %v3126, %v3499
        %v3512 = vmul.f32 %v3161, %v3499
        %v3513 = vmul.f32 %v3127, %v3499
        %v3514 = vmul.f32 %v3162, %v3499
        %v3515 = vmul.f32 %v3128, %v3499
        %v3516 = vmul.f32 %v3163, %v3499
        %v3517 = vmul.f32 %v3129, %v3499
        %v3518 = vmul.f32 %v3164, %v3499
        %v3519 = vmul.f32 %v3130, %v3499
        %v3520 = vmul.f32 %v3165, %v3499
        %v3521 = vmul.f32 %v3131, %v3499
        %v3522 = vmul.f32 %v3166, %v3499
        %v3523 = vmul.f32 %v3132, %v3499
        %v3524 = vmul.f32 %v3167, %v3499
        %v3525 = vmul.f32 %v3133, %v3499
        %v3526 = vmul.f32 %v3168, %v3499
        %v3527 = vmul.f32 %v3134, %v3499
        %v3528 = vmul.f32 %v3169, %v3499
        %v3529 = vmul.f32 %v3135, %v3499
        %v3530 = vmul.f32 %v3170, %v3499
        %v3531 = vmul.f32 %v3136, %v3499
        %v3532 = vadd.f32 %v3467, %v3500
        %v3533 = vadd.f32 %v3468, %v3501
        %v3534 = vadd.f32 %v3469, %v3502
        %v3535 = vadd.f32 %v3470, %v3503
        %v3536 = vadd.f32 %v3471, %v3504
        %v3537 = vadd.f32 %v3472, %v3505
        %v3538 = vadd.f32 %v3473, %v3506
        %v3539 = vadd.f32 %v3474, %v3507
        %v3540 = vadd.f32 %v3475, %v3508
        %v3541 = vadd.f32 %v3476, %v3509
        %v3542 = vadd.f32 %v3477, %v3510
        %v3543 = vadd.f32 %v3478, %v3511
        %v3544 = vadd.f32 %v3479, %v3512
        %v3545 = vadd.f32 %v3480, %v3513
        %v3546 = vadd.f32 %v3481, %v3514
        %v3547 = vadd.f32 %v3482, %v3515
        %v3548 = vadd.f32 %v3483, %v3516
        %v3549 = vadd.f32 %v3484, %v3517
        %v3550 = vadd.f32 %v3485, %v3518
        %v3551 = vadd.f32 %v3486, %v3519
        %v3552 = vadd.f32 %v3487, %v3520
        %v3553 = vadd.f32 %v3488, %v3521
        %v3554 = vadd.f32 %v3489, %v3522
        %v3555 = vadd.f32 %v3490, %v3523
        %v3556 = vadd.f32 %v3491, %v3524
        %v3557 = vadd.f32 %v3492, %v3525
        %v3558 = vadd.f32 %v3493, %v3526
        %v3559 = vadd.f32 %v3494, %v3527
        %v3560 = vadd.f32 %v3495, %v3528
        %v3561 = vadd.f32 %v3496, %v3529
        %v3562 = vadd.f32 %v3497, %v3530
        %v3563 = vadd.f32 %v3498, %v3531
        %v3564 = vperm.slane %v2798, 2
        %v3565 = vmul.f32 %v3158, %v3564
        %v3566 = vmul.f32 %v3124, %v3564
        %v3567 = vmul.f32 %v3159, %v3564
        %v3568 = vmul.f32 %v3125, %v3564
        %v3569 = vmul.f32 %v3160, %v3564
        %v3570 = vmul.f32 %v3126, %v3564
        %v3571 = vmul.f32 %v3161, %v3564
        %v3572 = vmul.f32 %v3127, %v3564
        %v3573 = vmul.f32 %v3162, %v3564
        %v3574 = vmul.f32 %v3128, %v3564
        %v3575 = vmul.f32 %v3163, %v3564
        %v3576 = vmul.f32 %v3129, %v3564
        %v3577 = vmul.f32 %v3164, %v3564
        %v3578 = vmul.f32 %v3130, %v3564
        %v3579 = vmul.f32 %v3165, %v3564
        %v3580 = vmul.f32 %v3131, %v3564
        %v3581 = vmul.f32 %v3166, %v3564
        %v3582 = vmul.f32 %v3132, %v3564
        %v3583 = vmul.f32 %v3167, %v3564
        %v3584 = vmul.f32 %v3133, %v3564
        %v3585 = vmul.f32 %v3168, %v3564
        %v3586 = vmul.f32 %v3134, %v3564
        %v3587 = vmul.f32 %v3169, %v3564
        %v3588 = vmul.f32 %v3135, %v3564
        %v3589 = vmul.f32 %v3170, %v3564
        %v3590 = vmul.f32 %v3136, %v3564
        %v3591 = vmul.f32 %v3171, %v3564
        %v3592 = vmul.f32 %v3137, %v3564
        %v3593 = vmul.f32 %v3172, %v3564
        %v3594 = vmul.f32 %v3138, %v3564
        %v3595 = vmul.f32 %v3173, %v3564
        %v3596 = vmul.f32 %v3139, %v3564
        %v3597 = vadd.f32 %v3532, %v3565
        %v3598 = vadd.f32 %v3533, %v3566
        %v3599 = vadd.f32 %v3534, %v3567
        %v3600 = vadd.f32 %v3535, %v3568
        %v3601 = vadd.f32 %v3536, %v3569
        %v3602 = vadd.f32 %v3537, %v3570
        %v3603 = vadd.f32 %v3538, %v3571
        %v3604 = vadd.f32 %v3539, %v3572
        %v3605 = vadd.f32 %v3540, %v3573
        %v3606 = vadd.f32 %v3541, %v3574
        %v3607 = vadd.f32 %v3542, %v3575
        %v3608 = vadd.f32 %v3543, %v3576
        %v3609 = vadd.f32 %v3544, %v3577
        %v3610 = vadd.f32 %v3545, %v3578
        %v3611 = vadd.f32 %v3546, %v3579
        %v3612 = vadd.f32 %v3547, %v3580
        %v3613 = vadd.f32 %v3548, %v3581
        %v3614 = vadd.f32 %v3549, %v3582
        %v3615 = vadd.f32 %v3550, %v3583
        %v3616 = vadd.f32 %v3551, %v3584
        %v3617 = vadd.f32 %v3552, %v3585
        %v3618 = vadd.f32 %v3553, %v3586
        %v3619 = vadd.f32 %v3554, %v3587
        %v3620 = vadd.f32 %v3555, %v3588
        %v3621 = vadd.f32 %v3556, %v3589
        %v3622 = vadd.f32 %v3557, %v3590
        %v3623 = vadd.f32 %v3558, %v3591
        %v3624 = vadd.f32 %v3559, %v3592
        %v3625 = vadd.f32 %v3560, %v3593
        %v3626 = vadd.f32 %v3561, %v3594
        %v3627 = vadd.f32 %v3562, %v3595
        %v3628 = vadd.f32 %v3563, %v3596
        %v3629 = vrot.slane %v2801, 2
        %v3630 = vrot.slane %v2807, 2
        %v3631 = vrot.slane %v2813, 2
        %v3632 = vrot.slane %v2819, 2
        %v3633 = vrot.slane %v2825, 2
        %v3634 = vrot.slane %v2831, 2
        %v3635 = vrot.slane %v2837, 2
        %v3636 = vrot.slane %v2843, 2
        %v3637 = vrot.slane %v2849, 2
        %v3638 = vrot.slane %v2855, 2
        %v3639 = vrot.slane %v2861, 2
        %v3640 = vrot.slane %v2867, 2
        %v3641 = vrot.slane %v2873, 2
        %v3642 = vrot.slane %v2879, 2
        %v3643 = vrot.slane %v2885, 2
        %v3644 = vrot.slane %v2891, 2
        %v3645 = vrot.slane %v2897, 2
        %v3646 = vrot.slane %v2903, 2
        %v3647 = vrot.slane %v2909, 2
        %v3648 = vrot.slane %v2915, 2
        %v3649 = vrot.slane %v2921, 2
        %v3650 = vrot.slane %v2927, 2
        %v3651 = vrot.slane %v2933, 2
        %v3652 = vrot.slane %v2939, 2
        %v3653 = vrot.slane %v2945, 2
        %v3654 = vrot.slane %v2951, 2
        %v3655 = vrot.slane %v2957, 2
        %v3656 = vrot.slane %v2963, 2
        %v3657 = vrot.slane %v2969, 2
        %v3658 = vrot.slane %v2975, 2
        %v3659 = vrot.slane %v2981, 2
        %v3660 = vrot.slane %v2987, 2
        %v3661 = vrot.slane %v2993, 2
        %v3662 = vrot.slane %v2999, 2
        %v3663 = vrot.slane %v2802, 2
        %v3664 = vrot.slane %v2808, 2
        %v3665 = vrot.slane %v2814, 2
        %v3666 = vrot.slane %v2820, 2
        %v3667 = vrot.slane %v2826, 2
        %v3668 = vrot.slane %v2832, 2
        %v3669 = vrot.slane %v2838, 2
        %v3670 = vrot.slane %v2844, 2
        %v3671 = vrot.slane %v2850, 2
        %v3672 = vrot.slane %v2856, 2
        %v3673 = vrot.slane %v2862, 2
        %v3674 = vrot.slane %v2868, 2
        %v3675 = vrot.slane %v2874, 2
        %v3676 = vrot.slane %v2880, 2
        %v3677 = vrot.slane %v2886, 2
        %v3678 = vrot.slane %v2892, 2
        %v3679 = vrot.slane %v2898, 2
        %v3680 = vrot.slane %v2904, 2
        %v3681 = vrot.slane %v2910, 2
        %v3682 = vrot.slane %v2916, 2
        %v3683 = vrot.slane %v2922, 2
        %v3684 = vrot.slane %v2928, 2
        %v3685 = vrot.slane %v2934, 2
        %v3686 = vrot.slane %v2940, 2
        %v3687 = vrot.slane %v2946, 2
        %v3688 = vrot.slane %v2952, 2
        %v3689 = vrot.slane %v2958, 2
        %v3690 = vrot.slane %v2964, 2
        %v3691 = vrot.slane %v2970, 2
        %v3692 = vrot.slane %v2976, 2
        %v3693 = vrot.slane %v2982, 2
        %v3694 = vrot.slane %v2988, 2
        %v3695 = vrot.slane %v2994, 2
        %v3696 = vrot.slane %v3000, 2
        %v3697 = vrot.slane %v2803, 2
        %v3698 = vrot.slane %v2809, 2
        %v3699 = vrot.slane %v2815, 2
        %v3700 = vrot.slane %v2821, 2
        %v3701 = vrot.slane %v2827, 2
        %v3702 = vrot.slane %v2833, 2
        %v3703 = vrot.slane %v2839, 2
        %v3704 = vrot.slane %v2845, 2
        %v3705 = vrot.slane %v2851, 2
        %v3706 = vrot.slane %v2857, 2
        %v3707 = vrot.slane %v2863, 2
        %v3708 = vrot.slane %v2869, 2
        %v3709 = vrot.slane %v2875, 2
        %v3710 = vrot.slane %v2881, 2
        %v3711 = vrot.slane %v2887, 2
        %v3712 = vrot.slane %v2893, 2
        %v3713 = vrot.slane %v2899, 2
        %v3714 = vrot.slane %v2905, 2
        %v3715 = vrot.slane %v2911, 2
        %v3716 = vrot.slane %v2917, 2
        %v3717 = vrot.slane %v2923, 2
        %v3718 = vrot.slane %v2929, 2
        %v3719 = vrot.slane %v2935, 2
        %v3720 = vrot.slane %v2941, 2
        %v3721 = vrot.slane %v2947, 2
        %v3722 = vrot.slane %v2953, 2
        %v3723 = vrot.slane %v2959, 2
        %v3724 = vrot.slane %v2965, 2
        %v3725 = vrot.slane %v2971, 2
        %v3726 = vrot.slane %v2977, 2
        %v3727 = vrot.slane %v2983, 2
        %v3728 = vrot.slane %v2989, 2
        %v3729 = vrot.slane %v2995, 2
        %v3730 = vrot.slane %v3001, 2
        %v3731 = vsel %vm2359, %v3663, %v3697
        %v3732 = vsel %vm2359, %v3664, %v3698
        %v3733 = vsel %vm2359, %v3665, %v3699
        %v3734 = vsel %vm2359, %v3666, %v3700
        %v3735 = vsel %vm2359, %v3667, %v3701
        %v3736 = vsel %vm2359, %v3668, %v3702
        %v3737 = vsel %vm2359, %v3669, %v3703
        %v3738 = vsel %vm2359, %v3670, %v3704
        %v3739 = vsel %vm2359, %v3671, %v3705
        %v3740 = vsel %vm2359, %v3672, %v3706
        %v3741 = vsel %vm2359, %v3673, %v3707
        %v3742 = vsel %vm2359, %v3674, %v3708
        %v3743 = vsel %vm2359, %v3675, %v3709
        %v3744 = vsel %vm2359, %v3676, %v3710
        %v3745 = vsel %vm2359, %v3677, %v3711
        %v3746 = vsel %vm2359, %v3678, %v3712
        %v3747 = vsel %vm2359, %v3679, %v3713
        %v3748 = vsel %vm2359, %v3680, %v3714
        %v3749 = vsel %vm2359, %v3681, %v3715
        %v3750 = vsel %vm2359, %v3682, %v3716
        %v3751 = vsel %vm2359, %v3683, %v3717
        %v3752 = vsel %vm2359, %v3684, %v3718
        %v3753 = vsel %vm2359, %v3685, %v3719
        %v3754 = vsel %vm2359, %v3686, %v3720
        %v3755 = vsel %vm2359, %v3687, %v3721
        %v3756 = vsel %vm2359, %v3688, %v3722
        %v3757 = vsel %vm2359, %v3689, %v3723
        %v3758 = vsel %vm2359, %v3690, %v3724
        %v3759 = vsel %vm2359, %v3691, %v3725
        %v3760 = vsel %vm2359, %v3692, %v3726
        %v3761 = vsel %vm2359, %v3693, %v3727
        %v3762 = vsel %vm2359, %v3694, %v3728
        %v3763 = vsel %vm2359, %v3695, %v3729
        %v3764 = vsel %vm2359, %v3696, %v3730
        %v3765 = vsel %vm2359, %v3629, %v3663
        %v3766 = vsel %vm2359, %v3630, %v3664
        %v3767 = vsel %vm2359, %v3631, %v3665
        %v3768 = vsel %vm2359, %v3632, %v3666
        %v3769 = vsel %vm2359, %v3633, %v3667
        %v3770 = vsel %vm2359, %v3634, %v3668
        %v3771 = vsel %vm2359, %v3635, %v3669
        %v3772 = vsel %vm2359, %v3636, %v3670
        %v3773 = vsel %vm2359, %v3637, %v3671
        %v3774 = vsel %vm2359, %v3638, %v3672
        %v3775 = vsel %vm2359, %v3639, %v3673
        %v3776 = vsel %vm2359, %v3640, %v3674
        %v3777 = vsel %vm2359, %v3641, %v3675
        %v3778 = vsel %vm2359, %v3642, %v3676
        %v3779 = vsel %vm2359, %v3643, %v3677
        %v3780 = vsel %vm2359, %v3644, %v3678
        %v3781 = vsel %vm2359, %v3645, %v3679
        %v3782 = vsel %vm2359, %v3646, %v3680
        %v3783 = vsel %vm2359, %v3647, %v3681
        %v3784 = vsel %vm2359, %v3648, %v3682
        %v3785 = vsel %vm2359, %v3649, %v3683
        %v3786 = vsel %vm2359, %v3650, %v3684
        %v3787 = vsel %vm2359, %v3651, %v3685
        %v3788 = vsel %vm2359, %v3652, %v3686
        %v3789 = vsel %vm2359, %v3653, %v3687
        %v3790 = vsel %vm2359, %v3654, %v3688
        %v3791 = vsel %vm2359, %v3655, %v3689
        %v3792 = vsel %vm2359, %v3656, %v3690
        %v3793 = vsel %vm2359, %v3657, %v3691
        %v3794 = vsel %vm2359, %v3658, %v3692
        %v3795 = vsel %vm2359, %v3659, %v3693
        %v3796 = vsel %vm2359, %v3660, %v3694
        %v3797 = vsel %vm2359, %v3661, %v3695
        %v3798 = vsel %vm2359, %v3662, %v3696
        %v3799 = vperm.slane %v2793, 1
        %v3800 = vmul.f32 %v3765, %v3799
        %v3801 = vmul.f32 %v3731, %v3799
        %v3802 = vmul.f32 %v3766, %v3799
        %v3803 = vmul.f32 %v3732, %v3799
        %v3804 = vmul.f32 %v3767, %v3799
        %v3805 = vmul.f32 %v3733, %v3799
        %v3806 = vmul.f32 %v3768, %v3799
        %v3807 = vmul.f32 %v3734, %v3799
        %v3808 = vmul.f32 %v3769, %v3799
        %v3809 = vmul.f32 %v3735, %v3799
        %v3810 = vmul.f32 %v3770, %v3799
        %v3811 = vmul.f32 %v3736, %v3799
        %v3812 = vmul.f32 %v3771, %v3799
        %v3813 = vmul.f32 %v3737, %v3799
        %v3814 = vmul.f32 %v3772, %v3799
        %v3815 = vmul.f32 %v3738, %v3799
        %v3816 = vmul.f32 %v3773, %v3799
        %v3817 = vmul.f32 %v3739, %v3799
        %v3818 = vmul.f32 %v3774, %v3799
        %v3819 = vmul.f32 %v3740, %v3799
        %v3820 = vmul.f32 %v3775, %v3799
        %v3821 = vmul.f32 %v3741, %v3799
        %v3822 = vmul.f32 %v3776, %v3799
        %v3823 = vmul.f32 %v3742, %v3799
        %v3824 = vmul.f32 %v3777, %v3799
        %v3825 = vmul.f32 %v3743, %v3799
        %v3826 = vmul.f32 %v3778, %v3799
        %v3827 = vmul.f32 %v3744, %v3799
        %v3828 = vmul.f32 %v3779, %v3799
        %v3829 = vmul.f32 %v3745, %v3799
        %v3830 = vmul.f32 %v3780, %v3799
        %v3831 = vmul.f32 %v3746, %v3799
        %v3832 = vadd.f32 %v3597, %v3800
        %v3833 = vadd.f32 %v3598, %v3801
        %v3834 = vadd.f32 %v3599, %v3802
        %v3835 = vadd.f32 %v3600, %v3803
        %v3836 = vadd.f32 %v3601, %v3804
        %v3837 = vadd.f32 %v3602, %v3805
        %v3838 = vadd.f32 %v3603, %v3806
        %v3839 = vadd.f32 %v3604, %v3807
        %v3840 = vadd.f32 %v3605, %v3808
        %v3841 = vadd.f32 %v3606, %v3809
        %v3842 = vadd.f32 %v3607, %v3810
        %v3843 = vadd.f32 %v3608, %v3811
        %v3844 = vadd.f32 %v3609, %v3812
        %v3845 = vadd.f32 %v3610, %v3813
        %v3846 = vadd.f32 %v3611, %v3814
        %v3847 = vadd.f32 %v3612, %v3815
        %v3848 = vadd.f32 %v3613, %v3816
        %v3849 = vadd.f32 %v3614, %v3817
        %v3850 = vadd.f32 %v3615, %v3818
        %v3851 = vadd.f32 %v3616, %v3819
        %v3852 = vadd.f32 %v3617, %v3820
        %v3853 = vadd.f32 %v3618, %v3821
        %v3854 = vadd.f32 %v3619, %v3822
        %v3855 = vadd.f32 %v3620, %v3823
        %v3856 = vadd.f32 %v3621, %v3824
        %v3857 = vadd.f32 %v3622, %v3825
        %v3858 = vadd.f32 %v3623, %v3826
        %v3859 = vadd.f32 %v3624, %v3827
        %v3860 = vadd.f32 %v3625, %v3828
        %v3861 = vadd.f32 %v3626, %v3829
        %v3862 = vadd.f32 %v3627, %v3830
        %v3863 = vadd.f32 %v3628, %v3831
        %v3864 = vperm.slane %v2794, 0
        %v3865 = vmul.f32 %v3768, %v3864
        %v3866 = vmul.f32 %v3734, %v3864
        %v3867 = vmul.f32 %v3769, %v3864
        %v3868 = vmul.f32 %v3735, %v3864
        %v3869 = vmul.f32 %v3770, %v3864
        %v3870 = vmul.f32 %v3736, %v3864
        %v3871 = vmul.f32 %v3771, %v3864
        %v3872 = vmul.f32 %v3737, %v3864
        %v3873 = vmul.f32 %v3772, %v3864
        %v3874 = vmul.f32 %v3738, %v3864
        %v3875 = vmul.f32 %v3773, %v3864
        %v3876 = vmul.f32 %v3739, %v3864
        %v3877 = vmul.f32 %v3774, %v3864
        %v3878 = vmul.f32 %v3740, %v3864
        %v3879 = vmul.f32 %v3775, %v3864
        %v3880 = vmul.f32 %v3741, %v3864
        %v3881 = vmul.f32 %v3776, %v3864
        %v3882 = vmul.f32 %v3742, %v3864
        %v3883 = vmul.f32 %v3777, %v3864
        %v3884 = vmul.f32 %v3743, %v3864
        %v3885 = vmul.f32 %v3778, %v3864
        %v3886 = vmul.f32 %v3744, %v3864
        %v3887 = vmul.f32 %v3779, %v3864
        %v3888 = vmul.f32 %v3745, %v3864
        %v3889 = vmul.f32 %v3780, %v3864
        %v3890 = vmul.f32 %v3746, %v3864
        %v3891 = vmul.f32 %v3781, %v3864
        %v3892 = vmul.f32 %v3747, %v3864
        %v3893 = vmul.f32 %v3782, %v3864
        %v3894 = vmul.f32 %v3748, %v3864
        %v3895 = vmul.f32 %v3783, %v3864
        %v3896 = vmul.f32 %v3749, %v3864
        %v3897 = vadd.f32 %v3832, %v3865
        %v3898 = vadd.f32 %v3833, %v3866
        %v3899 = vadd.f32 %v3834, %v3867
        %v3900 = vadd.f32 %v3835, %v3868
        %v3901 = vadd.f32 %v3836, %v3869
        %v3902 = vadd.f32 %v3837, %v3870
        %v3903 = vadd.f32 %v3838, %v3871
        %v3904 = vadd.f32 %v3839, %v3872
        %v3905 = vadd.f32 %v3840, %v3873
        %v3906 = vadd.f32 %v3841, %v3874
        %v3907 = vadd.f32 %v3842, %v3875
        %v3908 = vadd.f32 %v3843, %v3876
        %v3909 = vadd.f32 %v3844, %v3877
        %v3910 = vadd.f32 %v3845, %v3878
        %v3911 = vadd.f32 %v3846, %v3879
        %v3912 = vadd.f32 %v3847, %v3880
        %v3913 = vadd.f32 %v3848, %v3881
        %v3914 = vadd.f32 %v3849, %v3882
        %v3915 = vadd.f32 %v3850, %v3883
        %v3916 = vadd.f32 %v3851, %v3884
        %v3917 = vadd.f32 %v3852, %v3885
        %v3918 = vadd.f32 %v3853, %v3886
        %v3919 = vadd.f32 %v3854, %v3887
        %v3920 = vadd.f32 %v3855, %v3888
        %v3921 = vadd.f32 %v3856, %v3889
        %v3922 = vadd.f32 %v3857, %v3890
        %v3923 = vadd.f32 %v3858, %v3891
        %v3924 = vadd.f32 %v3859, %v3892
        %v3925 = vadd.f32 %v3860, %v3893
        %v3926 = vadd.f32 %v3861, %v3894
        %v3927 = vadd.f32 %v3862, %v3895
        %v3928 = vadd.f32 %v3863, %v3896
        %v3929 = vperm.slane %v2794, 7
        %v3930 = vmul.f32 %v3771, %v3929
        %v3931 = vmul.f32 %v3737, %v3929
        %v3932 = vmul.f32 %v3772, %v3929
        %v3933 = vmul.f32 %v3738, %v3929
        %v3934 = vmul.f32 %v3773, %v3929
        %v3935 = vmul.f32 %v3739, %v3929
        %v3936 = vmul.f32 %v3774, %v3929
        %v3937 = vmul.f32 %v3740, %v3929
        %v3938 = vmul.f32 %v3775, %v3929
        %v3939 = vmul.f32 %v3741, %v3929
        %v3940 = vmul.f32 %v3776, %v3929
        %v3941 = vmul.f32 %v3742, %v3929
        %v3942 = vmul.f32 %v3777, %v3929
        %v3943 = vmul.f32 %v3743, %v3929
        %v3944 = vmul.f32 %v3778, %v3929
        %v3945 = vmul.f32 %v3744, %v3929
        %v3946 = vmul.f32 %v3779, %v3929
        %v3947 = vmul.f32 %v3745, %v3929
        %v3948 = vmul.f32 %v3780, %v3929
        %v3949 = vmul.f32 %v3746, %v3929
        %v3950 = vmul.f32 %v3781, %v3929
        %v3951 = vmul.f32 %v3747, %v3929
        %v3952 = vmul.f32 %v3782, %v3929
        %v3953 = vmul.f32 %v3748, %v3929
        %v3954 = vmul.f32 %v3783, %v3929
        %v3955 = vmul.f32 %v3749, %v3929
        %v3956 = vmul.f32 %v3784, %v3929
        %v3957 = vmul.f32 %v3750, %v3929
        %v3958 = vmul.f32 %v3785, %v3929
        %v3959 = vmul.f32 %v3751, %v3929
        %v3960 = vmul.f32 %v3786, %v3929
        %v3961 = vmul.f32 %v3752, %v3929
        %v3962 = vadd.f32 %v3897, %v3930
        %v3963 = vadd.f32 %v3898, %v3931
        %v3964 = vadd.f32 %v3899, %v3932
        %v3965 = vadd.f32 %v3900, %v3933
        %v3966 = vadd.f32 %v3901, %v3934
        %v3967 = vadd.f32 %v3902, %v3935
        %v3968 = vadd.f32 %v3903, %v3936
        %v3969 = vadd.f32 %v3904, %v3937
        %v3970 = vadd.f32 %v3905, %v3938
        %v3971 = vadd.f32 %v3906, %v3939
        %v3972 = vadd.f32 %v3907, %v3940
        %v3973 = vadd.f32 %v3908, %v3941
        %v3974 = vadd.f32 %v3909, %v3942
        %v3975 = vadd.f32 %v3910, %v3943
        %v3976 = vadd.f32 %v3911, %v3944
        %v3977 = vadd.f32 %v3912, %v3945
        %v3978 = vadd.f32 %v3913, %v3946
        %v3979 = vadd.f32 %v3914, %v3947
        %v3980 = vadd.f32 %v3915, %v3948
        %v3981 = vadd.f32 %v3916, %v3949
        %v3982 = vadd.f32 %v3917, %v3950
        %v3983 = vadd.f32 %v3918, %v3951
        %v3984 = vadd.f32 %v3919, %v3952
        %v3985 = vadd.f32 %v3920, %v3953
        %v3986 = vadd.f32 %v3921, %v3954
        %v3987 = vadd.f32 %v3922, %v3955
        %v3988 = vadd.f32 %v3923, %v3956
        %v3989 = vadd.f32 %v3924, %v3957
        %v3990 = vadd.f32 %v3925, %v3958
        %v3991 = vadd.f32 %v3926, %v3959
        %v3992 = vadd.f32 %v3927, %v3960
        %v3993 = vadd.f32 %v3928, %v3961
        %v3994 = vperm.slane %v2795, 6
        %v3995 = vmul.f32 %v3774, %v3994
        %v3996 = vmul.f32 %v3740, %v3994
        %v3997 = vmul.f32 %v3775, %v3994
        %v3998 = vmul.f32 %v3741, %v3994
        %v3999 = vmul.f32 %v3776, %v3994
        %v4000 = vmul.f32 %v3742, %v3994
        %v4001 = vmul.f32 %v3777, %v3994
        %v4002 = vmul.f32 %v3743, %v3994
        %v4003 = vmul.f32 %v3778, %v3994
        %v4004 = vmul.f32 %v3744, %v3994
        %v4005 = vmul.f32 %v3779, %v3994
        %v4006 = vmul.f32 %v3745, %v3994
        %v4007 = vmul.f32 %v3780, %v3994
        %v4008 = vmul.f32 %v3746, %v3994
        %v4009 = vmul.f32 %v3781, %v3994
        %v4010 = vmul.f32 %v3747, %v3994
        %v4011 = vmul.f32 %v3782, %v3994
        %v4012 = vmul.f32 %v3748, %v3994
        %v4013 = vmul.f32 %v3783, %v3994
        %v4014 = vmul.f32 %v3749, %v3994
        %v4015 = vmul.f32 %v3784, %v3994
        %v4016 = vmul.f32 %v3750, %v3994
        %v4017 = vmul.f32 %v3785, %v3994
        %v4018 = vmul.f32 %v3751, %v3994
        %v4019 = vmul.f32 %v3786, %v3994
        %v4020 = vmul.f32 %v3752, %v3994
        %v4021 = vmul.f32 %v3787, %v3994
        %v4022 = vmul.f32 %v3753, %v3994
        %v4023 = vmul.f32 %v3788, %v3994
        %v4024 = vmul.f32 %v3754, %v3994
        %v4025 = vmul.f32 %v3789, %v3994
        %v4026 = vmul.f32 %v3755, %v3994
        %v4027 = vadd.f32 %v3962, %v3995
        %v4028 = vadd.f32 %v3963, %v3996
        %v4029 = vadd.f32 %v3964, %v3997
        %v4030 = vadd.f32 %v3965, %v3998
        %v4031 = vadd.f32 %v3966, %v3999
        %v4032 = vadd.f32 %v3967, %v4000
        %v4033 = vadd.f32 %v3968, %v4001
        %v4034 = vadd.f32 %v3969, %v4002
        %v4035 = vadd.f32 %v3970, %v4003
        %v4036 = vadd.f32 %v3971, %v4004
        %v4037 = vadd.f32 %v3972, %v4005
        %v4038 = vadd.f32 %v3973, %v4006
        %v4039 = vadd.f32 %v3974, %v4007
        %v4040 = vadd.f32 %v3975, %v4008
        %v4041 = vadd.f32 %v3976, %v4009
        %v4042 = vadd.f32 %v3977, %v4010
        %v4043 = vadd.f32 %v3978, %v4011
        %v4044 = vadd.f32 %v3979, %v4012
        %v4045 = vadd.f32 %v3980, %v4013
        %v4046 = vadd.f32 %v3981, %v4014
        %v4047 = vadd.f32 %v3982, %v4015
        %v4048 = vadd.f32 %v3983, %v4016
        %v4049 = vadd.f32 %v3984, %v4017
        %v4050 = vadd.f32 %v3985, %v4018
        %v4051 = vadd.f32 %v3986, %v4019
        %v4052 = vadd.f32 %v3987, %v4020
        %v4053 = vadd.f32 %v3988, %v4021
        %v4054 = vadd.f32 %v3989, %v4022
        %v4055 = vadd.f32 %v3990, %v4023
        %v4056 = vadd.f32 %v3991, %v4024
        %v4057 = vadd.f32 %v3992, %v4025
        %v4058 = vadd.f32 %v3993, %v4026
        %v4059 = vperm.slane %v2796, 5
        %v4060 = vmul.f32 %v3777, %v4059
        %v4061 = vmul.f32 %v3743, %v4059
        %v4062 = vmul.f32 %v3778, %v4059
        %v4063 = vmul.f32 %v3744, %v4059
        %v4064 = vmul.f32 %v3779, %v4059
        %v4065 = vmul.f32 %v3745, %v4059
        %v4066 = vmul.f32 %v3780, %v4059
        %v4067 = vmul.f32 %v3746, %v4059
        %v4068 = vmul.f32 %v3781, %v4059
        %v4069 = vmul.f32 %v3747, %v4059
        %v4070 = vmul.f32 %v3782, %v4059
        %v4071 = vmul.f32 %v3748, %v4059
        %v4072 = vmul.f32 %v3783, %v4059
        %v4073 = vmul.f32 %v3749, %v4059
        %v4074 = vmul.f32 %v3784, %v4059
        %v4075 = vmul.f32 %v3750, %v4059
        %v4076 = vmul.f32 %v3785, %v4059
        %v4077 = vmul.f32 %v3751, %v4059
        %v4078 = vmul.f32 %v3786, %v4059
        %v4079 = vmul.f32 %v3752, %v4059
        %v4080 = vmul.f32 %v3787, %v4059
        %v4081 = vmul.f32 %v3753, %v4059
        %v4082 = vmul.f32 %v3788, %v4059
        %v4083 = vmul.f32 %v3754, %v4059
        %v4084 = vmul.f32 %v3789, %v4059
        %v4085 = vmul.f32 %v3755, %v4059
        %v4086 = vmul.f32 %v3790, %v4059
        %v4087 = vmul.f32 %v3756, %v4059
        %v4088 = vmul.f32 %v3791, %v4059
        %v4089 = vmul.f32 %v3757, %v4059
        %v4090 = vmul.f32 %v3792, %v4059
        %v4091 = vmul.f32 %v3758, %v4059
        %v4092 = vadd.f32 %v4027, %v4060
        %v4093 = vadd.f32 %v4028, %v4061
        %v4094 = vadd.f32 %v4029, %v4062
        %v4095 = vadd.f32 %v4030, %v4063
        %v4096 = vadd.f32 %v4031, %v4064
        %v4097 = vadd.f32 %v4032, %v4065
        %v4098 = vadd.f32 %v4033, %v4066
        %v4099 = vadd.f32 %v4034, %v4067
        %v4100 = vadd.f32 %v4035, %v4068
        %v4101 = vadd.f32 %v4036, %v4069
        %v4102 = vadd.f32 %v4037, %v4070
        %v4103 = vadd.f32 %v4038, %v4071
        %v4104 = vadd.f32 %v4039, %v4072
        %v4105 = vadd.f32 %v4040, %v4073
        %v4106 = vadd.f32 %v4041, %v4074
        %v4107 = vadd.f32 %v4042, %v4075
        %v4108 = vadd.f32 %v4043, %v4076
        %v4109 = vadd.f32 %v4044, %v4077
        %v4110 = vadd.f32 %v4045, %v4078
        %v4111 = vadd.f32 %v4046, %v4079
        %v4112 = vadd.f32 %v4047, %v4080
        %v4113 = vadd.f32 %v4048, %v4081
        %v4114 = vadd.f32 %v4049, %v4082
        %v4115 = vadd.f32 %v4050, %v4083
        %v4116 = vadd.f32 %v4051, %v4084
        %v4117 = vadd.f32 %v4052, %v4085
        %v4118 = vadd.f32 %v4053, %v4086
        %v4119 = vadd.f32 %v4054, %v4087
        %v4120 = vadd.f32 %v4055, %v4088
        %v4121 = vadd.f32 %v4056, %v4089
        %v4122 = vadd.f32 %v4057, %v4090
        %v4123 = vadd.f32 %v4058, %v4091
        %v4124 = vperm.slane %v2797, 4
        %v4125 = vmul.f32 %v3780, %v4124
        %v4126 = vmul.f32 %v3746, %v4124
        %v4127 = vmul.f32 %v3781, %v4124
        %v4128 = vmul.f32 %v3747, %v4124
        %v4129 = vmul.f32 %v3782, %v4124
        %v4130 = vmul.f32 %v3748, %v4124
        %v4131 = vmul.f32 %v3783, %v4124
        %v4132 = vmul.f32 %v3749, %v4124
        %v4133 = vmul.f32 %v3784, %v4124
        %v4134 = vmul.f32 %v3750, %v4124
        %v4135 = vmul.f32 %v3785, %v4124
        %v4136 = vmul.f32 %v3751, %v4124
        %v4137 = vmul.f32 %v3786, %v4124
        %v4138 = vmul.f32 %v3752, %v4124
        %v4139 = vmul.f32 %v3787, %v4124
        %v4140 = vmul.f32 %v3753, %v4124
        %v4141 = vmul.f32 %v3788, %v4124
        %v4142 = vmul.f32 %v3754, %v4124
        %v4143 = vmul.f32 %v3789, %v4124
        %v4144 = vmul.f32 %v3755, %v4124
        %v4145 = vmul.f32 %v3790, %v4124
        %v4146 = vmul.f32 %v3756, %v4124
        %v4147 = vmul.f32 %v3791, %v4124
        %v4148 = vmul.f32 %v3757, %v4124
        %v4149 = vmul.f32 %v3792, %v4124
        %v4150 = vmul.f32 %v3758, %v4124
        %v4151 = vmul.f32 %v3793, %v4124
        %v4152 = vmul.f32 %v3759, %v4124
        %v4153 = vmul.f32 %v3794, %v4124
        %v4154 = vmul.f32 %v3760, %v4124
        %v4155 = vmul.f32 %v3795, %v4124
        %v4156 = vmul.f32 %v3761, %v4124
        %v4157 = vadd.f32 %v4092, %v4125
        %v4158 = vadd.f32 %v4093, %v4126
        %v4159 = vadd.f32 %v4094, %v4127
        %v4160 = vadd.f32 %v4095, %v4128
        %v4161 = vadd.f32 %v4096, %v4129
        %v4162 = vadd.f32 %v4097, %v4130
        %v4163 = vadd.f32 %v4098, %v4131
        %v4164 = vadd.f32 %v4099, %v4132
        %v4165 = vadd.f32 %v4100, %v4133
        %v4166 = vadd.f32 %v4101, %v4134
        %v4167 = vadd.f32 %v4102, %v4135
        %v4168 = vadd.f32 %v4103, %v4136
        %v4169 = vadd.f32 %v4104, %v4137
        %v4170 = vadd.f32 %v4105, %v4138
        %v4171 = vadd.f32 %v4106, %v4139
        %v4172 = vadd.f32 %v4107, %v4140
        %v4173 = vadd.f32 %v4108, %v4141
        %v4174 = vadd.f32 %v4109, %v4142
        %v4175 = vadd.f32 %v4110, %v4143
        %v4176 = vadd.f32 %v4111, %v4144
        %v4177 = vadd.f32 %v4112, %v4145
        %v4178 = vadd.f32 %v4113, %v4146
        %v4179 = vadd.f32 %v4114, %v4147
        %v4180 = vadd.f32 %v4115, %v4148
        %v4181 = vadd.f32 %v4116, %v4149
        %v4182 = vadd.f32 %v4117, %v4150
        %v4183 = vadd.f32 %v4118, %v4151
        %v4184 = vadd.f32 %v4119, %v4152
        %v4185 = vadd.f32 %v4120, %v4153
        %v4186 = vadd.f32 %v4121, %v4154
        %v4187 = vadd.f32 %v4122, %v4155
        %v4188 = vadd.f32 %v4123, %v4156
        %v4189 = vperm.slane %v2798, 3
        %v4190 = vmul.f32 %v3783, %v4189
        %v4191 = vmul.f32 %v3749, %v4189
        %v4192 = vmul.f32 %v3784, %v4189
        %v4193 = vmul.f32 %v3750, %v4189
        %v4194 = vmul.f32 %v3785, %v4189
        %v4195 = vmul.f32 %v3751, %v4189
        %v4196 = vmul.f32 %v3786, %v4189
        %v4197 = vmul.f32 %v3752, %v4189
        %v4198 = vmul.f32 %v3787, %v4189
        %v4199 = vmul.f32 %v3753, %v4189
        %v4200 = vmul.f32 %v3788, %v4189
        %v4201 = vmul.f32 %v3754, %v4189
        %v4202 = vmul.f32 %v3789, %v4189
        %v4203 = vmul.f32 %v3755, %v4189
        %v4204 = vmul.f32 %v3790, %v4189
        %v4205 = vmul.f32 %v3756, %v4189
        %v4206 = vmul.f32 %v3791, %v4189
        %v4207 = vmul.f32 %v3757, %v4189
        %v4208 = vmul.f32 %v3792, %v4189
        %v4209 = vmul.f32 %v3758, %v4189
        %v4210 = vmul.f32 %v3793, %v4189
        %v4211 = vmul.f32 %v3759, %v4189
        %v4212 = vmul.f32 %v3794, %v4189
        %v4213 = vmul.f32 %v3760, %v4189
        %v4214 = vmul.f32 %v3795, %v4189
        %v4215 = vmul.f32 %v3761, %v4189
        %v4216 = vmul.f32 %v3796, %v4189
        %v4217 = vmul.f32 %v3762, %v4189
        %v4218 = vmul.f32 %v3797, %v4189
        %v4219 = vmul.f32 %v3763, %v4189
        %v4220 = vmul.f32 %v3798, %v4189
        %v4221 = vmul.f32 %v3764, %v4189
        %v4222 = vadd.f32 %v4157, %v4190
        %v4223 = vadd.f32 %v4158, %v4191
        %v4224 = vadd.f32 %v4159, %v4192
        %v4225 = vadd.f32 %v4160, %v4193
        %v4226 = vadd.f32 %v4161, %v4194
        %v4227 = vadd.f32 %v4162, %v4195
        %v4228 = vadd.f32 %v4163, %v4196
        %v4229 = vadd.f32 %v4164, %v4197
        %v4230 = vadd.f32 %v4165, %v4198
        %v4231 = vadd.f32 %v4166, %v4199
        %v4232 = vadd.f32 %v4167, %v4200
        %v4233 = vadd.f32 %v4168, %v4201
        %v4234 = vadd.f32 %v4169, %v4202
        %v4235 = vadd.f32 %v4170, %v4203
        %v4236 = vadd.f32 %v4171, %v4204
        %v4237 = vadd.f32 %v4172, %v4205
        %v4238 = vadd.f32 %v4173, %v4206
        %v4239 = vadd.f32 %v4174, %v4207
        %v4240 = vadd.f32 %v4175, %v4208
        %v4241 = vadd.f32 %v4176, %v4209
        %v4242 = vadd.f32 %v4177, %v4210
        %v4243 = vadd.f32 %v4178, %v4211
        %v4244 = vadd.f32 %v4179, %v4212
        %v4245 = vadd.f32 %v4180, %v4213
        %v4246 = vadd.f32 %v4181, %v4214
        %v4247 = vadd.f32 %v4182, %v4215
        %v4248 = vadd.f32 %v4183, %v4216
        %v4249 = vadd.f32 %v4184, %v4217
        %v4250 = vadd.f32 %v4185, %v4218
        %v4251 = vadd.f32 %v4186, %v4219
        %v4252 = vadd.f32 %v4187, %v4220
        %v4253 = vadd.f32 %v4188, %v4221
        %v4254 = vrot.slane %v2801, 5
        %v4255 = vrot.slane %v2807, 5
        %v4256 = vrot.slane %v2813, 5
        %v4257 = vrot.slane %v2819, 5
        %v4258 = vrot.slane %v2825, 5
        %v4259 = vrot.slane %v2831, 5
        %v4260 = vrot.slane %v2837, 5
        %v4261 = vrot.slane %v2843, 5
        %v4262 = vrot.slane %v2849, 5
        %v4263 = vrot.slane %v2855, 5
        %v4264 = vrot.slane %v2861, 5
        %v4265 = vrot.slane %v2867, 5
        %v4266 = vrot.slane %v2873, 5
        %v4267 = vrot.slane %v2879, 5
        %v4268 = vrot.slane %v2885, 5
        %v4269 = vrot.slane %v2891, 5
        %v4270 = vrot.slane %v2897, 5
        %v4271 = vrot.slane %v2903, 5
        %v4272 = vrot.slane %v2909, 5
        %v4273 = vrot.slane %v2915, 5
        %v4274 = vrot.slane %v2921, 5
        %v4275 = vrot.slane %v2927, 5
        %v4276 = vrot.slane %v2933, 5
        %v4277 = vrot.slane %v2939, 5
        %v4278 = vrot.slane %v2945, 5
        %v4279 = vrot.slane %v2951, 5
        %v4280 = vrot.slane %v2957, 5
        %v4281 = vrot.slane %v2963, 5
        %v4282 = vrot.slane %v2969, 5
        %v4283 = vrot.slane %v2975, 5
        %v4284 = vrot.slane %v2981, 5
        %v4285 = vrot.slane %v2987, 5
        %v4286 = vrot.slane %v2993, 5
        %v4287 = vrot.slane %v2999, 5
        %v4288 = vrot.slane %v2802, 5
        %v4289 = vrot.slane %v2808, 5
        %v4290 = vrot.slane %v2814, 5
        %v4291 = vrot.slane %v2820, 5
        %v4292 = vrot.slane %v2826, 5
        %v4293 = vrot.slane %v2832, 5
        %v4294 = vrot.slane %v2838, 5
        %v4295 = vrot.slane %v2844, 5
        %v4296 = vrot.slane %v2850, 5
        %v4297 = vrot.slane %v2856, 5
        %v4298 = vrot.slane %v2862, 5
        %v4299 = vrot.slane %v2868, 5
        %v4300 = vrot.slane %v2874, 5
        %v4301 = vrot.slane %v2880, 5
        %v4302 = vrot.slane %v2886, 5
        %v4303 = vrot.slane %v2892, 5
        %v4304 = vrot.slane %v2898, 5
        %v4305 = vrot.slane %v2904, 5
        %v4306 = vrot.slane %v2910, 5
        %v4307 = vrot.slane %v2916, 5
        %v4308 = vrot.slane %v2922, 5
        %v4309 = vrot.slane %v2928, 5
        %v4310 = vrot.slane %v2934, 5
        %v4311 = vrot.slane %v2940, 5
        %v4312 = vrot.slane %v2946, 5
        %v4313 = vrot.slane %v2952, 5
        %v4314 = vrot.slane %v2958, 5
        %v4315 = vrot.slane %v2964, 5
        %v4316 = vrot.slane %v2970, 5
        %v4317 = vrot.slane %v2976, 5
        %v4318 = vrot.slane %v2982, 5
        %v4319 = vrot.slane %v2988, 5
        %v4320 = vrot.slane %v2994, 5
        %v4321 = vrot.slane %v3000, 5
        %v4322 = vrot.slane %v2803, 5
        %v4323 = vrot.slane %v2809, 5
        %v4324 = vrot.slane %v2815, 5
        %v4325 = vrot.slane %v2821, 5
        %v4326 = vrot.slane %v2827, 5
        %v4327 = vrot.slane %v2833, 5
        %v4328 = vrot.slane %v2839, 5
        %v4329 = vrot.slane %v2845, 5
        %v4330 = vrot.slane %v2851, 5
        %v4331 = vrot.slane %v2857, 5
        %v4332 = vrot.slane %v2863, 5
        %v4333 = vrot.slane %v2869, 5
        %v4334 = vrot.slane %v2875, 5
        %v4335 = vrot.slane %v2881, 5
        %v4336 = vrot.slane %v2887, 5
        %v4337 = vrot.slane %v2893, 5
        %v4338 = vrot.slane %v2899, 5
        %v4339 = vrot.slane %v2905, 5
        %v4340 = vrot.slane %v2911, 5
        %v4341 = vrot.slane %v2917, 5
        %v4342 = vrot.slane %v2923, 5
        %v4343 = vrot.slane %v2929, 5
        %v4344 = vrot.slane %v2935, 5
        %v4345 = vrot.slane %v2941, 5
        %v4346 = vrot.slane %v2947, 5
        %v4347 = vrot.slane %v2953, 5
        %v4348 = vrot.slane %v2959, 5
        %v4349 = vrot.slane %v2965, 5
        %v4350 = vrot.slane %v2971, 5
        %v4351 = vrot.slane %v2977, 5
        %v4352 = vrot.slane %v2983, 5
        %v4353 = vrot.slane %v2989, 5
        %v4354 = vrot.slane %v2995, 5
        %v4355 = vrot.slane %v3001, 5
        %vm4356 = vcmp.lt.s32.totalorder %v755, 3
        %v4357 = vsel %vm4356, %v4288, %v4322
        %v4358 = vsel %vm4356, %v4289, %v4323
        %v4359 = vsel %vm4356, %v4290, %v4324
        %v4360 = vsel %vm4356, %v4291, %v4325
        %v4361 = vsel %vm4356, %v4292, %v4326
        %v4362 = vsel %vm4356, %v4293, %v4327
        %v4363 = vsel %vm4356, %v4294, %v4328
        %v4364 = vsel %vm4356, %v4295, %v4329
        %v4365 = vsel %vm4356, %v4296, %v4330
        %v4366 = vsel %vm4356, %v4297, %v4331
        %v4367 = vsel %vm4356, %v4298, %v4332
        %v4368 = vsel %vm4356, %v4299, %v4333
        %v4369 = vsel %vm4356, %v4300, %v4334
        %v4370 = vsel %vm4356, %v4301, %v4335
        %v4371 = vsel %vm4356, %v4302, %v4336
        %v4372 = vsel %vm4356, %v4303, %v4337
        %v4373 = vsel %vm4356, %v4304, %v4338
        %v4374 = vsel %vm4356, %v4305, %v4339
        %v4375 = vsel %vm4356, %v4306, %v4340
        %v4376 = vsel %vm4356, %v4307, %v4341
        %v4377 = vsel %vm4356, %v4308, %v4342
        %v4378 = vsel %vm4356, %v4309, %v4343
        %v4379 = vsel %vm4356, %v4310, %v4344
        %v4380 = vsel %vm4356, %v4311, %v4345
        %v4381 = vsel %vm4356, %v4312, %v4346
        %v4382 = vsel %vm4356, %v4313, %v4347
        %v4383 = vsel %vm4356, %v4314, %v4348
        %v4384 = vsel %vm4356, %v4315, %v4349
        %v4385 = vsel %vm4356, %v4316, %v4350
        %v4386 = vsel %vm4356, %v4317, %v4351
        %v4387 = vsel %vm4356, %v4318, %v4352
        %v4388 = vsel %vm4356, %v4319, %v4353
        %v4389 = vsel %vm4356, %v4320, %v4354
        %v4390 = vsel %vm4356, %v4321, %v4355
        %v4391 = vsel %vm4356, %v4254, %v4288
        %v4392 = vsel %vm4356, %v4255, %v4289
        %v4393 = vsel %vm4356, %v4256, %v4290
        %v4394 = vsel %vm4356, %v4257, %v4291
        %v4395 = vsel %vm4356, %v4258, %v4292
        %v4396 = vsel %vm4356, %v4259, %v4293
        %v4397 = vsel %vm4356, %v4260, %v4294
        %v4398 = vsel %vm4356, %v4261, %v4295
        %v4399 = vsel %vm4356, %v4262, %v4296
        %v4400 = vsel %vm4356, %v4263, %v4297
        %v4401 = vsel %vm4356, %v4264, %v4298
        %v4402 = vsel %vm4356, %v4265, %v4299
        %v4403 = vsel %vm4356, %v4266, %v4300
        %v4404 = vsel %vm4356, %v4267, %v4301
        %v4405 = vsel %vm4356, %v4268, %v4302
        %v4406 = vsel %vm4356, %v4269, %v4303
        %v4407 = vsel %vm4356, %v4270, %v4304
        %v4408 = vsel %vm4356, %v4271, %v4305
        %v4409 = vsel %vm4356, %v4272, %v4306
        %v4410 = vsel %vm4356, %v4273, %v4307
        %v4411 = vsel %vm4356, %v4274, %v4308
        %v4412 = vsel %vm4356, %v4275, %v4309
        %v4413 = vsel %vm4356, %v4276, %v4310
        %v4414 = vsel %vm4356, %v4277, %v4311
        %v4415 = vsel %vm4356, %v4278, %v4312
        %v4416 = vsel %vm4356, %v4279, %v4313
        %v4417 = vsel %vm4356, %v4280, %v4314
        %v4418 = vsel %vm4356, %v4281, %v4315
        %v4419 = vsel %vm4356, %v4282, %v4316
        %v4420 = vsel %vm4356, %v4283, %v4317
        %v4421 = vsel %vm4356, %v4284, %v4318
        %v4422 = vsel %vm4356, %v4285, %v4319
        %v4423 = vsel %vm4356, %v4286, %v4320
        %v4424 = vsel %vm4356, %v4287, %v4321
        %v4425 = vperm.slane %v2793, 2
        %v4426 = vmul.f32 %v4391, %v4425
        %v4427 = vmul.f32 %v4357, %v4425
        %v4428 = vmul.f32 %v4392, %v4425
        %v4429 = vmul.f32 %v4358, %v4425
        %v4430 = vmul.f32 %v4393, %v4425
        %v4431 = vmul.f32 %v4359, %v4425
        %v4432 = vmul.f32 %v4394, %v4425
        %v4433 = vmul.f32 %v4360, %v4425
        %v4434 = vmul.f32 %v4395, %v4425
        %v4435 = vmul.f32 %v4361, %v4425
        %v4436 = vmul.f32 %v4396, %v4425
        %v4437 = vmul.f32 %v4362, %v4425
        %v4438 = vmul.f32 %v4397, %v4425
        %v4439 = vmul.f32 %v4363, %v4425
        %v4440 = vmul.f32 %v4398, %v4425
        %v4441 = vmul.f32 %v4364, %v4425
        %v4442 = vmul.f32 %v4399, %v4425
        %v4443 = vmul.f32 %v4365, %v4425
        %v4444 = vmul.f32 %v4400, %v4425
        %v4445 = vmul.f32 %v4366, %v4425
        %v4446 = vmul.f32 %v4401, %v4425
        %v4447 = vmul.f32 %v4367, %v4425
        %v4448 = vmul.f32 %v4402, %v4425
        %v4449 = vmul.f32 %v4368, %v4425
        %v4450 = vmul.f32 %v4403, %v4425
        %v4451 = vmul.f32 %v4369, %v4425
        %v4452 = vmul.f32 %v4404, %v4425
        %v4453 = vmul.f32 %v4370, %v4425
        %v4454 = vmul.f32 %v4405, %v4425
        %v4455 = vmul.f32 %v4371, %v4425
        %v4456 = vmul.f32 %v4406, %v4425
        %v4457 = vmul.f32 %v4372, %v4425
        %v4458 = vadd.f32 %v4222, %v4426
        %v4459 = vadd.f32 %v4223, %v4427
        %v4460 = vadd.f32 %v4224, %v4428
        %v4461 = vadd.f32 %v4225, %v4429
        %v4462 = vadd.f32 %v4226, %v4430
        %v4463 = vadd.f32 %v4227, %v4431
        %v4464 = vadd.f32 %v4228, %v4432
        %v4465 = vadd.f32 %v4229, %v4433
        %v4466 = vadd.f32 %v4230, %v4434
        %v4467 = vadd.f32 %v4231, %v4435
        %v4468 = vadd.f32 %v4232, %v4436
        %v4469 = vadd.f32 %v4233, %v4437
        %v4470 = vadd.f32 %v4234, %v4438
        %v4471 = vadd.f32 %v4235, %v4439
        %v4472 = vadd.f32 %v4236, %v4440
        %v4473 = vadd.f32 %v4237, %v4441
        %v4474 = vadd.f32 %v4238, %v4442
        %v4475 = vadd.f32 %v4239, %v4443
        %v4476 = vadd.f32 %v4240, %v4444
        %v4477 = vadd.f32 %v4241, %v4445
        %v4478 = vadd.f32 %v4242, %v4446
        %v4479 = vadd.f32 %v4243, %v4447
        %v4480 = vadd.f32 %v4244, %v4448
        %v4481 = vadd.f32 %v4245, %v4449
        %v4482 = vadd.f32 %v4246, %v4450
        %v4483 = vadd.f32 %v4247, %v4451
        %v4484 = vadd.f32 %v4248, %v4452
        %v4485 = vadd.f32 %v4249, %v4453
        %v4486 = vadd.f32 %v4250, %v4454
        %v4487 = vadd.f32 %v4251, %v4455
        %v4488 = vadd.f32 %v4252, %v4456
        %v4489 = vadd.f32 %v4253, %v4457
        %v4490 = vperm.slane %v2794, 1
        %v4491 = vmul.f32 %v4394, %v4490
        %v4492 = vmul.f32 %v4360, %v4490
        %v4493 = vmul.f32 %v4395, %v4490
        %v4494 = vmul.f32 %v4361, %v4490
        %v4495 = vmul.f32 %v4396, %v4490
        %v4496 = vmul.f32 %v4362, %v4490
        %v4497 = vmul.f32 %v4397, %v4490
        %v4498 = vmul.f32 %v4363, %v4490
        %v4499 = vmul.f32 %v4398, %v4490
        %v4500 = vmul.f32 %v4364, %v4490
        %v4501 = vmul.f32 %v4399, %v4490
        %v4502 = vmul.f32 %v4365, %v4490
        %v4503 = vmul.f32 %v4400, %v4490
        %v4504 = vmul.f32 %v4366, %v4490
        %v4505 = vmul.f32 %v4401, %v4490
        %v4506 = vmul.f32 %v4367, %v4490
        %v4507 = vmul.f32 %v4402, %v4490
        %v4508 = vmul.f32 %v4368, %v4490
        %v4509 = vmul.f32 %v4403, %v4490
        %v4510 = vmul.f32 %v4369, %v4490
        %v4511 = vmul.f32 %v4404, %v4490
        %v4512 = vmul.f32 %v4370, %v4490
        %v4513 = vmul.f32 %v4405, %v4490
        %v4514 = vmul.f32 %v4371, %v4490
        %v4515 = vmul.f32 %v4406, %v4490
        %v4516 = vmul.f32 %v4372, %v4490
        %v4517 = vmul.f32 %v4407, %v4490
        %v4518 = vmul.f32 %v4373, %v4490
        %v4519 = vmul.f32 %v4408, %v4490
        %v4520 = vmul.f32 %v4374, %v4490
        %v4521 = vmul.f32 %v4409, %v4490
        %v4522 = vmul.f32 %v4375, %v4490
        %v4523 = vadd.f32 %v4458, %v4491
        %v4524 = vadd.f32 %v4459, %v4492
        %v4525 = vadd.f32 %v4460, %v4493
        %v4526 = vadd.f32 %v4461, %v4494
        %v4527 = vadd.f32 %v4462, %v4495
        %v4528 = vadd.f32 %v4463, %v4496
        %v4529 = vadd.f32 %v4464, %v4497
        %v4530 = vadd.f32 %v4465, %v4498
        %v4531 = vadd.f32 %v4466, %v4499
        %v4532 = vadd.f32 %v4467, %v4500
        %v4533 = vadd.f32 %v4468, %v4501
        %v4534 = vadd.f32 %v4469, %v4502
        %v4535 = vadd.f32 %v4470, %v4503
        %v4536 = vadd.f32 %v4471, %v4504
        %v4537 = vadd.f32 %v4472, %v4505
        %v4538 = vadd.f32 %v4473, %v4506
        %v4539 = vadd.f32 %v4474, %v4507
        %v4540 = vadd.f32 %v4475, %v4508
        %v4541 = vadd.f32 %v4476, %v4509
        %v4542 = vadd.f32 %v4477, %v4510
        %v4543 = vadd.f32 %v4478, %v4511
        %v4544 = vadd.f32 %v4479, %v4512
        %v4545 = vadd.f32 %v4480, %v4513
        %v4546 = vadd.f32 %v4481, %v4514
        %v4547 = vadd.f32 %v4482, %v4515
        %v4548 = vadd.f32 %v4483, %v4516
        %v4549 = vadd.f32 %v4484, %v4517
        %v4550 = vadd.f32 %v4485, %v4518
        %v4551 = vadd.f32 %v4486, %v4519
        %v4552 = vadd.f32 %v4487, %v4520
        %v4553 = vadd.f32 %v4488, %v4521
        %v4554 = vadd.f32 %v4489, %v4522
        %v4555 = vperm.slane %v2795, 0
        %v4556 = vmul.f32 %v4397, %v4555
        %v4557 = vmul.f32 %v4363, %v4555
        %v4558 = vmul.f32 %v4398, %v4555
        %v4559 = vmul.f32 %v4364, %v4555
        %v4560 = vmul.f32 %v4399, %v4555
        %v4561 = vmul.f32 %v4365, %v4555
        %v4562 = vmul.f32 %v4400, %v4555
        %v4563 = vmul.f32 %v4366, %v4555
        %v4564 = vmul.f32 %v4401, %v4555
        %v4565 = vmul.f32 %v4367, %v4555
        %v4566 = vmul.f32 %v4402, %v4555
        %v4567 = vmul.f32 %v4368, %v4555
        %v4568 = vmul.f32 %v4403, %v4555
        %v4569 = vmul.f32 %v4369, %v4555
        %v4570 = vmul.f32 %v4404, %v4555
        %v4571 = vmul.f32 %v4370, %v4555
        %v4572 = vmul.f32 %v4405, %v4555
        %v4573 = vmul.f32 %v4371, %v4555
        %v4574 = vmul.f32 %v4406, %v4555
        %v4575 = vmul.f32 %v4372, %v4555
        %v4576 = vmul.f32 %v4407, %v4555
        %v4577 = vmul.f32 %v4373, %v4555
        %v4578 = vmul.f32 %v4408, %v4555
        %v4579 = vmul.f32 %v4374, %v4555
        %v4580 = vmul.f32 %v4409, %v4555
        %v4581 = vmul.f32 %v4375, %v4555
        %v4582 = vmul.f32 %v4410, %v4555
        %v4583 = vmul.f32 %v4376, %v4555
        %v4584 = vmul.f32 %v4411, %v4555
        %v4585 = vmul.f32 %v4377, %v4555
        %v4586 = vmul.f32 %v4412, %v4555
        %v4587 = vmul.f32 %v4378, %v4555
        %v4588 = vadd.f32 %v4523, %v4556
        %v4589 = vadd.f32 %v4524, %v4557
        %v4590 = vadd.f32 %v4525, %v4558
        %v4591 = vadd.f32 %v4526, %v4559
        %v4592 = vadd.f32 %v4527, %v4560
        %v4593 = vadd.f32 %v4528, %v4561
        %v4594 = vadd.f32 %v4529, %v4562
        %v4595 = vadd.f32 %v4530, %v4563
        %v4596 = vadd.f32 %v4531, %v4564
        %v4597 = vadd.f32 %v4532, %v4565
        %v4598 = vadd.f32 %v4533, %v4566
        %v4599 = vadd.f32 %v4534, %v4567
        %v4600 = vadd.f32 %v4535, %v4568
        %v4601 = vadd.f32 %v4536, %v4569
        %v4602 = vadd.f32 %v4537, %v4570
        %v4603 = vadd.f32 %v4538, %v4571
        %v4604 = vadd.f32 %v4539, %v4572
        %v4605 = vadd.f32 %v4540, %v4573
        %v4606 = vadd.f32 %v4541, %v4574
        %v4607 = vadd.f32 %v4542, %v4575
        %v4608 = vadd.f32 %v4543, %v4576
        %v4609 = vadd.f32 %v4544, %v4577
        %v4610 = vadd.f32 %v4545, %v4578
        %v4611 = vadd.f32 %v4546, %v4579
        %v4612 = vadd.f32 %v4547, %v4580
        %v4613 = vadd.f32 %v4548, %v4581
        %v4614 = vadd.f32 %v4549, %v4582
        %v4615 = vadd.f32 %v4550, %v4583
        %v4616 = vadd.f32 %v4551, %v4584
        %v4617 = vadd.f32 %v4552, %v4585
        %v4618 = vadd.f32 %v4553, %v4586
        %v4619 = vadd.f32 %v4554, %v4587
        %v4620 = vperm.slane %v2795, 7
        %v4621 = vmul.f32 %v4400, %v4620
        %v4622 = vmul.f32 %v4366, %v4620
        %v4623 = vmul.f32 %v4401, %v4620
        %v4624 = vmul.f32 %v4367, %v4620
        %v4625 = vmul.f32 %v4402, %v4620
        %v4626 = vmul.f32 %v4368, %v4620
        %v4627 = vmul.f32 %v4403, %v4620
        %v4628 = vmul.f32 %v4369, %v4620
        %v4629 = vmul.f32 %v4404, %v4620
        %v4630 = vmul.f32 %v4370, %v4620
        %v4631 = vmul.f32 %v4405, %v4620
        %v4632 = vmul.f32 %v4371, %v4620
        %v4633 = vmul.f32 %v4406, %v4620
        %v4634 = vmul.f32 %v4372, %v4620
        %v4635 = vmul.f32 %v4407, %v4620
        %v4636 = vmul.f32 %v4373, %v4620
        %v4637 = vmul.f32 %v4408, %v4620
        %v4638 = vmul.f32 %v4374, %v4620
        %v4639 = vmul.f32 %v4409, %v4620
        %v4640 = vmul.f32 %v4375, %v4620
        %v4641 = vmul.f32 %v4410, %v4620
        %v4642 = vmul.f32 %v4376, %v4620
        %v4643 = vmul.f32 %v4411, %v4620
        %v4644 = vmul.f32 %v4377, %v4620
        %v4645 = vmul.f32 %v4412, %v4620
        %v4646 = vmul.f32 %v4378, %v4620
        %v4647 = vmul.f32 %v4413, %v4620
        %v4648 = vmul.f32 %v4379, %v4620
        %v4649 = vmul.f32 %v4414, %v4620
        %v4650 = vmul.f32 %v4380, %v4620
        %v4651 = vmul.f32 %v4415, %v4620
        %v4652 = vmul.f32 %v4381, %v4620
        %v4653 = vadd.f32 %v4588, %v4621
        %v4654 = vadd.f32 %v4589, %v4622
        %v4655 = vadd.f32 %v4590, %v4623
        %v4656 = vadd.f32 %v4591, %v4624
        %v4657 = vadd.f32 %v4592, %v4625
        %v4658 = vadd.f32 %v4593, %v4626
        %v4659 = vadd.f32 %v4594, %v4627
        %v4660 = vadd.f32 %v4595, %v4628
        %v4661 = vadd.f32 %v4596, %v4629
        %v4662 = vadd.f32 %v4597, %v4630
        %v4663 = vadd.f32 %v4598, %v4631
        %v4664 = vadd.f32 %v4599, %v4632
        %v4665 = vadd.f32 %v4600, %v4633
        %v4666 = vadd.f32 %v4601, %v4634
        %v4667 = vadd.f32 %v4602, %v4635
        %v4668 = vadd.f32 %v4603, %v4636
        %v4669 = vadd.f32 %v4604, %v4637
        %v4670 = vadd.f32 %v4605, %v4638
        %v4671 = vadd.f32 %v4606, %v4639
        %v4672 = vadd.f32 %v4607, %v4640
        %v4673 = vadd.f32 %v4608, %v4641
        %v4674 = vadd.f32 %v4609, %v4642
        %v4675 = vadd.f32 %v4610, %v4643
        %v4676 = vadd.f32 %v4611, %v4644
        %v4677 = vadd.f32 %v4612, %v4645
        %v4678 = vadd.f32 %v4613, %v4646
        %v4679 = vadd.f32 %v4614, %v4647
        %v4680 = vadd.f32 %v4615, %v4648
        %v4681 = vadd.f32 %v4616, %v4649
        %v4682 = vadd.f32 %v4617, %v4650
        %v4683 = vadd.f32 %v4618, %v4651
        %v4684 = vadd.f32 %v4619, %v4652
        %v4685 = vperm.slane %v2796, 6
        %v4686 = vmul.f32 %v4403, %v4685
        %v4687 = vmul.f32 %v4369, %v4685
        %v4688 = vmul.f32 %v4404, %v4685
        %v4689 = vmul.f32 %v4370, %v4685
        %v4690 = vmul.f32 %v4405, %v4685
        %v4691 = vmul.f32 %v4371, %v4685
        %v4692 = vmul.f32 %v4406, %v4685
        %v4693 = vmul.f32 %v4372, %v4685
        %v4694 = vmul.f32 %v4407, %v4685
        %v4695 = vmul.f32 %v4373, %v4685
        %v4696 = vmul.f32 %v4408, %v4685
        %v4697 = vmul.f32 %v4374, %v4685
        %v4698 = vmul.f32 %v4409, %v4685
        %v4699 = vmul.f32 %v4375, %v4685
        %v4700 = vmul.f32 %v4410, %v4685
        %v4701 = vmul.f32 %v4376, %v4685
        %v4702 = vmul.f32 %v4411, %v4685
        %v4703 = vmul.f32 %v4377, %v4685
        %v4704 = vmul.f32 %v4412, %v4685
        %v4705 = vmul.f32 %v4378, %v4685
        %v4706 = vmul.f32 %v4413, %v4685
        %v4707 = vmul.f32 %v4379, %v4685
        %v4708 = vmul.f32 %v4414, %v4685
        %v4709 = vmul.f32 %v4380, %v4685
        %v4710 = vmul.f32 %v4415, %v4685
        %v4711 = vmul.f32 %v4381, %v4685
        %v4712 = vmul.f32 %v4416, %v4685
        %v4713 = vmul.f32 %v4382, %v4685
        %v4714 = vmul.f32 %v4417, %v4685
        %v4715 = vmul.f32 %v4383, %v4685
        %v4716 = vmul.f32 %v4418, %v4685
        %v4717 = vmul.f32 %v4384, %v4685
        %v4718 = vadd.f32 %v4653, %v4686
        %v4719 = vadd.f32 %v4654, %v4687
        %v4720 = vadd.f32 %v4655, %v4688
        %v4721 = vadd.f32 %v4656, %v4689
        %v4722 = vadd.f32 %v4657, %v4690
        %v4723 = vadd.f32 %v4658, %v4691
        %v4724 = vadd.f32 %v4659, %v4692
        %v4725 = vadd.f32 %v4660, %v4693
        %v4726 = vadd.f32 %v4661, %v4694
        %v4727 = vadd.f32 %v4662, %v4695
        %v4728 = vadd.f32 %v4663, %v4696
        %v4729 = vadd.f32 %v4664, %v4697
        %v4730 = vadd.f32 %v4665, %v4698
        %v4731 = vadd.f32 %v4666, %v4699
        %v4732 = vadd.f32 %v4667, %v4700
        %v4733 = vadd.f32 %v4668, %v4701
        %v4734 = vadd.f32 %v4669, %v4702
        %v4735 = vadd.f32 %v4670, %v4703
        %v4736 = vadd.f32 %v4671, %v4704
        %v4737 = vadd.f32 %v4672, %v4705
        %v4738 = vadd.f32 %v4673, %v4706
        %v4739 = vadd.f32 %v4674, %v4707
        %v4740 = vadd.f32 %v4675, %v4708
        %v4741 = vadd.f32 %v4676, %v4709
        %v4742 = vadd.f32 %v4677, %v4710
        %v4743 = vadd.f32 %v4678, %v4711
        %v4744 = vadd.f32 %v4679, %v4712
        %v4745 = vadd.f32 %v4680, %v4713
        %v4746 = vadd.f32 %v4681, %v4714
        %v4747 = vadd.f32 %v4682, %v4715
        %v4748 = vadd.f32 %v4683, %v4716
        %v4749 = vadd.f32 %v4684, %v4717
        %v4750 = vperm.slane %v2797, 5
        %v4751 = vmul.f32 %v4406, %v4750
        %v4752 = vmul.f32 %v4372, %v4750
        %v4753 = vmul.f32 %v4407, %v4750
        %v4754 = vmul.f32 %v4373, %v4750
        %v4755 = vmul.f32 %v4408, %v4750
        %v4756 = vmul.f32 %v4374, %v4750
        %v4757 = vmul.f32 %v4409, %v4750
        %v4758 = vmul.f32 %v4375, %v4750
        %v4759 = vmul.f32 %v4410, %v4750
        %v4760 = vmul.f32 %v4376, %v4750
        %v4761 = vmul.f32 %v4411, %v4750
        %v4762 = vmul.f32 %v4377, %v4750
        %v4763 = vmul.f32 %v4412, %v4750
        %v4764 = vmul.f32 %v4378, %v4750
        %v4765 = vmul.f32 %v4413, %v4750
        %v4766 = vmul.f32 %v4379, %v4750
        %v4767 = vmul.f32 %v4414, %v4750
        %v4768 = vmul.f32 %v4380, %v4750
        %v4769 = vmul.f32 %v4415, %v4750
        %v4770 = vmul.f32 %v4381, %v4750
        %v4771 = vmul.f32 %v4416, %v4750
        %v4772 = vmul.f32 %v4382, %v4750
        %v4773 = vmul.f32 %v4417, %v4750
        %v4774 = vmul.f32 %v4383, %v4750
        %v4775 = vmul.f32 %v4418, %v4750
        %v4776 = vmul.f32 %v4384, %v4750
        %v4777 = vmul.f32 %v4419, %v4750
        %v4778 = vmul.f32 %v4385, %v4750
        %v4779 = vmul.f32 %v4420, %v4750
        %v4780 = vmul.f32 %v4386, %v4750
        %v4781 = vmul.f32 %v4421, %v4750
        %v4782 = vmul.f32 %v4387, %v4750
        %v4783 = vadd.f32 %v4718, %v4751
        %v4784 = vadd.f32 %v4719, %v4752
        %v4785 = vadd.f32 %v4720, %v4753
        %v4786 = vadd.f32 %v4721, %v4754
        %v4787 = vadd.f32 %v4722, %v4755
        %v4788 = vadd.f32 %v4723, %v4756
        %v4789 = vadd.f32 %v4724, %v4757
        %v4790 = vadd.f32 %v4725, %v4758
        %v4791 = vadd.f32 %v4726, %v4759
        %v4792 = vadd.f32 %v4727, %v4760
        %v4793 = vadd.f32 %v4728, %v4761
        %v4794 = vadd.f32 %v4729, %v4762
        %v4795 = vadd.f32 %v4730, %v4763
        %v4796 = vadd.f32 %v4731, %v4764
        %v4797 = vadd.f32 %v4732, %v4765
        %v4798 = vadd.f32 %v4733, %v4766
        %v4799 = vadd.f32 %v4734, %v4767
        %v4800 = vadd.f32 %v4735, %v4768
        %v4801 = vadd.f32 %v4736, %v4769
        %v4802 = vadd.f32 %v4737, %v4770
        %v4803 = vadd.f32 %v4738, %v4771
        %v4804 = vadd.f32 %v4739, %v4772
        %v4805 = vadd.f32 %v4740, %v4773
        %v4806 = vadd.f32 %v4741, %v4774
        %v4807 = vadd.f32 %v4742, %v4775
        %v4808 = vadd.f32 %v4743, %v4776
        %v4809 = vadd.f32 %v4744, %v4777
        %v4810 = vadd.f32 %v4745, %v4778
        %v4811 = vadd.f32 %v4746, %v4779
        %v4812 = vadd.f32 %v4747, %v4780
        %v4813 = vadd.f32 %v4748, %v4781
        %v4814 = vadd.f32 %v4749, %v4782
        %v4815 = vperm.slane %v2798, 4
        %v4816 = vmul.f32 %v4409, %v4815
        %v4817 = vmul.f32 %v4375, %v4815
        %v4818 = vmul.f32 %v4410, %v4815
        %v4819 = vmul.f32 %v4376, %v4815
        %v4820 = vmul.f32 %v4411, %v4815
        %v4821 = vmul.f32 %v4377, %v4815
        %v4822 = vmul.f32 %v4412, %v4815
        %v4823 = vmul.f32 %v4378, %v4815
        %v4824 = vmul.f32 %v4413, %v4815
        %v4825 = vmul.f32 %v4379, %v4815
        %v4826 = vmul.f32 %v4414, %v4815
        %v4827 = vmul.f32 %v4380, %v4815
        %v4828 = vmul.f32 %v4415, %v4815
        %v4829 = vmul.f32 %v4381, %v4815
        %v4830 = vmul.f32 %v4416, %v4815
        %v4831 = vmul.f32 %v4382, %v4815
        %v4832 = vmul.f32 %v4417, %v4815
        %v4833 = vmul.f32 %v4383, %v4815
        %v4834 = vmul.f32 %v4418, %v4815
        %v4835 = vmul.f32 %v4384, %v4815
        %v4836 = vmul.f32 %v4419, %v4815
        %v4837 = vmul.f32 %v4385, %v4815
        %v4838 = vmul.f32 %v4420, %v4815
        %v4839 = vmul.f32 %v4386, %v4815
        %v4840 = vmul.f32 %v4421, %v4815
        %v4841 = vmul.f32 %v4387, %v4815
        %v4842 = vmul.f32 %v4422, %v4815
        %v4843 = vmul.f32 %v4388, %v4815
        %v4844 = vmul.f32 %v4423, %v4815
        %v4845 = vmul.f32 %v4389, %v4815
        %v4846 = vmul.f32 %v4424, %v4815
        %v4847 = vmul.f32 %v4390, %v4815
        %v4848 = vadd.f32 %v4783, %v4816
        %v4849 = vadd.f32 %v4784, %v4817
        %v4850 = vadd.f32 %v4785, %v4818
        %v4851 = vadd.f32 %v4786, %v4819
        %v4852 = vadd.f32 %v4787, %v4820
        %v4853 = vadd.f32 %v4788, %v4821
        %v4854 = vadd.f32 %v4789, %v4822
        %v4855 = vadd.f32 %v4790, %v4823
        %v4856 = vadd.f32 %v4791, %v4824
        %v4857 = vadd.f32 %v4792, %v4825
        %v4858 = vadd.f32 %v4793, %v4826
        %v4859 = vadd.f32 %v4794, %v4827
        %v4860 = vadd.f32 %v4795, %v4828
        %v4861 = vadd.f32 %v4796, %v4829
        %v4862 = vadd.f32 %v4797, %v4830
        %v4863 = vadd.f32 %v4798, %v4831
        %v4864 = vadd.f32 %v4799, %v4832
        %v4865 = vadd.f32 %v4800, %v4833
        %v4866 = vadd.f32 %v4801, %v4834
        %v4867 = vadd.f32 %v4802, %v4835
        %v4868 = vadd.f32 %v4803, %v4836
        %v4869 = vadd.f32 %v4804, %v4837
        %v4870 = vadd.f32 %v4805, %v4838
        %v4871 = vadd.f32 %v4806, %v4839
        %v4872 = vadd.f32 %v4807, %v4840
        %v4873 = vadd.f32 %v4808, %v4841
        %v4874 = vadd.f32 %v4809, %v4842
        %v4875 = vadd.f32 %v4810, %v4843
        %v4876 = vadd.f32 %v4811, %v4844
        %v4877 = vadd.f32 %v4812, %v4845
        %v4878 = vadd.f32 %v4813, %v4846
        %v4879 = vadd.f32 %v4814, %v4847
        %v4880 = vperm.slane %v2793, 3
        %v4881 = vmul.f32 %v2802, %v4880
        %v4882 = vmul.f32 %v2803, %v4880
        %v4883 = vmul.f32 %v2808, %v4880
        %v4884 = vmul.f32 %v2809, %v4880
        %v4885 = vmul.f32 %v2814, %v4880
        %v4886 = vmul.f32 %v2815, %v4880
        %v4887 = vmul.f32 %v2820, %v4880
        %v4888 = vmul.f32 %v2821, %v4880
        %v4889 = vmul.f32 %v2826, %v4880
        %v4890 = vmul.f32 %v2827, %v4880
        %v4891 = vmul.f32 %v2832, %v4880
        %v4892 = vmul.f32 %v2833, %v4880
        %v4893 = vmul.f32 %v2838, %v4880
        %v4894 = vmul.f32 %v2839, %v4880
        %v4895 = vmul.f32 %v2844, %v4880
        %v4896 = vmul.f32 %v2845, %v4880
        %v4897 = vmul.f32 %v2850, %v4880
        %v4898 = vmul.f32 %v2851, %v4880
        %v4899 = vmul.f32 %v2856, %v4880
        %v4900 = vmul.f32 %v2857, %v4880
        %v4901 = vmul.f32 %v2862, %v4880
        %v4902 = vmul.f32 %v2863, %v4880
        %v4903 = vmul.f32 %v2868, %v4880
        %v4904 = vmul.f32 %v2869, %v4880
        %v4905 = vmul.f32 %v2874, %v4880
        %v4906 = vmul.f32 %v2875, %v4880
        %v4907 = vmul.f32 %v2880, %v4880
        %v4908 = vmul.f32 %v2881, %v4880
        %v4909 = vmul.f32 %v2886, %v4880
        %v4910 = vmul.f32 %v2887, %v4880
        %v4911 = vmul.f32 %v2892, %v4880
        %v4912 = vmul.f32 %v2893, %v4880
        %v4913 = vadd.f32 %v4848, %v4881
        %v4914 = vadd.f32 %v4849, %v4882
        %v4915 = vadd.f32 %v4850, %v4883
        %v4916 = vadd.f32 %v4851, %v4884
        %v4917 = vadd.f32 %v4852, %v4885
        %v4918 = vadd.f32 %v4853, %v4886
        %v4919 = vadd.f32 %v4854, %v4887
        %v4920 = vadd.f32 %v4855, %v4888
        %v4921 = vadd.f32 %v4856, %v4889
        %v4922 = vadd.f32 %v4857, %v4890
        %v4923 = vadd.f32 %v4858, %v4891
        %v4924 = vadd.f32 %v4859, %v4892
        %v4925 = vadd.f32 %v4860, %v4893
        %v4926 = vadd.f32 %v4861, %v4894
        %v4927 = vadd.f32 %v4862, %v4895
        %v4928 = vadd.f32 %v4863, %v4896
        %v4929 = vadd.f32 %v4864, %v4897
        %v4930 = vadd.f32 %v4865, %v4898
        %v4931 = vadd.f32 %v4866, %v4899
        %v4932 = vadd.f32 %v4867, %v4900
        %v4933 = vadd.f32 %v4868, %v4901
        %v4934 = vadd.f32 %v4869, %v4902
        %v4935 = vadd.f32 %v4870, %v4903
        %v4936 = vadd.f32 %v4871, %v4904
        %v4937 = vadd.f32 %v4872, %v4905
        %v4938 = vadd.f32 %v4873, %v4906
        %v4939 = vadd.f32 %v4874, %v4907
        %v4940 = vadd.f32 %v4875, %v4908
        %v4941 = vadd.f32 %v4876, %v4909
        %v4942 = vadd.f32 %v4877, %v4910
        %v4943 = vadd.f32 %v4878, %v4911
        %v4944 = vadd.f32 %v4879, %v4912
        %v4945 = vperm.slane %v2794, 2
        %v4946 = vmul.f32 %v2820, %v4945
        %v4947 = vmul.f32 %v2821, %v4945
        %v4948 = vmul.f32 %v2826, %v4945
        %v4949 = vmul.f32 %v2827, %v4945
        %v4950 = vmul.f32 %v2832, %v4945
        %v4951 = vmul.f32 %v2833, %v4945
        %v4952 = vmul.f32 %v2838, %v4945
        %v4953 = vmul.f32 %v2839, %v4945
        %v4954 = vmul.f32 %v2844, %v4945
        %v4955 = vmul.f32 %v2845, %v4945
        %v4956 = vmul.f32 %v2850, %v4945
        %v4957 = vmul.f32 %v2851, %v4945
        %v4958 = vmul.f32 %v2856, %v4945
        %v4959 = vmul.f32 %v2857, %v4945
        %v4960 = vmul.f32 %v2862, %v4945
        %v4961 = vmul.f32 %v2863, %v4945
        %v4962 = vmul.f32 %v2868, %v4945
        %v4963 = vmul.f32 %v2869, %v4945
        %v4964 = vmul.f32 %v2874, %v4945
        %v4965 = vmul.f32 %v2875, %v4945
        %v4966 = vmul.f32 %v2880, %v4945
        %v4967 = vmul.f32 %v2881, %v4945
        %v4968 = vmul.f32 %v2886, %v4945
        %v4969 = vmul.f32 %v2887, %v4945
        %v4970 = vmul.f32 %v2892, %v4945
        %v4971 = vmul.f32 %v2893, %v4945
        %v4972 = vmul.f32 %v2898, %v4945
        %v4973 = vmul.f32 %v2899, %v4945
        %v4974 = vmul.f32 %v2904, %v4945
        %v4975 = vmul.f32 %v2905, %v4945
        %v4976 = vmul.f32 %v2910, %v4945
        %v4977 = vmul.f32 %v2911, %v4945
        %v4978 = vadd.f32 %v4913, %v4946
        %v4979 = vadd.f32 %v4914, %v4947
        %v4980 = vadd.f32 %v4915, %v4948
        %v4981 = vadd.f32 %v4916, %v4949
        %v4982 = vadd.f32 %v4917, %v4950
        %v4983 = vadd.f32 %v4918, %v4951
        %v4984 = vadd.f32 %v4919, %v4952
        %v4985 = vadd.f32 %v4920, %v4953
        %v4986 = vadd.f32 %v4921, %v4954
        %v4987 = vadd.f32 %v4922, %v4955
        %v4988 = vadd.f32 %v4923, %v4956
        %v4989 = vadd.f32 %v4924, %v4957
        %v4990 = vadd.f32 %v4925, %v4958
        %v4991 = vadd.f32 %v4926, %v4959
        %v4992 = vadd.f32 %v4927, %v4960
        %v4993 = vadd.f32 %v4928, %v4961
        %v4994 = vadd.f32 %v4929, %v4962
        %v4995 = vadd.f32 %v4930, %v4963
        %v4996 = vadd.f32 %v4931, %v4964
        %v4997 = vadd.f32 %v4932, %v4965
        %v4998 = vadd.f32 %v4933, %v4966
        %v4999 = vadd.f32 %v4934, %v4967
        %v5000 = vadd.f32 %v4935, %v4968
        %v5001 = vadd.f32 %v4936, %v4969
        %v5002 = vadd.f32 %v4937, %v4970
        %v5003 = vadd.f32 %v4938, %v4971
        %v5004 = vadd.f32 %v4939, %v4972
        %v5005 = vadd.f32 %v4940, %v4973
        %v5006 = vadd.f32 %v4941, %v4974
        %v5007 = vadd.f32 %v4942, %v4975
        %v5008 = vadd.f32 %v4943, %v4976
        %v5009 = vadd.f32 %v4944, %v4977
        %v5010 = vperm.slane %v2795, 1
        %v5011 = vmul.f32 %v2838, %v5010
        %v5012 = vmul.f32 %v2839, %v5010
        %v5013 = vmul.f32 %v2844, %v5010
        %v5014 = vmul.f32 %v2845, %v5010
        %v5015 = vmul.f32 %v2850, %v5010
        %v5016 = vmul.f32 %v2851, %v5010
        %v5017 = vmul.f32 %v2856, %v5010
        %v5018 = vmul.f32 %v2857, %v5010
        %v5019 = vmul.f32 %v2862, %v5010
        %v5020 = vmul.f32 %v2863, %v5010
        %v5021 = vmul.f32 %v2868, %v5010
        %v5022 = vmul.f32 %v2869, %v5010
        %v5023 = vmul.f32 %v2874, %v5010
        %v5024 = vmul.f32 %v2875, %v5010
        %v5025 = vmul.f32 %v2880, %v5010
        %v5026 = vmul.f32 %v2881, %v5010
        %v5027 = vmul.f32 %v2886, %v5010
        %v5028 = vmul.f32 %v2887, %v5010
        %v5029 = vmul.f32 %v2892, %v5010
        %v5030 = vmul.f32 %v2893, %v5010
        %v5031 = vmul.f32 %v2898, %v5010
        %v5032 = vmul.f32 %v2899, %v5010
        %v5033 = vmul.f32 %v2904, %v5010
        %v5034 = vmul.f32 %v2905, %v5010
        %v5035 = vmul.f32 %v2910, %v5010
        %v5036 = vmul.f32 %v2911, %v5010
        %v5037 = vmul.f32 %v2916, %v5010
        %v5038 = vmul.f32 %v2917, %v5010
        %v5039 = vmul.f32 %v2922, %v5010
        %v5040 = vmul.f32 %v2923, %v5010
        %v5041 = vmul.f32 %v2928, %v5010
        %v5042 = vmul.f32 %v2929, %v5010
        %v5043 = vadd.f32 %v4978, %v5011
        %v5044 = vadd.f32 %v4979, %v5012
        %v5045 = vadd.f32 %v4980, %v5013
        %v5046 = vadd.f32 %v4981, %v5014
        %v5047 = vadd.f32 %v4982, %v5015
        %v5048 = vadd.f32 %v4983, %v5016
        %v5049 = vadd.f32 %v4984, %v5017
        %v5050 = vadd.f32 %v4985, %v5018
        %v5051 = vadd.f32 %v4986, %v5019
        %v5052 = vadd.f32 %v4987, %v5020
        %v5053 = vadd.f32 %v4988, %v5021
        %v5054 = vadd.f32 %v4989, %v5022
        %v5055 = vadd.f32 %v4990, %v5023
        %v5056 = vadd.f32 %v4991, %v5024
        %v5057 = vadd.f32 %v4992, %v5025
        %v5058 = vadd.f32 %v4993, %v5026
        %v5059 = vadd.f32 %v4994, %v5027
        %v5060 = vadd.f32 %v4995, %v5028
        %v5061 = vadd.f32 %v4996, %v5029
        %v5062 = vadd.f32 %v4997, %v5030
        %v5063 = vadd.f32 %v4998, %v5031
        %v5064 = vadd.f32 %v4999, %v5032
        %v5065 = vadd.f32 %v5000, %v5033
        %v5066 = vadd.f32 %v5001, %v5034
        %v5067 = vadd.f32 %v5002, %v5035
        %v5068 = vadd.f32 %v5003, %v5036
        %v5069 = vadd.f32 %v5004, %v5037
        %v5070 = vadd.f32 %v5005, %v5038
        %v5071 = vadd.f32 %v5006, %v5039
        %v5072 = vadd.f32 %v5007, %v5040
        %v5073 = vadd.f32 %v5008, %v5041
        %v5074 = vadd.f32 %v5009, %v5042
        %v5075 = vperm.slane %v2796, 0
        %v5076 = vmul.f32 %v2856, %v5075
        %v5077 = vmul.f32 %v2857, %v5075
        %v5078 = vmul.f32 %v2862, %v5075
        %v5079 = vmul.f32 %v2863, %v5075
        %v5080 = vmul.f32 %v2868, %v5075
        %v5081 = vmul.f32 %v2869, %v5075
        %v5082 = vmul.f32 %v2874, %v5075
        %v5083 = vmul.f32 %v2875, %v5075
        %v5084 = vmul.f32 %v2880, %v5075
        %v5085 = vmul.f32 %v2881, %v5075
        %v5086 = vmul.f32 %v2886, %v5075
        %v5087 = vmul.f32 %v2887, %v5075
        %v5088 = vmul.f32 %v2892, %v5075
        %v5089 = vmul.f32 %v2893, %v5075
        %v5090 = vmul.f32 %v2898, %v5075
        %v5091 = vmul.f32 %v2899, %v5075
        %v5092 = vmul.f32 %v2904, %v5075
        %v5093 = vmul.f32 %v2905, %v5075
        %v5094 = vmul.f32 %v2910, %v5075
        %v5095 = vmul.f32 %v2911, %v5075
        %v5096 = vmul.f32 %v2916, %v5075
        %v5097 = vmul.f32 %v2917, %v5075
        %v5098 = vmul.f32 %v2922, %v5075
        %v5099 = vmul.f32 %v2923, %v5075
        %v5100 = vmul.f32 %v2928, %v5075
        %v5101 = vmul.f32 %v2929, %v5075
        %v5102 = vmul.f32 %v2934, %v5075
        %v5103 = vmul.f32 %v2935, %v5075
        %v5104 = vmul.f32 %v2940, %v5075
        %v5105 = vmul.f32 %v2941, %v5075
        %v5106 = vmul.f32 %v2946, %v5075
        %v5107 = vmul.f32 %v2947, %v5075
        %v5108 = vadd.f32 %v5043, %v5076
        %v5109 = vadd.f32 %v5044, %v5077
        %v5110 = vadd.f32 %v5045, %v5078
        %v5111 = vadd.f32 %v5046, %v5079
        %v5112 = vadd.f32 %v5047, %v5080
        %v5113 = vadd.f32 %v5048, %v5081
        %v5114 = vadd.f32 %v5049, %v5082
        %v5115 = vadd.f32 %v5050, %v5083
        %v5116 = vadd.f32 %v5051, %v5084
        %v5117 = vadd.f32 %v5052, %v5085
        %v5118 = vadd.f32 %v5053, %v5086
        %v5119 = vadd.f32 %v5054, %v5087
        %v5120 = vadd.f32 %v5055, %v5088
        %v5121 = vadd.f32 %v5056, %v5089
        %v5122 = vadd.f32 %v5057, %v5090
        %v5123 = vadd.f32 %v5058, %v5091
        %v5124 = vadd.f32 %v5059, %v5092
        %v5125 = vadd.f32 %v5060, %v5093
        %v5126 = vadd.f32 %v5061, %v5094
        %v5127 = vadd.f32 %v5062, %v5095
        %v5128 = vadd.f32 %v5063, %v5096
        %v5129 = vadd.f32 %v5064, %v5097
        %v5130 = vadd.f32 %v5065, %v5098
        %v5131 = vadd.f32 %v5066, %v5099
        %v5132 = vadd.f32 %v5067, %v5100
        %v5133 = vadd.f32 %v5068, %v5101
        %v5134 = vadd.f32 %v5069, %v5102
        %v5135 = vadd.f32 %v5070, %v5103
        %v5136 = vadd.f32 %v5071, %v5104
        %v5137 = vadd.f32 %v5072, %v5105
        %v5138 = vadd.f32 %v5073, %v5106
        %v5139 = vadd.f32 %v5074, %v5107
        %v5140 = vperm.slane %v2796, 7
        %v5141 = vmul.f32 %v2874, %v5140
        %v5142 = vmul.f32 %v2875, %v5140
        %v5143 = vmul.f32 %v2880, %v5140
        %v5144 = vmul.f32 %v2881, %v5140
        %v5145 = vmul.f32 %v2886, %v5140
        %v5146 = vmul.f32 %v2887, %v5140
        %v5147 = vmul.f32 %v2892, %v5140
        %v5148 = vmul.f32 %v2893, %v5140
        %v5149 = vmul.f32 %v2898, %v5140
        %v5150 = vmul.f32 %v2899, %v5140
        %v5151 = vmul.f32 %v2904, %v5140
        %v5152 = vmul.f32 %v2905, %v5140
        %v5153 = vmul.f32 %v2910, %v5140
        %v5154 = vmul.f32 %v2911, %v5140
        %v5155 = vmul.f32 %v2916, %v5140
        %v5156 = vmul.f32 %v2917, %v5140
        %v5157 = vmul.f32 %v2922, %v5140
        %v5158 = vmul.f32 %v2923, %v5140
        %v5159 = vmul.f32 %v2928, %v5140
        %v5160 = vmul.f32 %v2929, %v5140
        %v5161 = vmul.f32 %v2934, %v5140
        %v5162 = vmul.f32 %v2935, %v5140
        %v5163 = vmul.f32 %v2940, %v5140
        %v5164 = vmul.f32 %v2941, %v5140
        %v5165 = vmul.f32 %v2946, %v5140
        %v5166 = vmul.f32 %v2947, %v5140
        %v5167 = vmul.f32 %v2952, %v5140
        %v5168 = vmul.f32 %v2953, %v5140
        %v5169 = vmul.f32 %v2958, %v5140
        %v5170 = vmul.f32 %v2959, %v5140
        %v5171 = vmul.f32 %v2964, %v5140
        %v5172 = vmul.f32 %v2965, %v5140
        %v5173 = vadd.f32 %v5108, %v5141
        %v5174 = vadd.f32 %v5109, %v5142
        %v5175 = vadd.f32 %v5110, %v5143
        %v5176 = vadd.f32 %v5111, %v5144
        %v5177 = vadd.f32 %v5112, %v5145
        %v5178 = vadd.f32 %v5113, %v5146
        %v5179 = vadd.f32 %v5114, %v5147
        %v5180 = vadd.f32 %v5115, %v5148
        %v5181 = vadd.f32 %v5116, %v5149
        %v5182 = vadd.f32 %v5117, %v5150
        %v5183 = vadd.f32 %v5118, %v5151
        %v5184 = vadd.f32 %v5119, %v5152
        %v5185 = vadd.f32 %v5120, %v5153
        %v5186 = vadd.f32 %v5121, %v5154
        %v5187 = vadd.f32 %v5122, %v5155
        %v5188 = vadd.f32 %v5123, %v5156
        %v5189 = vadd.f32 %v5124, %v5157
        %v5190 = vadd.f32 %v5125, %v5158
        %v5191 = vadd.f32 %v5126, %v5159
        %v5192 = vadd.f32 %v5127, %v5160
        %v5193 = vadd.f32 %v5128, %v5161
        %v5194 = vadd.f32 %v5129, %v5162
        %v5195 = vadd.f32 %v5130, %v5163
        %v5196 = vadd.f32 %v5131, %v5164
        %v5197 = vadd.f32 %v5132, %v5165
        %v5198 = vadd.f32 %v5133, %v5166
        %v5199 = vadd.f32 %v5134, %v5167
        %v5200 = vadd.f32 %v5135, %v5168
        %v5201 = vadd.f32 %v5136, %v5169
        %v5202 = vadd.f32 %v5137, %v5170
        %v5203 = vadd.f32 %v5138, %v5171
        %v5204 = vadd.f32 %v5139, %v5172
        %v5205 = vperm.slane %v2797, 6
        %v5206 = vmul.f32 %v2892, %v5205
        %v5207 = vmul.f32 %v2893, %v5205
        %v5208 = vmul.f32 %v2898, %v5205
        %v5209 = vmul.f32 %v2899, %v5205
        %v5210 = vmul.f32 %v2904, %v5205
        %v5211 = vmul.f32 %v2905, %v5205
        %v5212 = vmul.f32 %v2910, %v5205
        %v5213 = vmul.f32 %v2911, %v5205
        %v5214 = vmul.f32 %v2916, %v5205
        %v5215 = vmul.f32 %v2917, %v5205
        %v5216 = vmul.f32 %v2922, %v5205
        %v5217 = vmul.f32 %v2923, %v5205
        %v5218 = vmul.f32 %v2928, %v5205
        %v5219 = vmul.f32 %v2929, %v5205
        %v5220 = vmul.f32 %v2934, %v5205
        %v5221 = vmul.f32 %v2935, %v5205
        %v5222 = vmul.f32 %v2940, %v5205
        %v5223 = vmul.f32 %v2941, %v5205
        %v5224 = vmul.f32 %v2946, %v5205
        %v5225 = vmul.f32 %v2947, %v5205
        %v5226 = vmul.f32 %v2952, %v5205
        %v5227 = vmul.f32 %v2953, %v5205
        %v5228 = vmul.f32 %v2958, %v5205
        %v5229 = vmul.f32 %v2959, %v5205
        %v5230 = vmul.f32 %v2964, %v5205
        %v5231 = vmul.f32 %v2965, %v5205
        %v5232 = vmul.f32 %v2970, %v5205
        %v5233 = vmul.f32 %v2971, %v5205
        %v5234 = vmul.f32 %v2976, %v5205
        %v5235 = vmul.f32 %v2977, %v5205
        %v5236 = vmul.f32 %v2982, %v5205
        %v5237 = vmul.f32 %v2983, %v5205
        %v5238 = vadd.f32 %v5173, %v5206
        %v5239 = vadd.f32 %v5174, %v5207
        %v5240 = vadd.f32 %v5175, %v5208
        %v5241 = vadd.f32 %v5176, %v5209
        %v5242 = vadd.f32 %v5177, %v5210
        %v5243 = vadd.f32 %v5178, %v5211
        %v5244 = vadd.f32 %v5179, %v5212
        %v5245 = vadd.f32 %v5180, %v5213
        %v5246 = vadd.f32 %v5181, %v5214
        %v5247 = vadd.f32 %v5182, %v5215
        %v5248 = vadd.f32 %v5183, %v5216
        %v5249 = vadd.f32 %v5184, %v5217
        %v5250 = vadd.f32 %v5185, %v5218
        %v5251 = vadd.f32 %v5186, %v5219
        %v5252 = vadd.f32 %v5187, %v5220
        %v5253 = vadd.f32 %v5188, %v5221
        %v5254 = vadd.f32 %v5189, %v5222
        %v5255 = vadd.f32 %v5190, %v5223
        %v5256 = vadd.f32 %v5191, %v5224
        %v5257 = vadd.f32 %v5192, %v5225
        %v5258 = vadd.f32 %v5193, %v5226
        %v5259 = vadd.f32 %v5194, %v5227
        %v5260 = vadd.f32 %v5195, %v5228
        %v5261 = vadd.f32 %v5196, %v5229
        %v5262 = vadd.f32 %v5197, %v5230
        %v5263 = vadd.f32 %v5198, %v5231
        %v5264 = vadd.f32 %v5199, %v5232
        %v5265 = vadd.f32 %v5200, %v5233
        %v5266 = vadd.f32 %v5201, %v5234
        %v5267 = vadd.f32 %v5202, %v5235
        %v5268 = vadd.f32 %v5203, %v5236
        %v5269 = vadd.f32 %v5204, %v5237
        %v5270 = vperm.slane %v2798, 5
        %v5271 = vmul.f32 %v2910, %v5270
        %v5272 = vmul.f32 %v2911, %v5270
        %v5273 = vmul.f32 %v2916, %v5270
        %v5274 = vmul.f32 %v2917, %v5270
        %v5275 = vmul.f32 %v2922, %v5270
        %v5276 = vmul.f32 %v2923, %v5270
        %v5277 = vmul.f32 %v2928, %v5270
        %v5278 = vmul.f32 %v2929, %v5270
        %v5279 = vmul.f32 %v2934, %v5270
        %v5280 = vmul.f32 %v2935, %v5270
        %v5281 = vmul.f32 %v2940, %v5270
        %v5282 = vmul.f32 %v2941, %v5270
        %v5283 = vmul.f32 %v2946, %v5270
        %v5284 = vmul.f32 %v2947, %v5270
        %v5285 = vmul.f32 %v2952, %v5270
        %v5286 = vmul.f32 %v2953, %v5270
        %v5287 = vmul.f32 %v2958, %v5270
        %v5288 = vmul.f32 %v2959, %v5270
        %v5289 = vmul.f32 %v2964, %v5270
        %v5290 = vmul.f32 %v2965, %v5270
        %v5291 = vmul.f32 %v2970, %v5270
        %v5292 = vmul.f32 %v2971, %v5270
        %v5293 = vmul.f32 %v2976, %v5270
        %v5294 = vmul.f32 %v2977, %v5270
        %v5295 = vmul.f32 %v2982, %v5270
        %v5296 = vmul.f32 %v2983, %v5270
        %v5297 = vmul.f32 %v2988, %v5270
        %v5298 = vmul.f32 %v2989, %v5270
        %v5299 = vmul.f32 %v2994, %v5270
        %v5300 = vmul.f32 %v2995, %v5270
        %v5301 = vmul.f32 %v3000, %v5270
        %v5302 = vmul.f32 %v3001, %v5270
        %v5303 = vadd.f32 %v5238, %v5271
        %v5304 = vadd.f32 %v5239, %v5272
        %v5305 = vadd.f32 %v5240, %v5273
        %v5306 = vadd.f32 %v5241, %v5274
        %v5307 = vadd.f32 %v5242, %v5275
        %v5308 = vadd.f32 %v5243, %v5276
        %v5309 = vadd.f32 %v5244, %v5277
        %v5310 = vadd.f32 %v5245, %v5278
        %v5311 = vadd.f32 %v5246, %v5279
        %v5312 = vadd.f32 %v5247, %v5280
        %v5313 = vadd.f32 %v5248, %v5281
        %v5314 = vadd.f32 %v5249, %v5282
        %v5315 = vadd.f32 %v5250, %v5283
        %v5316 = vadd.f32 %v5251, %v5284
        %v5317 = vadd.f32 %v5252, %v5285
        %v5318 = vadd.f32 %v5253, %v5286
        %v5319 = vadd.f32 %v5254, %v5287
        %v5320 = vadd.f32 %v5255, %v5288
        %v5321 = vadd.f32 %v5256, %v5289
        %v5322 = vadd.f32 %v5257, %v5290
        %v5323 = vadd.f32 %v5258, %v5291
        %v5324 = vadd.f32 %v5259, %v5292
        %v5325 = vadd.f32 %v5260, %v5293
        %v5326 = vadd.f32 %v5261, %v5294
        %v5327 = vadd.f32 %v5262, %v5295
        %v5328 = vadd.f32 %v5263, %v5296
        %v5329 = vadd.f32 %v5264, %v5297
        %v5330 = vadd.f32 %v5265, %v5298
        %v5331 = vadd.f32 %v5266, %v5299
        %v5332 = vadd.f32 %v5267, %v5300
        %v5333 = vadd.f32 %v5268, %v5301
        %v5334 = vadd.f32 %v5269, %v5302
        %v5335 = vrot.slane %v2802, 3
        %v5336 = vrot.slane %v2808, 3
        %v5337 = vrot.slane %v2814, 3
        %v5338 = vrot.slane %v2820, 3
        %v5339 = vrot.slane %v2826, 3
        %v5340 = vrot.slane %v2832, 3
        %v5341 = vrot.slane %v2838, 3
        %v5342 = vrot.slane %v2844, 3
        %v5343 = vrot.slane %v2850, 3
        %v5344 = vrot.slane %v2856, 3
        %v5345 = vrot.slane %v2862, 3
        %v5346 = vrot.slane %v2868, 3
        %v5347 = vrot.slane %v2874, 3
        %v5348 = vrot.slane %v2880, 3
        %v5349 = vrot.slane %v2886, 3
        %v5350 = vrot.slane %v2892, 3
        %v5351 = vrot.slane %v2898, 3
        %v5352 = vrot.slane %v2904, 3
        %v5353 = vrot.slane %v2910, 3
        %v5354 = vrot.slane %v2916, 3
        %v5355 = vrot.slane %v2922, 3
        %v5356 = vrot.slane %v2928, 3
        %v5357 = vrot.slane %v2934, 3
        %v5358 = vrot.slane %v2940, 3
        %v5359 = vrot.slane %v2946, 3
        %v5360 = vrot.slane %v2952, 3
        %v5361 = vrot.slane %v2958, 3
        %v5362 = vrot.slane %v2964, 3
        %v5363 = vrot.slane %v2970, 3
        %v5364 = vrot.slane %v2976, 3
        %v5365 = vrot.slane %v2982, 3
        %v5366 = vrot.slane %v2988, 3
        %v5367 = vrot.slane %v2994, 3
        %v5368 = vrot.slane %v3000, 3
        %v5369 = vrot.slane %v2803, 3
        %v5370 = vrot.slane %v2809, 3
        %v5371 = vrot.slane %v2815, 3
        %v5372 = vrot.slane %v2821, 3
        %v5373 = vrot.slane %v2827, 3
        %v5374 = vrot.slane %v2833, 3
        %v5375 = vrot.slane %v2839, 3
        %v5376 = vrot.slane %v2845, 3
        %v5377 = vrot.slane %v2851, 3
        %v5378 = vrot.slane %v2857, 3
        %v5379 = vrot.slane %v2863, 3
        %v5380 = vrot.slane %v2869, 3
        %v5381 = vrot.slane %v2875, 3
        %v5382 = vrot.slane %v2881, 3
        %v5383 = vrot.slane %v2887, 3
        %v5384 = vrot.slane %v2893, 3
        %v5385 = vrot.slane %v2899, 3
        %v5386 = vrot.slane %v2905, 3
        %v5387 = vrot.slane %v2911, 3
        %v5388 = vrot.slane %v2917, 3
        %v5389 = vrot.slane %v2923, 3
        %v5390 = vrot.slane %v2929, 3
        %v5391 = vrot.slane %v2935, 3
        %v5392 = vrot.slane %v2941, 3
        %v5393 = vrot.slane %v2947, 3
        %v5394 = vrot.slane %v2953, 3
        %v5395 = vrot.slane %v2959, 3
        %v5396 = vrot.slane %v2965, 3
        %v5397 = vrot.slane %v2971, 3
        %v5398 = vrot.slane %v2977, 3
        %v5399 = vrot.slane %v2983, 3
        %v5400 = vrot.slane %v2989, 3
        %v5401 = vrot.slane %v2995, 3
        %v5402 = vrot.slane %v3001, 3
        %v5403 = vrot.slane %v2804, 3
        %v5404 = vrot.slane %v2810, 3
        %v5405 = vrot.slane %v2816, 3
        %v5406 = vrot.slane %v2822, 3
        %v5407 = vrot.slane %v2828, 3
        %v5408 = vrot.slane %v2834, 3
        %v5409 = vrot.slane %v2840, 3
        %v5410 = vrot.slane %v2846, 3
        %v5411 = vrot.slane %v2852, 3
        %v5412 = vrot.slane %v2858, 3
        %v5413 = vrot.slane %v2864, 3
        %v5414 = vrot.slane %v2870, 3
        %v5415 = vrot.slane %v2876, 3
        %v5416 = vrot.slane %v2882, 3
        %v5417 = vrot.slane %v2888, 3
        %v5418 = vrot.slane %v2894, 3
        %v5419 = vrot.slane %v2900, 3
        %v5420 = vrot.slane %v2906, 3
        %v5421 = vrot.slane %v2912, 3
        %v5422 = vrot.slane %v2918, 3
        %v5423 = vrot.slane %v2924, 3
        %v5424 = vrot.slane %v2930, 3
        %v5425 = vrot.slane %v2936, 3
        %v5426 = vrot.slane %v2942, 3
        %v5427 = vrot.slane %v2948, 3
        %v5428 = vrot.slane %v2954, 3
        %v5429 = vrot.slane %v2960, 3
        %v5430 = vrot.slane %v2966, 3
        %v5431 = vrot.slane %v2972, 3
        %v5432 = vrot.slane %v2978, 3
        %v5433 = vrot.slane %v2984, 3
        %v5434 = vrot.slane %v2990, 3
        %v5435 = vrot.slane %v2996, 3
        %v5436 = vrot.slane %v3002, 3
        %vm5437 = vcmp.lt.s32.totalorder %v755, 5
        %v5438 = vsel %vm5437, %v5369, %v5403
        %v5439 = vsel %vm5437, %v5370, %v5404
        %v5440 = vsel %vm5437, %v5371, %v5405
        %v5441 = vsel %vm5437, %v5372, %v5406
        %v5442 = vsel %vm5437, %v5373, %v5407
        %v5443 = vsel %vm5437, %v5374, %v5408
        %v5444 = vsel %vm5437, %v5375, %v5409
        %v5445 = vsel %vm5437, %v5376, %v5410
        %v5446 = vsel %vm5437, %v5377, %v5411
        %v5447 = vsel %vm5437, %v5378, %v5412
        %v5448 = vsel %vm5437, %v5379, %v5413
        %v5449 = vsel %vm5437, %v5380, %v5414
        %v5450 = vsel %vm5437, %v5381, %v5415
        %v5451 = vsel %vm5437, %v5382, %v5416
        %v5452 = vsel %vm5437, %v5383, %v5417
        %v5453 = vsel %vm5437, %v5384, %v5418
        %v5454 = vsel %vm5437, %v5385, %v5419
        %v5455 = vsel %vm5437, %v5386, %v5420
        %v5456 = vsel %vm5437, %v5387, %v5421
        %v5457 = vsel %vm5437, %v5388, %v5422
        %v5458 = vsel %vm5437, %v5389, %v5423
        %v5459 = vsel %vm5437, %v5390, %v5424
        %v5460 = vsel %vm5437, %v5391, %v5425
        %v5461 = vsel %vm5437, %v5392, %v5426
        %v5462 = vsel %vm5437, %v5393, %v5427
        %v5463 = vsel %vm5437, %v5394, %v5428
        %v5464 = vsel %vm5437, %v5395, %v5429
        %v5465 = vsel %vm5437, %v5396, %v5430
        %v5466 = vsel %vm5437, %v5397, %v5431
        %v5467 = vsel %vm5437, %v5398, %v5432
        %v5468 = vsel %vm5437, %v5399, %v5433
        %v5469 = vsel %vm5437, %v5400, %v5434
        %v5470 = vsel %vm5437, %v5401, %v5435
        %v5471 = vsel %vm5437, %v5402, %v5436
        %v5472 = vsel %vm5437, %v5335, %v5369
        %v5473 = vsel %vm5437, %v5336, %v5370
        %v5474 = vsel %vm5437, %v5337, %v5371
        %v5475 = vsel %vm5437, %v5338, %v5372
        %v5476 = vsel %vm5437, %v5339, %v5373
        %v5477 = vsel %vm5437, %v5340, %v5374
        %v5478 = vsel %vm5437, %v5341, %v5375
        %v5479 = vsel %vm5437, %v5342, %v5376
        %v5480 = vsel %vm5437, %v5343, %v5377
        %v5481 = vsel %vm5437, %v5344, %v5378
        %v5482 = vsel %vm5437, %v5345, %v5379
        %v5483 = vsel %vm5437, %v5346, %v5380
        %v5484 = vsel %vm5437, %v5347, %v5381
        %v5485 = vsel %vm5437, %v5348, %v5382
        %v5486 = vsel %vm5437, %v5349, %v5383
        %v5487 = vsel %vm5437, %v5350, %v5384
        %v5488 = vsel %vm5437, %v5351, %v5385
        %v5489 = vsel %vm5437, %v5352, %v5386
        %v5490 = vsel %vm5437, %v5353, %v5387
        %v5491 = vsel %vm5437, %v5354, %v5388
        %v5492 = vsel %vm5437, %v5355, %v5389
        %v5493 = vsel %vm5437, %v5356, %v5390
        %v5494 = vsel %vm5437, %v5357, %v5391
        %v5495 = vsel %vm5437, %v5358, %v5392
        %v5496 = vsel %vm5437, %v5359, %v5393
        %v5497 = vsel %vm5437, %v5360, %v5394
        %v5498 = vsel %vm5437, %v5361, %v5395
        %v5499 = vsel %vm5437, %v5362, %v5396
        %v5500 = vsel %vm5437, %v5363, %v5397
        %v5501 = vsel %vm5437, %v5364, %v5398
        %v5502 = vsel %vm5437, %v5365, %v5399
        %v5503 = vsel %vm5437, %v5366, %v5400
        %v5504 = vsel %vm5437, %v5367, %v5401
        %v5505 = vsel %vm5437, %v5368, %v5402
        %v5506 = vperm.slane %v2793, 4
        %v5507 = vmul.f32 %v5472, %v5506
        %v5508 = vmul.f32 %v5438, %v5506
        %v5509 = vmul.f32 %v5473, %v5506
        %v5510 = vmul.f32 %v5439, %v5506
        %v5511 = vmul.f32 %v5474, %v5506
        %v5512 = vmul.f32 %v5440, %v5506
        %v5513 = vmul.f32 %v5475, %v5506
        %v5514 = vmul.f32 %v5441, %v5506
        %v5515 = vmul.f32 %v5476, %v5506
        %v5516 = vmul.f32 %v5442, %v5506
        %v5517 = vmul.f32 %v5477, %v5506
        %v5518 = vmul.f32 %v5443, %v5506
        %v5519 = vmul.f32 %v5478, %v5506
        %v5520 = vmul.f32 %v5444, %v5506
        %v5521 = vmul.f32 %v5479, %v5506
        %v5522 = vmul.f32 %v5445, %v5506
        %v5523 = vmul.f32 %v5480, %v5506
        %v5524 = vmul.f32 %v5446, %v5506
        %v5525 = vmul.f32 %v5481, %v5506
        %v5526 = vmul.f32 %v5447, %v5506
        %v5527 = vmul.f32 %v5482, %v5506
        %v5528 = vmul.f32 %v5448, %v5506
        %v5529 = vmul.f32 %v5483, %v5506
        %v5530 = vmul.f32 %v5449, %v5506
        %v5531 = vmul.f32 %v5484, %v5506
        %v5532 = vmul.f32 %v5450, %v5506
        %v5533 = vmul.f32 %v5485, %v5506
        %v5534 = vmul.f32 %v5451, %v5506
        %v5535 = vmul.f32 %v5486, %v5506
        %v5536 = vmul.f32 %v5452, %v5506
        %v5537 = vmul.f32 %v5487, %v5506
        %v5538 = vmul.f32 %v5453, %v5506
        %v5539 = vadd.f32 %v5303, %v5507
        %v5540 = vadd.f32 %v5304, %v5508
        %v5541 = vadd.f32 %v5305, %v5509
        %v5542 = vadd.f32 %v5306, %v5510
        %v5543 = vadd.f32 %v5307, %v5511
        %v5544 = vadd.f32 %v5308, %v5512
        %v5545 = vadd.f32 %v5309, %v5513
        %v5546 = vadd.f32 %v5310, %v5514
        %v5547 = vadd.f32 %v5311, %v5515
        %v5548 = vadd.f32 %v5312, %v5516
        %v5549 = vadd.f32 %v5313, %v5517
        %v5550 = vadd.f32 %v5314, %v5518
        %v5551 = vadd.f32 %v5315, %v5519
        %v5552 = vadd.f32 %v5316, %v5520
        %v5553 = vadd.f32 %v5317, %v5521
        %v5554 = vadd.f32 %v5318, %v5522
        %v5555 = vadd.f32 %v5319, %v5523
        %v5556 = vadd.f32 %v5320, %v5524
        %v5557 = vadd.f32 %v5321, %v5525
        %v5558 = vadd.f32 %v5322, %v5526
        %v5559 = vadd.f32 %v5323, %v5527
        %v5560 = vadd.f32 %v5324, %v5528
        %v5561 = vadd.f32 %v5325, %v5529
        %v5562 = vadd.f32 %v5326, %v5530
        %v5563 = vadd.f32 %v5327, %v5531
        %v5564 = vadd.f32 %v5328, %v5532
        %v5565 = vadd.f32 %v5329, %v5533
        %v5566 = vadd.f32 %v5330, %v5534
        %v5567 = vadd.f32 %v5331, %v5535
        %v5568 = vadd.f32 %v5332, %v5536
        %v5569 = vadd.f32 %v5333, %v5537
        %v5570 = vadd.f32 %v5334, %v5538
        %v5571 = vperm.slane %v2794, 3
        %v5572 = vmul.f32 %v5475, %v5571
        %v5573 = vmul.f32 %v5441, %v5571
        %v5574 = vmul.f32 %v5476, %v5571
        %v5575 = vmul.f32 %v5442, %v5571
        %v5576 = vmul.f32 %v5477, %v5571
        %v5577 = vmul.f32 %v5443, %v5571
        %v5578 = vmul.f32 %v5478, %v5571
        %v5579 = vmul.f32 %v5444, %v5571
        %v5580 = vmul.f32 %v5479, %v5571
        %v5581 = vmul.f32 %v5445, %v5571
        %v5582 = vmul.f32 %v5480, %v5571
        %v5583 = vmul.f32 %v5446, %v5571
        %v5584 = vmul.f32 %v5481, %v5571
        %v5585 = vmul.f32 %v5447, %v5571
        %v5586 = vmul.f32 %v5482, %v5571
        %v5587 = vmul.f32 %v5448, %v5571
        %v5588 = vmul.f32 %v5483, %v5571
        %v5589 = vmul.f32 %v5449, %v5571
        %v5590 = vmul.f32 %v5484, %v5571
        %v5591 = vmul.f32 %v5450, %v5571
        %v5592 = vmul.f32 %v5485, %v5571
        %v5593 = vmul.f32 %v5451, %v5571
        %v5594 = vmul.f32 %v5486, %v5571
        %v5595 = vmul.f32 %v5452, %v5571
        %v5596 = vmul.f32 %v5487, %v5571
        %v5597 = vmul.f32 %v5453, %v5571
        %v5598 = vmul.f32 %v5488, %v5571
        %v5599 = vmul.f32 %v5454, %v5571
        %v5600 = vmul.f32 %v5489, %v5571
        %v5601 = vmul.f32 %v5455, %v5571
        %v5602 = vmul.f32 %v5490, %v5571
        %v5603 = vmul.f32 %v5456, %v5571
        %v5604 = vadd.f32 %v5539, %v5572
        %v5605 = vadd.f32 %v5540, %v5573
        %v5606 = vadd.f32 %v5541, %v5574
        %v5607 = vadd.f32 %v5542, %v5575
        %v5608 = vadd.f32 %v5543, %v5576
        %v5609 = vadd.f32 %v5544, %v5577
        %v5610 = vadd.f32 %v5545, %v5578
        %v5611 = vadd.f32 %v5546, %v5579
        %v5612 = vadd.f32 %v5547, %v5580
        %v5613 = vadd.f32 %v5548, %v5581
        %v5614 = vadd.f32 %v5549, %v5582
        %v5615 = vadd.f32 %v5550, %v5583
        %v5616 = vadd.f32 %v5551, %v5584
        %v5617 = vadd.f32 %v5552, %v5585
        %v5618 = vadd.f32 %v5553, %v5586
        %v5619 = vadd.f32 %v5554, %v5587
        %v5620 = vadd.f32 %v5555, %v5588
        %v5621 = vadd.f32 %v5556, %v5589
        %v5622 = vadd.f32 %v5557, %v5590
        %v5623 = vadd.f32 %v5558, %v5591
        %v5624 = vadd.f32 %v5559, %v5592
        %v5625 = vadd.f32 %v5560, %v5593
        %v5626 = vadd.f32 %v5561, %v5594
        %v5627 = vadd.f32 %v5562, %v5595
        %v5628 = vadd.f32 %v5563, %v5596
        %v5629 = vadd.f32 %v5564, %v5597
        %v5630 = vadd.f32 %v5565, %v5598
        %v5631 = vadd.f32 %v5566, %v5599
        %v5632 = vadd.f32 %v5567, %v5600
        %v5633 = vadd.f32 %v5568, %v5601
        %v5634 = vadd.f32 %v5569, %v5602
        %v5635 = vadd.f32 %v5570, %v5603
        %v5636 = vperm.slane %v2795, 2
        %v5637 = vmul.f32 %v5478, %v5636
        %v5638 = vmul.f32 %v5444, %v5636
        %v5639 = vmul.f32 %v5479, %v5636
        %v5640 = vmul.f32 %v5445, %v5636
        %v5641 = vmul.f32 %v5480, %v5636
        %v5642 = vmul.f32 %v5446, %v5636
        %v5643 = vmul.f32 %v5481, %v5636
        %v5644 = vmul.f32 %v5447, %v5636
        %v5645 = vmul.f32 %v5482, %v5636
        %v5646 = vmul.f32 %v5448, %v5636
        %v5647 = vmul.f32 %v5483, %v5636
        %v5648 = vmul.f32 %v5449, %v5636
        %v5649 = vmul.f32 %v5484, %v5636
        %v5650 = vmul.f32 %v5450, %v5636
        %v5651 = vmul.f32 %v5485, %v5636
        %v5652 = vmul.f32 %v5451, %v5636
        %v5653 = vmul.f32 %v5486, %v5636
        %v5654 = vmul.f32 %v5452, %v5636
        %v5655 = vmul.f32 %v5487, %v5636
        %v5656 = vmul.f32 %v5453, %v5636
        %v5657 = vmul.f32 %v5488, %v5636
        %v5658 = vmul.f32 %v5454, %v5636
        %v5659 = vmul.f32 %v5489, %v5636
        %v5660 = vmul.f32 %v5455, %v5636
        %v5661 = vmul.f32 %v5490, %v5636
        %v5662 = vmul.f32 %v5456, %v5636
        %v5663 = vmul.f32 %v5491, %v5636
        %v5664 = vmul.f32 %v5457, %v5636
        %v5665 = vmul.f32 %v5492, %v5636
        %v5666 = vmul.f32 %v5458, %v5636
        %v5667 = vmul.f32 %v5493, %v5636
        %v5668 = vmul.f32 %v5459, %v5636
        %v5669 = vadd.f32 %v5604, %v5637
        %v5670 = vadd.f32 %v5605, %v5638
        %v5671 = vadd.f32 %v5606, %v5639
        %v5672 = vadd.f32 %v5607, %v5640
        %v5673 = vadd.f32 %v5608, %v5641
        %v5674 = vadd.f32 %v5609, %v5642
        %v5675 = vadd.f32 %v5610, %v5643
        %v5676 = vadd.f32 %v5611, %v5644
        %v5677 = vadd.f32 %v5612, %v5645
        %v5678 = vadd.f32 %v5613, %v5646
        %v5679 = vadd.f32 %v5614, %v5647
        %v5680 = vadd.f32 %v5615, %v5648
        %v5681 = vadd.f32 %v5616, %v5649
        %v5682 = vadd.f32 %v5617, %v5650
        %v5683 = vadd.f32 %v5618, %v5651
        %v5684 = vadd.f32 %v5619, %v5652
        %v5685 = vadd.f32 %v5620, %v5653
        %v5686 = vadd.f32 %v5621, %v5654
        %v5687 = vadd.f32 %v5622, %v5655
        %v5688 = vadd.f32 %v5623, %v5656
        %v5689 = vadd.f32 %v5624, %v5657
        %v5690 = vadd.f32 %v5625, %v5658
        %v5691 = vadd.f32 %v5626, %v5659
        %v5692 = vadd.f32 %v5627, %v5660
        %v5693 = vadd.f32 %v5628, %v5661
        %v5694 = vadd.f32 %v5629, %v5662
        %v5695 = vadd.f32 %v5630, %v5663
        %v5696 = vadd.f32 %v5631, %v5664
        %v5697 = vadd.f32 %v5632, %v5665
        %v5698 = vadd.f32 %v5633, %v5666
        %v5699 = vadd.f32 %v5634, %v5667
        %v5700 = vadd.f32 %v5635, %v5668
        %v5701 = vperm.slane %v2796, 1
        %v5702 = vmul.f32 %v5481, %v5701
        %v5703 = vmul.f32 %v5447, %v5701
        %v5704 = vmul.f32 %v5482, %v5701
        %v5705 = vmul.f32 %v5448, %v5701
        %v5706 = vmul.f32 %v5483, %v5701
        %v5707 = vmul.f32 %v5449, %v5701
        %v5708 = vmul.f32 %v5484, %v5701
        %v5709 = vmul.f32 %v5450, %v5701
        %v5710 = vmul.f32 %v5485, %v5701
        %v5711 = vmul.f32 %v5451, %v5701
        %v5712 = vmul.f32 %v5486, %v5701
        %v5713 = vmul.f32 %v5452, %v5701
        %v5714 = vmul.f32 %v5487, %v5701
        %v5715 = vmul.f32 %v5453, %v5701
        %v5716 = vmul.f32 %v5488, %v5701
        %v5717 = vmul.f32 %v5454, %v5701
        %v5718 = vmul.f32 %v5489, %v5701
        %v5719 = vmul.f32 %v5455, %v5701
        %v5720 = vmul.f32 %v5490, %v5701
        %v5721 = vmul.f32 %v5456, %v5701
        %v5722 = vmul.f32 %v5491, %v5701
        %v5723 = vmul.f32 %v5457, %v5701
        %v5724 = vmul.f32 %v5492, %v5701
        %v5725 = vmul.f32 %v5458, %v5701
        %v5726 = vmul.f32 %v5493, %v5701
        %v5727 = vmul.f32 %v5459, %v5701
        %v5728 = vmul.f32 %v5494, %v5701
        %v5729 = vmul.f32 %v5460, %v5701
        %v5730 = vmul.f32 %v5495, %v5701
        %v5731 = vmul.f32 %v5461, %v5701
        %v5732 = vmul.f32 %v5496, %v5701
        %v5733 = vmul.f32 %v5462, %v5701
        %v5734 = vadd.f32 %v5669, %v5702
        %v5735 = vadd.f32 %v5670, %v5703
        %v5736 = vadd.f32 %v5671, %v5704
        %v5737 = vadd.f32 %v5672, %v5705
        %v5738 = vadd.f32 %v5673, %v5706
        %v5739 = vadd.f32 %v5674, %v5707
        %v5740 = vadd.f32 %v5675, %v5708
        %v5741 = vadd.f32 %v5676, %v5709
        %v5742 = vadd.f32 %v5677, %v5710
        %v5743 = vadd.f32 %v5678, %v5711
        %v5744 = vadd.f32 %v5679, %v5712
        %v5745 = vadd.f32 %v5680, %v5713
        %v5746 = vadd.f32 %v5681, %v5714
        %v5747 = vadd.f32 %v5682, %v5715
        %v5748 = vadd.f32 %v5683, %v5716
        %v5749 = vadd.f32 %v5684, %v5717
        %v5750 = vadd.f32 %v5685, %v5718
        %v5751 = vadd.f32 %v5686, %v5719
        %v5752 = vadd.f32 %v5687, %v5720
        %v5753 = vadd.f32 %v5688, %v5721
        %v5754 = vadd.f32 %v5689, %v5722
        %v5755 = vadd.f32 %v5690, %v5723
        %v5756 = vadd.f32 %v5691, %v5724
        %v5757 = vadd.f32 %v5692, %v5725
        %v5758 = vadd.f32 %v5693, %v5726
        %v5759 = vadd.f32 %v5694, %v5727
        %v5760 = vadd.f32 %v5695, %v5728
        %v5761 = vadd.f32 %v5696, %v5729
        %v5762 = vadd.f32 %v5697, %v5730
        %v5763 = vadd.f32 %v5698, %v5731
        %v5764 = vadd.f32 %v5699, %v5732
        %v5765 = vadd.f32 %v5700, %v5733
        %v5766 = vperm.slane %v2797, 0
        %v5767 = vmul.f32 %v5484, %v5766
        %v5768 = vmul.f32 %v5450, %v5766
        %v5769 = vmul.f32 %v5485, %v5766
        %v5770 = vmul.f32 %v5451, %v5766
        %v5771 = vmul.f32 %v5486, %v5766
        %v5772 = vmul.f32 %v5452, %v5766
        %v5773 = vmul.f32 %v5487, %v5766
        %v5774 = vmul.f32 %v5453, %v5766
        %v5775 = vmul.f32 %v5488, %v5766
        %v5776 = vmul.f32 %v5454, %v5766
        %v5777 = vmul.f32 %v5489, %v5766
        %v5778 = vmul.f32 %v5455, %v5766
        %v5779 = vmul.f32 %v5490, %v5766
        %v5780 = vmul.f32 %v5456, %v5766
        %v5781 = vmul.f32 %v5491, %v5766
        %v5782 = vmul.f32 %v5457, %v5766
        %v5783 = vmul.f32 %v5492, %v5766
        %v5784 = vmul.f32 %v5458, %v5766
        %v5785 = vmul.f32 %v5493, %v5766
        %v5786 = vmul.f32 %v5459, %v5766
        %v5787 = vmul.f32 %v5494, %v5766
        %v5788 = vmul.f32 %v5460, %v5766
        %v5789 = vmul.f32 %v5495, %v5766
        %v5790 = vmul.f32 %v5461, %v5766
        %v5791 = vmul.f32 %v5496, %v5766
        %v5792 = vmul.f32 %v5462, %v5766
        %v5793 = vmul.f32 %v5497, %v5766
        %v5794 = vmul.f32 %v5463, %v5766
        %v5795 = vmul.f32 %v5498, %v5766
        %v5796 = vmul.f32 %v5464, %v5766
        %v5797 = vmul.f32 %v5499, %v5766
        %v5798 = vmul.f32 %v5465, %v5766
        %v5799 = vadd.f32 %v5734, %v5767
        %v5800 = vadd.f32 %v5735, %v5768
        %v5801 = vadd.f32 %v5736, %v5769
        %v5802 = vadd.f32 %v5737, %v5770
        %v5803 = vadd.f32 %v5738, %v5771
        %v5804 = vadd.f32 %v5739, %v5772
        %v5805 = vadd.f32 %v5740, %v5773
        %v5806 = vadd.f32 %v5741, %v5774
        %v5807 = vadd.f32 %v5742, %v5775
        %v5808 = vadd.f32 %v5743, %v5776
        %v5809 = vadd.f32 %v5744, %v5777
        %v5810 = vadd.f32 %v5745, %v5778
        %v5811 = vadd.f32 %v5746, %v5779
        %v5812 = vadd.f32 %v5747, %v5780
        %v5813 = vadd.f32 %v5748, %v5781
        %v5814 = vadd.f32 %v5749, %v5782
        %v5815 = vadd.f32 %v5750, %v5783
        %v5816 = vadd.f32 %v5751, %v5784
        %v5817 = vadd.f32 %v5752, %v5785
        %v5818 = vadd.f32 %v5753, %v5786
        %v5819 = vadd.f32 %v5754, %v5787
        %v5820 = vadd.f32 %v5755, %v5788
        %v5821 = vadd.f32 %v5756, %v5789
        %v5822 = vadd.f32 %v5757, %v5790
        %v5823 = vadd.f32 %v5758, %v5791
        %v5824 = vadd.f32 %v5759, %v5792
        %v5825 = vadd.f32 %v5760, %v5793
        %v5826 = vadd.f32 %v5761, %v5794
        %v5827 = vadd.f32 %v5762, %v5795
        %v5828 = vadd.f32 %v5763, %v5796
        %v5829 = vadd.f32 %v5764, %v5797
        %v5830 = vadd.f32 %v5765, %v5798
        %v5831 = vperm.slane %v2797, 7
        %v5832 = vmul.f32 %v5487, %v5831
        %v5833 = vmul.f32 %v5453, %v5831
        %v5834 = vmul.f32 %v5488, %v5831
        %v5835 = vmul.f32 %v5454, %v5831
        %v5836 = vmul.f32 %v5489, %v5831
        %v5837 = vmul.f32 %v5455, %v5831
        %v5838 = vmul.f32 %v5490, %v5831
        %v5839 = vmul.f32 %v5456, %v5831
        %v5840 = vmul.f32 %v5491, %v5831
        %v5841 = vmul.f32 %v5457, %v5831
        %v5842 = vmul.f32 %v5492, %v5831
        %v5843 = vmul.f32 %v5458, %v5831
        %v5844 = vmul.f32 %v5493, %v5831
        %v5845 = vmul.f32 %v5459, %v5831
        %v5846 = vmul.f32 %v5494, %v5831
        %v5847 = vmul.f32 %v5460, %v5831
        %v5848 = vmul.f32 %v5495, %v5831
        %v5849 = vmul.f32 %v5461, %v5831
        %v5850 = vmul.f32 %v5496, %v5831
        %v5851 = vmul.f32 %v5462, %v5831
        %v5852 = vmul.f32 %v5497, %v5831
        %v5853 = vmul.f32 %v5463, %v5831
        %v5854 = vmul.f32 %v5498, %v5831
        %v5855 = vmul.f32 %v5464, %v5831
        %v5856 = vmul.f32 %v5499, %v5831
        %v5857 = vmul.f32 %v5465, %v5831
        %v5858 = vmul.f32 %v5500, %v5831
        %v5859 = vmul.f32 %v5466, %v5831
        %v5860 = vmul.f32 %v5501, %v5831
        %v5861 = vmul.f32 %v5467, %v5831
        %v5862 = vmul.f32 %v5502, %v5831
        %v5863 = vmul.f32 %v5468, %v5831
        %v5864 = vadd.f32 %v5799, %v5832
        %v5865 = vadd.f32 %v5800, %v5833
        %v5866 = vadd.f32 %v5801, %v5834
        %v5867 = vadd.f32 %v5802, %v5835
        %v5868 = vadd.f32 %v5803, %v5836
        %v5869 = vadd.f32 %v5804, %v5837
        %v5870 = vadd.f32 %v5805, %v5838
        %v5871 = vadd.f32 %v5806, %v5839
        %v5872 = vadd.f32 %v5807, %v5840
        %v5873 = vadd.f32 %v5808, %v5841
        %v5874 = vadd.f32 %v5809, %v5842
        %v5875 = vadd.f32 %v5810, %v5843
        %v5876 = vadd.f32 %v5811, %v5844
        %v5877 = vadd.f32 %v5812, %v5845
        %v5878 = vadd.f32 %v5813, %v5846
        %v5879 = vadd.f32 %v5814, %v5847
        %v5880 = vadd.f32 %v5815, %v5848
        %v5881 = vadd.f32 %v5816, %v5849
        %v5882 = vadd.f32 %v5817, %v5850
        %v5883 = vadd.f32 %v5818, %v5851
        %v5884 = vadd.f32 %v5819, %v5852
        %v5885 = vadd.f32 %v5820, %v5853
        %v5886 = vadd.f32 %v5821, %v5854
        %v5887 = vadd.f32 %v5822, %v5855
        %v5888 = vadd.f32 %v5823, %v5856
        %v5889 = vadd.f32 %v5824, %v5857
        %v5890 = vadd.f32 %v5825, %v5858
        %v5891 = vadd.f32 %v5826, %v5859
        %v5892 = vadd.f32 %v5827, %v5860
        %v5893 = vadd.f32 %v5828, %v5861
        %v5894 = vadd.f32 %v5829, %v5862
        %v5895 = vadd.f32 %v5830, %v5863
        %v5896 = vperm.slane %v2798, 6
        %v5897 = vmul.f32 %v5490, %v5896
        %v5898 = vmul.f32 %v5456, %v5896
        %v5899 = vmul.f32 %v5491, %v5896
        %v5900 = vmul.f32 %v5457, %v5896
        %v5901 = vmul.f32 %v5492, %v5896
        %v5902 = vmul.f32 %v5458, %v5896
        %v5903 = vmul.f32 %v5493, %v5896
        %v5904 = vmul.f32 %v5459, %v5896
        %v5905 = vmul.f32 %v5494, %v5896
        %v5906 = vmul.f32 %v5460, %v5896
        %v5907 = vmul.f32 %v5495, %v5896
        %v5908 = vmul.f32 %v5461, %v5896
        %v5909 = vmul.f32 %v5496, %v5896
        %v5910 = vmul.f32 %v5462, %v5896
        %v5911 = vmul.f32 %v5497, %v5896
        %v5912 = vmul.f32 %v5463, %v5896
        %v5913 = vmul.f32 %v5498, %v5896
        %v5914 = vmul.f32 %v5464, %v5896
        %v5915 = vmul.f32 %v5499, %v5896
        %v5916 = vmul.f32 %v5465, %v5896
        %v5917 = vmul.f32 %v5500, %v5896
        %v5918 = vmul.f32 %v5466, %v5896
        %v5919 = vmul.f32 %v5501, %v5896
        %v5920 = vmul.f32 %v5467, %v5896
        %v5921 = vmul.f32 %v5502, %v5896
        %v5922 = vmul.f32 %v5468, %v5896
        %v5923 = vmul.f32 %v5503, %v5896
        %v5924 = vmul.f32 %v5469, %v5896
        %v5925 = vmul.f32 %v5504, %v5896
        %v5926 = vmul.f32 %v5470, %v5896
        %v5927 = vmul.f32 %v5505, %v5896
        %v5928 = vmul.f32 %v5471, %v5896
        %v5929 = vadd.f32 %v5864, %v5897
        %v5930 = vadd.f32 %v5865, %v5898
        %v5931 = vadd.f32 %v5866, %v5899
        %v5932 = vadd.f32 %v5867, %v5900
        %v5933 = vadd.f32 %v5868, %v5901
        %v5934 = vadd.f32 %v5869, %v5902
        %v5935 = vadd.f32 %v5870, %v5903
        %v5936 = vadd.f32 %v5871, %v5904
        %v5937 = vadd.f32 %v5872, %v5905
        %v5938 = vadd.f32 %v5873, %v5906
        %v5939 = vadd.f32 %v5874, %v5907
        %v5940 = vadd.f32 %v5875, %v5908
        %v5941 = vadd.f32 %v5876, %v5909
        %v5942 = vadd.f32 %v5877, %v5910
        %v5943 = vadd.f32 %v5878, %v5911
        %v5944 = vadd.f32 %v5879, %v5912
        %v5945 = vadd.f32 %v5880, %v5913
        %v5946 = vadd.f32 %v5881, %v5914
        %v5947 = vadd.f32 %v5882, %v5915
        %v5948 = vadd.f32 %v5883, %v5916
        %v5949 = vadd.f32 %v5884, %v5917
        %v5950 = vadd.f32 %v5885, %v5918
        %v5951 = vadd.f32 %v5886, %v5919
        %v5952 = vadd.f32 %v5887, %v5920
        %v5953 = vadd.f32 %v5888, %v5921
        %v5954 = vadd.f32 %v5889, %v5922
        %v5955 = vadd.f32 %v5890, %v5923
        %v5956 = vadd.f32 %v5891, %v5924
        %v5957 = vadd.f32 %v5892, %v5925
        %v5958 = vadd.f32 %v5893, %v5926
        %v5959 = vadd.f32 %v5894, %v5927
        %v5960 = vadd.f32 %v5895, %v5928
        %v5961 = vrot.slane %v2802, 6
        %v5962 = vrot.slane %v2808, 6
        %v5963 = vrot.slane %v2814, 6
        %v5964 = vrot.slane %v2820, 6
        %v5965 = vrot.slane %v2826, 6
        %v5966 = vrot.slane %v2832, 6
        %v5967 = vrot.slane %v2838, 6
        %v5968 = vrot.slane %v2844, 6
        %v5969 = vrot.slane %v2850, 6
        %v5970 = vrot.slane %v2856, 6
        %v5971 = vrot.slane %v2862, 6
        %v5972 = vrot.slane %v2868, 6
        %v5973 = vrot.slane %v2874, 6
        %v5974 = vrot.slane %v2880, 6
        %v5975 = vrot.slane %v2886, 6
        %v5976 = vrot.slane %v2892, 6
        %v5977 = vrot.slane %v2898, 6
        %v5978 = vrot.slane %v2904, 6
        %v5979 = vrot.slane %v2910, 6
        %v5980 = vrot.slane %v2916, 6
        %v5981 = vrot.slane %v2922, 6
        %v5982 = vrot.slane %v2928, 6
        %v5983 = vrot.slane %v2934, 6
        %v5984 = vrot.slane %v2940, 6
        %v5985 = vrot.slane %v2946, 6
        %v5986 = vrot.slane %v2952, 6
        %v5987 = vrot.slane %v2958, 6
        %v5988 = vrot.slane %v2964, 6
        %v5989 = vrot.slane %v2970, 6
        %v5990 = vrot.slane %v2976, 6
        %v5991 = vrot.slane %v2982, 6
        %v5992 = vrot.slane %v2988, 6
        %v5993 = vrot.slane %v2994, 6
        %v5994 = vrot.slane %v3000, 6
        %v5995 = vrot.slane %v2803, 6
        %v5996 = vrot.slane %v2809, 6
        %v5997 = vrot.slane %v2815, 6
        %v5998 = vrot.slane %v2821, 6
        %v5999 = vrot.slane %v2827, 6
        %v6000 = vrot.slane %v2833, 6
        %v6001 = vrot.slane %v2839, 6
        %v6002 = vrot.slane %v2845, 6
        %v6003 = vrot.slane %v2851, 6
        %v6004 = vrot.slane %v2857, 6
        %v6005 = vrot.slane %v2863, 6
        %v6006 = vrot.slane %v2869, 6
        %v6007 = vrot.slane %v2875, 6
        %v6008 = vrot.slane %v2881, 6
        %v6009 = vrot.slane %v2887, 6
        %v6010 = vrot.slane %v2893, 6
        %v6011 = vrot.slane %v2899, 6
        %v6012 = vrot.slane %v2905, 6
        %v6013 = vrot.slane %v2911, 6
        %v6014 = vrot.slane %v2917, 6
        %v6015 = vrot.slane %v2923, 6
        %v6016 = vrot.slane %v2929, 6
        %v6017 = vrot.slane %v2935, 6
        %v6018 = vrot.slane %v2941, 6
        %v6019 = vrot.slane %v2947, 6
        %v6020 = vrot.slane %v2953, 6
        %v6021 = vrot.slane %v2959, 6
        %v6022 = vrot.slane %v2965, 6
        %v6023 = vrot.slane %v2971, 6
        %v6024 = vrot.slane %v2977, 6
        %v6025 = vrot.slane %v2983, 6
        %v6026 = vrot.slane %v2989, 6
        %v6027 = vrot.slane %v2995, 6
        %v6028 = vrot.slane %v3001, 6
        %v6029 = vrot.slane %v2804, 6
        %v6030 = vrot.slane %v2810, 6
        %v6031 = vrot.slane %v2816, 6
        %v6032 = vrot.slane %v2822, 6
        %v6033 = vrot.slane %v2828, 6
        %v6034 = vrot.slane %v2834, 6
        %v6035 = vrot.slane %v2840, 6
        %v6036 = vrot.slane %v2846, 6
        %v6037 = vrot.slane %v2852, 6
        %v6038 = vrot.slane %v2858, 6
        %v6039 = vrot.slane %v2864, 6
        %v6040 = vrot.slane %v2870, 6
        %v6041 = vrot.slane %v2876, 6
        %v6042 = vrot.slane %v2882, 6
        %v6043 = vrot.slane %v2888, 6
        %v6044 = vrot.slane %v2894, 6
        %v6045 = vrot.slane %v2900, 6
        %v6046 = vrot.slane %v2906, 6
        %v6047 = vrot.slane %v2912, 6
        %v6048 = vrot.slane %v2918, 6
        %v6049 = vrot.slane %v2924, 6
        %v6050 = vrot.slane %v2930, 6
        %v6051 = vrot.slane %v2936, 6
        %v6052 = vrot.slane %v2942, 6
        %v6053 = vrot.slane %v2948, 6
        %v6054 = vrot.slane %v2954, 6
        %v6055 = vrot.slane %v2960, 6
        %v6056 = vrot.slane %v2966, 6
        %v6057 = vrot.slane %v2972, 6
        %v6058 = vrot.slane %v2978, 6
        %v6059 = vrot.slane %v2984, 6
        %v6060 = vrot.slane %v2990, 6
        %v6061 = vrot.slane %v2996, 6
        %v6062 = vrot.slane %v3002, 6
        %v6063 = vsel %vm756, %v5995, %v6029
        %v6064 = vsel %vm756, %v5996, %v6030
        %v6065 = vsel %vm756, %v5997, %v6031
        %v6066 = vsel %vm756, %v5998, %v6032
        %v6067 = vsel %vm756, %v5999, %v6033
        %v6068 = vsel %vm756, %v6000, %v6034
        %v6069 = vsel %vm756, %v6001, %v6035
        %v6070 = vsel %vm756, %v6002, %v6036
        %v6071 = vsel %vm756, %v6003, %v6037
        %v6072 = vsel %vm756, %v6004, %v6038
        %v6073 = vsel %vm756, %v6005, %v6039
        %v6074 = vsel %vm756, %v6006, %v6040
        %v6075 = vsel %vm756, %v6007, %v6041
        %v6076 = vsel %vm756, %v6008, %v6042
        %v6077 = vsel %vm756, %v6009, %v6043
        %v6078 = vsel %vm756, %v6010, %v6044
        %v6079 = vsel %vm756, %v6011, %v6045
        %v6080 = vsel %vm756, %v6012, %v6046
        %v6081 = vsel %vm756, %v6013, %v6047
        %v6082 = vsel %vm756, %v6014, %v6048
        %v6083 = vsel %vm756, %v6015, %v6049
        %v6084 = vsel %vm756, %v6016, %v6050
        %v6085 = vsel %vm756, %v6017, %v6051
        %v6086 = vsel %vm756, %v6018, %v6052
        %v6087 = vsel %vm756, %v6019, %v6053
        %v6088 = vsel %vm756, %v6020, %v6054
        %v6089 = vsel %vm756, %v6021, %v6055
        %v6090 = vsel %vm756, %v6022, %v6056
        %v6091 = vsel %vm756, %v6023, %v6057
        %v6092 = vsel %vm756, %v6024, %v6058
        %v6093 = vsel %vm756, %v6025, %v6059
        %v6094 = vsel %vm756, %v6026, %v6060
        %v6095 = vsel %vm756, %v6027, %v6061
        %v6096 = vsel %vm756, %v6028, %v6062
        %v6097 = vsel %vm756, %v5961, %v5995
        %v6098 = vsel %vm756, %v5962, %v5996
        %v6099 = vsel %vm756, %v5963, %v5997
        %v6100 = vsel %vm756, %v5964, %v5998
        %v6101 = vsel %vm756, %v5965, %v5999
        %v6102 = vsel %vm756, %v5966, %v6000
        %v6103 = vsel %vm756, %v5967, %v6001
        %v6104 = vsel %vm756, %v5968, %v6002
        %v6105 = vsel %vm756, %v5969, %v6003
        %v6106 = vsel %vm756, %v5970, %v6004
        %v6107 = vsel %vm756, %v5971, %v6005
        %v6108 = vsel %vm756, %v5972, %v6006
        %v6109 = vsel %vm756, %v5973, %v6007
        %v6110 = vsel %vm756, %v5974, %v6008
        %v6111 = vsel %vm756, %v5975, %v6009
        %v6112 = vsel %vm756, %v5976, %v6010
        %v6113 = vsel %vm756, %v5977, %v6011
        %v6114 = vsel %vm756, %v5978, %v6012
        %v6115 = vsel %vm756, %v5979, %v6013
        %v6116 = vsel %vm756, %v5980, %v6014
        %v6117 = vsel %vm756, %v5981, %v6015
        %v6118 = vsel %vm756, %v5982, %v6016
        %v6119 = vsel %vm756, %v5983, %v6017
        %v6120 = vsel %vm756, %v5984, %v6018
        %v6121 = vsel %vm756, %v5985, %v6019
        %v6122 = vsel %vm756, %v5986, %v6020
        %v6123 = vsel %vm756, %v5987, %v6021
        %v6124 = vsel %vm756, %v5988, %v6022
        %v6125 = vsel %vm756, %v5989, %v6023
        %v6126 = vsel %vm756, %v5990, %v6024
        %v6127 = vsel %vm756, %v5991, %v6025
        %v6128 = vsel %vm756, %v5992, %v6026
        %v6129 = vsel %vm756, %v5993, %v6027
        %v6130 = vsel %vm756, %v5994, %v6028
        %v6131 = vperm.slane %v2793, 5
        %v6132 = vmul.f32 %v6097, %v6131
        %v6133 = vmul.f32 %v6063, %v6131
        %v6134 = vmul.f32 %v6098, %v6131
        %v6135 = vmul.f32 %v6064, %v6131
        %v6136 = vmul.f32 %v6099, %v6131
        %v6137 = vmul.f32 %v6065, %v6131
        %v6138 = vmul.f32 %v6100, %v6131
        %v6139 = vmul.f32 %v6066, %v6131
        %v6140 = vmul.f32 %v6101, %v6131
        %v6141 = vmul.f32 %v6067, %v6131
        %v6142 = vmul.f32 %v6102, %v6131
        %v6143 = vmul.f32 %v6068, %v6131
        %v6144 = vmul.f32 %v6103, %v6131
        %v6145 = vmul.f32 %v6069, %v6131
        %v6146 = vmul.f32 %v6104, %v6131
        %v6147 = vmul.f32 %v6070, %v6131
        %v6148 = vmul.f32 %v6105, %v6131
        %v6149 = vmul.f32 %v6071, %v6131
        %v6150 = vmul.f32 %v6106, %v6131
        %v6151 = vmul.f32 %v6072, %v6131
        %v6152 = vmul.f32 %v6107, %v6131
        %v6153 = vmul.f32 %v6073, %v6131
        %v6154 = vmul.f32 %v6108, %v6131
        %v6155 = vmul.f32 %v6074, %v6131
        %v6156 = vmul.f32 %v6109, %v6131
        %v6157 = vmul.f32 %v6075, %v6131
        %v6158 = vmul.f32 %v6110, %v6131
        %v6159 = vmul.f32 %v6076, %v6131
        %v6160 = vmul.f32 %v6111, %v6131
        %v6161 = vmul.f32 %v6077, %v6131
        %v6162 = vmul.f32 %v6112, %v6131
        %v6163 = vmul.f32 %v6078, %v6131
        %v6164 = vadd.f32 %v5929, %v6132
        %v6165 = vadd.f32 %v5930, %v6133
        %v6166 = vadd.f32 %v5931, %v6134
        %v6167 = vadd.f32 %v5932, %v6135
        %v6168 = vadd.f32 %v5933, %v6136
        %v6169 = vadd.f32 %v5934, %v6137
        %v6170 = vadd.f32 %v5935, %v6138
        %v6171 = vadd.f32 %v5936, %v6139
        %v6172 = vadd.f32 %v5937, %v6140
        %v6173 = vadd.f32 %v5938, %v6141
        %v6174 = vadd.f32 %v5939, %v6142
        %v6175 = vadd.f32 %v5940, %v6143
        %v6176 = vadd.f32 %v5941, %v6144
        %v6177 = vadd.f32 %v5942, %v6145
        %v6178 = vadd.f32 %v5943, %v6146
        %v6179 = vadd.f32 %v5944, %v6147
        %v6180 = vadd.f32 %v5945, %v6148
        %v6181 = vadd.f32 %v5946, %v6149
        %v6182 = vadd.f32 %v5947, %v6150
        %v6183 = vadd.f32 %v5948, %v6151
        %v6184 = vadd.f32 %v5949, %v6152
        %v6185 = vadd.f32 %v5950, %v6153
        %v6186 = vadd.f32 %v5951, %v6154
        %v6187 = vadd.f32 %v5952, %v6155
        %v6188 = vadd.f32 %v5953, %v6156
        %v6189 = vadd.f32 %v5954, %v6157
        %v6190 = vadd.f32 %v5955, %v6158
        %v6191 = vadd.f32 %v5956, %v6159
        %v6192 = vadd.f32 %v5957, %v6160
        %v6193 = vadd.f32 %v5958, %v6161
        %v6194 = vadd.f32 %v5959, %v6162
        %v6195 = vadd.f32 %v5960, %v6163
        %v6196 = vperm.slane %v2794, 4
        %v6197 = vmul.f32 %v6100, %v6196
        %v6198 = vmul.f32 %v6066, %v6196
        %v6199 = vmul.f32 %v6101, %v6196
        %v6200 = vmul.f32 %v6067, %v6196
        %v6201 = vmul.f32 %v6102, %v6196
        %v6202 = vmul.f32 %v6068, %v6196
        %v6203 = vmul.f32 %v6103, %v6196
        %v6204 = vmul.f32 %v6069, %v6196
        %v6205 = vmul.f32 %v6104, %v6196
        %v6206 = vmul.f32 %v6070, %v6196
        %v6207 = vmul.f32 %v6105, %v6196
        %v6208 = vmul.f32 %v6071, %v6196
        %v6209 = vmul.f32 %v6106, %v6196
        %v6210 = vmul.f32 %v6072, %v6196
        %v6211 = vmul.f32 %v6107, %v6196
        %v6212 = vmul.f32 %v6073, %v6196
        %v6213 = vmul.f32 %v6108, %v6196
        %v6214 = vmul.f32 %v6074, %v6196
        %v6215 = vmul.f32 %v6109, %v6196
        %v6216 = vmul.f32 %v6075, %v6196
        %v6217 = vmul.f32 %v6110, %v6196
        %v6218 = vmul.f32 %v6076, %v6196
        %v6219 = vmul.f32 %v6111, %v6196
        %v6220 = vmul.f32 %v6077, %v6196
        %v6221 = vmul.f32 %v6112, %v6196
        %v6222 = vmul.f32 %v6078, %v6196
        %v6223 = vmul.f32 %v6113, %v6196
        %v6224 = vmul.f32 %v6079, %v6196
        %v6225 = vmul.f32 %v6114, %v6196
        %v6226 = vmul.f32 %v6080, %v6196
        %v6227 = vmul.f32 %v6115, %v6196
        %v6228 = vmul.f32 %v6081, %v6196
        %v6229 = vadd.f32 %v6164, %v6197
        %v6230 = vadd.f32 %v6165, %v6198
        %v6231 = vadd.f32 %v6166, %v6199
        %v6232 = vadd.f32 %v6167, %v6200
        %v6233 = vadd.f32 %v6168, %v6201
        %v6234 = vadd.f32 %v6169, %v6202
        %v6235 = vadd.f32 %v6170, %v6203
        %v6236 = vadd.f32 %v6171, %v6204
        %v6237 = vadd.f32 %v6172, %v6205
        %v6238 = vadd.f32 %v6173, %v6206
        %v6239 = vadd.f32 %v6174, %v6207
        %v6240 = vadd.f32 %v6175, %v6208
        %v6241 = vadd.f32 %v6176, %v6209
        %v6242 = vadd.f32 %v6177, %v6210
        %v6243 = vadd.f32 %v6178, %v6211
        %v6244 = vadd.f32 %v6179, %v6212
        %v6245 = vadd.f32 %v6180, %v6213
        %v6246 = vadd.f32 %v6181, %v6214
        %v6247 = vadd.f32 %v6182, %v6215
        %v6248 = vadd.f32 %v6183, %v6216
        %v6249 = vadd.f32 %v6184, %v6217
        %v6250 = vadd.f32 %v6185, %v6218
        %v6251 = vadd.f32 %v6186, %v6219
        %v6252 = vadd.f32 %v6187, %v6220
        %v6253 = vadd.f32 %v6188, %v6221
        %v6254 = vadd.f32 %v6189, %v6222
        %v6255 = vadd.f32 %v6190, %v6223
        %v6256 = vadd.f32 %v6191, %v6224
        %v6257 = vadd.f32 %v6192, %v6225
        %v6258 = vadd.f32 %v6193, %v6226
        %v6259 = vadd.f32 %v6194, %v6227
        %v6260 = vadd.f32 %v6195, %v6228
        %v6261 = vperm.slane %v2795, 3
        %v6262 = vmul.f32 %v6103, %v6261
        %v6263 = vmul.f32 %v6069, %v6261
        %v6264 = vmul.f32 %v6104, %v6261
        %v6265 = vmul.f32 %v6070, %v6261
        %v6266 = vmul.f32 %v6105, %v6261
        %v6267 = vmul.f32 %v6071, %v6261
        %v6268 = vmul.f32 %v6106, %v6261
        %v6269 = vmul.f32 %v6072, %v6261
        %v6270 = vmul.f32 %v6107, %v6261
        %v6271 = vmul.f32 %v6073, %v6261
        %v6272 = vmul.f32 %v6108, %v6261
        %v6273 = vmul.f32 %v6074, %v6261
        %v6274 = vmul.f32 %v6109, %v6261
        %v6275 = vmul.f32 %v6075, %v6261
        %v6276 = vmul.f32 %v6110, %v6261
        %v6277 = vmul.f32 %v6076, %v6261
        %v6278 = vmul.f32 %v6111, %v6261
        %v6279 = vmul.f32 %v6077, %v6261
        %v6280 = vmul.f32 %v6112, %v6261
        %v6281 = vmul.f32 %v6078, %v6261
        %v6282 = vmul.f32 %v6113, %v6261
        %v6283 = vmul.f32 %v6079, %v6261
        %v6284 = vmul.f32 %v6114, %v6261
        %v6285 = vmul.f32 %v6080, %v6261
        %v6286 = vmul.f32 %v6115, %v6261
        %v6287 = vmul.f32 %v6081, %v6261
        %v6288 = vmul.f32 %v6116, %v6261
        %v6289 = vmul.f32 %v6082, %v6261
        %v6290 = vmul.f32 %v6117, %v6261
        %v6291 = vmul.f32 %v6083, %v6261
        %v6292 = vmul.f32 %v6118, %v6261
        %v6293 = vmul.f32 %v6084, %v6261
        %v6294 = vadd.f32 %v6229, %v6262
        %v6295 = vadd.f32 %v6230, %v6263
        %v6296 = vadd.f32 %v6231, %v6264
        %v6297 = vadd.f32 %v6232, %v6265
        %v6298 = vadd.f32 %v6233, %v6266
        %v6299 = vadd.f32 %v6234, %v6267
        %v6300 = vadd.f32 %v6235, %v6268
        %v6301 = vadd.f32 %v6236, %v6269
        %v6302 = vadd.f32 %v6237, %v6270
        %v6303 = vadd.f32 %v6238, %v6271
        %v6304 = vadd.f32 %v6239, %v6272
        %v6305 = vadd.f32 %v6240, %v6273
        %v6306 = vadd.f32 %v6241, %v6274
        %v6307 = vadd.f32 %v6242, %v6275
        %v6308 = vadd.f32 %v6243, %v6276
        %v6309 = vadd.f32 %v6244, %v6277
        %v6310 = vadd.f32 %v6245, %v6278
        %v6311 = vadd.f32 %v6246, %v6279
        %v6312 = vadd.f32 %v6247, %v6280
        %v6313 = vadd.f32 %v6248, %v6281
        %v6314 = vadd.f32 %v6249, %v6282
        %v6315 = vadd.f32 %v6250, %v6283
        %v6316 = vadd.f32 %v6251, %v6284
        %v6317 = vadd.f32 %v6252, %v6285
        %v6318 = vadd.f32 %v6253, %v6286
        %v6319 = vadd.f32 %v6254, %v6287
        %v6320 = vadd.f32 %v6255, %v6288
        %v6321 = vadd.f32 %v6256, %v6289
        %v6322 = vadd.f32 %v6257, %v6290
        %v6323 = vadd.f32 %v6258, %v6291
        %v6324 = vadd.f32 %v6259, %v6292
        %v6325 = vadd.f32 %v6260, %v6293
        %v6326 = vperm.slane %v2796, 2
        %v6327 = vmul.f32 %v6106, %v6326
        %v6328 = vmul.f32 %v6072, %v6326
        %v6329 = vmul.f32 %v6107, %v6326
        %v6330 = vmul.f32 %v6073, %v6326
        %v6331 = vmul.f32 %v6108, %v6326
        %v6332 = vmul.f32 %v6074, %v6326
        %v6333 = vmul.f32 %v6109, %v6326
        %v6334 = vmul.f32 %v6075, %v6326
        %v6335 = vmul.f32 %v6110, %v6326
        %v6336 = vmul.f32 %v6076, %v6326
        %v6337 = vmul.f32 %v6111, %v6326
        %v6338 = vmul.f32 %v6077, %v6326
        %v6339 = vmul.f32 %v6112, %v6326
        %v6340 = vmul.f32 %v6078, %v6326
        %v6341 = vmul.f32 %v6113, %v6326
        %v6342 = vmul.f32 %v6079, %v6326
        %v6343 = vmul.f32 %v6114, %v6326
        %v6344 = vmul.f32 %v6080, %v6326
        %v6345 = vmul.f32 %v6115, %v6326
        %v6346 = vmul.f32 %v6081, %v6326
        %v6347 = vmul.f32 %v6116, %v6326
        %v6348 = vmul.f32 %v6082, %v6326
        %v6349 = vmul.f32 %v6117, %v6326
        %v6350 = vmul.f32 %v6083, %v6326
        %v6351 = vmul.f32 %v6118, %v6326
        %v6352 = vmul.f32 %v6084, %v6326
        %v6353 = vmul.f32 %v6119, %v6326
        %v6354 = vmul.f32 %v6085, %v6326
        %v6355 = vmul.f32 %v6120, %v6326
        %v6356 = vmul.f32 %v6086, %v6326
        %v6357 = vmul.f32 %v6121, %v6326
        %v6358 = vmul.f32 %v6087, %v6326
        %v6359 = vadd.f32 %v6294, %v6327
        %v6360 = vadd.f32 %v6295, %v6328
        %v6361 = vadd.f32 %v6296, %v6329
        %v6362 = vadd.f32 %v6297, %v6330
        %v6363 = vadd.f32 %v6298, %v6331
        %v6364 = vadd.f32 %v6299, %v6332
        %v6365 = vadd.f32 %v6300, %v6333
        %v6366 = vadd.f32 %v6301, %v6334
        %v6367 = vadd.f32 %v6302, %v6335
        %v6368 = vadd.f32 %v6303, %v6336
        %v6369 = vadd.f32 %v6304, %v6337
        %v6370 = vadd.f32 %v6305, %v6338
        %v6371 = vadd.f32 %v6306, %v6339
        %v6372 = vadd.f32 %v6307, %v6340
        %v6373 = vadd.f32 %v6308, %v6341
        %v6374 = vadd.f32 %v6309, %v6342
        %v6375 = vadd.f32 %v6310, %v6343
        %v6376 = vadd.f32 %v6311, %v6344
        %v6377 = vadd.f32 %v6312, %v6345
        %v6378 = vadd.f32 %v6313, %v6346
        %v6379 = vadd.f32 %v6314, %v6347
        %v6380 = vadd.f32 %v6315, %v6348
        %v6381 = vadd.f32 %v6316, %v6349
        %v6382 = vadd.f32 %v6317, %v6350
        %v6383 = vadd.f32 %v6318, %v6351
        %v6384 = vadd.f32 %v6319, %v6352
        %v6385 = vadd.f32 %v6320, %v6353
        %v6386 = vadd.f32 %v6321, %v6354
        %v6387 = vadd.f32 %v6322, %v6355
        %v6388 = vadd.f32 %v6323, %v6356
        %v6389 = vadd.f32 %v6324, %v6357
        %v6390 = vadd.f32 %v6325, %v6358
        %v6391 = vperm.slane %v2797, 1
        %v6392 = vmul.f32 %v6109, %v6391
        %v6393 = vmul.f32 %v6075, %v6391
        %v6394 = vmul.f32 %v6110, %v6391
        %v6395 = vmul.f32 %v6076, %v6391
        %v6396 = vmul.f32 %v6111, %v6391
        %v6397 = vmul.f32 %v6077, %v6391
        %v6398 = vmul.f32 %v6112, %v6391
        %v6399 = vmul.f32 %v6078, %v6391
        %v6400 = vmul.f32 %v6113, %v6391
        %v6401 = vmul.f32 %v6079, %v6391
        %v6402 = vmul.f32 %v6114, %v6391
        %v6403 = vmul.f32 %v6080, %v6391
        %v6404 = vmul.f32 %v6115, %v6391
        %v6405 = vmul.f32 %v6081, %v6391
        %v6406 = vmul.f32 %v6116, %v6391
        %v6407 = vmul.f32 %v6082, %v6391
        %v6408 = vmul.f32 %v6117, %v6391
        %v6409 = vmul.f32 %v6083, %v6391
        %v6410 = vmul.f32 %v6118, %v6391
        %v6411 = vmul.f32 %v6084, %v6391
        %v6412 = vmul.f32 %v6119, %v6391
        %v6413 = vmul.f32 %v6085, %v6391
        %v6414 = vmul.f32 %v6120, %v6391
        %v6415 = vmul.f32 %v6086, %v6391
        %v6416 = vmul.f32 %v6121, %v6391
        %v6417 = vmul.f32 %v6087, %v6391
        %v6418 = vmul.f32 %v6122, %v6391
        %v6419 = vmul.f32 %v6088, %v6391
        %v6420 = vmul.f32 %v6123, %v6391
        %v6421 = vmul.f32 %v6089, %v6391
        %v6422 = vmul.f32 %v6124, %v6391
        %v6423 = vmul.f32 %v6090, %v6391
        %v6424 = vadd.f32 %v6359, %v6392
        %v6425 = vadd.f32 %v6360, %v6393
        %v6426 = vadd.f32 %v6361, %v6394
        %v6427 = vadd.f32 %v6362, %v6395
        %v6428 = vadd.f32 %v6363, %v6396
        %v6429 = vadd.f32 %v6364, %v6397
        %v6430 = vadd.f32 %v6365, %v6398
        %v6431 = vadd.f32 %v6366, %v6399
        %v6432 = vadd.f32 %v6367, %v6400
        %v6433 = vadd.f32 %v6368, %v6401
        %v6434 = vadd.f32 %v6369, %v6402
        %v6435 = vadd.f32 %v6370, %v6403
        %v6436 = vadd.f32 %v6371, %v6404
        %v6437 = vadd.f32 %v6372, %v6405
        %v6438 = vadd.f32 %v6373, %v6406
        %v6439 = vadd.f32 %v6374, %v6407
        %v6440 = vadd.f32 %v6375, %v6408
        %v6441 = vadd.f32 %v6376, %v6409
        %v6442 = vadd.f32 %v6377, %v6410
        %v6443 = vadd.f32 %v6378, %v6411
        %v6444 = vadd.f32 %v6379, %v6412
        %v6445 = vadd.f32 %v6380, %v6413
        %v6446 = vadd.f32 %v6381, %v6414
        %v6447 = vadd.f32 %v6382, %v6415
        %v6448 = vadd.f32 %v6383, %v6416
        %v6449 = vadd.f32 %v6384, %v6417
        %v6450 = vadd.f32 %v6385, %v6418
        %v6451 = vadd.f32 %v6386, %v6419
        %v6452 = vadd.f32 %v6387, %v6420
        %v6453 = vadd.f32 %v6388, %v6421
        %v6454 = vadd.f32 %v6389, %v6422
        %v6455 = vadd.f32 %v6390, %v6423
        %v6456 = vperm.slane %v2798, 0
        %v6457 = vmul.f32 %v6112, %v6456
        %v6458 = vmul.f32 %v6078, %v6456
        %v6459 = vmul.f32 %v6113, %v6456
        %v6460 = vmul.f32 %v6079, %v6456
        %v6461 = vmul.f32 %v6114, %v6456
        %v6462 = vmul.f32 %v6080, %v6456
        %v6463 = vmul.f32 %v6115, %v6456
        %v6464 = vmul.f32 %v6081, %v6456
        %v6465 = vmul.f32 %v6116, %v6456
        %v6466 = vmul.f32 %v6082, %v6456
        %v6467 = vmul.f32 %v6117, %v6456
        %v6468 = vmul.f32 %v6083, %v6456
        %v6469 = vmul.f32 %v6118, %v6456
        %v6470 = vmul.f32 %v6084, %v6456
        %v6471 = vmul.f32 %v6119, %v6456
        %v6472 = vmul.f32 %v6085, %v6456
        %v6473 = vmul.f32 %v6120, %v6456
        %v6474 = vmul.f32 %v6086, %v6456
        %v6475 = vmul.f32 %v6121, %v6456
        %v6476 = vmul.f32 %v6087, %v6456
        %v6477 = vmul.f32 %v6122, %v6456
        %v6478 = vmul.f32 %v6088, %v6456
        %v6479 = vmul.f32 %v6123, %v6456
        %v6480 = vmul.f32 %v6089, %v6456
        %v6481 = vmul.f32 %v6124, %v6456
        %v6482 = vmul.f32 %v6090, %v6456
        %v6483 = vmul.f32 %v6125, %v6456
        %v6484 = vmul.f32 %v6091, %v6456
        %v6485 = vmul.f32 %v6126, %v6456
        %v6486 = vmul.f32 %v6092, %v6456
        %v6487 = vmul.f32 %v6127, %v6456
        %v6488 = vmul.f32 %v6093, %v6456
        %v6489 = vadd.f32 %v6424, %v6457
        %v6490 = vadd.f32 %v6425, %v6458
        %v6491 = vadd.f32 %v6426, %v6459
        %v6492 = vadd.f32 %v6427, %v6460
        %v6493 = vadd.f32 %v6428, %v6461
        %v6494 = vadd.f32 %v6429, %v6462
        %v6495 = vadd.f32 %v6430, %v6463
        %v6496 = vadd.f32 %v6431, %v6464
        %v6497 = vadd.f32 %v6432, %v6465
        %v6498 = vadd.f32 %v6433, %v6466
        %v6499 = vadd.f32 %v6434, %v6467
        %v6500 = vadd.f32 %v6435, %v6468
        %v6501 = vadd.f32 %v6436, %v6469
        %v6502 = vadd.f32 %v6437, %v6470
        %v6503 = vadd.f32 %v6438, %v6471
        %v6504 = vadd.f32 %v6439, %v6472
        %v6505 = vadd.f32 %v6440, %v6473
        %v6506 = vadd.f32 %v6441, %v6474
        %v6507 = vadd.f32 %v6442, %v6475
        %v6508 = vadd.f32 %v6443, %v6476
        %v6509 = vadd.f32 %v6444, %v6477
        %v6510 = vadd.f32 %v6445, %v6478
        %v6511 = vadd.f32 %v6446, %v6479
        %v6512 = vadd.f32 %v6447, %v6480
        %v6513 = vadd.f32 %v6448, %v6481
        %v6514 = vadd.f32 %v6449, %v6482
        %v6515 = vadd.f32 %v6450, %v6483
        %v6516 = vadd.f32 %v6451, %v6484
        %v6517 = vadd.f32 %v6452, %v6485
        %v6518 = vadd.f32 %v6453, %v6486
        %v6519 = vadd.f32 %v6454, %v6487
        %v6520 = vadd.f32 %v6455, %v6488
        %v6521 = vperm.slane %v2798, 7
        %v6522 = vmul.f32 %v6115, %v6521
        %v6523 = vmul.f32 %v6081, %v6521
        %v6524 = vmul.f32 %v6116, %v6521
        %v6525 = vmul.f32 %v6082, %v6521
        %v6526 = vmul.f32 %v6117, %v6521
        %v6527 = vmul.f32 %v6083, %v6521
        %v6528 = vmul.f32 %v6118, %v6521
        %v6529 = vmul.f32 %v6084, %v6521
        %v6530 = vmul.f32 %v6119, %v6521
        %v6531 = vmul.f32 %v6085, %v6521
        %v6532 = vmul.f32 %v6120, %v6521
        %v6533 = vmul.f32 %v6086, %v6521
        %v6534 = vmul.f32 %v6121, %v6521
        %v6535 = vmul.f32 %v6087, %v6521
        %v6536 = vmul.f32 %v6122, %v6521
        %v6537 = vmul.f32 %v6088, %v6521
        %v6538 = vmul.f32 %v6123, %v6521
        %v6539 = vmul.f32 %v6089, %v6521
        %v6540 = vmul.f32 %v6124, %v6521
        %v6541 = vmul.f32 %v6090, %v6521
        %v6542 = vmul.f32 %v6125, %v6521
        %v6543 = vmul.f32 %v6091, %v6521
        %v6544 = vmul.f32 %v6126, %v6521
        %v6545 = vmul.f32 %v6092, %v6521
        %v6546 = vmul.f32 %v6127, %v6521
        %v6547 = vmul.f32 %v6093, %v6521
        %v6548 = vmul.f32 %v6128, %v6521
        %v6549 = vmul.f32 %v6094, %v6521
        %v6550 = vmul.f32 %v6129, %v6521
        %v6551 = vmul.f32 %v6095, %v6521
        %v6552 = vmul.f32 %v6130, %v6521
        %v6553 = vmul.f32 %v6096, %v6521
        %v6554 = vadd.f32 %v6489, %v6522
        %v6555 = vadd.f32 %v6490, %v6523
        %v6556 = vadd.f32 %v6491, %v6524
        %v6557 = vadd.f32 %v6492, %v6525
        %v6558 = vadd.f32 %v6493, %v6526
        %v6559 = vadd.f32 %v6494, %v6527
        %v6560 = vadd.f32 %v6495, %v6528
        %v6561 = vadd.f32 %v6496, %v6529
        %v6562 = vadd.f32 %v6497, %v6530
        %v6563 = vadd.f32 %v6498, %v6531
        %v6564 = vadd.f32 %v6499, %v6532
        %v6565 = vadd.f32 %v6500, %v6533
        %v6566 = vadd.f32 %v6501, %v6534
        %v6567 = vadd.f32 %v6502, %v6535
        %v6568 = vadd.f32 %v6503, %v6536
        %v6569 = vadd.f32 %v6504, %v6537
        %v6570 = vadd.f32 %v6505, %v6538
        %v6571 = vadd.f32 %v6506, %v6539
        %v6572 = vadd.f32 %v6507, %v6540
        %v6573 = vadd.f32 %v6508, %v6541
        %v6574 = vadd.f32 %v6509, %v6542
        %v6575 = vadd.f32 %v6510, %v6543
        %v6576 = vadd.f32 %v6511, %v6544
        %v6577 = vadd.f32 %v6512, %v6545
        %v6578 = vadd.f32 %v6513, %v6546
        %v6579 = vadd.f32 %v6514, %v6547
        %v6580 = vadd.f32 %v6515, %v6548
        %v6581 = vadd.f32 %v6516, %v6549
        %v6582 = vadd.f32 %v6517, %v6550
        %v6583 = vadd.f32 %v6518, %v6551
        %v6584 = vadd.f32 %v6519, %v6552
        %v6585 = vadd.f32 %v6520, %v6553
        %v6586 = vrot.slane %v2803, 1
        %v6587 = vrot.slane %v2809, 1
        %v6588 = vrot.slane %v2815, 1
        %v6589 = vrot.slane %v2821, 1
        %v6590 = vrot.slane %v2827, 1
        %v6591 = vrot.slane %v2833, 1
        %v6592 = vrot.slane %v2839, 1
        %v6593 = vrot.slane %v2845, 1
        %v6594 = vrot.slane %v2851, 1
        %v6595 = vrot.slane %v2857, 1
        %v6596 = vrot.slane %v2863, 1
        %v6597 = vrot.slane %v2869, 1
        %v6598 = vrot.slane %v2875, 1
        %v6599 = vrot.slane %v2881, 1
        %v6600 = vrot.slane %v2887, 1
        %v6601 = vrot.slane %v2893, 1
        %v6602 = vrot.slane %v2899, 1
        %v6603 = vrot.slane %v2905, 1
        %v6604 = vrot.slane %v2911, 1
        %v6605 = vrot.slane %v2917, 1
        %v6606 = vrot.slane %v2923, 1
        %v6607 = vrot.slane %v2929, 1
        %v6608 = vrot.slane %v2935, 1
        %v6609 = vrot.slane %v2941, 1
        %v6610 = vrot.slane %v2947, 1
        %v6611 = vrot.slane %v2953, 1
        %v6612 = vrot.slane %v2959, 1
        %v6613 = vrot.slane %v2965, 1
        %v6614 = vrot.slane %v2971, 1
        %v6615 = vrot.slane %v2977, 1
        %v6616 = vrot.slane %v2983, 1
        %v6617 = vrot.slane %v2989, 1
        %v6618 = vrot.slane %v2995, 1
        %v6619 = vrot.slane %v3001, 1
        %v6620 = vrot.slane %v2804, 1
        %v6621 = vrot.slane %v2810, 1
        %v6622 = vrot.slane %v2816, 1
        %v6623 = vrot.slane %v2822, 1
        %v6624 = vrot.slane %v2828, 1
        %v6625 = vrot.slane %v2834, 1
        %v6626 = vrot.slane %v2840, 1
        %v6627 = vrot.slane %v2846, 1
        %v6628 = vrot.slane %v2852, 1
        %v6629 = vrot.slane %v2858, 1
        %v6630 = vrot.slane %v2864, 1
        %v6631 = vrot.slane %v2870, 1
        %v6632 = vrot.slane %v2876, 1
        %v6633 = vrot.slane %v2882, 1
        %v6634 = vrot.slane %v2888, 1
        %v6635 = vrot.slane %v2894, 1
        %v6636 = vrot.slane %v2900, 1
        %v6637 = vrot.slane %v2906, 1
        %v6638 = vrot.slane %v2912, 1
        %v6639 = vrot.slane %v2918, 1
        %v6640 = vrot.slane %v2924, 1
        %v6641 = vrot.slane %v2930, 1
        %v6642 = vrot.slane %v2936, 1
        %v6643 = vrot.slane %v2942, 1
        %v6644 = vrot.slane %v2948, 1
        %v6645 = vrot.slane %v2954, 1
        %v6646 = vrot.slane %v2960, 1
        %v6647 = vrot.slane %v2966, 1
        %v6648 = vrot.slane %v2972, 1
        %v6649 = vrot.slane %v2978, 1
        %v6650 = vrot.slane %v2984, 1
        %v6651 = vrot.slane %v2990, 1
        %v6652 = vrot.slane %v2996, 1
        %v6653 = vrot.slane %v3002, 1
        %v6654 = vrot.slane %v2805, 1
        %v6655 = vrot.slane %v2811, 1
        %v6656 = vrot.slane %v2817, 1
        %v6657 = vrot.slane %v2823, 1
        %v6658 = vrot.slane %v2829, 1
        %v6659 = vrot.slane %v2835, 1
        %v6660 = vrot.slane %v2841, 1
        %v6661 = vrot.slane %v2847, 1
        %v6662 = vrot.slane %v2853, 1
        %v6663 = vrot.slane %v2859, 1
        %v6664 = vrot.slane %v2865, 1
        %v6665 = vrot.slane %v2871, 1
        %v6666 = vrot.slane %v2877, 1
        %v6667 = vrot.slane %v2883, 1
        %v6668 = vrot.slane %v2889, 1
        %v6669 = vrot.slane %v2895, 1
        %v6670 = vrot.slane %v2901, 1
        %v6671 = vrot.slane %v2907, 1
        %v6672 = vrot.slane %v2913, 1
        %v6673 = vrot.slane %v2919, 1
        %v6674 = vrot.slane %v2925, 1
        %v6675 = vrot.slane %v2931, 1
        %v6676 = vrot.slane %v2937, 1
        %v6677 = vrot.slane %v2943, 1
        %v6678 = vrot.slane %v2949, 1
        %v6679 = vrot.slane %v2955, 1
        %v6680 = vrot.slane %v2961, 1
        %v6681 = vrot.slane %v2967, 1
        %v6682 = vrot.slane %v2973, 1
        %v6683 = vrot.slane %v2979, 1
        %v6684 = vrot.slane %v2985, 1
        %v6685 = vrot.slane %v2991, 1
        %v6686 = vrot.slane %v2997, 1
        %v6687 = vrot.slane %v3003, 1
        %v6688 = vsel %vm1933, %v6620, %v6654
        %v6689 = vsel %vm1933, %v6621, %v6655
        %v6690 = vsel %vm1933, %v6622, %v6656
        %v6691 = vsel %vm1933, %v6623, %v6657
        %v6692 = vsel %vm1933, %v6624, %v6658
        %v6693 = vsel %vm1933, %v6625, %v6659
        %v6694 = vsel %vm1933, %v6626, %v6660
        %v6695 = vsel %vm1933, %v6627, %v6661
        %v6696 = vsel %vm1933, %v6628, %v6662
        %v6697 = vsel %vm1933, %v6629, %v6663
        %v6698 = vsel %vm1933, %v6630, %v6664
        %v6699 = vsel %vm1933, %v6631, %v6665
        %v6700 = vsel %vm1933, %v6632, %v6666
        %v6701 = vsel %vm1933, %v6633, %v6667
        %v6702 = vsel %vm1933, %v6634, %v6668
        %v6703 = vsel %vm1933, %v6635, %v6669
        %v6704 = vsel %vm1933, %v6636, %v6670
        %v6705 = vsel %vm1933, %v6637, %v6671
        %v6706 = vsel %vm1933, %v6638, %v6672
        %v6707 = vsel %vm1933, %v6639, %v6673
        %v6708 = vsel %vm1933, %v6640, %v6674
        %v6709 = vsel %vm1933, %v6641, %v6675
        %v6710 = vsel %vm1933, %v6642, %v6676
        %v6711 = vsel %vm1933, %v6643, %v6677
        %v6712 = vsel %vm1933, %v6644, %v6678
        %v6713 = vsel %vm1933, %v6645, %v6679
        %v6714 = vsel %vm1933, %v6646, %v6680
        %v6715 = vsel %vm1933, %v6647, %v6681
        %v6716 = vsel %vm1933, %v6648, %v6682
        %v6717 = vsel %vm1933, %v6649, %v6683
        %v6718 = vsel %vm1933, %v6650, %v6684
        %v6719 = vsel %vm1933, %v6651, %v6685
        %v6720 = vsel %vm1933, %v6652, %v6686
        %v6721 = vsel %vm1933, %v6653, %v6687
        %v6722 = vsel %vm1933, %v6586, %v6620
        %v6723 = vsel %vm1933, %v6587, %v6621
        %v6724 = vsel %vm1933, %v6588, %v6622
        %v6725 = vsel %vm1933, %v6589, %v6623
        %v6726 = vsel %vm1933, %v6590, %v6624
        %v6727 = vsel %vm1933, %v6591, %v6625
        %v6728 = vsel %vm1933, %v6592, %v6626
        %v6729 = vsel %vm1933, %v6593, %v6627
        %v6730 = vsel %vm1933, %v6594, %v6628
        %v6731 = vsel %vm1933, %v6595, %v6629
        %v6732 = vsel %vm1933, %v6596, %v6630
        %v6733 = vsel %vm1933, %v6597, %v6631
        %v6734 = vsel %vm1933, %v6598, %v6632
        %v6735 = vsel %vm1933, %v6599, %v6633
        %v6736 = vsel %vm1933, %v6600, %v6634
        %v6737 = vsel %vm1933, %v6601, %v6635
        %v6738 = vsel %vm1933, %v6602, %v6636
        %v6739 = vsel %vm1933, %v6603, %v6637
        %v6740 = vsel %vm1933, %v6604, %v6638
        %v6741 = vsel %vm1933, %v6605, %v6639
        %v6742 = vsel %vm1933, %v6606, %v6640
        %v6743 = vsel %vm1933, %v6607, %v6641
        %v6744 = vsel %vm1933, %v6608, %v6642
        %v6745 = vsel %vm1933, %v6609, %v6643
        %v6746 = vsel %vm1933, %v6610, %v6644
        %v6747 = vsel %vm1933, %v6611, %v6645
        %v6748 = vsel %vm1933, %v6612, %v6646
        %v6749 = vsel %vm1933, %v6613, %v6647
        %v6750 = vsel %vm1933, %v6614, %v6648
        %v6751 = vsel %vm1933, %v6615, %v6649
        %v6752 = vsel %vm1933, %v6616, %v6650
        %v6753 = vsel %vm1933, %v6617, %v6651
        %v6754 = vsel %vm1933, %v6618, %v6652
        %v6755 = vsel %vm1933, %v6619, %v6653
        %v6756 = vperm.slane %v2793, 6
        %v6757 = vmul.f32 %v6722, %v6756
        %v6758 = vmul.f32 %v6688, %v6756
        %v6759 = vmul.f32 %v6723, %v6756
        %v6760 = vmul.f32 %v6689, %v6756
        %v6761 = vmul.f32 %v6724, %v6756
        %v6762 = vmul.f32 %v6690, %v6756
        %v6763 = vmul.f32 %v6725, %v6756
        %v6764 = vmul.f32 %v6691, %v6756
        %v6765 = vmul.f32 %v6726, %v6756
        %v6766 = vmul.f32 %v6692, %v6756
        %v6767 = vmul.f32 %v6727, %v6756
        %v6768 = vmul.f32 %v6693, %v6756
        %v6769 = vmul.f32 %v6728, %v6756
        %v6770 = vmul.f32 %v6694, %v6756
        %v6771 = vmul.f32 %v6729, %v6756
        %v6772 = vmul.f32 %v6695, %v6756
        %v6773 = vmul.f32 %v6730, %v6756
        %v6774 = vmul.f32 %v6696, %v6756
        %v6775 = vmul.f32 %v6731, %v6756
        %v6776 = vmul.f32 %v6697, %v6756
        %v6777 = vmul.f32 %v6732, %v6756
        %v6778 = vmul.f32 %v6698, %v6756
        %v6779 = vmul.f32 %v6733, %v6756
        %v6780 = vmul.f32 %v6699, %v6756
        %v6781 = vmul.f32 %v6734, %v6756
        %v6782 = vmul.f32 %v6700, %v6756
        %v6783 = vmul.f32 %v6735, %v6756
        %v6784 = vmul.f32 %v6701, %v6756
        %v6785 = vmul.f32 %v6736, %v6756
        %v6786 = vmul.f32 %v6702, %v6756
        %v6787 = vmul.f32 %v6737, %v6756
        %v6788 = vmul.f32 %v6703, %v6756
        %v6789 = vadd.f32 %v6554, %v6757
        %v6790 = vadd.f32 %v6555, %v6758
        %v6791 = vadd.f32 %v6556, %v6759
        %v6792 = vadd.f32 %v6557, %v6760
        %v6793 = vadd.f32 %v6558, %v6761
        %v6794 = vadd.f32 %v6559, %v6762
        %v6795 = vadd.f32 %v6560, %v6763
        %v6796 = vadd.f32 %v6561, %v6764
        %v6797 = vadd.f32 %v6562, %v6765
        %v6798 = vadd.f32 %v6563, %v6766
        %v6799 = vadd.f32 %v6564, %v6767
        %v6800 = vadd.f32 %v6565, %v6768
        %v6801 = vadd.f32 %v6566, %v6769
        %v6802 = vadd.f32 %v6567, %v6770
        %v6803 = vadd.f32 %v6568, %v6771
        %v6804 = vadd.f32 %v6569, %v6772
        %v6805 = vadd.f32 %v6570, %v6773
        %v6806 = vadd.f32 %v6571, %v6774
        %v6807 = vadd.f32 %v6572, %v6775
        %v6808 = vadd.f32 %v6573, %v6776
        %v6809 = vadd.f32 %v6574, %v6777
        %v6810 = vadd.f32 %v6575, %v6778
        %v6811 = vadd.f32 %v6576, %v6779
        %v6812 = vadd.f32 %v6577, %v6780
        %v6813 = vadd.f32 %v6578, %v6781
        %v6814 = vadd.f32 %v6579, %v6782
        %v6815 = vadd.f32 %v6580, %v6783
        %v6816 = vadd.f32 %v6581, %v6784
        %v6817 = vadd.f32 %v6582, %v6785
        %v6818 = vadd.f32 %v6583, %v6786
        %v6819 = vadd.f32 %v6584, %v6787
        %v6820 = vadd.f32 %v6585, %v6788
        %v6821 = vperm.slane %v2794, 5
        %v6822 = vmul.f32 %v6725, %v6821
        %v6823 = vmul.f32 %v6691, %v6821
        %v6824 = vmul.f32 %v6726, %v6821
        %v6825 = vmul.f32 %v6692, %v6821
        %v6826 = vmul.f32 %v6727, %v6821
        %v6827 = vmul.f32 %v6693, %v6821
        %v6828 = vmul.f32 %v6728, %v6821
        %v6829 = vmul.f32 %v6694, %v6821
        %v6830 = vmul.f32 %v6729, %v6821
        %v6831 = vmul.f32 %v6695, %v6821
        %v6832 = vmul.f32 %v6730, %v6821
        %v6833 = vmul.f32 %v6696, %v6821
        %v6834 = vmul.f32 %v6731, %v6821
        %v6835 = vmul.f32 %v6697, %v6821
        %v6836 = vmul.f32 %v6732, %v6821
        %v6837 = vmul.f32 %v6698, %v6821
        %v6838 = vmul.f32 %v6733, %v6821
        %v6839 = vmul.f32 %v6699, %v6821
        %v6840 = vmul.f32 %v6734, %v6821
        %v6841 = vmul.f32 %v6700, %v6821
        %v6842 = vmul.f32 %v6735, %v6821
        %v6843 = vmul.f32 %v6701, %v6821
        %v6844 = vmul.f32 %v6736, %v6821
        %v6845 = vmul.f32 %v6702, %v6821
        %v6846 = vmul.f32 %v6737, %v6821
        %v6847 = vmul.f32 %v6703, %v6821
        %v6848 = vmul.f32 %v6738, %v6821
        %v6849 = vmul.f32 %v6704, %v6821
        %v6850 = vmul.f32 %v6739, %v6821
        %v6851 = vmul.f32 %v6705, %v6821
        %v6852 = vmul.f32 %v6740, %v6821
        %v6853 = vmul.f32 %v6706, %v6821
        %v6854 = vadd.f32 %v6789, %v6822
        %v6855 = vadd.f32 %v6790, %v6823
        %v6856 = vadd.f32 %v6791, %v6824
        %v6857 = vadd.f32 %v6792, %v6825
        %v6858 = vadd.f32 %v6793, %v6826
        %v6859 = vadd.f32 %v6794, %v6827
        %v6860 = vadd.f32 %v6795, %v6828
        %v6861 = vadd.f32 %v6796, %v6829
        %v6862 = vadd.f32 %v6797, %v6830
        %v6863 = vadd.f32 %v6798, %v6831
        %v6864 = vadd.f32 %v6799, %v6832
        %v6865 = vadd.f32 %v6800, %v6833
        %v6866 = vadd.f32 %v6801, %v6834
        %v6867 = vadd.f32 %v6802, %v6835
        %v6868 = vadd.f32 %v6803, %v6836
        %v6869 = vadd.f32 %v6804, %v6837
        %v6870 = vadd.f32 %v6805, %v6838
        %v6871 = vadd.f32 %v6806, %v6839
        %v6872 = vadd.f32 %v6807, %v6840
        %v6873 = vadd.f32 %v6808, %v6841
        %v6874 = vadd.f32 %v6809, %v6842
        %v6875 = vadd.f32 %v6810, %v6843
        %v6876 = vadd.f32 %v6811, %v6844
        %v6877 = vadd.f32 %v6812, %v6845
        %v6878 = vadd.f32 %v6813, %v6846
        %v6879 = vadd.f32 %v6814, %v6847
        %v6880 = vadd.f32 %v6815, %v6848
        %v6881 = vadd.f32 %v6816, %v6849
        %v6882 = vadd.f32 %v6817, %v6850
        %v6883 = vadd.f32 %v6818, %v6851
        %v6884 = vadd.f32 %v6819, %v6852
        %v6885 = vadd.f32 %v6820, %v6853
        %v6886 = vperm.slane %v2795, 4
        %v6887 = vmul.f32 %v6728, %v6886
        %v6888 = vmul.f32 %v6694, %v6886
        %v6889 = vmul.f32 %v6729, %v6886
        %v6890 = vmul.f32 %v6695, %v6886
        %v6891 = vmul.f32 %v6730, %v6886
        %v6892 = vmul.f32 %v6696, %v6886
        %v6893 = vmul.f32 %v6731, %v6886
        %v6894 = vmul.f32 %v6697, %v6886
        %v6895 = vmul.f32 %v6732, %v6886
        %v6896 = vmul.f32 %v6698, %v6886
        %v6897 = vmul.f32 %v6733, %v6886
        %v6898 = vmul.f32 %v6699, %v6886
        %v6899 = vmul.f32 %v6734, %v6886
        %v6900 = vmul.f32 %v6700, %v6886
        %v6901 = vmul.f32 %v6735, %v6886
        %v6902 = vmul.f32 %v6701, %v6886
        %v6903 = vmul.f32 %v6736, %v6886
        %v6904 = vmul.f32 %v6702, %v6886
        %v6905 = vmul.f32 %v6737, %v6886
        %v6906 = vmul.f32 %v6703, %v6886
        %v6907 = vmul.f32 %v6738, %v6886
        %v6908 = vmul.f32 %v6704, %v6886
        %v6909 = vmul.f32 %v6739, %v6886
        %v6910 = vmul.f32 %v6705, %v6886
        %v6911 = vmul.f32 %v6740, %v6886
        %v6912 = vmul.f32 %v6706, %v6886
        %v6913 = vmul.f32 %v6741, %v6886
        %v6914 = vmul.f32 %v6707, %v6886
        %v6915 = vmul.f32 %v6742, %v6886
        %v6916 = vmul.f32 %v6708, %v6886
        %v6917 = vmul.f32 %v6743, %v6886
        %v6918 = vmul.f32 %v6709, %v6886
        %v6919 = vadd.f32 %v6854, %v6887
        %v6920 = vadd.f32 %v6855, %v6888
        %v6921 = vadd.f32 %v6856, %v6889
        %v6922 = vadd.f32 %v6857, %v6890
        %v6923 = vadd.f32 %v6858, %v6891
        %v6924 = vadd.f32 %v6859, %v6892
        %v6925 = vadd.f32 %v6860, %v6893
        %v6926 = vadd.f32 %v6861, %v6894
        %v6927 = vadd.f32 %v6862, %v6895
        %v6928 = vadd.f32 %v6863, %v6896
        %v6929 = vadd.f32 %v6864, %v6897
        %v6930 = vadd.f32 %v6865, %v6898
        %v6931 = vadd.f32 %v6866, %v6899
        %v6932 = vadd.f32 %v6867, %v6900
        %v6933 = vadd.f32 %v6868, %v6901
        %v6934 = vadd.f32 %v6869, %v6902
        %v6935 = vadd.f32 %v6870, %v6903
        %v6936 = vadd.f32 %v6871, %v6904
        %v6937 = vadd.f32 %v6872, %v6905
        %v6938 = vadd.f32 %v6873, %v6906
        %v6939 = vadd.f32 %v6874, %v6907
        %v6940 = vadd.f32 %v6875, %v6908
        %v6941 = vadd.f32 %v6876, %v6909
        %v6942 = vadd.f32 %v6877, %v6910
        %v6943 = vadd.f32 %v6878, %v6911
        %v6944 = vadd.f32 %v6879, %v6912
        %v6945 = vadd.f32 %v6880, %v6913
        %v6946 = vadd.f32 %v6881, %v6914
        %v6947 = vadd.f32 %v6882, %v6915
        %v6948 = vadd.f32 %v6883, %v6916
        %v6949 = vadd.f32 %v6884, %v6917
        %v6950 = vadd.f32 %v6885, %v6918
        %v6951 = vperm.slane %v2796, 3
        %v6952 = vmul.f32 %v6731, %v6951
        %v6953 = vmul.f32 %v6697, %v6951
        %v6954 = vmul.f32 %v6732, %v6951
        %v6955 = vmul.f32 %v6698, %v6951
        %v6956 = vmul.f32 %v6733, %v6951
        %v6957 = vmul.f32 %v6699, %v6951
        %v6958 = vmul.f32 %v6734, %v6951
        %v6959 = vmul.f32 %v6700, %v6951
        %v6960 = vmul.f32 %v6735, %v6951
        %v6961 = vmul.f32 %v6701, %v6951
        %v6962 = vmul.f32 %v6736, %v6951
        %v6963 = vmul.f32 %v6702, %v6951
        %v6964 = vmul.f32 %v6737, %v6951
        %v6965 = vmul.f32 %v6703, %v6951
        %v6966 = vmul.f32 %v6738, %v6951
        %v6967 = vmul.f32 %v6704, %v6951
        %v6968 = vmul.f32 %v6739, %v6951
        %v6969 = vmul.f32 %v6705, %v6951
        %v6970 = vmul.f32 %v6740, %v6951
        %v6971 = vmul.f32 %v6706, %v6951
        %v6972 = vmul.f32 %v6741, %v6951
        %v6973 = vmul.f32 %v6707, %v6951
        %v6974 = vmul.f32 %v6742, %v6951
        %v6975 = vmul.f32 %v6708, %v6951
        %v6976 = vmul.f32 %v6743, %v6951
        %v6977 = vmul.f32 %v6709, %v6951
        %v6978 = vmul.f32 %v6744, %v6951
        %v6979 = vmul.f32 %v6710, %v6951
        %v6980 = vmul.f32 %v6745, %v6951
        %v6981 = vmul.f32 %v6711, %v6951
        %v6982 = vmul.f32 %v6746, %v6951
        %v6983 = vmul.f32 %v6712, %v6951
        %v6984 = vadd.f32 %v6919, %v6952
        %v6985 = vadd.f32 %v6920, %v6953
        %v6986 = vadd.f32 %v6921, %v6954
        %v6987 = vadd.f32 %v6922, %v6955
        %v6988 = vadd.f32 %v6923, %v6956
        %v6989 = vadd.f32 %v6924, %v6957
        %v6990 = vadd.f32 %v6925, %v6958
        %v6991 = vadd.f32 %v6926, %v6959
        %v6992 = vadd.f32 %v6927, %v6960
        %v6993 = vadd.f32 %v6928, %v6961
        %v6994 = vadd.f32 %v6929, %v6962
        %v6995 = vadd.f32 %v6930, %v6963
        %v6996 = vadd.f32 %v6931, %v6964
        %v6997 = vadd.f32 %v6932, %v6965
        %v6998 = vadd.f32 %v6933, %v6966
        %v6999 = vadd.f32 %v6934, %v6967
        %v7000 = vadd.f32 %v6935, %v6968
        %v7001 = vadd.f32 %v6936, %v6969
        %v7002 = vadd.f32 %v6937, %v6970
        %v7003 = vadd.f32 %v6938, %v6971
        %v7004 = vadd.f32 %v6939, %v6972
        %v7005 = vadd.f32 %v6940, %v6973
        %v7006 = vadd.f32 %v6941, %v6974
        %v7007 = vadd.f32 %v6942, %v6975
        %v7008 = vadd.f32 %v6943, %v6976
        %v7009 = vadd.f32 %v6944, %v6977
        %v7010 = vadd.f32 %v6945, %v6978
        %v7011 = vadd.f32 %v6946, %v6979
        %v7012 = vadd.f32 %v6947, %v6980
        %v7013 = vadd.f32 %v6948, %v6981
        %v7014 = vadd.f32 %v6949, %v6982
        %v7015 = vadd.f32 %v6950, %v6983
        %v7016 = vperm.slane %v2797, 2
        %v7017 = vmul.f32 %v6734, %v7016
        %v7018 = vmul.f32 %v6700, %v7016
        %v7019 = vmul.f32 %v6735, %v7016
        %v7020 = vmul.f32 %v6701, %v7016
        %v7021 = vmul.f32 %v6736, %v7016
        %v7022 = vmul.f32 %v6702, %v7016
        %v7023 = vmul.f32 %v6737, %v7016
        %v7024 = vmul.f32 %v6703, %v7016
        %v7025 = vmul.f32 %v6738, %v7016
        %v7026 = vmul.f32 %v6704, %v7016
        %v7027 = vmul.f32 %v6739, %v7016
        %v7028 = vmul.f32 %v6705, %v7016
        %v7029 = vmul.f32 %v6740, %v7016
        %v7030 = vmul.f32 %v6706, %v7016
        %v7031 = vmul.f32 %v6741, %v7016
        %v7032 = vmul.f32 %v6707, %v7016
        %v7033 = vmul.f32 %v6742, %v7016
        %v7034 = vmul.f32 %v6708, %v7016
        %v7035 = vmul.f32 %v6743, %v7016
        %v7036 = vmul.f32 %v6709, %v7016
        %v7037 = vmul.f32 %v6744, %v7016
        %v7038 = vmul.f32 %v6710, %v7016
        %v7039 = vmul.f32 %v6745, %v7016
        %v7040 = vmul.f32 %v6711, %v7016
        %v7041 = vmul.f32 %v6746, %v7016
        %v7042 = vmul.f32 %v6712, %v7016
        %v7043 = vmul.f32 %v6747, %v7016
        %v7044 = vmul.f32 %v6713, %v7016
        %v7045 = vmul.f32 %v6748, %v7016
        %v7046 = vmul.f32 %v6714, %v7016
        %v7047 = vmul.f32 %v6749, %v7016
        %v7048 = vmul.f32 %v6715, %v7016
        %v7049 = vadd.f32 %v6984, %v7017
        %v7050 = vadd.f32 %v6985, %v7018
        %v7051 = vadd.f32 %v6986, %v7019
        %v7052 = vadd.f32 %v6987, %v7020
        %v7053 = vadd.f32 %v6988, %v7021
        %v7054 = vadd.f32 %v6989, %v7022
        %v7055 = vadd.f32 %v6990, %v7023
        %v7056 = vadd.f32 %v6991, %v7024
        %v7057 = vadd.f32 %v6992, %v7025
        %v7058 = vadd.f32 %v6993, %v7026
        %v7059 = vadd.f32 %v6994, %v7027
        %v7060 = vadd.f32 %v6995, %v7028
        %v7061 = vadd.f32 %v6996, %v7029
        %v7062 = vadd.f32 %v6997, %v7030
        %v7063 = vadd.f32 %v6998, %v7031
        %v7064 = vadd.f32 %v6999, %v7032
        %v7065 = vadd.f32 %v7000, %v7033
        %v7066 = vadd.f32 %v7001, %v7034
        %v7067 = vadd.f32 %v7002, %v7035
        %v7068 = vadd.f32 %v7003, %v7036
        %v7069 = vadd.f32 %v7004, %v7037
        %v7070 = vadd.f32 %v7005, %v7038
        %v7071 = vadd.f32 %v7006, %v7039
        %v7072 = vadd.f32 %v7007, %v7040
        %v7073 = vadd.f32 %v7008, %v7041
        %v7074 = vadd.f32 %v7009, %v7042
        %v7075 = vadd.f32 %v7010, %v7043
        %v7076 = vadd.f32 %v7011, %v7044
        %v7077 = vadd.f32 %v7012, %v7045
        %v7078 = vadd.f32 %v7013, %v7046
        %v7079 = vadd.f32 %v7014, %v7047
        %v7080 = vadd.f32 %v7015, %v7048
        %v7081 = vperm.slane %v2798, 1
        %v7082 = vmul.f32 %v6737, %v7081
        %v7083 = vmul.f32 %v6703, %v7081
        %v7084 = vmul.f32 %v6738, %v7081
        %v7085 = vmul.f32 %v6704, %v7081
        %v7086 = vmul.f32 %v6739, %v7081
        %v7087 = vmul.f32 %v6705, %v7081
        %v7088 = vmul.f32 %v6740, %v7081
        %v7089 = vmul.f32 %v6706, %v7081
        %v7090 = vmul.f32 %v6741, %v7081
        %v7091 = vmul.f32 %v6707, %v7081
        %v7092 = vmul.f32 %v6742, %v7081
        %v7093 = vmul.f32 %v6708, %v7081
        %v7094 = vmul.f32 %v6743, %v7081
        %v7095 = vmul.f32 %v6709, %v7081
        %v7096 = vmul.f32 %v6744, %v7081
        %v7097 = vmul.f32 %v6710, %v7081
        %v7098 = vmul.f32 %v6745, %v7081
        %v7099 = vmul.f32 %v6711, %v7081
        %v7100 = vmul.f32 %v6746, %v7081
        %v7101 = vmul.f32 %v6712, %v7081
        %v7102 = vmul.f32 %v6747, %v7081
        %v7103 = vmul.f32 %v6713, %v7081
        %v7104 = vmul.f32 %v6748, %v7081
        %v7105 = vmul.f32 %v6714, %v7081
        %v7106 = vmul.f32 %v6749, %v7081
        %v7107 = vmul.f32 %v6715, %v7081
        %v7108 = vmul.f32 %v6750, %v7081
        %v7109 = vmul.f32 %v6716, %v7081
        %v7110 = vmul.f32 %v6751, %v7081
        %v7111 = vmul.f32 %v6717, %v7081
        %v7112 = vmul.f32 %v6752, %v7081
        %v7113 = vmul.f32 %v6718, %v7081
        %v7114 = vadd.f32 %v7049, %v7082
        %v7115 = vadd.f32 %v7050, %v7083
        %v7116 = vadd.f32 %v7051, %v7084
        %v7117 = vadd.f32 %v7052, %v7085
        %v7118 = vadd.f32 %v7053, %v7086
        %v7119 = vadd.f32 %v7054, %v7087
        %v7120 = vadd.f32 %v7055, %v7088
        %v7121 = vadd.f32 %v7056, %v7089
        %v7122 = vadd.f32 %v7057, %v7090
        %v7123 = vadd.f32 %v7058, %v7091
        %v7124 = vadd.f32 %v7059, %v7092
        %v7125 = vadd.f32 %v7060, %v7093
        %v7126 = vadd.f32 %v7061, %v7094
        %v7127 = vadd.f32 %v7062, %v7095
        %v7128 = vadd.f32 %v7063, %v7096
        %v7129 = vadd.f32 %v7064, %v7097
        %v7130 = vadd.f32 %v7065, %v7098
        %v7131 = vadd.f32 %v7066, %v7099
        %v7132 = vadd.f32 %v7067, %v7100
        %v7133 = vadd.f32 %v7068, %v7101
        %v7134 = vadd.f32 %v7069, %v7102
        %v7135 = vadd.f32 %v7070, %v7103
        %v7136 = vadd.f32 %v7071, %v7104
        %v7137 = vadd.f32 %v7072, %v7105
        %v7138 = vadd.f32 %v7073, %v7106
        %v7139 = vadd.f32 %v7074, %v7107
        %v7140 = vadd.f32 %v7075, %v7108
        %v7141 = vadd.f32 %v7076, %v7109
        %v7142 = vadd.f32 %v7077, %v7110
        %v7143 = vadd.f32 %v7078, %v7111
        %v7144 = vadd.f32 %v7079, %v7112
        %v7145 = vadd.f32 %v7080, %v7113
        %v7146 = vperm.slane %v2799, 0
        %v7147 = vmul.f32 %v6740, %v7146
        %v7148 = vmul.f32 %v6706, %v7146
        %v7149 = vmul.f32 %v6741, %v7146
        %v7150 = vmul.f32 %v6707, %v7146
        %v7151 = vmul.f32 %v6742, %v7146
        %v7152 = vmul.f32 %v6708, %v7146
        %v7153 = vmul.f32 %v6743, %v7146
        %v7154 = vmul.f32 %v6709, %v7146
        %v7155 = vmul.f32 %v6744, %v7146
        %v7156 = vmul.f32 %v6710, %v7146
        %v7157 = vmul.f32 %v6745, %v7146
        %v7158 = vmul.f32 %v6711, %v7146
        %v7159 = vmul.f32 %v6746, %v7146
        %v7160 = vmul.f32 %v6712, %v7146
        %v7161 = vmul.f32 %v6747, %v7146
        %v7162 = vmul.f32 %v6713, %v7146
        %v7163 = vmul.f32 %v6748, %v7146
        %v7164 = vmul.f32 %v6714, %v7146
        %v7165 = vmul.f32 %v6749, %v7146
        %v7166 = vmul.f32 %v6715, %v7146
        %v7167 = vmul.f32 %v6750, %v7146
        %v7168 = vmul.f32 %v6716, %v7146
        %v7169 = vmul.f32 %v6751, %v7146
        %v7170 = vmul.f32 %v6717, %v7146
        %v7171 = vmul.f32 %v6752, %v7146
        %v7172 = vmul.f32 %v6718, %v7146
        %v7173 = vmul.f32 %v6753, %v7146
        %v7174 = vmul.f32 %v6719, %v7146
        %v7175 = vmul.f32 %v6754, %v7146
        %v7176 = vmul.f32 %v6720, %v7146
        %v7177 = vmul.f32 %v6755, %v7146
        %v7178 = vmul.f32 %v6721, %v7146
        %v7179 = vadd.f32 %v7114, %v7147
        %v7180 = vadd.f32 %v7115, %v7148
        %v7181 = vadd.f32 %v7116, %v7149
        %v7182 = vadd.f32 %v7117, %v7150
        %v7183 = vadd.f32 %v7118, %v7151
        %v7184 = vadd.f32 %v7119, %v7152
        %v7185 = vadd.f32 %v7120, %v7153
        %v7186 = vadd.f32 %v7121, %v7154
        %v7187 = vadd.f32 %v7122, %v7155
        %v7188 = vadd.f32 %v7123, %v7156
        %v7189 = vadd.f32 %v7124, %v7157
        %v7190 = vadd.f32 %v7125, %v7158
        %v7191 = vadd.f32 %v7126, %v7159
        %v7192 = vadd.f32 %v7127, %v7160
        %v7193 = vadd.f32 %v7128, %v7161
        %v7194 = vadd.f32 %v7129, %v7162
        %v7195 = vadd.f32 %v7130, %v7163
        %v7196 = vadd.f32 %v7131, %v7164
        %v7197 = vadd.f32 %v7132, %v7165
        %v7198 = vadd.f32 %v7133, %v7166
        %v7199 = vadd.f32 %v7134, %v7167
        %v7200 = vadd.f32 %v7135, %v7168
        %v7201 = vadd.f32 %v7136, %v7169
        %v7202 = vadd.f32 %v7137, %v7170
        %v7203 = vadd.f32 %v7138, %v7171
        %v7204 = vadd.f32 %v7139, %v7172
        %v7205 = vadd.f32 %v7140, %v7173
        %v7206 = vadd.f32 %v7141, %v7174
        %v7207 = vadd.f32 %v7142, %v7175
        %v7208 = vadd.f32 %v7143, %v7176
        %v7209 = vadd.f32 %v7144, %v7177
        %v7210 = vadd.f32 %v7145, %v7178
        %v7211 = vld [vmem:[#allocation10] sm:$0xff]
        %v7212 = vld [vmem:[#allocation10 + $0x8] sm:$0xff]
        %v7213 = vld [vmem:[#allocation10 + $0x10] sm:$0xff]
        %v7214 = vld [vmem:[#allocation10 + $0x18] sm:$0xff]
        %v7215 = vld [vmem:[#allocation10 + $0x20] sm:$0xff]
        %v7216 = vld [vmem:[#allocation10 + $0x28] sm:$0xff]
        %v7217 = vld [vmem:[#allocation10 + $0x30] sm:$0xff]
        %v7218 = vld [vmem:[#allocation10 + $0x38] sm:$0xff]
        %v7219 = vld [vmem:[#allocation10 + $0x40] sm:$0xff]
        %v7220 = vld [vmem:[#allocation10 + $0x48] sm:$0xff]
        %v7221 = vld [vmem:[#allocation10 + $0x50] sm:$0xff]
        %v7222 = vld [vmem:[#allocation10 + $0x58] sm:$0xff]
        %v7223 = vld [vmem:[#allocation10 + $0x60] sm:$0xff]
        %v7224 = vld [vmem:[#allocation10 + $0x68] sm:$0xff]
        %v7225 = vld [vmem:[#allocation10 + $0x70] sm:$0xff]
        %v7226 = vld [vmem:[#allocation10 + $0x78] sm:$0xff]
        %v7227 = vld [vmem:[%s5] sm:$0x1]
        %v7229 = vperm.slane %v7227, 0
        %7231 = vmatpush.msra.mxu0 %v7226
        %7232 = vmatpush.msra.mxu0 %v7225
        %7233 = vmatpush.msra.mxu0 %v7224
        %7234 = vmatpush.msra.mxu0 %v7223
        %7235 = vmatpush.msra.mxu0 %v7222
        %7236 = vmatpush.msra.mxu0 %v7221
        %7237 = vmatpush.msra.mxu0 %v7220
        %7238 = vmatpush.msra.mxu0 %v7219
        %7239 = vmatpush.msra.mxu0 %v7218
        %7240 = vmatpush.msra.mxu0 %v7217
        %7241 = vmatpush.msra.mxu0 %v7216
        %7242 = vmatpush.msra.mxu0 %v7215
        %7243 = vmatpush.msra.mxu0 %v7214
        %7244 = vmatpush.msra.mxu0 %v7213
        %7245 = vmatpush.msra.mxu0 %v7212
        %7246 = vmatpush.msra.mxu0 %v7211
        %7247 = vmatmul.f32.gmra.mxu0 %v7179
        %v7248 = vpop.f32.mrf.mxu0
        %v7249 = vadd.f32 %v7229, %v7248
        %7250 = vmatmul.f32.gmra.mxu0 %v7180
        %v7251 = vpop.f32.mrf.mxu0
        %v7252 = vadd.f32 %v7229, %v7251
        %7253 = vmatmul.f32.gmra.mxu0 %v7181
        %v7254 = vpop.f32.mrf.mxu0
        %v7255 = vadd.f32 %v7229, %v7254
        %7256 = vmatmul.f32.gmra.mxu0 %v7182
        %v7257 = vpop.f32.mrf.mxu0
        %v7258 = vadd.f32 %v7229, %v7257
        %7259 = vmatmul.f32.gmra.mxu0 %v7183
        %v7260 = vpop.f32.mrf.mxu0
        %v7261 = vadd.f32 %v7229, %v7260
        %7262 = vmatmul.f32.gmra.mxu0 %v7184
        %v7263 = vpop.f32.mrf.mxu0
        %v7264 = vadd.f32 %v7229, %v7263
        %7265 = vmatmul.f32.gmra.mxu0 %v7185
        %v7266 = vpop.f32.mrf.mxu0
        %v7267 = vadd.f32 %v7229, %v7266
        %7268 = vmatmul.f32.gmra.mxu0 %v7186
        %v7269 = vpop.f32.mrf.mxu0
        %v7270 = vadd.f32 %v7229, %v7269
        %7271 = vmatmul.f32.gmra.mxu0 %v7187
        %v7272 = vpop.f32.mrf.mxu0
        %v7273 = vadd.f32 %v7229, %v7272
        %7274 = vmatmul.f32.gmra.mxu0 %v7188
        %v7275 = vpop.f32.mrf.mxu0
        %v7276 = vadd.f32 %v7229, %v7275
        %7277 = vmatmul.f32.gmra.mxu0 %v7189
        %v7278 = vpop.f32.mrf.mxu0
        %v7279 = vadd.f32 %v7229, %v7278
        %7280 = vmatmul.f32.gmra.mxu0 %v7190
        %v7281 = vpop.f32.mrf.mxu0
        %v7282 = vadd.f32 %v7229, %v7281
        %7283 = vmatmul.f32.gmra.mxu0 %v7191
        %v7284 = vpop.f32.mrf.mxu0
        %v7285 = vadd.f32 %v7229, %v7284
        %7286 = vmatmul.f32.gmra.mxu0 %v7192
        %v7287 = vpop.f32.mrf.mxu0
        %v7288 = vadd.f32 %v7229, %v7287
        %7289 = vmatmul.f32.gmra.mxu0 %v7193
        %v7290 = vpop.f32.mrf.mxu0
        %v7291 = vadd.f32 %v7229, %v7290
        %7292 = vmatmul.f32.gmra.mxu0 %v7194
        %v7293 = vpop.f32.mrf.mxu0
        %v7294 = vadd.f32 %v7229, %v7293
        %7295 = vmatmul.f32.gmra.mxu0 %v7195
        %v7296 = vpop.f32.mrf.mxu0
        %v7297 = vadd.f32 %v7229, %v7296
        %7298 = vmatmul.f32.gmra.mxu0 %v7196
        %v7299 = vpop.f32.mrf.mxu0
        %v7300 = vadd.f32 %v7229, %v7299
        %7301 = vmatmul.f32.gmra.mxu0 %v7197
        %v7302 = vpop.f32.mrf.mxu0
        %v7303 = vadd.f32 %v7229, %v7302
        %7304 = vmatmul.f32.gmra.mxu0 %v7198
        %v7305 = vpop.f32.mrf.mxu0
        %v7306 = vadd.f32 %v7229, %v7305
        %7307 = vmatmul.f32.gmra.mxu0 %v7199
        %v7308 = vpop.f32.mrf.mxu0
        %v7309 = vadd.f32 %v7229, %v7308
        %7310 = vmatmul.f32.gmra.mxu0 %v7200
        %v7311 = vpop.f32.mrf.mxu0
        %v7312 = vadd.f32 %v7229, %v7311
        %7313 = vmatmul.f32.gmra.mxu0 %v7201
        %v7314 = vpop.f32.mrf.mxu0
        %v7315 = vadd.f32 %v7229, %v7314
        %7316 = vmatmul.f32.gmra.mxu0 %v7202
        %v7317 = vpop.f32.mrf.mxu0
        %v7318 = vadd.f32 %v7229, %v7317
        %7319 = vmatmul.f32.gmra.mxu0 %v7203
        %v7320 = vpop.f32.mrf.mxu0
        %v7321 = vadd.f32 %v7229, %v7320
        %7322 = vmatmul.f32.gmra.mxu0 %v7204
        %v7323 = vpop.f32.mrf.mxu0
        %v7324 = vadd.f32 %v7229, %v7323
        %7325 = vmatmul.f32.gmra.mxu0 %v7205
        %v7326 = vpop.f32.mrf.mxu0
        %v7327 = vadd.f32 %v7229, %v7326
        %7328 = vmatmul.f32.gmra.mxu0 %v7206
        %v7329 = vpop.f32.mrf.mxu0
        %v7330 = vadd.f32 %v7229, %v7329
        %7331 = vmatmul.f32.gmra.mxu0 %v7207
        %v7332 = vpop.f32.mrf.mxu0
        %v7333 = vadd.f32 %v7229, %v7332
        %7334 = vmatmul.f32.gmra.mxu0 %v7208
        %v7335 = vpop.f32.mrf.mxu0
        %v7336 = vadd.f32 %v7229, %v7335
        %7337 = vmatmul.f32.gmra.mxu0 %v7209
        %v7338 = vpop.f32.mrf.mxu0
        %v7339 = vadd.f32 %v7229, %v7338
        %7340 = vmatmul.f32.gmra.mxu0 %v7210
        %v7341 = vpop.f32.mrf.mxu0
        %v7342 = vadd.f32 %v7229, %v7341
        %7343 = vdwg.mxu0
        %v7344 = vld [vmem:[%s277] sm:$0xff]
        %v7345 = vld [vmem:[%s277 + $0x8] sm:$0xff]
        %v7346 = vld [vmem:[%s277 + $0x10] sm:$0xff]
        %v7347 = vld [vmem:[%s277 + $0x18] sm:$0xff]
        %v7348 = vld [vmem:[%s277 + $0x20] sm:$0xff]
        %v7349 = vld [vmem:[%s277 + $0x28] sm:$0xff]
        %v7350 = vld [vmem:[%s277 + $0x30] sm:$0xff]
        %v7351 = vld [vmem:[%s277 + $0x38] sm:$0xff]
        %v7352 = vld [vmem:[%s277 + $0x40] sm:$0xff]
        %v7353 = vld [vmem:[%s277 + $0x48] sm:$0xff]
        %v7354 = vld [vmem:[%s277 + $0x50] sm:$0xff]
        %v7355 = vld [vmem:[%s277 + $0x58] sm:$0xff]
        %v7356 = vld [vmem:[%s277 + $0x60] sm:$0xff]
        %v7357 = vld [vmem:[%s277 + $0x68] sm:$0xff]
        %v7358 = vld [vmem:[%s277 + $0x70] sm:$0xff]
        %v7359 = vld [vmem:[%s277 + $0x78] sm:$0xff]
        %v7360 = vld [vmem:[%s277 + $0x80] sm:$0xff]
        %v7361 = vld [vmem:[%s277 + $0x88] sm:$0xff]
        %v7362 = vld [vmem:[%s277 + $0x90] sm:$0xff]
        %v7363 = vld [vmem:[%s277 + $0x98] sm:$0xff]
        %v7364 = vld [vmem:[%s277 + $0xa0] sm:$0xff]
        %v7365 = vld [vmem:[%s277 + $0xa8] sm:$0xff]
        %v7366 = vld [vmem:[%s277 + $0xb0] sm:$0xff]
        %v7367 = vld [vmem:[%s277 + $0xb8] sm:$0xff]
        %v7368 = vld [vmem:[%s277 + $0xc0] sm:$0xff]
        %v7369 = vld [vmem:[%s277 + $0xc8] sm:$0xff]
        %v7370 = vld [vmem:[%s277 + $0xd0] sm:$0xff]
        %v7371 = vld [vmem:[%s277 + $0xd8] sm:$0xff]
        %v7372 = vld [vmem:[%s277 + $0xe0] sm:$0xff]
        %v7373 = vld [vmem:[%s277 + $0xe8] sm:$0xff]
        %v7374 = vld [vmem:[%s277 + $0xf0] sm:$0xff]
        %v7375 = vld [vmem:[%s277 + $0xf8] sm:$0xff]
        %v7376 = vmul.f32 %v7249, %v7344
        %v7377 = vmul.f32 %v7252, %v7345
        %v7378 = vmul.f32 %v7255, %v7346
        %v7379 = vmul.f32 %v7258, %v7347
        %v7380 = vmul.f32 %v7261, %v7348
        %v7381 = vmul.f32 %v7264, %v7349
        %v7382 = vmul.f32 %v7267, %v7350
        %v7383 = vmul.f32 %v7270, %v7351
        %v7384 = vmul.f32 %v7273, %v7352
        %v7385 = vmul.f32 %v7276, %v7353
        %v7386 = vmul.f32 %v7279, %v7354
        %v7387 = vmul.f32 %v7282, %v7355
        %v7388 = vmul.f32 %v7285, %v7356
        %v7389 = vmul.f32 %v7288, %v7357
        %v7390 = vmul.f32 %v7291, %v7358
        %v7391 = vmul.f32 %v7294, %v7359
        %v7392 = vmul.f32 %v7297, %v7360
        %v7393 = vmul.f32 %v7300, %v7361
        %v7394 = vmul.f32 %v7303, %v7362
        %v7395 = vmul.f32 %v7306, %v7363
        %v7396 = vmul.f32 %v7309, %v7364
        %v7397 = vmul.f32 %v7312, %v7365
        %v7398 = vmul.f32 %v7315, %v7366
        %v7399 = vmul.f32 %v7318, %v7367
        %v7400 = vmul.f32 %v7321, %v7368
        %v7401 = vmul.f32 %v7324, %v7369
        %v7402 = vmul.f32 %v7327, %v7370
        %v7403 = vmul.f32 %v7330, %v7371
        %v7404 = vmul.f32 %v7333, %v7372
        %v7405 = vmul.f32 %v7336, %v7373
        %v7406 = vmul.f32 %v7339, %v7374
        %v7407 = vmul.f32 %v7342, %v7375
        %7408 = vst [vmem:[%s321] sm:$0xff] %v7376
        %7409 = vst [vmem:[%s321 + $0x8] sm:$0xff] %v7377
        %7410 = vst [vmem:[%s321 + $0x10] sm:$0xff] %v7378
        %7411 = vst [vmem:[%s321 + $0x18] sm:$0xff] %v7379
        %7412 = vst [vmem:[%s321 + $0x20] sm:$0xff] %v7380
        %7413 = vst [vmem:[%s321 + $0x28] sm:$0xff] %v7381
        %7414 = vst [vmem:[%s321 + $0x30] sm:$0xff] %v7382
        %7415 = vst [vmem:[%s321 + $0x38] sm:$0xff] %v7383
        %7416 = vst [vmem:[%s321 + $0x40] sm:$0xff] %v7384
        %7417 = vst [vmem:[%s321 + $0x48] sm:$0xff] %v7385
        %7418 = vst [vmem:[%s321 + $0x50] sm:$0xff] %v7386
        %7419 = vst [vmem:[%s321 + $0x58] sm:$0xff] %v7387
        %7420 = vst [vmem:[%s321 + $0x60] sm:$0xff] %v7388
        %7421 = vst [vmem:[%s321 + $0x68] sm:$0xff] %v7389
        %7422 = vst [vmem:[%s321 + $0x70] sm:$0xff] %v7390
        %7423 = vst [vmem:[%s321 + $0x78] sm:$0xff] %v7391
        %7424 = vst [vmem:[%s321 + $0x80] sm:$0xff] %v7392
        %7425 = vst [vmem:[%s321 + $0x88] sm:$0xff] %v7393
        %7426 = vst [vmem:[%s321 + $0x90] sm:$0xff] %v7394
        %7427 = vst [vmem:[%s321 + $0x98] sm:$0xff] %v7395
        %7428 = vst [vmem:[%s321 + $0xa0] sm:$0xff] %v7396
        %7429 = vst [vmem:[%s321 + $0xa8] sm:$0xff] %v7397
        %7430 = vst [vmem:[%s321 + $0xb0] sm:$0xff] %v7398
        %7431 = vst [vmem:[%s321 + $0xb8] sm:$0xff] %v7399
        %7432 = vst [vmem:[%s321 + $0xc0] sm:$0xff] %v7400
        %7433 = vst [vmem:[%s321 + $0xc8] sm:$0xff] %v7401
        %7434 = vst [vmem:[%s321 + $0xd0] sm:$0xff] %v7402
        %7435 = vst [vmem:[%s321 + $0xd8] sm:$0xff] %v7403
        %7436 = vst [vmem:[%s321 + $0xe0] sm:$0xff] %v7404
        %7437 = vst [vmem:[%s321 + $0xe8] sm:$0xff] %v7405
        %7438 = vst [vmem:[%s321 + $0xf0] sm:$0xff] %v7406
        %7439 = vst [vmem:[%s321 + $0xf8] sm:$0xff] %v7407
        %s7440 = sand.u32 %s164, 1
        %s7441 = scalar_lea.sflag [#allocation6], %s7440
        %s7442 = sand.u32 %s164, 1
        %s7443 = smul.addr %s7442, 256
        %s7444 = scalar_lea.vmem [#allocation12], %s7443
        // Predicated region
        $region61: #{tpu_custom_call.1} parent=43 // pred_check
          %p7445 = pneg %p174
        $region62: #{tpu_custom_call.1} parent=43 // pred_check_branch
          %7447 = sbr.rel (%p7445) target = $region64
        $region63: #{tpu_custom_call.1} parent=43 // pred_region
          %7449 = vsyncadd %s7441, 0
          %s7450 = smul.addr %s25, 32
          %s7451 = smul.addr %s7450, 8
          %s7452 = scalar_lea.hbm %s6, %s7451
          %s7453 = sshll.u32 %s7444, 4
          %s7454 = int_to_ptr.vmem [resolvable:$true] %s7453
          %s7455 = sshll.u32 %s7452, 4
          %s7456 = int_to_ptr.hbm [resolvable:$true] %s7455
          %7461 = dma.vmem_to_hbm [thread:$0]  %s7454, 4096, %s7456, %s7441, 128, 128, 8
        $region64: #{tpu_custom_call.1} parent=43 // pred_fallthru
          _
      $region44: #{tpu_custom_call.1} parent=5 // pred_fallthru
        _
      %p7462 = scmp.le.s32.totalorder 2, %s20
      // Predicated region
      $region65: #{tpu_custom_call.1} parent=5 // pred_check
        %p7463 = pneg %p7462
      $region66: #{tpu_custom_call.1} parent=5 // pred_check_branch
        %7465 = sbr.rel (%p7463) target = $region68
      $region67: #{tpu_custom_call.1} parent=5 // pred_region
        %s7466 = ssub.s32 %s20, 2
        // Predicated region
        $region69: #{tpu_custom_call.1} parent=67 // pred_check
          %p7467 = pneg %p180
        $region70: #{tpu_custom_call.1} parent=67 // pred_check_branch
          %7469 = sbr.rel (%p7467) target = $region72
        $region71: #{tpu_custom_call.1} parent=67 // pred_region
          %s7470 = sand.u32 %s165, 1
          %s7471 = scalar_lea.sflag [#allocation6], %s7470
          %s7472 = sand.u32 %s165, 1
          %s7473 = smul.addr %s7472, 256
          %s7474 = scalar_lea.vmem [#allocation12], %s7473
          %7476 = dma.done %s7471, 4096
        $region72: #{tpu_custom_call.1} parent=67 // pred_fallthru
          _
      $region68: #{tpu_custom_call.1} parent=5 // pred_fallthru
        _
    $region6: #{tpu_custom_call.1} parent=1 // loop_footer
      %s24 = sadd.s32 1, %s20
    $region7: #{tpu_custom_call.1} parent=1 // loop_footer_branch
      %19 = sbr.rel target = $region3
    $region8: #{tpu_custom_call.1} parent=1 // loop_exit
      _
    %7477 = vsyncpa [#allocation5], 1
    %s7478 = scalar_lea.sflag [#allocation5], 1
    %7479 = vsyncpa %s7478, 1
    %7480 = vsyncpa [#allocation8], 1
    %7481 = vsyncpa [#allocation11], 1
    %7482 = vsyncpa [#allocation6], 1
    %s7483 = scalar_lea.sflag [#allocation6], 1
    %7484 = vsyncpa %s7483, 1

</llo_original>
